<compile_context>
chip_gen: v5e
topology: v5e:2x2
jax: 0.10.0
libtpu: 0.0.40
codegen_flags: <defaults>
</compile_context>

<pallas_src>
import jax
import jax.numpy as jnp
from jax import lax
from jax.experimental import pallas as pl
from jax.experimental.pallas import tpu as pltpu

# ---- model config (matches the PyTorch module constants) -------------------
N_EMBEDS   = 384
N_HEADS    = 6
HEAD_SIZE  = N_EMBEDS // N_HEADS          # Block() uses n_embeds // n_heads = 64
N_LAYER    = 6
BLOCK_SIZE = 56
VOCAB_SIZE = 65                           # synthetic vocabulary (len(chars))
VOCAB_PAD  = 256                          # lane-dense + fills 256-wide MXU output
LN_EPS     = 1e-5
# dropout = 0.2 in training; forward here is eval-mode, so dropout == identity.


def _normalize(x):
    """LayerNorm without affine (gamma/beta folded into downstream weights)."""
    mu = jnp.mean(x, axis=-1, keepdims=True)
    var = jnp.mean(jnp.square(x - mu), axis=-1, keepdims=True)
    return (x - mu) * lax.rsqrt(var + LN_EPS)


def _layernorm(x, gamma, beta):
    mu = jnp.mean(x, axis=-1, keepdims=True)
    var = jnp.mean(jnp.square(x - mu), axis=-1, keepdims=True)
    return (x - mu) * lax.rsqrt(var + LN_EPS) * gamma + beta


# ---------------------------- Pallas kernel ---------------------------------
def transformer_kernel(x_ref, wqkv_ref, bqkv_ref, wproj_ref, bproj_ref,
                       w1_ref, b1_ref, w2_ref, b2_ref, wout_ref, bout_ref,
                       logits_ref, res_ref):
    """One grid step = one layer of one batch-row block.

    Grid = (batch_blocks, N_LAYER); layer axis innermost + 'arbitrary'.
    res_ref (VMEM scratch) holds the f32 residual stream across layers; only
    the lane-padded logits are written to HBM (at the last layer step).
    """
    l = pl.program_id(1)

    # Layer 0: seed the residual stream from the embedded input.
    @pl.when(l == 0)
    def _():
        res_ref[...] = x_ref[...]

    x = res_ref[...]                                   # (Bb, T, C) f32
    Bb, T, C = x.shape
    x2 = x.reshape(Bb * T, C)

    # ---- LN1 (affine folded into Wqkv/bqkv) + fused QKV projection ----
    h = _normalize(x2).astype(jnp.bfloat16)
    qkv = jnp.dot(h, wqkv_ref[0], preferred_element_type=jnp.float32) + bqkv_ref[0]
    qkv = qkv.reshape(Bb, T, 3 * C).astype(jnp.bfloat16)

    # ---- multi-head causal self-attention (softmax math in f32) ----
    row = lax.broadcasted_iota(jnp.int32, (T, T), 0)
    col = lax.broadcasted_iota(jnp.int32, (T, T), 1)
    causal = col <= row                                # built once, reused per head
    scale = C ** -0.5                                  # reference uses n_embeds**-0.5

    head_outs = []
    for hi in range(N_HEADS):
        lo = hi * HEAD_SIZE
        qh = qkv[:, :, 0 * C + lo: 0 * C + lo + HEAD_SIZE]
        kh = qkv[:, :, 1 * C + lo: 1 * C + lo + HEAD_SIZE]
        vh = qkv[:, :, 2 * C + lo: 2 * C + lo + HEAD_SIZE]
        wei = jnp.einsum('btd,bsd->bts', qh, kh,
                         preferred_element_type=jnp.float32) * scale
        wei = jnp.where(causal, wei, -1e30)            # large-negative finite mask
        wei = wei - jnp.max(wei, axis=-1, keepdims=True)
        p = jnp.exp(wei)
        p = p * pl.reciprocal(jnp.sum(p, axis=-1, keepdims=True), approx=True)
        head_outs.append(jnp.einsum('bts,bsd->btd', p.astype(jnp.bfloat16), vh,
                                    preferred_element_type=jnp.float32))
    attn = jnp.concatenate(head_outs, axis=-1)         # (Bb, T, C) f32
    attn2 = attn.reshape(Bb * T, C).astype(jnp.bfloat16)

    proj = jnp.dot(attn2, wproj_ref[0],
                   preferred_element_type=jnp.float32) + bproj_ref[0]
    x_sa = x2 + proj                                   # residual 1 (f32)

    # ---- LN2 (affine folded into W1/b1) + FeedForward ----
    h2 = _normalize(x_sa).astype(jnp.bfloat16)
    ff = jnp.dot(h2, w1_ref[0], preferred_element_type=jnp.float32) + b1_ref[0]
    ff = jnp.maximum(ff, 0.0).astype(jnp.bfloat16)
    ff = jnp.dot(ff, w2_ref[0], preferred_element_type=jnp.float32) + b2_ref[0]

    x_out = x_sa + ff                                  # residual 2 (f32)
    res_ref[...] = x_out.reshape(Bb, T, C)

    # ---- fused LM head on the last layer step (ln_f folded into W_out/b_out) ----
    @pl.when(l == N_LAYER - 1)
    def _():
        hf = _normalize(x_out).astype(jnp.bfloat16)
        y = jnp.dot(hf, wout_ref[...],
                    preferred_element_type=jnp.float32) + bout_ref[...]
        logits_ref[...] = y.reshape(Bb, T, VOCAB_PAD)


# ---------------------------- wrappers ---------------------------------------
def _pick_bb(B):
    # Largest batch block (<=16) that divides B: maximizes tokens per streamed
    # weight byte; B//Bb == 1 for small batches so weights are fetched once.
    for bb in (16, 8, 4, 2, 1):
        if bb <= B and B % bb == 0:
            return bb
    return 1


def _fold_ln(gamma, beta, w, b=None):
    """Fold a LayerNorm affine into the downstream linear: W'=diag(g)W, b'=b+beta@W."""
    w32 = w.astype(jnp.float32)                               # (L, C, D)
    w_f = (gamma[:, 0, :, None] * w32).astype(w.dtype)        # scale rows by gamma
    b_f = jnp.einsum('lc,lcd->ld', beta[:, 0, :], w32)[:, None, :]
    if b is not None:
        b_f = b_f + b
    return w_f, b_f


def transformer_forward(tokens, params):
    """Equivalent of TransformerModel.forward(x, targets=None) -> logits."""
    B, T = tokens.shape
    C, H4 = N_EMBEDS, 4 * N_EMBEDS
    Vp = params['w_out'].shape[1]

    # embedding gather + positional add: plain JAX glue (no Pallas win for a gather)
    x = params['tok_emb'][tokens] + params['pos_emb'][:T][None, :, :]   # (B, T, C) f32

    # Fold LayerNorm affines into the downstream matmuls (exact math rewrite).
    wqkv, bqkv = _fold_ln(params['ln1_g'], params['ln1_b'], params['wqkv'])
    w1, b1 = _fold_ln(params['ln2_g'], params['ln2_b'], params['w1'], params['b1'])
    w_out32 = params['w_out'].astype(jnp.float32)
    w_out = (params['ln_f_g'][0][:, None] * w_out32).astype(jnp.bfloat16)
    b_out = params['b_out'] + params['ln_f_b'] @ w_out32

    Bb = _pick_bb(B)
    xmap = lambda b, l: (b, 0, 0)       # per-batch-block, layer-invariant
    lmap = lambda b, l: (l, 0, 0)       # per-layer streamed weights
    cmap = lambda b, l: (0, 0)          # resident LM-head weights

    logits = pl.pallas_call(
        transformer_kernel,
        out_shape=jax.ShapeDtypeStruct((B, T, Vp), jnp.float32),
        grid=(B // Bb, N_LAYER),
        in_specs=[
            pl.BlockSpec((Bb, T, C), xmap),                   # embedded input (layer-0 seed)
            pl.BlockSpec((1, C, 3 * C), lmap),                # Wqkv   (ln1 folded)
            pl.BlockSpec((1, 1, 3 * C), lmap),                # bqkv   (= beta1 @ Wqkv)
            pl.BlockSpec((1, C, C), lmap),                    # Wproj
            pl.BlockSpec((1, 1, C), lmap),                    # bproj
            pl.BlockSpec((1, C, H4), lmap),                   # W1     (ln2 folded)
            pl.BlockSpec((1, 1, H4), lmap),                   # b1
            pl.BlockSpec((1, H4, C), lmap),                   # W2
            pl.BlockSpec((1, 1, C), lmap),                    # b2
            pl.BlockSpec((C, Vp), cmap),                      # W_out  (ln_f folded)
            pl.BlockSpec((1, Vp), cmap),                      # b_out
        ],
        out_specs=pl.BlockSpec((Bb, T, Vp), xmap),            # lane-dense logits
        scratch_shapes=[pltpu.VMEM((Bb, T, C), jnp.float32)], # resident residual stream
        compiler_params=pltpu.CompilerParams(
            dimension_semantics=("parallel", "arbitrary"),
            vmem_limit_bytes=48 * 1024 * 1024),               # safe on v7x 64 MiB VMEM
    )(x, wqkv, bqkv, params['wproj'], params['bproj'],
      w1, b1, params['w2'], params['b2'], w_out, b_out)

    return logits[:, :, :VOCAB_SIZE]
    # TODO(synk): cross-entropy loss path (targets != None) and generate() are
    # not implemented; the reference returns (logits, None) when targets is None.


# ---------------------------- pure-JAX reference ------------------------------
def reference_forward(tokens, params):
    """Same math (bf16 weights, f32 accumulation, explicit LayerNorm affines)."""
    B, T = tokens.shape
    C = N_EMBEDS
    x = params['tok_emb'][tokens] + params['pos_emb'][:T][None]
    mask = jnp.tril(jnp.ones((T, T), dtype=bool))
    scale = C ** -0.5
    for l in range(N_LAYER):
        h = _layernorm(x, params['ln1_g'][l], params['ln1_b'][l]).astype(jnp.bfloat16)
        qkv = jnp.einsum('btc,cd->btd', h, params['wqkv'][l],
                         preferred_element_type=jnp.float32).astype(jnp.bfloat16)
        outs = []
        for hi in range(N_HEADS):
            lo = hi * HEAD_SIZE
            qh = qkv[..., 0 * C + lo: 0 * C + lo + HEAD_SIZE]
            kh = qkv[..., 1 * C + lo: 1 * C + lo + HEAD_SIZE]
            vh = qkv[..., 2 * C + lo: 2 * C + lo + HEAD_SIZE]
            wei = jnp.einsum('btd,bsd->bts', qh, kh,
                             preferred_element_type=jnp.float32) * scale
            wei = jnp.where(mask, wei, -jnp.inf)
            p = jax.nn.softmax(wei, axis=-1)
            outs.append(jnp.einsum('bts,bsd->btd', p.astype(jnp.bfloat16), vh,
                                   preferred_element_type=jnp.float32))
        attn = jnp.concatenate(outs, axis=-1).astype(jnp.bfloat16)
        x = x + (jnp.einsum('btc,cd->btd', attn, params['wproj'][l],
                            preferred_element_type=jnp.float32) + params['bproj'][l])
        h2 = _layernorm(x, params['ln2_g'][l], params['ln2_b'][l]).astype(jnp.bfloat16)
        ff = jnp.einsum('btc,ch->bth', h2, params['w1'][l],
                        preferred_element_type=jnp.float32) + params['b1'][l]
        ff = jnp.maximum(ff, 0.0).astype(jnp.bfloat16)
        x = x + (jnp.einsum('bth,hc->btc', ff, params['w2'][l],
                            preferred_element_type=jnp.float32) + params['b2'][l])
    hf = _layernorm(x, params['ln_f_g'], params['ln_f_b']).astype(jnp.bfloat16)
    logits = jnp.einsum('btc,cv->btv', hf, params['w_out'],
                        preferred_element_type=jnp.float32) + params['b_out']
    return logits[..., :VOCAB_SIZE]


# ---------------------------- parameter init ----------------------------------
def init_params(key):
    keys = jax.random.split(key, 8)
    C, H4, L = N_EMBEDS, 4 * N_EMBEDS, N_LAYER

    def w(k, shape, dtype=jnp.bfloat16, scale=0.02):
        return (jax.random.normal(k, shape, jnp.float32) * scale).astype(dtype)

    w_out = jnp.zeros((C, VOCAB_PAD), jnp.bfloat16)
    w_out = w_out.at[:, :VOCAB_SIZE].set(w(keys[6], (C, VOCAB_SIZE)))

    return {
        'tok_emb': w(keys[0], (VOCAB_SIZE, C), dtype=jnp.float32),
        'pos_emb': w(keys[1], (BLOCK_SIZE, C), dtype=jnp.float32),
        # per-layer params stacked along a leading [N_LAYER] axis
        'ln1_g': jnp.ones((L, 1, C), jnp.float32),
        'ln1_b': jnp.zeros((L, 1, C), jnp.float32),
        'wqkv': w(keys[2], (L, C, 3 * C)),             # fused Wq|Wk|Wv, bf16
        'wproj': w(keys[3], (L, C, C)),
        'bproj': jnp.zeros((L, 1, C), jnp.float32),
        'ln2_g': jnp.ones((L, 1, C), jnp.float32),
        'ln2_b': jnp.zeros((L, 1, C), jnp.float32),
        'w1': w(keys[4], (L, C, H4)),
        'b1': jnp.zeros((L, 1, H4), jnp.float32),
        'w2': w(keys[5], (L, H4, C)),
        'b2': jnp.zeros((L, 1, C), jnp.float32),
        # final LN + lane-padded vocab head
        'ln_f_g': jnp.ones((1, C), jnp.float32),
        'ln_f_b': jnp.zeros((1, C), jnp.float32),
        'w_out': w_out,
        'b_out': jnp.zeros((1, VOCAB_PAD), jnp.float32),
    }


# ---------------------------- main --------------------------------------------
if __name__ == "__main__":
    key = jax.random.PRNGKey(0)
    pkey, tkey1, tkey2 = jax.random.split(key, 3)
    params = init_params(pkey)

    # Small case: B=2, T=8 (T <= block_size)
    B, T = 2, 8
    tokens = jax.random.randint(tkey1, (B, T), 0, VOCAB_SIZE, dtype=jnp.int32)
    logits = jax.block_until_ready(transformer_forward(tokens, params))
    assert logits.shape == (B, T, VOCAB_SIZE)
    ref = jax.block_until_ready(reference_forward(tokens, params))
    err = float(jnp.max(jnp.abs(logits - ref)))
    assert jnp.allclose(logits, ref, rtol=2e-2, atol=2e-2), err

    # Full-context case: B=4, T=block_size=56
    B2, T2 = 4, BLOCK_SIZE
    tokens2 = jax.random.randint(tkey2, (B2, T2), 0, VOCAB_SIZE, dtype=jnp.int32)
    logits2 = jax.block_until_ready(transformer_forward(tokens2, params))
    assert logits2.shape == (B2, T2, VOCAB_SIZE)
    ref2 = jax.block_until_ready(reference_forward(tokens2, params))
    err2 = float(jnp.max(jnp.abs(logits2 - ref2)))
    assert jnp.allclose(logits2, ref2, rtol=2e-2, atol=2e-2), err2

    print("KERNEL_OK")
</pallas_src>

<mosaic_0001>
module attributes {stable_mosaic.version = 11 : i64} {
  func.func @transformer_kernel(%arg0: i32, %arg1: i32, %arg2: memref<2x8x384xf32, #tpu.memory_space<vmem>>, %arg3: memref<1x384x1152xbf16, #tpu.memory_space<vmem>>, %arg4: memref<1x1x1152xf32, #tpu.memory_space<vmem>>, %arg5: memref<1x384x384xbf16, #tpu.memory_space<vmem>>, %arg6: memref<1x1x384xf32, #tpu.memory_space<vmem>>, %arg7: memref<1x384x1536xbf16, #tpu.memory_space<vmem>>, %arg8: memref<1x1x1536xf32, #tpu.memory_space<vmem>>, %arg9: memref<1x1536x384xbf16, #tpu.memory_space<vmem>>, %arg10: memref<1x1x384xf32, #tpu.memory_space<vmem>>, %arg11: memref<384x256xbf16, #tpu.memory_space<vmem>>, %arg12: memref<1x256xf32, #tpu.memory_space<vmem>>, %arg13: memref<2x8x256xf32, #tpu.memory_space<vmem>>, %arg14: memref<2x8x384xf32, #tpu.memory_space<vmem>>) attributes {dimension_semantics = [#tpu.dimension_semantics<parallel>, #tpu.dimension_semantics<arbitrary>], iteration_bounds = array<i64: 1, 6>, scalar_prefetch = 0 : i64, scratch_operands = 1 : i64, tpu.core_type = #tpu.core_type<tc>, window_params = [{transform_indices = @transform_0, window_bounds = array<i64: 2, 8, 384>}, {transform_indices = @transform_1, window_bounds = array<i64: 1, 384, 1152>}, {transform_indices = @transform_2, window_bounds = array<i64: 1, 1, 1152>}, {transform_indices = @transform_3, window_bounds = array<i64: 1, 384, 384>}, {transform_indices = @transform_4, window_bounds = array<i64: 1, 1, 384>}, {transform_indices = @transform_5, window_bounds = array<i64: 1, 384, 1536>}, {transform_indices = @transform_6, window_bounds = array<i64: 1, 1, 1536>}, {transform_indices = @transform_7, window_bounds = array<i64: 1, 1536, 384>}, {transform_indices = @transform_8, window_bounds = array<i64: 1, 1, 384>}, {pipeline_mode = #tpu.pipeline_mode<synchronous>, transform_indices = @transform_9, window_bounds = array<i64: 384, 256>}, {pipeline_mode = #tpu.pipeline_mode<synchronous>, transform_indices = @transform_10, window_bounds = array<i64: 1, 256>}, {transform_indices = @transform_11, window_bounds = array<i64: 2, 8, 256>}]} {
    %c0_i32 = arith.constant 0 : i32
    %0 = arith.cmpi eq, %arg1, %c0_i32 : i32
    %1 = arith.extui %0 : i1 to i32
    %c0_i32_0 = arith.constant 0 : i32
    %2 = arith.cmpi ne, %1, %c0_i32_0 : i32
    scf.if %2 {
      %c0_81 = arith.constant 0 : index
      %c0_82 = arith.constant 0 : index
      %c0_83 = arith.constant 0 : index
      %221 = vector.load %arg2[%c0_81, %c0_82, %c0_83] : memref<2x8x384xf32, #tpu.memory_space<vmem>>, vector<2x8x384xf32>
      %c0_84 = arith.constant 0 : index
      %c0_85 = arith.constant 0 : index
      %c0_86 = arith.constant 0 : index
      %222 = vector.load %arg14[%c0_84, %c0_85, %c0_86] : memref<2x8x384xf32, #tpu.memory_space<vmem>>, vector<2x8x384xf32>
      tpu.vector_store %arg14[%c0_84, %c0_85, %c0_86], %221 {strides = array<i32>} : memref<2x8x384xf32, #tpu.memory_space<vmem>>, vector<2x8x384xf32>,
    } else {
    }
    %c0 = arith.constant 0 : index
    %c0_1 = arith.constant 0 : index
    %c0_2 = arith.constant 0 : index
    %3 = vector.load %arg14[%c0, %c0_1, %c0_2] : memref<2x8x384xf32, #tpu.memory_space<vmem>>, vector<2x8x384xf32>
    %4 = vector.shape_cast %3 : vector<2x8x384xf32> to vector<16x384xf32>
    %cst = arith.constant dense<0.000000e+00> : vector<16xf32>
    %5 = vector.multi_reduction <add>, %4, %cst [1] : vector<16x384xf32> to vector<16xf32>
    %6 = vector.shape_cast %5 : vector<16xf32> to vector<16x1xf32>
    %cst_3 = arith.constant 3.840000e+02 : f32
    %7 = vector.broadcast %cst_3 : f32 to vector<16x1xf32>
    %8 = arith.divf %6, %7 : vector<16x1xf32>
    %9 = vector.broadcast %8 : vector<16x1xf32> to vector<16x384xf32>
    %10 = arith.subf %4, %9 : vector<16x384xf32>
    %11 = arith.mulf %10, %10 : vector<16x384xf32>
    %cst_4 = arith.constant dense<0.000000e+00> : vector<16xf32>
    %12 = vector.multi_reduction <add>, %11, %cst_4 [1] : vector<16x384xf32> to vector<16xf32>
    %13 = vector.shape_cast %12 : vector<16xf32> to vector<16x1xf32>
    %cst_5 = arith.constant 3.840000e+02 : f32
    %14 = vector.broadcast %cst_5 : f32 to vector<16x1xf32>
    %15 = arith.divf %13, %14 : vector<16x1xf32>
    %16 = vector.broadcast %8 : vector<16x1xf32> to vector<16x384xf32>
    %17 = arith.subf %4, %16 : vector<16x384xf32>
    %cst_6 = arith.constant 9.99999974E-6 : f32
    %18 = vector.broadcast %cst_6 : f32 to vector<16x1xf32>
    %19 = arith.addf %15, %18 : vector<16x1xf32>
    %20 = math.rsqrt %19 : vector<16x1xf32>
    %21 = vector.broadcast %20 : vector<16x1xf32> to vector<16x384xf32>
    %22 = arith.mulf %17, %21 : vector<16x384xf32>
    %23 = arith.truncf %22 : vector<16x384xf32> to vector<16x384xbf16>
    %c0_7 = arith.constant 0 : index
    %c0_8 = arith.constant 0 : index
    %c0_9 = arith.constant 0 : index
    %24 = vector.load %arg3[%c0_7, %c0_8, %c0_9] : memref<1x384x1152xbf16, #tpu.memory_space<vmem>>, vector<1x384x1152xbf16>
    %25 = vector.shape_cast %24 : vector<1x384x1152xbf16> to vector<384x1152xbf16>
    %cst_10 = arith.constant dense<0.000000e+00> : vector<16x1152xf32>
    %26 = tpu.matmul %23, %25, %cst_10 {dimension_numbers = #tpu.dot_dimension_numbers<[1], [0], [0], [1], [0, 0, 1, 1], [], []>} : vector<16x384xbf16>, vector<384x1152xbf16>, vector<16x1152xf32> -> vector<16x1152xf32>
    %c0_11 = arith.constant 0 : index
    %c0_12 = arith.constant 0 : index
    %c0_13 = arith.constant 0 : index
    %27 = vector.load %arg4[%c0_11, %c0_12, %c0_13] : memref<1x1x1152xf32, #tpu.memory_space<vmem>>, vector<1x1x1152xf32>
    %28 = vector.shape_cast %27 : vector<1x1x1152xf32> to vector<1x1152xf32>
    %29 = vector.broadcast %28 : vector<1x1152xf32> to vector<16x1152xf32>
    %30 = arith.addf %26, %29 : vector<16x1152xf32>
    %31 = vector.shape_cast %30 : vector<16x1152xf32> to vector<2x8x1152xf32>
    %32 = arith.truncf %31 : vector<2x8x1152xf32> to vector<2x8x1152xbf16>
    %33 = tpu.iota {dimensions = array<i32: 0>} : vector<8x8xi32>
    %34 = tpu.iota {dimensions = array<i32: 1>} : vector<8x8xi32>
    %35 = arith.cmpi sle, %34, %33 : vector<8x8xi32>
    %36 = vector.extract_strided_slice %32 {offsets = [0, 0, 0], sizes = [2, 8, 64], strides = [1, 1, 1]} : vector<2x8x1152xbf16> to vector<2x8x64xbf16>
    %37 = vector.extract_strided_slice %32 {offsets = [0, 0, 384], sizes = [2, 8, 64], strides = [1, 1, 1]} : vector<2x8x1152xbf16> to vector<2x8x64xbf16>
    %38 = vector.extract_strided_slice %32 {offsets = [0, 0, 768], sizes = [2, 8, 64], strides = [1, 1, 1]} : vector<2x8x1152xbf16> to vector<2x8x64xbf16>
    "tpu.trace_start"() <{level = 10 : i32, message = "btd,bsd->bts"}> : () -> ()
    %cst_14 = arith.constant dense<0.000000e+00> : vector<2x8x8xf32>
    %39 = tpu.matmul %36, %37, %cst_14 {dimension_numbers = #tpu.dot_dimension_numbers<[2], [2], [1], [1], [0, 0, 0, 1, 1, 1], [0], [0]>} : vector<2x8x64xbf16>, vector<2x8x64xbf16>, vector<2x8x8xf32> -> vector<2x8x8xf32>
    "tpu.trace_stop"() : () -> ()
    %cst_15 = arith.constant 0.0510310382 : f32
    %40 = vector.broadcast %cst_15 : f32 to vector<2x8x8xf32>
    %41 = arith.mulf %39, %40 : vector<2x8x8xf32>
    %cst_16 = arith.constant -1.000000e+30 : f32
    %42 = vector.shape_cast %35 : vector<8x8xi1> to vector<1x8x8xi1>
    %43 = vector.broadcast %42 : vector<1x8x8xi1> to vector<2x8x8xi1>
    %44 = vector.broadcast %cst_16 : f32 to vector<2x8x8xf32>
    %45 = arith.select %43, %41, %44 : vector<2x8x8xi1>, vector<2x8x8xf32>
    %cst_17 = arith.constant dense<0xFF800000> : vector<2x8xf32>
    %46 = vector.multi_reduction <maximumf>, %45, %cst_17 [2] : vector<2x8x8xf32> to vector<2x8xf32>
    %47 = vector.shape_cast %46 : vector<2x8xf32> to vector<2x8x1xf32>
    %48 = vector.broadcast %47 : vector<2x8x1xf32> to vector<2x8x8xf32>
    %49 = arith.subf %45, %48 : vector<2x8x8xf32>
    %50 = math.exp %49 : vector<2x8x8xf32>
    %cst_18 = arith.constant dense<0.000000e+00> : vector<2x8xf32>
    %51 = vector.multi_reduction <add>, %50, %cst_18 [2] : vector<2x8x8xf32> to vector<2x8xf32>
    %52 = vector.shape_cast %51 : vector<2x8xf32> to vector<2x8x1xf32>
    %53 = tpu.reciprocal %52 {approx = true} : vector<2x8x1xf32> -> vector<2x8x1xf32>
    %54 = vector.broadcast %53 : vector<2x8x1xf32> to vector<2x8x8xf32>
    %55 = arith.mulf %50, %54 : vector<2x8x8xf32>
    %56 = arith.truncf %55 : vector<2x8x8xf32> to vector<2x8x8xbf16>
    "tpu.trace_start"() <{level = 10 : i32, message = "bts,bsd->btd"}> : () -> ()
    %cst_19 = arith.constant dense<0.000000e+00> : vector<2x8x64xf32>
    %57 = tpu.matmul %56, %38, %cst_19 {dimension_numbers = #tpu.dot_dimension_numbers<[2], [1], [1], [2], [0, 0, 0, 1, 1, 2], [0], [0]>} : vector<2x8x8xbf16>, vector<2x8x64xbf16>, vector<2x8x64xf32> -> vector<2x8x64xf32>
    "tpu.trace_stop"() : () -> ()
    %58 = vector.extract_strided_slice %32 {offsets = [0, 0, 64], sizes = [2, 8, 64], strides = [1, 1, 1]} : vector<2x8x1152xbf16> to vector<2x8x64xbf16>
    %59 = vector.extract_strided_slice %32 {offsets = [0, 0, 448], sizes = [2, 8, 64], strides = [1, 1, 1]} : vector<2x8x1152xbf16> to vector<2x8x64xbf16>
    %60 = vector.extract_strided_slice %32 {offsets = [0, 0, 832], sizes = [2, 8, 64], strides = [1, 1, 1]} : vector<2x8x1152xbf16> to vector<2x8x64xbf16>
    "tpu.trace_start"() <{level = 10 : i32, message = "btd,bsd->bts"}> : () -> ()
    %cst_20 = arith.constant dense<0.000000e+00> : vector<2x8x8xf32>
    %61 = tpu.matmul %58, %59, %cst_20 {dimension_numbers = #tpu.dot_dimension_numbers<[2], [2], [1], [1], [0, 0, 0, 1, 1, 1], [0], [0]>} : vector<2x8x64xbf16>, vector<2x8x64xbf16>, vector<2x8x8xf32> -> vector<2x8x8xf32>
    "tpu.trace_stop"() : () -> ()
    %cst_21 = arith.constant 0.0510310382 : f32
    %62 = vector.broadcast %cst_21 : f32 to vector<2x8x8xf32>
    %63 = arith.mulf %61, %62 : vector<2x8x8xf32>
    %cst_22 = arith.constant -1.000000e+30 : f32
    %64 = vector.shape_cast %35 : vector<8x8xi1> to vector<1x8x8xi1>
    %65 = vector.broadcast %64 : vector<1x8x8xi1> to vector<2x8x8xi1>
    %66 = vector.broadcast %cst_22 : f32 to vector<2x8x8xf32>
    %67 = arith.select %65, %63, %66 : vector<2x8x8xi1>, vector<2x8x8xf32>
    %cst_23 = arith.constant dense<0xFF800000> : vector<2x8xf32>
    %68 = vector.multi_reduction <maximumf>, %67, %cst_23 [2] : vector<2x8x8xf32> to vector<2x8xf32>
    %69 = vector.shape_cast %68 : vector<2x8xf32> to vector<2x8x1xf32>
    %70 = vector.broadcast %69 : vector<2x8x1xf32> to vector<2x8x8xf32>
    %71 = arith.subf %67, %70 : vector<2x8x8xf32>
    %72 = math.exp %71 : vector<2x8x8xf32>
    %cst_24 = arith.constant dense<0.000000e+00> : vector<2x8xf32>
    %73 = vector.multi_reduction <add>, %72, %cst_24 [2] : vector<2x8x8xf32> to vector<2x8xf32>
    %74 = vector.shape_cast %73 : vector<2x8xf32> to vector<2x8x1xf32>
    %75 = tpu.reciprocal %74 {approx = true} : vector<2x8x1xf32> -> vector<2x8x1xf32>
    %76 = vector.broadcast %75 : vector<2x8x1xf32> to vector<2x8x8xf32>
    %77 = arith.mulf %72, %76 : vector<2x8x8xf32>
    %78 = arith.truncf %77 : vector<2x8x8xf32> to vector<2x8x8xbf16>
    "tpu.trace_start"() <{level = 10 : i32, message = "bts,bsd->btd"}> : () -> ()
    %cst_25 = arith.constant dense<0.000000e+00> : vector<2x8x64xf32>
    %79 = tpu.matmul %78, %60, %cst_25 {dimension_numbers = #tpu.dot_dimension_numbers<[2], [1], [1], [2], [0, 0, 0, 1, 1, 2], [0], [0]>} : vector<2x8x8xbf16>, vector<2x8x64xbf16>, vector<2x8x64xf32> -> vector<2x8x64xf32>
    "tpu.trace_stop"() : () -> ()
    %80 = vector.extract_strided_slice %32 {offsets = [0, 0, 128], sizes = [2, 8, 64], strides = [1, 1, 1]} : vector<2x8x1152xbf16> to vector<2x8x64xbf16>
    %81 = vector.extract_strided_slice %32 {offsets = [0, 0, 512], sizes = [2, 8, 64], strides = [1, 1, 1]} : vector<2x8x1152xbf16> to vector<2x8x64xbf16>
    %82 = vector.extract_strided_slice %32 {offsets = [0, 0, 896], sizes = [2, 8, 64], strides = [1, 1, 1]} : vector<2x8x1152xbf16> to vector<2x8x64xbf16>
    "tpu.trace_start"() <{level = 10 : i32, message = "btd,bsd->bts"}> : () -> ()
    %cst_26 = arith.constant dense<0.000000e+00> : vector<2x8x8xf32>
    %83 = tpu.matmul %80, %81, %cst_26 {dimension_numbers = #tpu.dot_dimension_numbers<[2], [2], [1], [1], [0, 0, 0, 1, 1, 1], [0], [0]>} : vector<2x8x64xbf16>, vector<2x8x64xbf16>, vector<2x8x8xf32> -> vector<2x8x8xf32>
    "tpu.trace_stop"() : () -> ()
    %cst_27 = arith.constant 0.0510310382 : f32
    %84 = vector.broadcast %cst_27 : f32 to vector<2x8x8xf32>
    %85 = arith.mulf %83, %84 : vector<2x8x8xf32>
    %cst_28 = arith.constant -1.000000e+30 : f32
    %86 = vector.shape_cast %35 : vector<8x8xi1> to vector<1x8x8xi1>
    %87 = vector.broadcast %86 : vector<1x8x8xi1> to vector<2x8x8xi1>
    %88 = vector.broadcast %cst_28 : f32 to vector<2x8x8xf32>
    %89 = arith.select %87, %85, %88 : vector<2x8x8xi1>, vector<2x8x8xf32>
    %cst_29 = arith.constant dense<0xFF800000> : vector<2x8xf32>
    %90 = vector.multi_reduction <maximumf>, %89, %cst_29 [2] : vector<2x8x8xf32> to vector<2x8xf32>
    %91 = vector.shape_cast %90 : vector<2x8xf32> to vector<2x8x1xf32>
    %92 = vector.broadcast %91 : vector<2x8x1xf32> to vector<2x8x8xf32>
    %93 = arith.subf %89, %92 : vector<2x8x8xf32>
    %94 = math.exp %93 : vector<2x8x8xf32>
    %cst_30 = arith.constant dense<0.000000e+00> : vector<2x8xf32>
    %95 = vector.multi_reduction <add>, %94, %cst_30 [2] : vector<2x8x8xf32> to vector<2x8xf32>
    %96 = vector.shape_cast %95 : vector<2x8xf32> to vector<2x8x1xf32>
    %97 = tpu.reciprocal %96 {approx = true} : vector<2x8x1xf32> -> vector<2x8x1xf32>
    %98 = vector.broadcast %97 : vector<2x8x1xf32> to vector<2x8x8xf32>
    %99 = arith.mulf %94, %98 : vector<2x8x8xf32>
    %100 = arith.truncf %99 : vector<2x8x8xf32> to vector<2x8x8xbf16>
    "tpu.trace_start"() <{level = 10 : i32, message = "bts,bsd->btd"}> : () -> ()
    %cst_31 = arith.constant dense<0.000000e+00> : vector<2x8x64xf32>
    %101 = tpu.matmul %100, %82, %cst_31 {dimension_numbers = #tpu.dot_dimension_numbers<[2], [1], [1], [2], [0, 0, 0, 1, 1, 2], [0], [0]>} : vector<2x8x8xbf16>, vector<2x8x64xbf16>, vector<2x8x64xf32> -> vector<2x8x64xf32>
    "tpu.trace_stop"() : () -> ()
    %102 = vector.extract_strided_slice %32 {offsets = [0, 0, 192], sizes = [2, 8, 64], strides = [1, 1, 1]} : vector<2x8x1152xbf16> to vector<2x8x64xbf16>
    %103 = vector.extract_strided_slice %32 {offsets = [0, 0, 576], sizes = [2, 8, 64], strides = [1, 1, 1]} : vector<2x8x1152xbf16> to vector<2x8x64xbf16>
    %104 = vector.extract_strided_slice %32 {offsets = [0, 0, 960], sizes = [2, 8, 64], strides = [1, 1, 1]} : vector<2x8x1152xbf16> to vector<2x8x64xbf16>
    "tpu.trace_start"() <{level = 10 : i32, message = "btd,bsd->bts"}> : () -> ()
    %cst_32 = arith.constant dense<0.000000e+00> : vector<2x8x8xf32>
    %105 = tpu.matmul %102, %103, %cst_32 {dimension_numbers = #tpu.dot_dimension_numbers<[2], [2], [1], [1], [0, 0, 0, 1, 1, 1], [0], [0]>} : vector<2x8x64xbf16>, vector<2x8x64xbf16>, vector<2x8x8xf32> -> vector<2x8x8xf32>
    "tpu.trace_stop"() : () -> ()
    %cst_33 = arith.constant 0.0510310382 : f32
    %106 = vector.broadcast %cst_33 : f32 to vector<2x8x8xf32>
    %107 = arith.mulf %105, %106 : vector<2x8x8xf32>
    %cst_34 = arith.constant -1.000000e+30 : f32
    %108 = vector.shape_cast %35 : vector<8x8xi1> to vector<1x8x8xi1>
    %109 = vector.broadcast %108 : vector<1x8x8xi1> to vector<2x8x8xi1>
    %110 = vector.broadcast %cst_34 : f32 to vector<2x8x8xf32>
    %111 = arith.select %109, %107, %110 : vector<2x8x8xi1>, vector<2x8x8xf32>
    %cst_35 = arith.constant dense<0xFF800000> : vector<2x8xf32>
    %112 = vector.multi_reduction <maximumf>, %111, %cst_35 [2] : vector<2x8x8xf32> to vector<2x8xf32>
    %113 = vector.shape_cast %112 : vector<2x8xf32> to vector<2x8x1xf32>
    %114 = vector.broadcast %113 : vector<2x8x1xf32> to vector<2x8x8xf32>
    %115 = arith.subf %111, %114 : vector<2x8x8xf32>
    %116 = math.exp %115 : vector<2x8x8xf32>
    %cst_36 = arith.constant dense<0.000000e+00> : vector<2x8xf32>
    %117 = vector.multi_reduction <add>, %116, %cst_36 [2] : vector<2x8x8xf32> to vector<2x8xf32>
    %118 = vector.shape_cast %117 : vector<2x8xf32> to vector<2x8x1xf32>
    %119 = tpu.reciprocal %118 {approx = true} : vector<2x8x1xf32> -> vector<2x8x1xf32>
    %120 = vector.broadcast %119 : vector<2x8x1xf32> to vector<2x8x8xf32>
    %121 = arith.mulf %116, %120 : vector<2x8x8xf32>
    %122 = arith.truncf %121 : vector<2x8x8xf32> to vector<2x8x8xbf16>
    "tpu.trace_start"() <{level = 10 : i32, message = "bts,bsd->btd"}> : () -> ()
    %cst_37 = arith.constant dense<0.000000e+00> : vector<2x8x64xf32>
    %123 = tpu.matmul %122, %104, %cst_37 {dimension_numbers = #tpu.dot_dimension_numbers<[2], [1], [1], [2], [0, 0, 0, 1, 1, 2], [0], [0]>} : vector<2x8x8xbf16>, vector<2x8x64xbf16>, vector<2x8x64xf32> -> vector<2x8x64xf32>
    "tpu.trace_stop"() : () -> ()
    %124 = vector.extract_strided_slice %32 {offsets = [0, 0, 256], sizes = [2, 8, 64], strides = [1, 1, 1]} : vector<2x8x1152xbf16> to vector<2x8x64xbf16>
    %125 = vector.extract_strided_slice %32 {offsets = [0, 0, 640], sizes = [2, 8, 64], strides = [1, 1, 1]} : vector<2x8x1152xbf16> to vector<2x8x64xbf16>
    %126 = vector.extract_strided_slice %32 {offsets = [0, 0, 1024], sizes = [2, 8, 64], strides = [1, 1, 1]} : vector<2x8x1152xbf16> to vector<2x8x64xbf16>
    "tpu.trace_start"() <{level = 10 : i32, message = "btd,bsd->bts"}> : () -> ()
    %cst_38 = arith.constant dense<0.000000e+00> : vector<2x8x8xf32>
    %127 = tpu.matmul %124, %125, %cst_38 {dimension_numbers = #tpu.dot_dimension_numbers<[2], [2], [1], [1], [0, 0, 0, 1, 1, 1], [0], [0]>} : vector<2x8x64xbf16>, vector<2x8x64xbf16>, vector<2x8x8xf32> -> vector<2x8x8xf32>
    "tpu.trace_stop"() : () -> ()
    %cst_39 = arith.constant 0.0510310382 : f32
    %128 = vector.broadcast %cst_39 : f32 to vector<2x8x8xf32>
    %129 = arith.mulf %127, %128 : vector<2x8x8xf32>
    %cst_40 = arith.constant -1.000000e+30 : f32
    %130 = vector.shape_cast %35 : vector<8x8xi1> to vector<1x8x8xi1>
    %131 = vector.broadcast %130 : vector<1x8x8xi1> to vector<2x8x8xi1>
    %132 = vector.broadcast %cst_40 : f32 to vector<2x8x8xf32>
    %133 = arith.select %131, %129, %132 : vector<2x8x8xi1>, vector<2x8x8xf32>
    %cst_41 = arith.constant dense<0xFF800000> : vector<2x8xf32>
    %134 = vector.multi_reduction <maximumf>, %133, %cst_41 [2] : vector<2x8x8xf32> to vector<2x8xf32>
    %135 = vector.shape_cast %134 : vector<2x8xf32> to vector<2x8x1xf32>
    %136 = vector.broadcast %135 : vector<2x8x1xf32> to vector<2x8x8xf32>
    %137 = arith.subf %133, %136 : vector<2x8x8xf32>
    %138 = math.exp %137 : vector<2x8x8xf32>
    %cst_42 = arith.constant dense<0.000000e+00> : vector<2x8xf32>
    %139 = vector.multi_reduction <add>, %138, %cst_42 [2] : vector<2x8x8xf32> to vector<2x8xf32>
    %140 = vector.shape_cast %139 : vector<2x8xf32> to vector<2x8x1xf32>
    %141 = tpu.reciprocal %140 {approx = true} : vector<2x8x1xf32> -> vector<2x8x1xf32>
    %142 = vector.broadcast %141 : vector<2x8x1xf32> to vector<2x8x8xf32>
    %143 = arith.mulf %138, %142 : vector<2x8x8xf32>
    %144 = arith.truncf %143 : vector<2x8x8xf32> to vector<2x8x8xbf16>
    "tpu.trace_start"() <{level = 10 : i32, message = "bts,bsd->btd"}> : () -> ()
    %cst_43 = arith.constant dense<0.000000e+00> : vector<2x8x64xf32>
    %145 = tpu.matmul %144, %126, %cst_43 {dimension_numbers = #tpu.dot_dimension_numbers<[2], [1], [1], [2], [0, 0, 0, 1, 1, 2], [0], [0]>} : vector<2x8x8xbf16>, vector<2x8x64xbf16>, vector<2x8x64xf32> -> vector<2x8x64xf32>
    "tpu.trace_stop"() : () -> ()
    %146 = vector.extract_strided_slice %32 {offsets = [0, 0, 320], sizes = [2, 8, 64], strides = [1, 1, 1]} : vector<2x8x1152xbf16> to vector<2x8x64xbf16>
    %147 = vector.extract_strided_slice %32 {offsets = [0, 0, 704], sizes = [2, 8, 64], strides = [1, 1, 1]} : vector<2x8x1152xbf16> to vector<2x8x64xbf16>
    %148 = vector.extract_strided_slice %32 {offsets = [0, 0, 1088], sizes = [2, 8, 64], strides = [1, 1, 1]} : vector<2x8x1152xbf16> to vector<2x8x64xbf16>
    "tpu.trace_start"() <{level = 10 : i32, message = "btd,bsd->bts"}> : () -> ()
    %cst_44 = arith.constant dense<0.000000e+00> : vector<2x8x8xf32>
    %149 = tpu.matmul %146, %147, %cst_44 {dimension_numbers = #tpu.dot_dimension_numbers<[2], [2], [1], [1], [0, 0, 0, 1, 1, 1], [0], [0]>} : vector<2x8x64xbf16>, vector<2x8x64xbf16>, vector<2x8x8xf32> -> vector<2x8x8xf32>
    "tpu.trace_stop"() : () -> ()
    %cst_45 = arith.constant 0.0510310382 : f32
    %150 = vector.broadcast %cst_45 : f32 to vector<2x8x8xf32>
    %151 = arith.mulf %149, %150 : vector<2x8x8xf32>
    %cst_46 = arith.constant -1.000000e+30 : f32
    %152 = vector.shape_cast %35 : vector<8x8xi1> to vector<1x8x8xi1>
    %153 = vector.broadcast %152 : vector<1x8x8xi1> to vector<2x8x8xi1>
    %154 = vector.broadcast %cst_46 : f32 to vector<2x8x8xf32>
    %155 = arith.select %153, %151, %154 : vector<2x8x8xi1>, vector<2x8x8xf32>
    %cst_47 = arith.constant dense<0xFF800000> : vector<2x8xf32>
    %156 = vector.multi_reduction <maximumf>, %155, %cst_47 [2] : vector<2x8x8xf32> to vector<2x8xf32>
    %157 = vector.shape_cast %156 : vector<2x8xf32> to vector<2x8x1xf32>
    %158 = vector.broadcast %157 : vector<2x8x1xf32> to vector<2x8x8xf32>
    %159 = arith.subf %155, %158 : vector<2x8x8xf32>
    %160 = math.exp %159 : vector<2x8x8xf32>
    %cst_48 = arith.constant dense<0.000000e+00> : vector<2x8xf32>
    %161 = vector.multi_reduction <add>, %160, %cst_48 [2] : vector<2x8x8xf32> to vector<2x8xf32>
    %162 = vector.shape_cast %161 : vector<2x8xf32> to vector<2x8x1xf32>
    %163 = tpu.reciprocal %162 {approx = true} : vector<2x8x1xf32> -> vector<2x8x1xf32>
    %164 = vector.broadcast %163 : vector<2x8x1xf32> to vector<2x8x8xf32>
    %165 = arith.mulf %160, %164 : vector<2x8x8xf32>
    %166 = arith.truncf %165 : vector<2x8x8xf32> to vector<2x8x8xbf16>
    "tpu.trace_start"() <{level = 10 : i32, message = "bts,bsd->btd"}> : () -> ()
    %cst_49 = arith.constant dense<0.000000e+00> : vector<2x8x64xf32>
    %167 = tpu.matmul %166, %148, %cst_49 {dimension_numbers = #tpu.dot_dimension_numbers<[2], [1], [1], [2], [0, 0, 0, 1, 1, 2], [0], [0]>} : vector<2x8x8xbf16>, vector<2x8x64xbf16>, vector<2x8x64xf32> -> vector<2x8x64xf32>
    "tpu.trace_stop"() : () -> ()
    %168 = tpu.concatenate %57, %79, %101, %123, %145, %167 in 2 : vector<2x8x64xf32>, vector<2x8x64xf32>, vector<2x8x64xf32>, vector<2x8x64xf32>, vector<2x8x64xf32>, vector<2x8x64xf32> -> vector<2x8x384xf32>
    %169 = vector.shape_cast %168 : vector<2x8x384xf32> to vector<16x384xf32>
    %170 = arith.truncf %169 : vector<16x384xf32> to vector<16x384xbf16>
    %c0_50 = arith.constant 0 : index
    %c0_51 = arith.constant 0 : index
    %c0_52 = arith.constant 0 : index
    %171 = vector.load %arg5[%c0_50, %c0_51, %c0_52] : memref<1x384x384xbf16, #tpu.memory_space<vmem>>, vector<1x384x384xbf16>
    %172 = vector.shape_cast %171 : vector<1x384x384xbf16> to vector<384x384xbf16>
    %cst_53 = arith.constant dense<0.000000e+00> : vector<16x384xf32>
    %173 = tpu.matmul %170, %172, %cst_53 {dimension_numbers = #tpu.dot_dimension_numbers<[1], [0], [0], [1], [0, 0, 1, 1], [], []>} : vector<16x384xbf16>, vector<384x384xbf16>, vector<16x384xf32> -> vector<16x384xf32>
    %c0_54 = arith.constant 0 : index
    %c0_55 = arith.constant 0 : index
    %c0_56 = arith.constant 0 : index
    %174 = vector.load %arg6[%c0_54, %c0_55, %c0_56] : memref<1x1x384xf32, #tpu.memory_space<vmem>>, vector<1x1x384xf32>
    %175 = vector.shape_cast %174 : vector<1x1x384xf32> to vector<1x384xf32>
    %176 = vector.broadcast %175 : vector<1x384xf32> to vector<16x384xf32>
    %177 = arith.addf %173, %176 : vector<16x384xf32>
    %178 = arith.addf %4, %177 : vector<16x384xf32>
    %cst_57 = arith.constant dense<0.000000e+00> : vector<16xf32>
    %179 = vector.multi_reduction <add>, %178, %cst_57 [1] : vector<16x384xf32> to vector<16xf32>
    %180 = vector.shape_cast %179 : vector<16xf32> to vector<16x1xf32>
    %cst_58 = arith.constant 3.840000e+02 : f32
    %181 = vector.broadcast %cst_58 : f32 to vector<16x1xf32>
    %182 = arith.divf %180, %181 : vector<16x1xf32>
    %183 = vector.broadcast %182 : vector<16x1xf32> to vector<16x384xf32>
    %184 = arith.subf %178, %183 : vector<16x384xf32>
    %185 = arith.mulf %184, %184 : vector<16x384xf32>
    %cst_59 = arith.constant dense<0.000000e+00> : vector<16xf32>
    %186 = vector.multi_reduction <add>, %185, %cst_59 [1] : vector<16x384xf32> to vector<16xf32>
    %187 = vector.shape_cast %186 : vector<16xf32> to vector<16x1xf32>
    %cst_60 = arith.constant 3.840000e+02 : f32
    %188 = vector.broadcast %cst_60 : f32 to vector<16x1xf32>
    %189 = arith.divf %187, %188 : vector<16x1xf32>
    %190 = vector.broadcast %182 : vector<16x1xf32> to vector<16x384xf32>
    %191 = arith.subf %178, %190 : vector<16x384xf32>
    %cst_61 = arith.constant 9.99999974E-6 : f32
    %192 = vector.broadcast %cst_61 : f32 to vector<16x1xf32>
    %193 = arith.addf %189, %192 : vector<16x1xf32>
    %194 = math.rsqrt %193 : vector<16x1xf32>
    %195 = vector.broadcast %194 : vector<16x1xf32> to vector<16x384xf32>
    %196 = arith.mulf %191, %195 : vector<16x384xf32>
    %197 = arith.truncf %196 : vector<16x384xf32> to vector<16x384xbf16>
    %c0_62 = arith.constant 0 : index
    %c0_63 = arith.constant 0 : index
    %c0_64 = arith.constant 0 : index
    %198 = vector.load %arg7[%c0_62, %c0_63, %c0_64] : memref<1x384x1536xbf16, #tpu.memory_space<vmem>>, vector<1x384x1536xbf16>
    %199 = vector.shape_cast %198 : vector<1x384x1536xbf16> to vector<384x1536xbf16>
    %cst_65 = arith.constant dense<0.000000e+00> : vector<16x1536xf32>
    %200 = tpu.matmul %197, %199, %cst_65 {dimension_numbers = #tpu.dot_dimension_numbers<[1], [0], [0], [1], [0, 0, 1, 1], [], []>} : vector<16x384xbf16>, vector<384x1536xbf16>, vector<16x1536xf32> -> vector<16x1536xf32>
    %c0_66 = arith.constant 0 : index
    %c0_67 = arith.constant 0 : index
    %c0_68 = arith.constant 0 : index
    %201 = vector.load %arg8[%c0_66, %c0_67, %c0_68] : memref<1x1x1536xf32, #tpu.memory_space<vmem>>, vector<1x1x1536xf32>
    %202 = vector.shape_cast %201 : vector<1x1x1536xf32> to vector<1x1536xf32>
    %203 = vector.broadcast %202 : vector<1x1536xf32> to vector<16x1536xf32>
    %204 = arith.addf %200, %203 : vector<16x1536xf32>
    %cst_69 = arith.constant 0.000000e+00 : f32
    %205 = vector.broadcast %cst_69 : f32 to vector<16x1536xf32>
    %206 = arith.maximumf %204, %205 : vector<16x1536xf32>
    %207 = arith.truncf %206 : vector<16x1536xf32> to vector<16x1536xbf16>
    %c0_70 = arith.constant 0 : index
    %c0_71 = arith.constant 0 : index
    %c0_72 = arith.constant 0 : index
    %208 = vector.load %arg9[%c0_70, %c0_71, %c0_72] : memref<1x1536x384xbf16, #tpu.memory_space<vmem>>, vector<1x1536x384xbf16>
    %209 = vector.shape_cast %208 : vector<1x1536x384xbf16> to vector<1536x384xbf16>
    %cst_73 = arith.constant dense<0.000000e+00> : vector<16x384xf32>
    %210 = tpu.matmul %207, %209, %cst_73 {dimension_numbers = #tpu.dot_dimension_numbers<[1], [0], [0], [1], [0, 0, 1, 1], [], []>} : vector<16x1536xbf16>, vector<1536x384xbf16>, vector<16x384xf32> -> vector<16x384xf32>
    %c0_74 = arith.constant 0 : index
    %c0_75 = arith.constant 0 : index
    %c0_76 = arith.constant 0 : index
    %211 = vector.load %arg10[%c0_74, %c0_75, %c0_76] : memref<1x1x384xf32, #tpu.memory_space<vmem>>, vector<1x1x384xf32>
    %212 = vector.shape_cast %211 : vector<1x1x384xf32> to vector<1x384xf32>
    %213 = vector.broadcast %212 : vector<1x384xf32> to vector<16x384xf32>
    %214 = arith.addf %210, %213 : vector<16x384xf32>
    %215 = arith.addf %178, %214 : vector<16x384xf32>
    %216 = vector.shape_cast %215 : vector<16x384xf32> to vector<2x8x384xf32>
    %c0_77 = arith.constant 0 : index
    %c0_78 = arith.constant 0 : index
    %c0_79 = arith.constant 0 : index
    %217 = vector.load %arg14[%c0_77, %c0_78, %c0_79] : memref<2x8x384xf32, #tpu.memory_space<vmem>>, vector<2x8x384xf32>
    tpu.vector_store %arg14[%c0_77, %c0_78, %c0_79], %216 {strides = array<i32>} : memref<2x8x384xf32, #tpu.memory_space<vmem>>, vector<2x8x384xf32>,
    %c5_i32 = arith.constant 5 : i32
    %218 = arith.cmpi eq, %arg1, %c5_i32 : i32
    %219 = arith.extui %218 : i1 to i32
    %c0_i32_80 = arith.constant 0 : i32
    %220 = arith.cmpi ne, %219, %c0_i32_80 : i32
    scf.if %220 {
      %cst_81 = arith.constant dense<0.000000e+00> : vector<16xf32>
      %221 = vector.multi_reduction <add>, %215, %cst_81 [1] : vector<16x384xf32> to vector<16xf32>
      %222 = vector.shape_cast %221 : vector<16xf32> to vector<16x1xf32>
      %cst_82 = arith.constant 3.840000e+02 : f32
      %223 = vector.broadcast %cst_82 : f32 to vector<16x1xf32>
      %224 = arith.divf %222, %223 : vector<16x1xf32>
      %225 = vector.broadcast %224 : vector<16x1xf32> to vector<16x384xf32>
      %226 = arith.subf %215, %225 : vector<16x384xf32>
      %227 = arith.mulf %226, %226 : vector<16x384xf32>
      %cst_83 = arith.constant dense<0.000000e+00> : vector<16xf32>
      %228 = vector.multi_reduction <add>, %227, %cst_83 [1] : vector<16x384xf32> to vector<16xf32>
      %229 = vector.shape_cast %228 : vector<16xf32> to vector<16x1xf32>
      %cst_84 = arith.constant 3.840000e+02 : f32
      %230 = vector.broadcast %cst_84 : f32 to vector<16x1xf32>
      %231 = arith.divf %229, %230 : vector<16x1xf32>
      %232 = vector.broadcast %224 : vector<16x1xf32> to vector<16x384xf32>
      %233 = arith.subf %215, %232 : vector<16x384xf32>
      %cst_85 = arith.constant 9.99999974E-6 : f32
      %234 = vector.broadcast %cst_85 : f32 to vector<16x1xf32>
      %235 = arith.addf %231, %234 : vector<16x1xf32>
      %236 = math.rsqrt %235 : vector<16x1xf32>
      %237 = vector.broadcast %236 : vector<16x1xf32> to vector<16x384xf32>
      %238 = arith.mulf %233, %237 : vector<16x384xf32>
      %239 = arith.truncf %238 : vector<16x384xf32> to vector<16x384xbf16>
      %c0_86 = arith.constant 0 : index
      %c0_87 = arith.constant 0 : index
      %240 = vector.load %arg11[%c0_86, %c0_87] : memref<384x256xbf16, #tpu.memory_space<vmem>>, vector<384x256xbf16>
      %cst_88 = arith.constant dense<0.000000e+00> : vector<16x256xf32>
      %241 = tpu.matmul %239, %240, %cst_88 {dimension_numbers = #tpu.dot_dimension_numbers<[1], [0], [0], [1], [0, 0, 1, 1], [], []>} : vector<16x384xbf16>, vector<384x256xbf16>, vector<16x256xf32> -> vector<16x256xf32>
      %c0_89 = arith.constant 0 : index
      %c0_90 = arith.constant 0 : index
      %242 = vector.load %arg12[%c0_89, %c0_90] : memref<1x256xf32, #tpu.memory_space<vmem>>, vector<1x256xf32>
      %243 = vector.broadcast %242 : vector<1x256xf32> to vector<16x256xf32>
      %244 = arith.addf %241, %243 : vector<16x256xf32>
      %245 = vector.shape_cast %244 : vector<16x256xf32> to vector<2x8x256xf32>
      %c0_91 = arith.constant 0 : index
      %c0_92 = arith.constant 0 : index
      %c0_93 = arith.constant 0 : index
      %246 = vector.load %arg13[%c0_91, %c0_92, %c0_93] : memref<2x8x256xf32, #tpu.memory_space<vmem>>, vector<2x8x256xf32>
      tpu.vector_store %arg13[%c0_91, %c0_92, %c0_93], %245 {strides = array<i32>} : memref<2x8x256xf32, #tpu.memory_space<vmem>>, vector<2x8x256xf32>,
    } else {
    }
    return
  }
  func.func @transform_0(%arg0: i32, %arg1: i32) -> (i32, i32, i32) {
    %c0_i32 = arith.constant 0 : i32
    %c0_i32_0 = arith.constant 0 : i32
    %c0_i32_1 = arith.constant 0 : i32
    return %arg0, %c0_i32, %c0_i32_0 : i32, i32, i32
  }
  func.func @transform_1(%arg0: i32, %arg1: i32) -> (i32, i32, i32) {
    %c0_i32 = arith.constant 0 : i32
    %c0_i32_0 = arith.constant 0 : i32
    %c0_i32_1 = arith.constant 0 : i32
    return %arg1, %c0_i32, %c0_i32_0 : i32, i32, i32
  }
  func.func @transform_2(%arg0: i32, %arg1: i32) -> (i32, i32, i32) {
    %c0_i32 = arith.constant 0 : i32
    %c0_i32_0 = arith.constant 0 : i32
    %c0_i32_1 = arith.constant 0 : i32
    return %arg1, %c0_i32, %c0_i32_0 : i32, i32, i32
  }
  func.func @transform_3(%arg0: i32, %arg1: i32) -> (i32, i32, i32) {
    %c0_i32 = arith.constant 0 : i32
    %c0_i32_0 = arith.constant 0 : i32
    %c0_i32_1 = arith.constant 0 : i32
    return %arg1, %c0_i32, %c0_i32_0 : i32, i32, i32
  }
  func.func @transform_4(%arg0: i32, %arg1: i32) -> (i32, i32, i32) {
    %c0_i32 = arith.constant 0 : i32
    %c0_i32_0 = arith.constant 0 : i32
    %c0_i32_1 = arith.constant 0 : i32
    return %arg1, %c0_i32, %c0_i32_0 : i32, i32, i32
  }
  func.func @transform_5(%arg0: i32, %arg1: i32) -> (i32, i32, i32) {
    %c0_i32 = arith.constant 0 : i32
    %c0_i32_0 = arith.constant 0 : i32
    %c0_i32_1 = arith.constant 0 : i32
    return %arg1, %c0_i32, %c0_i32_0 : i32, i32, i32
  }
  func.func @transform_6(%arg0: i32, %arg1: i32) -> (i32, i32, i32) {
    %c0_i32 = arith.constant 0 : i32
    %c0_i32_0 = arith.constant 0 : i32
    %c0_i32_1 = arith.constant 0 : i32
    return %arg1, %c0_i32, %c0_i32_0 : i32, i32, i32
  }
  func.func @transform_7(%arg0: i32, %arg1: i32) -> (i32, i32, i32) {
    %c0_i32 = arith.constant 0 : i32
    %c0_i32_0 = arith.constant 0 : i32
    %c0_i32_1 = arith.constant 0 : i32
    return %arg1, %c0_i32, %c0_i32_0 : i32, i32, i32
  }
  func.func @transform_8(%arg0: i32, %arg1: i32) -> (i32, i32, i32) {
    %c0_i32 = arith.constant 0 : i32
    %c0_i32_0 = arith.constant 0 : i32
    %c0_i32_1 = arith.constant 0 : i32
    return %arg1, %c0_i32, %c0_i32_0 : i32, i32, i32
  }
  func.func @transform_9(%arg0: i32, %arg1: i32) -> (i32, i32) {
    %c0_i32 = arith.constant 0 : i32
    %c0_i32_0 = arith.constant 0 : i32
    %c0_i32_1 = arith.constant 0 : i32
    return %c0_i32, %c0_i32_0 : i32, i32
  }
  func.func @transform_10(%arg0: i32, %arg1: i32) -> (i32, i32) {
    %c0_i32 = arith.constant 0 : i32
    %c0_i32_0 = arith.constant 0 : i32
    %c0_i32_1 = arith.constant 0 : i32
    return %c0_i32, %c0_i32_0 : i32, i32
  }
  func.func @transform_11(%arg0: i32, %arg1: i32) -> (i32, i32, i32) {
    %c0_i32 = arith.constant 0 : i32
    %c0_i32_0 = arith.constant 0 : i32
    %c0_i32_1 = arith.constant 0 : i32
    return %arg0, %c0_i32, %c0_i32_0 : i32, i32, i32
  }
}

</mosaic_0001>

<llo_original>
// kernel: tpu_custom_call.1
$region0: #{tpu_custom_call.1}
  #allocation0 [shape = 'u32[]', space=smem, size = 0x4, offset = 0x4, fixed_abs, tag = 'smem constant byte address 0x4 - core index']
  #allocation1 [shape = 'u32[72,128]{1,0:T(1,128)}', space=vmem, size = 0x9000, scoped, tag = 'internal scratch']
  #allocation2 [shape = 'f32[2,8,384]{2,1,0:T(8,128)}', space=vmem, size = 0x6000, scoped, tag = 'scratch operand']
  %s0 = inlined_call_operand.hbm [shape: f32[2,8,384], index: 0, kind: input, shape index: {}]
  %s1 = inlined_call_operand.hbm [shape: bf16[6,384,1152], index: 1, kind: input, shape index: {}]
  %s2 = inlined_call_operand.hbm [shape: f32[6,1,1152], index: 2, kind: input, shape index: {}]
  %s3 = inlined_call_operand.hbm [shape: bf16[6,384,384], index: 3, kind: input, shape index: {}]
  %s4 = inlined_call_operand.hbm [shape: f32[6,1,384], index: 4, kind: input, shape index: {}]
  %s5 = inlined_call_operand.hbm [shape: bf16[6,384,1536], index: 5, kind: input, shape index: {}]
  %s6 = inlined_call_operand.hbm [shape: f32[6,1,1536], index: 6, kind: input, shape index: {}]
  %s7 = inlined_call_operand.hbm [shape: bf16[6,1536,384], index: 7, kind: input, shape index: {}]
  %s8 = inlined_call_operand.hbm [shape: f32[6,1,384], index: 8, kind: input, shape index: {}]
  %s9 = inlined_call_operand.hbm [shape: bf16[384,256], index: 9, kind: input, shape index: {}]
  %s10 = inlined_call_operand.hbm [shape: f32[1,256], index: 10, kind: input, shape index: {}]
  %s11 = inlined_call_operand.hbm [shape: f32[2,8,256], index: 11, kind: output, shape index: {}]
  %s12 = sld [smem:[#allocation0]]
  $region129: #{tpu_custom_call.1} parent=0
    _
  %s14 = ssub.s32 1, %s12
  %s15 = scalar_select 0, %s14, %s12
  $region1: #{tpu_custom_call.1} parent=0
    #allocation3 [shape = 'u8[24576]{0}', space=vmem, size = 0x6000, scoped, tag = 'input window, operand 0, single buffered']
    #allocation4 [shape = 's32[2]{0}', space=sflag, size = 0x8, scoped, tag = 'scoped memory for tpu_custom_call.1']
    #allocation5 [shape = 's32[2]{0}', space=sflag, size = 0x8, scoped, tag = 'scoped memory for tpu_custom_call.1']
    #allocation6 [shape = 'u8[1769472]{0}', space=vmem, size = 0x1b0000, scoped, tag = 'input window, operand 1']
    #allocation7 [shape = 's32[2]{0}', space=sflag, size = 0x8, scoped, tag = 'scoped memory for tpu_custom_call.1']
    #allocation8 [shape = 'u8[9216]{0}', space=vmem, size = 0x2400, scoped, tag = 'input window, operand 2']
    #allocation9 [shape = 'u8[589824]{0}', space=vmem, size = 0x90000, scoped, tag = 'input window, operand 3']
    #allocation10 [shape = 's32[2]{0}', space=sflag, size = 0x8, scoped, tag = 'scoped memory for tpu_custom_call.1']
    #allocation11 [shape = 'u8[3072]{0}', space=vmem, size = 0xc00, scoped, tag = 'input window, operand 4']
    #allocation12 [shape = 'u8[2359296]{0}', space=vmem, size = 0x240000, scoped, tag = 'input window, operand 5']
    #allocation13 [shape = 's32[2]{0}', space=sflag, size = 0x8, scoped, tag = 'scoped memory for tpu_custom_call.1']
    #allocation14 [shape = 'u8[12288]{0}', space=vmem, size = 0x3000, scoped, tag = 'input window, operand 6']
    #allocation15 [shape = 'u8[2359296]{0}', space=vmem, size = 0x240000, scoped, tag = 'input window, operand 7']
    #allocation16 [shape = 's32[2]{0}', space=sflag, size = 0x8, scoped, tag = 'scoped memory for tpu_custom_call.1']
    #allocation17 [shape = 'u8[3072]{0}', space=vmem, size = 0xc00, scoped, tag = 'input window, operand 8']
    #allocation18 [shape = 'u8[196608]{0}', space=vmem, size = 0x30000, scoped, tag = 'input window, operand 9, single buffered']
    #allocation19 [shape = 's32[1]{0}', space=sflag, size = 0x4, scoped, tag = 'scoped memory for tpu_custom_call.1']
    #allocation20 [shape = 'u8[1024]{0}', space=vmem, size = 0x400, scoped, tag = 'input window, operand 10, single buffered']
    #allocation21 [shape = 'u8[16384]{0}', space=vmem, size = 0x4000, scoped, tag = 'output window, operand 0, single buffered']
    %16 = vsyncpa [#allocation4], 0
    %17 = vsyncpa [#allocation7], 0
    %s18 = scalar_lea.sflag [#allocation7], 1
    %19 = vsyncpa %s18, 0
    %20 = vsyncpa [#allocation10], 0
    %s21 = scalar_lea.sflag [#allocation10], 1
    %22 = vsyncpa %s21, 0
    %23 = vsyncpa [#allocation13], 0
    %s24 = scalar_lea.sflag [#allocation13], 1
    %25 = vsyncpa %s24, 0
    %26 = vsyncpa [#allocation16], 0
    %s27 = scalar_lea.sflag [#allocation16], 1
    %28 = vsyncpa %s27, 0
    %29 = vsyncpa [#allocation19], 0
    %30 = vsyncpa [#allocation5], 0
    loop: start=0, step=1, limit=8
    $region2: #{tpu_custom_call.1} parent=1 // loop_pre_header
      _
    $region3: #{tpu_custom_call.1} parent=1 // loop_header
      %s32 = sphi 0, %s36
      %p33 = scmp.ge.s32.totalorder %s32, 8
      %s39 = sphi 0, %s51
      %s40 = sphi 0, %s47
      %s41 = sphi 0, %s39
      %s42 = sphi 0, %s40
      %s43 = sphi 0, %s41
      %s44 = sphi 0, %s42
      %s54 = sphi 0, %s56
      %s57 = sphi 0, %s54
      %s58 = sphi 0, %s57
      %s74 = sphi 0, %s58
      %s80 = sphi 0, %s82
      %s83 = sphi 0, %s80
      %s84 = sphi 0, %s83
      %s100 = sphi 0, %s84
      %s106 = sphi 0, %s108
      %s109 = sphi 0, %s106
      %s110 = sphi 0, %s109
      %s126 = sphi 0, %s110
      %s132 = sphi 0, %s134
      %s135 = sphi 0, %s132
      %s136 = sphi 0, %s135
      %s152 = sphi 0, %s136
      %s158 = sphi 0, %s160
      %s161 = sphi 0, %s158
      %s162 = sphi 0, %s161
      %s178 = sphi 0, %s162
      %s184 = sphi 0, %s186
      %s187 = sphi 0, %s184
      %s188 = sphi 0, %s187
      %s204 = sphi 0, %s188
      %s210 = sphi 0, %s212
      %s213 = sphi 0, %s210
      %s214 = sphi 0, %s213
      %s230 = sphi 0, %s214
      %s236 = sphi 0, %s238
      %s239 = sphi 0, %s236
      %s240 = sphi 0, %s239
      %s256 = sphi 0, %s240
      %s262 = sphi 0, %s264
      %s265 = sphi 0, %s262
      %s266 = sphi 0, %s265
      %s282 = sphi 0, %s266
      %s286 = sphi 0, %s286
      %s288 = sphi 0, %s286
      %s289 = sphi 0, %s288
      %s303 = sphi 0, %s289
      %s307 = sphi 0, %s307
      %s309 = sphi 0, %s307
      %s310 = sphi 0, %s309
      %s324 = sphi 0, %s310
      %s330 = sphi 0, %s332
      %s333 = sphi 0, %s330
      %s334 = sphi 0, %s333
      %s350 = sphi 0, %s334
    $region4: #{tpu_custom_call.1} parent=1 // loop_header_branch
      %35 = sbr.rel (%p33) target = $region8
    $region5: #{tpu_custom_call.1} parent=1 // loop_body
      %s37 = ssub.s32 %s32, 1
      %s38 = ssub.s32 %s32, 2
      %s45 = sadd.s32 1, %s40
      %p46 = scmp.ge.s32.totalorder %s45, 6
      %s47 = scalar_select %p46, 0, %s45
      %s48 = sadd.s32 1, %s39
      %s49 = scalar_select %p46, %s48, %s39
      %p50 = scmp.ge.s32.totalorder %s49, 1
      %s51 = scalar_select %p50, 0, %s49
      %s52 = ssub.s32 %s39, %s51
      %p53 = scmp.eq.s32.totalorder %s52, 0
      %s55 = sadd.s32 %s54, 1
      %s56 = scalar_select %p53, %s54, %s55
      %p59 = pneg %p53
      %p60 = scmp.eq.s32.totalorder %s32, 5
      %p61 = por %p59, %p60
      %p62 = scmp.ne.s32.totalorder %s54, %s57
      %p63 = scmp.eq.s32.totalorder %s32, 0
      %p64 = por %p62, %p63
      %p65 = scmp.ne.s32.totalorder %s54, %s57
      %p66 = scmp.eq.s32.totalorder %s37, 5
      %p67 = por %p65, %p66
      %p68 = scmp.ne.s32.totalorder %s57, %s58
      %p69 = scmp.eq.s32.totalorder %s37, 0
      %p70 = por %p68, %p69
      %p71 = scmp.ne.s32.totalorder %s57, %s58
      %p72 = scmp.eq.s32.totalorder %s38, 5
      %p73 = por %p71, %p72
      %p75 = scmp.ne.s32.totalorder %s58, %s74
      %p76 = scmp.eq.s32.totalorder %s38, 0
      %p77 = por %p75, %p76
      %s78 = ssub.s32 %s40, %s47
      %p79 = scmp.eq.s32.totalorder %s78, 0
      %s81 = sadd.s32 %s80, 1
      %s82 = scalar_select %p79, %s80, %s81
      %p85 = pneg %p79
      %p86 = scmp.eq.s32.totalorder %s32, 5
      %p87 = por %p85, %p86
      %p88 = scmp.ne.s32.totalorder %s80, %s83
      %p89 = scmp.eq.s32.totalorder %s32, 0
      %p90 = por %p88, %p89
      %p91 = scmp.ne.s32.totalorder %s80, %s83
      %p92 = scmp.eq.s32.totalorder %s37, 5
      %p93 = por %p91, %p92
      %p94 = scmp.ne.s32.totalorder %s83, %s84
      %p95 = scmp.eq.s32.totalorder %s37, 0
      %p96 = por %p94, %p95
      %p97 = scmp.ne.s32.totalorder %s83, %s84
      %p98 = scmp.eq.s32.totalorder %s38, 5
      %p99 = por %p97, %p98
      %p101 = scmp.ne.s32.totalorder %s84, %s100
      %p102 = scmp.eq.s32.totalorder %s38, 0
      %p103 = por %p101, %p102
      %s104 = ssub.s32 %s40, %s47
      %p105 = scmp.eq.s32.totalorder %s104, 0
      %s107 = sadd.s32 %s106, 1
      %s108 = scalar_select %p105, %s106, %s107
      %p111 = pneg %p105
      %p112 = scmp.eq.s32.totalorder %s32, 5
      %p113 = por %p111, %p112
      %p114 = scmp.ne.s32.totalorder %s106, %s109
      %p115 = scmp.eq.s32.totalorder %s32, 0
      %p116 = por %p114, %p115
      %p117 = scmp.ne.s32.totalorder %s106, %s109
      %p118 = scmp.eq.s32.totalorder %s37, 5
      %p119 = por %p117, %p118
      %p120 = scmp.ne.s32.totalorder %s109, %s110
      %p121 = scmp.eq.s32.totalorder %s37, 0
      %p122 = por %p120, %p121
      %p123 = scmp.ne.s32.totalorder %s109, %s110
      %p124 = scmp.eq.s32.totalorder %s38, 5
      %p125 = por %p123, %p124
      %p127 = scmp.ne.s32.totalorder %s110, %s126
      %p128 = scmp.eq.s32.totalorder %s38, 0
      %p129 = por %p127, %p128
      %s130 = ssub.s32 %s40, %s47
      %p131 = scmp.eq.s32.totalorder %s130, 0
      %s133 = sadd.s32 %s132, 1
      %s134 = scalar_select %p131, %s132, %s133
      %p137 = pneg %p131
      %p138 = scmp.eq.s32.totalorder %s32, 5
      %p139 = por %p137, %p138
      %p140 = scmp.ne.s32.totalorder %s132, %s135
      %p141 = scmp.eq.s32.totalorder %s32, 0
      %p142 = por %p140, %p141
      %p143 = scmp.ne.s32.totalorder %s132, %s135
      %p144 = scmp.eq.s32.totalorder %s37, 5
      %p145 = por %p143, %p144
      %p146 = scmp.ne.s32.totalorder %s135, %s136
      %p147 = scmp.eq.s32.totalorder %s37, 0
      %p148 = por %p146, %p147
      %p149 = scmp.ne.s32.totalorder %s135, %s136
      %p150 = scmp.eq.s32.totalorder %s38, 5
      %p151 = por %p149, %p150
      %p153 = scmp.ne.s32.totalorder %s136, %s152
      %p154 = scmp.eq.s32.totalorder %s38, 0
      %p155 = por %p153, %p154
      %s156 = ssub.s32 %s40, %s47
      %p157 = scmp.eq.s32.totalorder %s156, 0
      %s159 = sadd.s32 %s158, 1
      %s160 = scalar_select %p157, %s158, %s159
      %p163 = pneg %p157
      %p164 = scmp.eq.s32.totalorder %s32, 5
      %p165 = por %p163, %p164
      %p166 = scmp.ne.s32.totalorder %s158, %s161
      %p167 = scmp.eq.s32.totalorder %s32, 0
      %p168 = por %p166, %p167
      %p169 = scmp.ne.s32.totalorder %s158, %s161
      %p170 = scmp.eq.s32.totalorder %s37, 5
      %p171 = por %p169, %p170
      %p172 = scmp.ne.s32.totalorder %s161, %s162
      %p173 = scmp.eq.s32.totalorder %s37, 0
      %p174 = por %p172, %p173
      %p175 = scmp.ne.s32.totalorder %s161, %s162
      %p176 = scmp.eq.s32.totalorder %s38, 5
      %p177 = por %p175, %p176
      %p179 = scmp.ne.s32.totalorder %s162, %s178
      %p180 = scmp.eq.s32.totalorder %s38, 0
      %p181 = por %p179, %p180
      %s182 = ssub.s32 %s40, %s47
      %p183 = scmp.eq.s32.totalorder %s182, 0
      %s185 = sadd.s32 %s184, 1
      %s186 = scalar_select %p183, %s184, %s185
      %p189 = pneg %p183
      %p190 = scmp.eq.s32.totalorder %s32, 5
      %p191 = por %p189, %p190
      %p192 = scmp.ne.s32.totalorder %s184, %s187
      %p193 = scmp.eq.s32.totalorder %s32, 0
      %p194 = por %p192, %p193
      %p195 = scmp.ne.s32.totalorder %s184, %s187
      %p196 = scmp.eq.s32.totalorder %s37, 5
      %p197 = por %p195, %p196
      %p198 = scmp.ne.s32.totalorder %s187, %s188
      %p199 = scmp.eq.s32.totalorder %s37, 0
      %p200 = por %p198, %p199
      %p201 = scmp.ne.s32.totalorder %s187, %s188
      %p202 = scmp.eq.s32.totalorder %s38, 5
      %p203 = por %p201, %p202
      %p205 = scmp.ne.s32.totalorder %s188, %s204
      %p206 = scmp.eq.s32.totalorder %s38, 0
      %p207 = por %p205, %p206
      %s208 = ssub.s32 %s40, %s47
      %p209 = scmp.eq.s32.totalorder %s208, 0
      %s211 = sadd.s32 %s210, 1
      %s212 = scalar_select %p209, %s210, %s211
      %p215 = pneg %p209
      %p216 = scmp.eq.s32.totalorder %s32, 5
      %p217 = por %p215, %p216
      %p218 = scmp.ne.s32.totalorder %s210, %s213
      %p219 = scmp.eq.s32.totalorder %s32, 0
      %p220 = por %p218, %p219
      %p221 = scmp.ne.s32.totalorder %s210, %s213
      %p222 = scmp.eq.s32.totalorder %s37, 5
      %p223 = por %p221, %p222
      %p224 = scmp.ne.s32.totalorder %s213, %s214
      %p225 = scmp.eq.s32.totalorder %s37, 0
      %p226 = por %p224, %p225
      %p227 = scmp.ne.s32.totalorder %s213, %s214
      %p228 = scmp.eq.s32.totalorder %s38, 5
      %p229 = por %p227, %p228
      %p231 = scmp.ne.s32.totalorder %s214, %s230
      %p232 = scmp.eq.s32.totalorder %s38, 0
      %p233 = por %p231, %p232
      %s234 = ssub.s32 %s40, %s47
      %p235 = scmp.eq.s32.totalorder %s234, 0
      %s237 = sadd.s32 %s236, 1
      %s238 = scalar_select %p235, %s236, %s237
      %p241 = pneg %p235
      %p242 = scmp.eq.s32.totalorder %s32, 5
      %p243 = por %p241, %p242
      %p244 = scmp.ne.s32.totalorder %s236, %s239
      %p245 = scmp.eq.s32.totalorder %s32, 0
      %p246 = por %p244, %p245
      %p247 = scmp.ne.s32.totalorder %s236, %s239
      %p248 = scmp.eq.s32.totalorder %s37, 5
      %p249 = por %p247, %p248
      %p250 = scmp.ne.s32.totalorder %s239, %s240
      %p251 = scmp.eq.s32.totalorder %s37, 0
      %p252 = por %p250, %p251
      %p253 = scmp.ne.s32.totalorder %s239, %s240
      %p254 = scmp.eq.s32.totalorder %s38, 5
      %p255 = por %p253, %p254
      %p257 = scmp.ne.s32.totalorder %s240, %s256
      %p258 = scmp.eq.s32.totalorder %s38, 0
      %p259 = por %p257, %p258
      %s260 = ssub.s32 %s40, %s47
      %p261 = scmp.eq.s32.totalorder %s260, 0
      %s263 = sadd.s32 %s262, 1
      %s264 = scalar_select %p261, %s262, %s263
      %p267 = pneg %p261
      %p268 = scmp.eq.s32.totalorder %s32, 5
      %p269 = por %p267, %p268
      %p270 = scmp.ne.s32.totalorder %s262, %s265
      %p271 = scmp.eq.s32.totalorder %s32, 0
      %p272 = por %p270, %p271
      %p273 = scmp.ne.s32.totalorder %s262, %s265
      %p274 = scmp.eq.s32.totalorder %s37, 5
      %p275 = por %p273, %p274
      %p276 = scmp.ne.s32.totalorder %s265, %s266
      %p277 = scmp.eq.s32.totalorder %s37, 0
      %p278 = por %p276, %p277
      %p279 = scmp.ne.s32.totalorder %s265, %s266
      %p280 = scmp.eq.s32.totalorder %s38, 5
      %p281 = por %p279, %p280
      %p283 = scmp.ne.s32.totalorder %s266, %s282
      %p284 = scmp.eq.s32.totalorder %s38, 0
      %p285 = por %p283, %p284
      %s287 = sadd.s32 %s286, 1
      %p290 = scmp.eq.s32.totalorder %s32, 5
      %p291 = scmp.ne.s32.totalorder %s286, %s288
      %p292 = scmp.eq.s32.totalorder %s32, 0
      %p293 = por %p291, %p292
      %p294 = scmp.ne.s32.totalorder %s286, %s288
      %p295 = scmp.eq.s32.totalorder %s37, 5
      %p296 = por %p294, %p295
      %p297 = scmp.ne.s32.totalorder %s288, %s289
      %p298 = scmp.eq.s32.totalorder %s37, 0
      %p299 = por %p297, %p298
      %p300 = scmp.ne.s32.totalorder %s288, %s289
      %p301 = scmp.eq.s32.totalorder %s38, 5
      %p302 = por %p300, %p301
      %p304 = scmp.ne.s32.totalorder %s289, %s303
      %p305 = scmp.eq.s32.totalorder %s38, 0
      %p306 = por %p304, %p305
      %s308 = sadd.s32 %s307, 1
      %p311 = scmp.eq.s32.totalorder %s32, 5
      %p312 = scmp.ne.s32.totalorder %s307, %s309
      %p313 = scmp.eq.s32.totalorder %s32, 0
      %p314 = por %p312, %p313
      %p315 = scmp.ne.s32.totalorder %s307, %s309
      %p316 = scmp.eq.s32.totalorder %s37, 5
      %p317 = por %p315, %p316
      %p318 = scmp.ne.s32.totalorder %s309, %s310
      %p319 = scmp.eq.s32.totalorder %s37, 0
      %p320 = por %p318, %p319
      %p321 = scmp.ne.s32.totalorder %s309, %s310
      %p322 = scmp.eq.s32.totalorder %s38, 5
      %p323 = por %p321, %p322
      %p325 = scmp.ne.s32.totalorder %s310, %s324
      %p326 = scmp.eq.s32.totalorder %s38, 0
      %p327 = por %p325, %p326
      %s328 = ssub.s32 %s39, %s51
      %p329 = scmp.eq.s32.totalorder %s328, 0
      %s331 = sadd.s32 %s330, 1
      %s332 = scalar_select %p329, %s330, %s331
      %p335 = pneg %p329
      %p336 = scmp.eq.s32.totalorder %s32, 5
      %p337 = por %p335, %p336
      %p338 = scmp.ne.s32.totalorder %s330, %s333
      %p339 = scmp.eq.s32.totalorder %s32, 0
      %p340 = por %p338, %p339
      %p341 = scmp.ne.s32.totalorder %s330, %s333
      %p342 = scmp.eq.s32.totalorder %s37, 5
      %p343 = por %p341, %p342
      %p344 = scmp.ne.s32.totalorder %s333, %s334
      %p345 = scmp.eq.s32.totalorder %s37, 0
      %p346 = por %p344, %p345
      %p347 = scmp.ne.s32.totalorder %s333, %s334
      %p348 = scmp.eq.s32.totalorder %s38, 5
      %p349 = por %p347, %p348
      %p351 = scmp.ne.s32.totalorder %s334, %s350
      %p352 = scmp.eq.s32.totalorder %s38, 0
      %p353 = por %p351, %p352
      %p354 = scmp.le.s32.totalorder 1, %s32
      %p355 = scmp.lt.s32.totalorder %s32, 7
      %p356 = pnand %p354, %p355
      %p357 = pneg %p356
      // Predicated region
      $region9: #{tpu_custom_call.1} parent=5 // pred_check
        _
      $region10: #{tpu_custom_call.1} parent=5 // pred_check_branch
        %359 = sbr.rel (%p356) target = $region12
      $region11: #{tpu_custom_call.1} parent=5 // pred_region
        %s360 = ssub.s32 %s32, 1
        // Predicated region
        $region13: #{tpu_custom_call.1} parent=11 // pred_check
          %p361 = pneg %p70
        $region14: #{tpu_custom_call.1} parent=11 // pred_check_branch
          %363 = sbr.rel (%p361) target = $region16
        $region15: #{tpu_custom_call.1} parent=11 // pred_region
          %s364 = smul.u32 2, %s41
          %366 = vsyncadd [#allocation4], 0
          %s367 = smul.addr %s364, 3
          %s368 = smul.addr %s367, 8
          %s369 = scalar_lea.hbm %s0, %s368
          %s370 = sshll.u32 %s369, 4
          %s371 = int_to_ptr.hbm [resolvable:$true] %s370
          %s372 = sshll.u32 [#allocation3], 4
          %s373 = int_to_ptr.vmem [resolvable:$true] %s372
          %378 = dma.hbm_to_vmem [thread:$0]  %s371, 768, %s373, [#allocation4], 384, 384, 24
        $region16: #{tpu_custom_call.1} parent=11 // pred_fallthru
          _
        // Predicated region
        $region17: #{tpu_custom_call.1} parent=11 // pred_check
          %p379 = pneg %p299
        $region18: #{tpu_custom_call.1} parent=11 // pred_check_branch
          %381 = sbr.rel (%p379) target = $region20
        $region19: #{tpu_custom_call.1} parent=11 // pred_region
          %383 = vsyncadd [#allocation19], 0
          %s384 = sshll.u32 %s9, 4
          %s385 = int_to_ptr.hbm [resolvable:$true] %s384
          %s386 = sshll.u32 [#allocation18], 4
          %s387 = int_to_ptr.vmem [resolvable:$true] %s386
          %392 = dma.hbm_to_vmem [thread:$0]  %s385, 6144, %s387, [#allocation19], 128, 128, 8
        $region20: #{tpu_custom_call.1} parent=11 // pred_fallthru
          _
        // Predicated region
        $region21: #{tpu_custom_call.1} parent=11 // pred_check
          %p393 = pneg %p320
        $region22: #{tpu_custom_call.1} parent=11 // pred_check_branch
          %395 = sbr.rel (%p393) target = $region24
        $region23: #{tpu_custom_call.1} parent=11 // pred_region
          %397 = vsyncadd [#allocation19], 0
          %s399 = sshll.u32 %s10, 4
          %s400 = int_to_ptr.hbm [resolvable:$true] %s399
          %s401 = sshll.u32 [#allocation20], 4
          %s402 = int_to_ptr.vmem [resolvable:$true] %s401
          %404 = dma.hbm_to_vmem [thread:$0]  %s400, 32, %s402, [#allocation19]
        $region24: #{tpu_custom_call.1} parent=11 // pred_fallthru
          _
      $region12: #{tpu_custom_call.1} parent=5 // pred_fallthru
        _
      %p405 = scmp.lt.s32.totalorder %s32, 6
      // Predicated region
      $region25: #{tpu_custom_call.1} parent=5 // pred_check
        %p406 = pneg %p405
      $region26: #{tpu_custom_call.1} parent=5 // pred_check_branch
        %408 = sbr.rel (%p406) target = $region28
      $region27: #{tpu_custom_call.1} parent=5 // pred_region
        // Predicated region
        $region29: #{tpu_custom_call.1} parent=27 // pred_check
          %p409 = pneg %p90
        $region30: #{tpu_custom_call.1} parent=27 // pred_check_branch
          %411 = sbr.rel (%p409) target = $region32
        $region31: #{tpu_custom_call.1} parent=27 // pred_region
          %s412 = sand.u32 %s32, 1
          %s413 = scalar_lea.sflag [#allocation7], %s412
          %s414 = sand.u32 %s80, 1
          %s415 = smul.addr %s414, 1728
          %s416 = scalar_lea.vmem [#allocation6], %s415
          %418 = vsyncadd %s413, 0
          %s419 = smul.addr %s40, 432
          %s420 = smul.addr %s419, 4
          %s421 = scalar_lea.hbm %s1, %s420
          %s422 = sshll.u32 %s421, 4
          %s423 = int_to_ptr.hbm [resolvable:$true] %s422
          %s424 = sshll.u32 %s416, 4
          %s425 = int_to_ptr.vmem [resolvable:$true] %s424
          %430 = dma.hbm_to_vmem [thread:$0]  %s423, 27648, %s425, %s413, 576, 576, 36
        $region32: #{tpu_custom_call.1} parent=27 // pred_fallthru
          _
        // Predicated region
        $region33: #{tpu_custom_call.1} parent=27 // pred_check
          %p431 = pneg %p116
        $region34: #{tpu_custom_call.1} parent=27 // pred_check_branch
          %433 = sbr.rel (%p431) target = $region36
        $region35: #{tpu_custom_call.1} parent=27 // pred_region
          %s434 = sand.u32 %s32, 1
          %s435 = scalar_lea.sflag [#allocation7], %s434
          %s436 = sand.u32 %s106, 1
          %s437 = smul.addr %s436, 9
          %s438 = scalar_lea.vmem [#allocation8], %s437
          %440 = vsyncadd %s435, 0
          %s441 = smul.addr %s40, 9
          %s442 = scalar_lea.hbm %s2, %s441
          %s444 = sshll.u32 %s442, 4
          %s445 = int_to_ptr.hbm [resolvable:$true] %s444
          %s446 = sshll.u32 %s438, 4
          %s447 = int_to_ptr.vmem [resolvable:$true] %s446
          %449 = dma.hbm_to_vmem [thread:$0]  %s445, 144, %s447, %s435
        $region36: #{tpu_custom_call.1} parent=27 // pred_fallthru
          _
        // Predicated region
        $region37: #{tpu_custom_call.1} parent=27 // pred_check
          %p450 = pneg %p142
        $region38: #{tpu_custom_call.1} parent=27 // pred_check_branch
          %452 = sbr.rel (%p450) target = $region40
        $region39: #{tpu_custom_call.1} parent=27 // pred_region
          %s453 = sand.u32 %s32, 1
          %s454 = scalar_lea.sflag [#allocation10], %s453
          %s455 = sand.u32 %s132, 1
          %s456 = smul.addr %s455, 576
          %s457 = scalar_lea.vmem [#allocation9], %s456
          %459 = vsyncadd %s454, 0
          %s460 = smul.addr %s40, 144
          %s461 = smul.addr %s460, 4
          %s462 = scalar_lea.hbm %s3, %s461
          %s463 = sshll.u32 %s462, 4
          %s464 = int_to_ptr.hbm [resolvable:$true] %s463
          %s465 = sshll.u32 %s457, 4
          %s466 = int_to_ptr.vmem [resolvable:$true] %s465
          %471 = dma.hbm_to_vmem [thread:$0]  %s464, 9216, %s466, %s454, 192, 192, 12
        $region40: #{tpu_custom_call.1} parent=27 // pred_fallthru
          _
        // Predicated region
        $region41: #{tpu_custom_call.1} parent=27 // pred_check
          %p472 = pneg %p168
        $region42: #{tpu_custom_call.1} parent=27 // pred_check_branch
          %474 = sbr.rel (%p472) target = $region44
        $region43: #{tpu_custom_call.1} parent=27 // pred_region
          %s475 = sand.u32 %s32, 1
          %s476 = scalar_lea.sflag [#allocation10], %s475
          %s477 = sand.u32 %s158, 1
          %s478 = smul.addr %s477, 3
          %s479 = scalar_lea.vmem [#allocation11], %s478
          %481 = vsyncadd %s476, 0
          %s482 = smul.addr %s40, 3
          %s483 = scalar_lea.hbm %s4, %s482
          %s485 = sshll.u32 %s483, 4
          %s486 = int_to_ptr.hbm [resolvable:$true] %s485
          %s487 = sshll.u32 %s479, 4
          %s488 = int_to_ptr.vmem [resolvable:$true] %s487
          %490 = dma.hbm_to_vmem [thread:$0]  %s486, 48, %s488, %s476
        $region44: #{tpu_custom_call.1} parent=27 // pred_fallthru
          _
        // Predicated region
        $region45: #{tpu_custom_call.1} parent=27 // pred_check
          %p491 = pneg %p194
        $region46: #{tpu_custom_call.1} parent=27 // pred_check_branch
          %493 = sbr.rel (%p491) target = $region48
        $region47: #{tpu_custom_call.1} parent=27 // pred_region
          %s494 = sand.u32 %s32, 1
          %s495 = scalar_lea.sflag [#allocation13], %s494
          %s496 = sand.u32 %s184, 1
          %s497 = smul.addr %s496, 2304
          %s498 = scalar_lea.vmem [#allocation12], %s497
          %500 = vsyncadd %s495, 0
          %s501 = smul.addr %s40, 576
          %s502 = smul.addr %s501, 4
          %s503 = scalar_lea.hbm %s5, %s502
          %s504 = sshll.u32 %s503, 4
          %s505 = int_to_ptr.hbm [resolvable:$true] %s504
          %s506 = sshll.u32 %s498, 4
          %s507 = int_to_ptr.vmem [resolvable:$true] %s506
          %512 = dma.hbm_to_vmem [thread:$0]  %s505, 36864, %s507, %s495, 768, 768, 48
        $region48: #{tpu_custom_call.1} parent=27 // pred_fallthru
          _
        // Predicated region
        $region49: #{tpu_custom_call.1} parent=27 // pred_check
          %p513 = pneg %p220
        $region50: #{tpu_custom_call.1} parent=27 // pred_check_branch
          %515 = sbr.rel (%p513) target = $region52
        $region51: #{tpu_custom_call.1} parent=27 // pred_region
          %s516 = sand.u32 %s32, 1
          %s517 = scalar_lea.sflag [#allocation13], %s516
          %s518 = sand.u32 %s210, 1
          %s519 = smul.addr %s518, 12
          %s520 = scalar_lea.vmem [#allocation14], %s519
          %522 = vsyncadd %s517, 0
          %s523 = smul.addr %s40, 12
          %s524 = scalar_lea.hbm %s6, %s523
          %s526 = sshll.u32 %s524, 4
          %s527 = int_to_ptr.hbm [resolvable:$true] %s526
          %s528 = sshll.u32 %s520, 4
          %s529 = int_to_ptr.vmem [resolvable:$true] %s528
          %531 = dma.hbm_to_vmem [thread:$0]  %s527, 192, %s529, %s517
        $region52: #{tpu_custom_call.1} parent=27 // pred_fallthru
          _
        // Predicated region
        $region53: #{tpu_custom_call.1} parent=27 // pred_check
          %p532 = pneg %p246
        $region54: #{tpu_custom_call.1} parent=27 // pred_check_branch
          %534 = sbr.rel (%p532) target = $region56
        $region55: #{tpu_custom_call.1} parent=27 // pred_region
          %s535 = sand.u32 %s32, 1
          %s536 = scalar_lea.sflag [#allocation16], %s535
          %s537 = sand.u32 %s236, 1
          %s538 = smul.addr %s537, 2304
          %s539 = scalar_lea.vmem [#allocation15], %s538
          %541 = vsyncadd %s536, 0
          %s542 = smul.addr %s40, 576
          %s543 = smul.addr %s542, 4
          %s544 = scalar_lea.hbm %s7, %s543
          %s545 = sshll.u32 %s544, 4
          %s546 = int_to_ptr.hbm [resolvable:$true] %s545
          %s547 = sshll.u32 %s539, 4
          %s548 = int_to_ptr.vmem [resolvable:$true] %s547
          %553 = dma.hbm_to_vmem [thread:$0]  %s546, 36864, %s548, %s536, 192, 192, 12
        $region56: #{tpu_custom_call.1} parent=27 // pred_fallthru
          _
        // Predicated region
        $region57: #{tpu_custom_call.1} parent=27 // pred_check
          %p554 = pneg %p272
        $region58: #{tpu_custom_call.1} parent=27 // pred_check_branch
          %556 = sbr.rel (%p554) target = $region60
        $region59: #{tpu_custom_call.1} parent=27 // pred_region
          %s557 = sand.u32 %s32, 1
          %s558 = scalar_lea.sflag [#allocation16], %s557
          %s559 = sand.u32 %s262, 1
          %s560 = smul.addr %s559, 3
          %s561 = scalar_lea.vmem [#allocation17], %s560
          %563 = vsyncadd %s558, 0
          %s564 = smul.addr %s40, 3
          %s565 = scalar_lea.hbm %s8, %s564
          %s567 = sshll.u32 %s565, 4
          %s568 = int_to_ptr.hbm [resolvable:$true] %s567
          %s569 = sshll.u32 %s561, 4
          %s570 = int_to_ptr.vmem [resolvable:$true] %s569
          %572 = dma.hbm_to_vmem [thread:$0]  %s568, 48, %s570, %s558
        $region60: #{tpu_custom_call.1} parent=27 // pred_fallthru
          _
      $region28: #{tpu_custom_call.1} parent=5 // pred_fallthru
        _
      %p573 = scmp.le.s32.totalorder 1, %s32
      %p574 = scmp.lt.s32.totalorder %s32, 7
      %p575 = pnand %p573, %p574
      %p576 = pneg %p575
      // Predicated region
      $region61: #{tpu_custom_call.1} parent=5 // pred_check
        _
      $region62: #{tpu_custom_call.1} parent=5 // pred_check_branch
        %578 = sbr.rel (%p575) target = $region64
      $region63: #{tpu_custom_call.1} parent=5 // pred_region
        %s579 = ssub.s32 %s32, 1
        // Predicated region
        $region65: #{tpu_custom_call.1} parent=63 // pred_check
          %p580 = pneg %p70
        $region66: #{tpu_custom_call.1} parent=63 // pred_check_branch
          %582 = sbr.rel (%p580) target = $region68
        $region67: #{tpu_custom_call.1} parent=63 // pred_region
          %584 = dma.done [#allocation4], 768
        $region68: #{tpu_custom_call.1} parent=63 // pred_fallthru
          _
        %s585 = sand.u32 %s37, 1
        %s586 = scalar_lea.sflag [#allocation7], %s585
        %s587 = sand.u32 %s83, 1
        %s588 = smul.addr %s587, 1728
        %s589 = scalar_lea.vmem [#allocation6], %s588
        // Predicated region
        $region69: #{tpu_custom_call.1} parent=63 // pred_check
          %p590 = pneg %p96
        $region70: #{tpu_custom_call.1} parent=63 // pred_check_branch
          %592 = sbr.rel (%p590) target = $region72
        $region71: #{tpu_custom_call.1} parent=63 // pred_region
          %594 = dma.done %s586, 27648
        $region72: #{tpu_custom_call.1} parent=63 // pred_fallthru
          _
        %s595 = sand.u32 %s37, 1
        %s596 = scalar_lea.sflag [#allocation7], %s595
        %s597 = sand.u32 %s109, 1
        %s598 = smul.addr %s597, 9
        %s599 = scalar_lea.vmem [#allocation8], %s598
        // Predicated region
        $region73: #{tpu_custom_call.1} parent=63 // pred_check
          %p600 = pneg %p122
        $region74: #{tpu_custom_call.1} parent=63 // pred_check_branch
          %602 = sbr.rel (%p600) target = $region76
        $region75: #{tpu_custom_call.1} parent=63 // pred_region
          %604 = dma.done %s596, 144
        $region76: #{tpu_custom_call.1} parent=63 // pred_fallthru
          _
        %s605 = sand.u32 %s37, 1
        %s606 = scalar_lea.sflag [#allocation10], %s605
        %s607 = sand.u32 %s135, 1
        %s608 = smul.addr %s607, 576
        %s609 = scalar_lea.vmem [#allocation9], %s608
        // Predicated region
        $region77: #{tpu_custom_call.1} parent=63 // pred_check
          %p610 = pneg %p148
        $region78: #{tpu_custom_call.1} parent=63 // pred_check_branch
          %612 = sbr.rel (%p610) target = $region80
        $region79: #{tpu_custom_call.1} parent=63 // pred_region
          %614 = dma.done %s606, 9216
        $region80: #{tpu_custom_call.1} parent=63 // pred_fallthru
          _
        %s615 = sand.u32 %s37, 1
        %s616 = scalar_lea.sflag [#allocation10], %s615
        %s617 = sand.u32 %s161, 1
        %s618 = smul.addr %s617, 3
        %s619 = scalar_lea.vmem [#allocation11], %s618
        // Predicated region
        $region81: #{tpu_custom_call.1} parent=63 // pred_check
          %p620 = pneg %p174
        $region82: #{tpu_custom_call.1} parent=63 // pred_check_branch
          %622 = sbr.rel (%p620) target = $region84
        $region83: #{tpu_custom_call.1} parent=63 // pred_region
          %624 = dma.done %s616, 48
        $region84: #{tpu_custom_call.1} parent=63 // pred_fallthru
          _
        %s625 = sand.u32 %s37, 1
        %s626 = scalar_lea.sflag [#allocation13], %s625
        %s627 = sand.u32 %s187, 1
        %s628 = smul.addr %s627, 2304
        %s629 = scalar_lea.vmem [#allocation12], %s628
        // Predicated region
        $region85: #{tpu_custom_call.1} parent=63 // pred_check
          %p630 = pneg %p200
        $region86: #{tpu_custom_call.1} parent=63 // pred_check_branch
          %632 = sbr.rel (%p630) target = $region88
        $region87: #{tpu_custom_call.1} parent=63 // pred_region
          %634 = dma.done %s626, 36864
        $region88: #{tpu_custom_call.1} parent=63 // pred_fallthru
          _
        %s635 = sand.u32 %s37, 1
        %s636 = scalar_lea.sflag [#allocation13], %s635
        %s637 = sand.u32 %s213, 1
        %s638 = smul.addr %s637, 12
        %s639 = scalar_lea.vmem [#allocation14], %s638
        // Predicated region
        $region89: #{tpu_custom_call.1} parent=63 // pred_check
          %p640 = pneg %p226
        $region90: #{tpu_custom_call.1} parent=63 // pred_check_branch
          %642 = sbr.rel (%p640) target = $region92
        $region91: #{tpu_custom_call.1} parent=63 // pred_region
          %644 = dma.done %s636, 192
        $region92: #{tpu_custom_call.1} parent=63 // pred_fallthru
          _
        %s645 = sand.u32 %s37, 1
        %s646 = scalar_lea.sflag [#allocation16], %s645
        %s647 = sand.u32 %s239, 1
        %s648 = smul.addr %s647, 2304
        %s649 = scalar_lea.vmem [#allocation15], %s648
        // Predicated region
        $region93: #{tpu_custom_call.1} parent=63 // pred_check
          %p650 = pneg %p252
        $region94: #{tpu_custom_call.1} parent=63 // pred_check_branch
          %652 = sbr.rel (%p650) target = $region96
        $region95: #{tpu_custom_call.1} parent=63 // pred_region
          %654 = dma.done %s646, 36864
        $region96: #{tpu_custom_call.1} parent=63 // pred_fallthru
          _
        %s655 = sand.u32 %s37, 1
        %s656 = scalar_lea.sflag [#allocation16], %s655
        %s657 = sand.u32 %s265, 1
        %s658 = smul.addr %s657, 3
        %s659 = scalar_lea.vmem [#allocation17], %s658
        // Predicated region
        $region97: #{tpu_custom_call.1} parent=63 // pred_check
          %p660 = pneg %p278
        $region98: #{tpu_custom_call.1} parent=63 // pred_check_branch
          %662 = sbr.rel (%p660) target = $region100
        $region99: #{tpu_custom_call.1} parent=63 // pred_region
          %664 = dma.done %s656, 48
        $region100: #{tpu_custom_call.1} parent=63 // pred_fallthru
          _
        // Predicated region
        $region101: #{tpu_custom_call.1} parent=63 // pred_check
          %p665 = pneg %p299
        $region102: #{tpu_custom_call.1} parent=63 // pred_check_branch
          %667 = sbr.rel (%p665) target = $region104
        $region103: #{tpu_custom_call.1} parent=63 // pred_region
          %669 = dma.done [#allocation19], 6144
        $region104: #{tpu_custom_call.1} parent=63 // pred_fallthru
          _
        // Predicated region
        $region105: #{tpu_custom_call.1} parent=63 // pred_check
          %p670 = pneg %p320
        $region106: #{tpu_custom_call.1} parent=63 // pred_check_branch
          %672 = sbr.rel (%p670) target = $region108
        $region107: #{tpu_custom_call.1} parent=63 // pred_region
          %674 = dma.done [#allocation19], 32
        $region108: #{tpu_custom_call.1} parent=63 // pred_fallthru
          _
        %p675 = pneg %p70
        %p676 = pneg %p67
        %s677 = sand.u32 %s37, 1
        %s678 = scalar_lea.sflag [#allocation7], %s677
        %s679 = sand.u32 %s83, 1
        %s680 = smul.addr %s679, 1728
        %s681 = scalar_lea.vmem [#allocation6], %s680
        %p682 = pneg %p96
        %p683 = pneg %p93
        %s684 = sand.u32 %s37, 1
        %s685 = scalar_lea.sflag [#allocation7], %s684
        %s686 = sand.u32 %s109, 1
        %s687 = smul.addr %s686, 9
        %s688 = scalar_lea.vmem [#allocation8], %s687
        %p689 = pneg %p122
        %p690 = pneg %p119
        %s691 = sand.u32 %s37, 1
        %s692 = scalar_lea.sflag [#allocation10], %s691
        %s693 = sand.u32 %s135, 1
        %s694 = smul.addr %s693, 576
        %s695 = scalar_lea.vmem [#allocation9], %s694
        %p696 = pneg %p148
        %p697 = pneg %p145
        %s698 = sand.u32 %s37, 1
        %s699 = scalar_lea.sflag [#allocation10], %s698
        %s700 = sand.u32 %s161, 1
        %s701 = smul.addr %s700, 3
        %s702 = scalar_lea.vmem [#allocation11], %s701
        %p703 = pneg %p174
        %p704 = pneg %p171
        %s705 = sand.u32 %s37, 1
        %s706 = scalar_lea.sflag [#allocation13], %s705
        %s707 = sand.u32 %s187, 1
        %s708 = smul.addr %s707, 2304
        %s709 = scalar_lea.vmem [#allocation12], %s708
        %p710 = pneg %p200
        %p711 = pneg %p197
        %s712 = sand.u32 %s37, 1
        %s713 = scalar_lea.sflag [#allocation13], %s712
        %s714 = sand.u32 %s213, 1
        %s715 = smul.addr %s714, 12
        %s716 = scalar_lea.vmem [#allocation14], %s715
        %p717 = pneg %p226
        %p718 = pneg %p223
        %s719 = sand.u32 %s37, 1
        %s720 = scalar_lea.sflag [#allocation16], %s719
        %s721 = sand.u32 %s239, 1
        %s722 = smul.addr %s721, 2304
        %s723 = scalar_lea.vmem [#allocation15], %s722
        %p724 = pneg %p252
        %p725 = pneg %p249
        %s726 = sand.u32 %s37, 1
        %s727 = scalar_lea.sflag [#allocation16], %s726
        %s728 = sand.u32 %s265, 1
        %s729 = smul.addr %s728, 3
        %s730 = scalar_lea.vmem [#allocation17], %s729
        %p731 = pneg %p278
        %p732 = pneg %p275
        %p733 = pneg %p299
        %p734 = pneg %p296
        %p735 = pneg %p320
        %p736 = pneg %p317
        %p737 = pneg %p346
        %p738 = pneg %p343
        %s739 = smul.u32 2, %s41
        %s740 = smul.u32 2, %s41
        %p742 = scmp.eq.s32.totalorder %s42, 0
        // Predicated region
        $region109: #{tpu_custom_call.1} parent=63 // pred_check
          %p743 = pneg %p742
        $region110: #{tpu_custom_call.1} parent=63 // pred_check_branch
          %745 = sbr.rel (%p743) target = $region112
        $region111: #{tpu_custom_call.1} parent=63 // pred_region
          %v746 = vld [vmem:[#allocation3] sm:$0xff]
          %v747 = vld [vmem:[#allocation3 + $0x8] sm:$0xff]
          %v748 = vld [vmem:[#allocation3 + $0x10] sm:$0xff]
          %v749 = vld [vmem:[#allocation3 + $0x18] sm:$0xff]
          %v750 = vld [vmem:[#allocation3 + $0x20] sm:$0xff]
          %v751 = vld [vmem:[#allocation3 + $0x28] sm:$0xff]
          %752 = vst [vmem:[#allocation2] sm:$0xff] %v746
          %753 = vst [vmem:[#allocation2 + $0x8] sm:$0xff] %v747
          %754 = vst [vmem:[#allocation2 + $0x10] sm:$0xff] %v748
          %755 = vst [vmem:[#allocation2 + $0x18] sm:$0xff] %v749
          %756 = vst [vmem:[#allocation2 + $0x20] sm:$0xff] %v750
          %757 = vst [vmem:[#allocation2 + $0x28] sm:$0xff] %v751
        $region112: #{tpu_custom_call.1} parent=63 // pred_fallthru
          _
        %v758 = vld [vmem:[#allocation2] sm:$0xff]
        %v759 = vld [vmem:[#allocation2 + $0x8] sm:$0xff]
        %v760 = vld [vmem:[#allocation2 + $0x10] sm:$0xff]
        %v761 = vld [vmem:[#allocation2 + $0x18] sm:$0xff]
        %v762 = vld [vmem:[#allocation2 + $0x20] sm:$0xff]
        %v763 = vld [vmem:[#allocation2 + $0x28] sm:$0xff]
        %v764 = vadd.f32 %v758, %v759
        %v765 = vadd.f32 %v764, %v760
        %766 = vadd.xlane.f32.xlu0 %v765
        %v767 = vpop.xlane.xlu0 %766
        %v768 = vadd.f32 %v761, %v762
        %v769 = vadd.f32 %v768, %v763
        %770 = vadd.xlane.f32.xlu0 %v769
        %v771 = vpop.xlane.xlu0 %770
        %v772 = vrcp.pop 384.0
        %v773 = vmul.f32 384.0, %v772
        %v774 = vsub.f32 1.0, %v773
        %v775 = vmul.f32 %v772, %v774
        %v776 = vadd.f32 %v772, %v775
        %vm777 = vweird.f32 %v772
        %v778 = vsel %vm777, %v772, %v776
        %v779 = vmul.f32 %v767, %v778
        %v780 = vmul.f32 %v771, %v778
        %v781 = vsub.f32 %v758, %v779
        %v782 = vsub.f32 %v759, %v779
        %v783 = vsub.f32 %v760, %v779
        %v784 = vsub.f32 %v761, %v780
        %v785 = vsub.f32 %v762, %v780
        %v786 = vsub.f32 %v763, %v780
        %v787 = vmul.f32 %v781, %v781
        %v788 = vmul.f32 %v782, %v782
        %v789 = vmul.f32 %v783, %v783
        %v790 = vmul.f32 %v784, %v784
        %v791 = vmul.f32 %v785, %v785
        %v792 = vmul.f32 %v786, %v786
        %v793 = vadd.f32 %v787, %v788
        %v794 = vadd.f32 %v793, %v789
        %795 = vadd.xlane.f32.xlu0 %v794
        %v796 = vpop.xlane.xlu0 %795
        %v797 = vadd.f32 %v790, %v791
        %v798 = vadd.f32 %v797, %v792
        %799 = vadd.xlane.f32.xlu0 %v798
        %v800 = vpop.xlane.xlu0 %799
        %v801 = vmul.f32 %v796, %v778
        %v802 = vmul.f32 %v800, %v778
        %v803 = vadd.f32 %v801, 1e-05
        %v804 = vadd.f32 %v802, 1e-05
        %v805 = vrsqrt.pop %v803
        %v806 = vmul.f32 %v805, %v803
        %v807 = vmul.f32 %v806, %v805
        %v808 = vmul.f32 0.5, %v807
        %v809 = vsub.f32 1.5, %v808
        %v810 = vmul.f32 %v805, %v809
        %vm811 = vweird.f32 %v803
        %vm812 = vweird.f32 %v805
        %vm813 = vmor %vm811, %vm812
        %v814 = vsel %vm813, %v805, %v810
        %v815 = vrsqrt.pop %v804
        %v816 = vmul.f32 %v815, %v804
        %v817 = vmul.f32 %v816, %v815
        %v818 = vmul.f32 0.5, %v817
        %v819 = vsub.f32 1.5, %v818
        %v820 = vmul.f32 %v815, %v819
        %vm821 = vweird.f32 %v804
        %vm822 = vweird.f32 %v815
        %vm823 = vmor %vm821, %vm822
        %v824 = vsel %vm823, %v815, %v820
        %v825 = vmul.f32 %v781, %v814
        %v826 = vmul.f32 %v782, %v814
        %v827 = vmul.f32 %v783, %v814
        %v828 = vmul.f32 %v784, %v824
        %v829 = vmul.f32 %v785, %v824
        %v830 = vmul.f32 %v786, %v824
        %v831 = vpack.c.bf16 %v828, %v825
        %v832 = vpack.c.bf16 %v829, %v826
        %v833 = vpack.c.bf16 %v830, %v827
        %v834 = vld [vmem:[%s589] sm:$0xff]
        %v835 = vld [vmem:[%s589 + $0x8] sm:$0xff]
        %v836 = vld [vmem:[%s589 + $0x10] sm:$0xff]
        %v837 = vld [vmem:[%s589 + $0x18] sm:$0xff]
        %v838 = vld [vmem:[%s589 + $0x20] sm:$0xf]
        %v839 = vld [vmem:[%s589 + $0x24] sm:$0xff]
        %v840 = vld [vmem:[%s589 + $0x2c] sm:$0xff]
        %v841 = vld [vmem:[%s589 + $0x34] sm:$0xff]
        %v842 = vld [vmem:[%s589 + $0x3c] sm:$0xff]
        %v843 = vld [vmem:[%s589 + $0x44] sm:$0xf]
        %v844 = vld [vmem:[%s589 + $0x48] sm:$0xff]
        %v845 = vld [vmem:[%s589 + $0x50] sm:$0xff]
        %v846 = vld [vmem:[%s589 + $0x58] sm:$0xff]
        %v847 = vld [vmem:[%s589 + $0x60] sm:$0xff]
        %v848 = vld [vmem:[%s589 + $0x68] sm:$0xf]
        %v849 = vld [vmem:[%s589 + $0x6c] sm:$0xff]
        %v850 = vld [vmem:[%s589 + $0x74] sm:$0xff]
        %v851 = vld [vmem:[%s589 + $0x7c] sm:$0xff]
        %v852 = vld [vmem:[%s589 + $0x84] sm:$0xff]
        %v853 = vld [vmem:[%s589 + $0x8c] sm:$0xf]
        %v854 = vld [vmem:[%s589 + $0x90] sm:$0xff]
        %v855 = vld [vmem:[%s589 + $0x98] sm:$0xff]
        %v856 = vld [vmem:[%s589 + $0xa0] sm:$0xff]
        %v857 = vld [vmem:[%s589 + $0xa8] sm:$0xff]
        %v858 = vld [vmem:[%s589 + $0xb0] sm:$0xf]
        %v859 = vld [vmem:[%s589 + $0xb4] sm:$0xff]
        %v860 = vld [vmem:[%s589 + $0xbc] sm:$0xff]
        %v861 = vld [vmem:[%s589 + $0xc4] sm:$0xff]
        %v862 = vld [vmem:[%s589 + $0xcc] sm:$0xff]
        %v863 = vld [vmem:[%s589 + $0xd4] sm:$0xf]
        %v864 = vld [vmem:[%s589 + $0xd8] sm:$0xff]
        %v865 = vld [vmem:[%s589 + $0xe0] sm:$0xff]
        %v866 = vld [vmem:[%s589 + $0xe8] sm:$0xff]
        %v867 = vld [vmem:[%s589 + $0xf0] sm:$0xff]
        %v868 = vld [vmem:[%s589 + $0xf8] sm:$0xf]
        %v869 = vld [vmem:[%s589 + $0xfc] sm:$0xff]
        %v870 = vld [vmem:[%s589 + $0x104] sm:$0xff]
        %v871 = vld [vmem:[%s589 + $0x10c] sm:$0xff]
        %v872 = vld [vmem:[%s589 + $0x114] sm:$0xff]
        %v873 = vld [vmem:[%s589 + $0x11c] sm:$0xf]
        %v874 = vld [vmem:[%s589 + $0x120] sm:$0xff]
        %v875 = vld [vmem:[%s589 + $0x128] sm:$0xff]
        %v876 = vld [vmem:[%s589 + $0x130] sm:$0xff]
        %v877 = vld [vmem:[%s589 + $0x138] sm:$0xff]
        %v878 = vld [vmem:[%s589 + $0x140] sm:$0xf]
        %v879 = vld [vmem:[%s589 + $0x144] sm:$0xff]
        %v880 = vld [vmem:[%s589 + $0x14c] sm:$0xff]
        %v881 = vld [vmem:[%s589 + $0x154] sm:$0xff]
        %v882 = vld [vmem:[%s589 + $0x15c] sm:$0xff]
        %v883 = vld [vmem:[%s589 + $0x164] sm:$0xf]
        %v884 = vld [vmem:[%s589 + $0x168] sm:$0xff]
        %v885 = vld [vmem:[%s589 + $0x170] sm:$0xff]
        %v886 = vld [vmem:[%s589 + $0x178] sm:$0xff]
        %v887 = vld [vmem:[%s589 + $0x180] sm:$0xff]
        %v888 = vld [vmem:[%s589 + $0x188] sm:$0xf]
        %v889 = vld [vmem:[%s589 + $0x18c] sm:$0xff]
        %v890 = vld [vmem:[%s589 + $0x194] sm:$0xff]
        %v891 = vld [vmem:[%s589 + $0x19c] sm:$0xff]
        %v892 = vld [vmem:[%s589 + $0x1a4] sm:$0xff]
        %v893 = vld [vmem:[%s589 + $0x1ac] sm:$0xf]
        %v894 = vld [vmem:[%s589 + $0x1b0] sm:$0xff]
        %v895 = vld [vmem:[%s589 + $0x1b8] sm:$0xff]
        %v896 = vld [vmem:[%s589 + $0x1c0] sm:$0xff]
        %v897 = vld [vmem:[%s589 + $0x1c8] sm:$0xff]
        %v898 = vld [vmem:[%s589 + $0x1d0] sm:$0xf]
        %v899 = vld [vmem:[%s589 + $0x1d4] sm:$0xff]
        %v900 = vld [vmem:[%s589 + $0x1dc] sm:$0xff]
        %v901 = vld [vmem:[%s589 + $0x1e4] sm:$0xff]
        %v902 = vld [vmem:[%s589 + $0x1ec] sm:$0xff]
        %v903 = vld [vmem:[%s589 + $0x1f4] sm:$0xf]
        %v904 = vld [vmem:[%s589 + $0x1f8] sm:$0xff]
        %v905 = vld [vmem:[%s589 + $0x200] sm:$0xff]
        %v906 = vld [vmem:[%s589 + $0x208] sm:$0xff]
        %v907 = vld [vmem:[%s589 + $0x210] sm:$0xff]
        %v908 = vld [vmem:[%s589 + $0x218] sm:$0xf]
        %v909 = vld [vmem:[%s589 + $0x21c] sm:$0xff]
        %v910 = vld [vmem:[%s589 + $0x224] sm:$0xff]
        %v911 = vld [vmem:[%s589 + $0x22c] sm:$0xff]
        %v912 = vld [vmem:[%s589 + $0x234] sm:$0xff]
        %v913 = vld [vmem:[%s589 + $0x23c] sm:$0xf]
        %v914 = vld [vmem:[%s589 + $0x240] sm:$0xff]
        %v915 = vld [vmem:[%s589 + $0x248] sm:$0xff]
        %v916 = vld [vmem:[%s589 + $0x250] sm:$0xff]
        %v917 = vld [vmem:[%s589 + $0x258] sm:$0xff]
        %v918 = vld [vmem:[%s589 + $0x260] sm:$0xf]
        %v919 = vld [vmem:[%s589 + $0x264] sm:$0xff]
        %v920 = vld [vmem:[%s589 + $0x26c] sm:$0xff]
        %v921 = vld [vmem:[%s589 + $0x274] sm:$0xff]
        %v922 = vld [vmem:[%s589 + $0x27c] sm:$0xff]
        %v923 = vld [vmem:[%s589 + $0x284] sm:$0xf]
        %v924 = vld [vmem:[%s589 + $0x288] sm:$0xff]
        %v925 = vld [vmem:[%s589 + $0x290] sm:$0xff]
        %v926 = vld [vmem:[%s589 + $0x298] sm:$0xff]
        %v927 = vld [vmem:[%s589 + $0x2a0] sm:$0xff]
        %v928 = vld [vmem:[%s589 + $0x2a8] sm:$0xf]
        %v929 = vld [vmem:[%s589 + $0x2ac] sm:$0xff]
        %v930 = vld [vmem:[%s589 + $0x2b4] sm:$0xff]
        %v931 = vld [vmem:[%s589 + $0x2bc] sm:$0xff]
        %v932 = vld [vmem:[%s589 + $0x2c4] sm:$0xff]
        %v933 = vld [vmem:[%s589 + $0x2cc] sm:$0xf]
        %v934 = vld [vmem:[%s589 + $0x2d0] sm:$0xff]
        %v935 = vld [vmem:[%s589 + $0x2d8] sm:$0xff]
        %v936 = vld [vmem:[%s589 + $0x2e0] sm:$0xff]
        %v937 = vld [vmem:[%s589 + $0x2e8] sm:$0xff]
        %v938 = vld [vmem:[%s589 + $0x2f0] sm:$0xf]
        %v939 = vld [vmem:[%s589 + $0x2f4] sm:$0xff]
        %v940 = vld [vmem:[%s589 + $0x2fc] sm:$0xff]
        %v941 = vld [vmem:[%s589 + $0x304] sm:$0xff]
        %v942 = vld [vmem:[%s589 + $0x30c] sm:$0xff]
        %v943 = vld [vmem:[%s589 + $0x314] sm:$0xf]
        %v944 = vld [vmem:[%s589 + $0x318] sm:$0xff]
        %v945 = vld [vmem:[%s589 + $0x320] sm:$0xff]
        %v946 = vld [vmem:[%s589 + $0x328] sm:$0xff]
        %v947 = vld [vmem:[%s589 + $0x330] sm:$0xff]
        %v948 = vld [vmem:[%s589 + $0x338] sm:$0xf]
        %v949 = vld [vmem:[%s589 + $0x33c] sm:$0xff]
        %v950 = vld [vmem:[%s589 + $0x344] sm:$0xff]
        %v951 = vld [vmem:[%s589 + $0x34c] sm:$0xff]
        %v952 = vld [vmem:[%s589 + $0x354] sm:$0xff]
        %v953 = vld [vmem:[%s589 + $0x35c] sm:$0xf]
        %v954 = vld [vmem:[%s589 + $0x360] sm:$0xff]
        %v955 = vld [vmem:[%s589 + $0x368] sm:$0xff]
        %v956 = vld [vmem:[%s589 + $0x370] sm:$0xff]
        %v957 = vld [vmem:[%s589 + $0x378] sm:$0xff]
        %v958 = vld [vmem:[%s589 + $0x380] sm:$0xf]
        %v959 = vld [vmem:[%s589 + $0x384] sm:$0xff]
        %v960 = vld [vmem:[%s589 + $0x38c] sm:$0xff]
        %v961 = vld [vmem:[%s589 + $0x394] sm:$0xff]
        %v962 = vld [vmem:[%s589 + $0x39c] sm:$0xff]
        %v963 = vld [vmem:[%s589 + $0x3a4] sm:$0xf]
        %v964 = vld [vmem:[%s589 + $0x3a8] sm:$0xff]
        %v965 = vld [vmem:[%s589 + $0x3b0] sm:$0xff]
        %v966 = vld [vmem:[%s589 + $0x3b8] sm:$0xff]
        %v967 = vld [vmem:[%s589 + $0x3c0] sm:$0xff]
        %v968 = vld [vmem:[%s589 + $0x3c8] sm:$0xf]
        %v969 = vld [vmem:[%s589 + $0x3cc] sm:$0xff]
        %v970 = vld [vmem:[%s589 + $0x3d4] sm:$0xff]
        %v971 = vld [vmem:[%s589 + $0x3dc] sm:$0xff]
        %v972 = vld [vmem:[%s589 + $0x3e4] sm:$0xff]
        %v973 = vld [vmem:[%s589 + $0x3ec] sm:$0xf]
        %v974 = vld [vmem:[%s589 + $0x3f0] sm:$0xff]
        %v975 = vld [vmem:[%s589 + $0x3f8] sm:$0xff]
        %v976 = vld [vmem:[%s589 + $0x400] sm:$0xff]
        %v977 = vld [vmem:[%s589 + $0x408] sm:$0xff]
        %v978 = vld [vmem:[%s589 + $0x410] sm:$0xf]
        %v979 = vld [vmem:[%s589 + $0x414] sm:$0xff]
        %v980 = vld [vmem:[%s589 + $0x41c] sm:$0xff]
        %v981 = vld [vmem:[%s589 + $0x424] sm:$0xff]
        %v982 = vld [vmem:[%s589 + $0x42c] sm:$0xff]
        %v983 = vld [vmem:[%s589 + $0x434] sm:$0xf]
        %v984 = vld [vmem:[%s589 + $0x438] sm:$0xff]
        %v985 = vld [vmem:[%s589 + $0x440] sm:$0xff]
        %v986 = vld [vmem:[%s589 + $0x448] sm:$0xff]
        %v987 = vld [vmem:[%s589 + $0x450] sm:$0xff]
        %v988 = vld [vmem:[%s589 + $0x458] sm:$0xf]
        %v989 = vld [vmem:[%s589 + $0x45c] sm:$0xff]
        %v990 = vld [vmem:[%s589 + $0x464] sm:$0xff]
        %v991 = vld [vmem:[%s589 + $0x46c] sm:$0xff]
        %v992 = vld [vmem:[%s589 + $0x474] sm:$0xff]
        %v993 = vld [vmem:[%s589 + $0x47c] sm:$0xf]
        %v994 = vld [vmem:[%s589 + $0x480] sm:$0xff]
        %v995 = vld [vmem:[%s589 + $0x488] sm:$0xff]
        %v996 = vld [vmem:[%s589 + $0x490] sm:$0xff]
        %v997 = vld [vmem:[%s589 + $0x498] sm:$0xff]
        %v998 = vld [vmem:[%s589 + $0x4a0] sm:$0xf]
        %v999 = vld [vmem:[%s589 + $0x4a4] sm:$0xff]
        %v1000 = vld [vmem:[%s589 + $0x4ac] sm:$0xff]
        %v1001 = vld [vmem:[%s589 + $0x4b4] sm:$0xff]
        %v1002 = vld [vmem:[%s589 + $0x4bc] sm:$0xff]
        %v1003 = vld [vmem:[%s589 + $0x4c4] sm:$0xf]
        %v1004 = vld [vmem:[%s589 + $0x4c8] sm:$0xff]
        %v1005 = vld [vmem:[%s589 + $0x4d0] sm:$0xff]
        %v1006 = vld [vmem:[%s589 + $0x4d8] sm:$0xff]
        %v1007 = vld [vmem:[%s589 + $0x4e0] sm:$0xff]
        %v1008 = vld [vmem:[%s589 + $0x4e8] sm:$0xf]
        %v1009 = vld [vmem:[%s589 + $0x4ec] sm:$0xff]
        %v1010 = vld [vmem:[%s589 + $0x4f4] sm:$0xff]
        %v1011 = vld [vmem:[%s589 + $0x4fc] sm:$0xff]
        %v1012 = vld [vmem:[%s589 + $0x504] sm:$0xff]
        %v1013 = vld [vmem:[%s589 + $0x50c] sm:$0xf]
        %v1014 = vld [vmem:[%s589 + $0x510] sm:$0xff]
        %v1015 = vld [vmem:[%s589 + $0x518] sm:$0xff]
        %v1016 = vld [vmem:[%s589 + $0x520] sm:$0xff]
        %v1017 = vld [vmem:[%s589 + $0x528] sm:$0xff]
        %v1018 = vld [vmem:[%s589 + $0x530] sm:$0xf]
        %v1019 = vld [vmem:[%s589 + $0x534] sm:$0xff]
        %v1020 = vld [vmem:[%s589 + $0x53c] sm:$0xff]
        %v1021 = vld [vmem:[%s589 + $0x544] sm:$0xff]
        %v1022 = vld [vmem:[%s589 + $0x54c] sm:$0xff]
        %v1023 = vld [vmem:[%s589 + $0x554] sm:$0xf]
        %v1024 = vld [vmem:[%s589 + $0x558] sm:$0xff]
        %v1025 = vld [vmem:[%s589 + $0x560] sm:$0xff]
        %v1026 = vld [vmem:[%s589 + $0x568] sm:$0xff]
        %v1027 = vld [vmem:[%s589 + $0x570] sm:$0xff]
        %v1028 = vld [vmem:[%s589 + $0x578] sm:$0xf]
        %v1029 = vld [vmem:[%s589 + $0x57c] sm:$0xff]
        %v1030 = vld [vmem:[%s589 + $0x584] sm:$0xff]
        %v1031 = vld [vmem:[%s589 + $0x58c] sm:$0xff]
        %v1032 = vld [vmem:[%s589 + $0x594] sm:$0xff]
        %v1033 = vld [vmem:[%s589 + $0x59c] sm:$0xf]
        %v1034 = vld [vmem:[%s589 + $0x5a0] sm:$0xff]
        %v1035 = vld [vmem:[%s589 + $0x5a8] sm:$0xff]
        %v1036 = vld [vmem:[%s589 + $0x5b0] sm:$0xff]
        %v1037 = vld [vmem:[%s589 + $0x5b8] sm:$0xff]
        %v1038 = vld [vmem:[%s589 + $0x5c0] sm:$0xf]
        %v1039 = vld [vmem:[%s589 + $0x5c4] sm:$0xff]
        %v1040 = vld [vmem:[%s589 + $0x5cc] sm:$0xff]
        %v1041 = vld [vmem:[%s589 + $0x5d4] sm:$0xff]
        %v1042 = vld [vmem:[%s589 + $0x5dc] sm:$0xff]
        %v1043 = vld [vmem:[%s589 + $0x5e4] sm:$0xf]
        %v1044 = vld [vmem:[%s589 + $0x5e8] sm:$0xff]
        %v1045 = vld [vmem:[%s589 + $0x5f0] sm:$0xff]
        %v1046 = vld [vmem:[%s589 + $0x5f8] sm:$0xff]
        %v1047 = vld [vmem:[%s589 + $0x600] sm:$0xff]
        %v1048 = vld [vmem:[%s589 + $0x608] sm:$0xf]
        %v1049 = vld [vmem:[%s589 + $0x60c] sm:$0xff]
        %v1050 = vld [vmem:[%s589 + $0x614] sm:$0xff]
        %v1051 = vld [vmem:[%s589 + $0x61c] sm:$0xff]
        %v1052 = vld [vmem:[%s589 + $0x624] sm:$0xff]
        %v1053 = vld [vmem:[%s589 + $0x62c] sm:$0xf]
        %v1054 = vld [vmem:[%s589 + $0x630] sm:$0xff]
        %v1055 = vld [vmem:[%s589 + $0x638] sm:$0xff]
        %v1056 = vld [vmem:[%s589 + $0x640] sm:$0xff]
        %v1057 = vld [vmem:[%s589 + $0x648] sm:$0xff]
        %v1058 = vld [vmem:[%s589 + $0x650] sm:$0xf]
        %v1059 = vld [vmem:[%s589 + $0x654] sm:$0xff]
        %v1060 = vld [vmem:[%s589 + $0x65c] sm:$0xff]
        %v1061 = vld [vmem:[%s589 + $0x664] sm:$0xff]
        %v1062 = vld [vmem:[%s589 + $0x66c] sm:$0xff]
        %v1063 = vld [vmem:[%s589 + $0x674] sm:$0xf]
        %v1064 = vld [vmem:[%s589 + $0x678] sm:$0xff]
        %v1065 = vld [vmem:[%s589 + $0x680] sm:$0xff]
        %v1066 = vld [vmem:[%s589 + $0x688] sm:$0xff]
        %v1067 = vld [vmem:[%s589 + $0x690] sm:$0xff]
        %v1068 = vld [vmem:[%s589 + $0x698] sm:$0xf]
        %v1069 = vld [vmem:[%s589 + $0x69c] sm:$0xff]
        %v1070 = vld [vmem:[%s589 + $0x6a4] sm:$0xff]
        %v1071 = vld [vmem:[%s589 + $0x6ac] sm:$0xff]
        %v1072 = vld [vmem:[%s589 + $0x6b4] sm:$0xff]
        %v1073 = vld [vmem:[%s589 + $0x6bc] sm:$0xf]
        %v1074 = vld [vmem:[%s599] sm:$0xff]
        %v1075 = vld [vmem:[%s599 + $0x8] sm:$0x1]
        %v1078 = vperm.slane %v1074, 0
        %v1079 = vperm.slane %v1074, 1
        %v1080 = vperm.slane %v1074, 2
        %v1081 = vperm.slane %v1074, 3
        %v1082 = vperm.slane %v1074, 4
        %v1083 = vperm.slane %v1074, 5
        %v1084 = vperm.slane %v1074, 6
        %v1085 = vperm.slane %v1074, 7
        %v1086 = vperm.slane %v1075, 0
        %v1336 = vunpack.c.l.b16 %v834
        %v1337 = vunpack.c.h.b16 %v834
        %v1338 = vunpack.c.l.b16 %v835
        %v1339 = vunpack.c.h.b16 %v835
        %v1340 = vunpack.c.l.b16 %v836
        %v1341 = vunpack.c.h.b16 %v836
        %v1342 = vunpack.c.l.b16 %v837
        %v1343 = vunpack.c.h.b16 %v837
        %v1344 = vunpack.c.l.b16 %v838
        %v1345 = vunpack.c.l.b16 %v839
        %v1346 = vunpack.c.h.b16 %v839
        %v1347 = vunpack.c.l.b16 %v840
        %v1348 = vunpack.c.h.b16 %v840
        %v1349 = vunpack.c.l.b16 %v841
        %v1350 = vunpack.c.h.b16 %v841
        %v1351 = vunpack.c.l.b16 %v842
        %v1352 = vunpack.c.h.b16 %v842
        %v1353 = vunpack.c.l.b16 %v843
        %v1354 = vunpack.c.l.b16 %v844
        %v1355 = vunpack.c.h.b16 %v844
        %v1356 = vunpack.c.l.b16 %v845
        %v1357 = vunpack.c.h.b16 %v845
        %v1358 = vunpack.c.l.b16 %v846
        %v1359 = vunpack.c.h.b16 %v846
        %v1360 = vunpack.c.l.b16 %v847
        %v1361 = vunpack.c.h.b16 %v847
        %v1362 = vunpack.c.l.b16 %v848
        %v1363 = vunpack.c.l.b16 %v849
        %v1364 = vunpack.c.h.b16 %v849
        %v1365 = vunpack.c.l.b16 %v850
        %v1366 = vunpack.c.h.b16 %v850
        %v1367 = vunpack.c.l.b16 %v851
        %v1368 = vunpack.c.h.b16 %v851
        %v1369 = vunpack.c.l.b16 %v852
        %v1370 = vunpack.c.h.b16 %v852
        %v1371 = vunpack.c.l.b16 %v853
        %v1372 = vunpack.c.l.b16 %v854
        %v1373 = vunpack.c.h.b16 %v854
        %v1374 = vunpack.c.l.b16 %v855
        %v1375 = vunpack.c.h.b16 %v855
        %v1376 = vunpack.c.l.b16 %v856
        %v1377 = vunpack.c.h.b16 %v856
        %v1378 = vunpack.c.l.b16 %v857
        %v1379 = vunpack.c.h.b16 %v857
        %v1380 = vunpack.c.l.b16 %v858
        %v1381 = vunpack.c.l.b16 %v859
        %v1382 = vunpack.c.h.b16 %v859
        %v1383 = vunpack.c.l.b16 %v860
        %v1384 = vunpack.c.h.b16 %v860
        %v1385 = vunpack.c.l.b16 %v861
        %v1386 = vunpack.c.h.b16 %v861
        %v1387 = vunpack.c.l.b16 %v862
        %v1388 = vunpack.c.h.b16 %v862
        %v1389 = vunpack.c.l.b16 %v863
        %v1390 = vunpack.c.l.b16 %v864
        %v1391 = vunpack.c.h.b16 %v864
        %v1392 = vunpack.c.l.b16 %v865
        %v1393 = vunpack.c.h.b16 %v865
        %v1394 = vunpack.c.l.b16 %v866
        %v1395 = vunpack.c.h.b16 %v866
        %v1396 = vunpack.c.l.b16 %v867
        %v1397 = vunpack.c.h.b16 %v867
        %v1398 = vunpack.c.l.b16 %v868
        %v1399 = vunpack.c.l.b16 %v869
        %v1400 = vunpack.c.h.b16 %v869
        %v1401 = vunpack.c.l.b16 %v870
        %v1402 = vunpack.c.h.b16 %v870
        %v1403 = vunpack.c.l.b16 %v871
        %v1404 = vunpack.c.h.b16 %v871
        %v1405 = vunpack.c.l.b16 %v872
        %v1406 = vunpack.c.h.b16 %v872
        %v1407 = vunpack.c.l.b16 %v873
        %v1408 = vunpack.c.l.b16 %v874
        %v1409 = vunpack.c.h.b16 %v874
        %v1410 = vunpack.c.l.b16 %v875
        %v1411 = vunpack.c.h.b16 %v875
        %v1412 = vunpack.c.l.b16 %v876
        %v1413 = vunpack.c.h.b16 %v876
        %v1414 = vunpack.c.l.b16 %v877
        %v1415 = vunpack.c.h.b16 %v877
        %v1416 = vunpack.c.l.b16 %v878
        %v1417 = vunpack.c.l.b16 %v879
        %v1418 = vunpack.c.h.b16 %v879
        %v1419 = vunpack.c.l.b16 %v880
        %v1420 = vunpack.c.h.b16 %v880
        %v1421 = vunpack.c.l.b16 %v881
        %v1422 = vunpack.c.h.b16 %v881
        %v1423 = vunpack.c.l.b16 %v882
        %v1424 = vunpack.c.h.b16 %v882
        %v1425 = vunpack.c.l.b16 %v883
        %v1426 = vunpack.c.l.b16 %v884
        %v1427 = vunpack.c.h.b16 %v884
        %v1428 = vunpack.c.l.b16 %v885
        %v1429 = vunpack.c.h.b16 %v885
        %v1430 = vunpack.c.l.b16 %v886
        %v1431 = vunpack.c.h.b16 %v886
        %v1432 = vunpack.c.l.b16 %v887
        %v1433 = vunpack.c.h.b16 %v887
        %v1434 = vunpack.c.l.b16 %v888
        %v1435 = vunpack.c.l.b16 %v889
        %v1436 = vunpack.c.h.b16 %v889
        %v1437 = vunpack.c.l.b16 %v890
        %v1438 = vunpack.c.h.b16 %v890
        %v1439 = vunpack.c.l.b16 %v891
        %v1440 = vunpack.c.h.b16 %v891
        %v1441 = vunpack.c.l.b16 %v892
        %v1442 = vunpack.c.h.b16 %v892
        %v1443 = vunpack.c.l.b16 %v893
        %v1444 = vunpack.c.l.b16 %v894
        %v1445 = vunpack.c.h.b16 %v894
        %v1446 = vunpack.c.l.b16 %v895
        %v1447 = vunpack.c.h.b16 %v895
        %v1448 = vunpack.c.l.b16 %v896
        %v1449 = vunpack.c.h.b16 %v896
        %v1450 = vunpack.c.l.b16 %v897
        %v1451 = vunpack.c.h.b16 %v897
        %v1452 = vunpack.c.l.b16 %v898
        %v1453 = vunpack.c.l.b16 %v899
        %v1454 = vunpack.c.h.b16 %v899
        %v1455 = vunpack.c.l.b16 %v900
        %v1456 = vunpack.c.h.b16 %v900
        %v1457 = vunpack.c.l.b16 %v901
        %v1458 = vunpack.c.h.b16 %v901
        %v1459 = vunpack.c.l.b16 %v902
        %v1460 = vunpack.c.h.b16 %v902
        %v1461 = vunpack.c.l.b16 %v903
        %v1462 = vunpack.c.l.b16 %v904
        %v1463 = vunpack.c.h.b16 %v904
        %v1464 = vunpack.c.l.b16 %v905
        %v1465 = vunpack.c.h.b16 %v905
        %v1466 = vunpack.c.l.b16 %v906
        %v1467 = vunpack.c.h.b16 %v906
        %v1468 = vunpack.c.l.b16 %v907
        %v1469 = vunpack.c.h.b16 %v907
        %v1470 = vunpack.c.l.b16 %v908
        %v1471 = vunpack.c.l.b16 %v909
        %v1472 = vunpack.c.h.b16 %v909
        %v1473 = vunpack.c.l.b16 %v910
        %v1474 = vunpack.c.h.b16 %v910
        %v1475 = vunpack.c.l.b16 %v911
        %v1476 = vunpack.c.h.b16 %v911
        %v1477 = vunpack.c.l.b16 %v912
        %v1478 = vunpack.c.h.b16 %v912
        %v1479 = vunpack.c.l.b16 %v913
        %v1480 = vunpack.c.l.b16 %v914
        %v1481 = vunpack.c.h.b16 %v914
        %v1482 = vunpack.c.l.b16 %v915
        %v1483 = vunpack.c.h.b16 %v915
        %v1484 = vunpack.c.l.b16 %v916
        %v1485 = vunpack.c.h.b16 %v916
        %v1486 = vunpack.c.l.b16 %v917
        %v1487 = vunpack.c.h.b16 %v917
        %v1488 = vunpack.c.l.b16 %v918
        %v1489 = vunpack.c.l.b16 %v919
        %v1490 = vunpack.c.h.b16 %v919
        %v1491 = vunpack.c.l.b16 %v920
        %v1492 = vunpack.c.h.b16 %v920
        %v1493 = vunpack.c.l.b16 %v921
        %v1494 = vunpack.c.h.b16 %v921
        %v1495 = vunpack.c.l.b16 %v922
        %v1496 = vunpack.c.h.b16 %v922
        %v1497 = vunpack.c.l.b16 %v923
        %v1498 = vunpack.c.l.b16 %v924
        %v1499 = vunpack.c.h.b16 %v924
        %v1500 = vunpack.c.l.b16 %v925
        %v1501 = vunpack.c.h.b16 %v925
        %v1502 = vunpack.c.l.b16 %v926
        %v1503 = vunpack.c.h.b16 %v926
        %v1504 = vunpack.c.l.b16 %v927
        %v1505 = vunpack.c.h.b16 %v927
        %v1506 = vunpack.c.l.b16 %v928
        %v1507 = vunpack.c.l.b16 %v929
        %v1508 = vunpack.c.h.b16 %v929
        %v1509 = vunpack.c.l.b16 %v930
        %v1510 = vunpack.c.h.b16 %v930
        %v1511 = vunpack.c.l.b16 %v931
        %v1512 = vunpack.c.h.b16 %v931
        %v1513 = vunpack.c.l.b16 %v932
        %v1514 = vunpack.c.h.b16 %v932
        %v1515 = vunpack.c.l.b16 %v933
        %v1516 = vunpack.c.l.b16 %v934
        %v1517 = vunpack.c.h.b16 %v934
        %v1518 = vunpack.c.l.b16 %v935
        %v1519 = vunpack.c.h.b16 %v935
        %v1520 = vunpack.c.l.b16 %v936
        %v1521 = vunpack.c.h.b16 %v936
        %v1522 = vunpack.c.l.b16 %v937
        %v1523 = vunpack.c.h.b16 %v937
        %v1524 = vunpack.c.l.b16 %v938
        %v1525 = vunpack.c.l.b16 %v939
        %v1526 = vunpack.c.h.b16 %v939
        %v1527 = vunpack.c.l.b16 %v940
        %v1528 = vunpack.c.h.b16 %v940
        %v1529 = vunpack.c.l.b16 %v941
        %v1530 = vunpack.c.h.b16 %v941
        %v1531 = vunpack.c.l.b16 %v942
        %v1532 = vunpack.c.h.b16 %v942
        %v1533 = vunpack.c.l.b16 %v943
        %v1534 = vunpack.c.l.b16 %v944
        %v1535 = vunpack.c.h.b16 %v944
        %v1536 = vunpack.c.l.b16 %v945
        %v1537 = vunpack.c.h.b16 %v945
        %v1538 = vunpack.c.l.b16 %v946
        %v1539 = vunpack.c.h.b16 %v946
        %v1540 = vunpack.c.l.b16 %v947
        %v1541 = vunpack.c.h.b16 %v947
        %v1542 = vunpack.c.l.b16 %v948
        %v1543 = vunpack.c.l.b16 %v949
        %v1544 = vunpack.c.h.b16 %v949
        %v1545 = vunpack.c.l.b16 %v950
        %v1546 = vunpack.c.h.b16 %v950
        %v1547 = vunpack.c.l.b16 %v951
        %v1548 = vunpack.c.h.b16 %v951
        %v1549 = vunpack.c.l.b16 %v952
        %v1550 = vunpack.c.h.b16 %v952
        %v1551 = vunpack.c.l.b16 %v953
        %v1552 = vunpack.c.l.b16 %v954
        %v1553 = vunpack.c.h.b16 %v954
        %v1554 = vunpack.c.l.b16 %v955
        %v1555 = vunpack.c.h.b16 %v955
        %v1556 = vunpack.c.l.b16 %v956
        %v1557 = vunpack.c.h.b16 %v956
        %v1558 = vunpack.c.l.b16 %v957
        %v1559 = vunpack.c.h.b16 %v957
        %v1560 = vunpack.c.l.b16 %v958
        %v1561 = vunpack.c.l.b16 %v959
        %v1562 = vunpack.c.h.b16 %v959
        %v1563 = vunpack.c.l.b16 %v960
        %v1564 = vunpack.c.h.b16 %v960
        %v1565 = vunpack.c.l.b16 %v961
        %v1566 = vunpack.c.h.b16 %v961
        %v1567 = vunpack.c.l.b16 %v962
        %v1568 = vunpack.c.h.b16 %v962
        %v1569 = vunpack.c.l.b16 %v963
        %v1570 = vunpack.c.l.b16 %v964
        %v1571 = vunpack.c.h.b16 %v964
        %v1572 = vunpack.c.l.b16 %v965
        %v1573 = vunpack.c.h.b16 %v965
        %v1574 = vunpack.c.l.b16 %v966
        %v1575 = vunpack.c.h.b16 %v966
        %v1576 = vunpack.c.l.b16 %v967
        %v1577 = vunpack.c.h.b16 %v967
        %v1578 = vunpack.c.l.b16 %v968
        %v1579 = vunpack.c.l.b16 %v969
        %v1580 = vunpack.c.h.b16 %v969
        %v1581 = vunpack.c.l.b16 %v970
        %v1582 = vunpack.c.h.b16 %v970
        %v1583 = vunpack.c.l.b16 %v971
        %v1584 = vunpack.c.h.b16 %v971
        %v1585 = vunpack.c.l.b16 %v972
        %v1586 = vunpack.c.h.b16 %v972
        %v1587 = vunpack.c.l.b16 %v973
        %v1588 = vunpack.c.l.b16 %v974
        %v1589 = vunpack.c.h.b16 %v974
        %v1590 = vunpack.c.l.b16 %v975
        %v1591 = vunpack.c.h.b16 %v975
        %v1592 = vunpack.c.l.b16 %v976
        %v1593 = vunpack.c.h.b16 %v976
        %v1594 = vunpack.c.l.b16 %v977
        %v1595 = vunpack.c.h.b16 %v977
        %v1596 = vunpack.c.l.b16 %v978
        %v1597 = vunpack.c.l.b16 %v979
        %v1598 = vunpack.c.h.b16 %v979
        %v1599 = vunpack.c.l.b16 %v980
        %v1600 = vunpack.c.h.b16 %v980
        %v1601 = vunpack.c.l.b16 %v981
        %v1602 = vunpack.c.h.b16 %v981
        %v1603 = vunpack.c.l.b16 %v982
        %v1604 = vunpack.c.h.b16 %v982
        %v1605 = vunpack.c.l.b16 %v983
        %v1606 = vunpack.c.l.b16 %v984
        %v1607 = vunpack.c.h.b16 %v984
        %v1608 = vunpack.c.l.b16 %v985
        %v1609 = vunpack.c.h.b16 %v985
        %v1610 = vunpack.c.l.b16 %v986
        %v1611 = vunpack.c.h.b16 %v986
        %v1612 = vunpack.c.l.b16 %v987
        %v1613 = vunpack.c.h.b16 %v987
        %v1614 = vunpack.c.l.b16 %v988
        %v1615 = vunpack.c.l.b16 %v989
        %v1616 = vunpack.c.h.b16 %v989
        %v1617 = vunpack.c.l.b16 %v990
        %v1618 = vunpack.c.h.b16 %v990
        %v1619 = vunpack.c.l.b16 %v991
        %v1620 = vunpack.c.h.b16 %v991
        %v1621 = vunpack.c.l.b16 %v992
        %v1622 = vunpack.c.h.b16 %v992
        %v1623 = vunpack.c.l.b16 %v993
        %v1624 = vunpack.c.l.b16 %v994
        %v1625 = vunpack.c.h.b16 %v994
        %v1626 = vunpack.c.l.b16 %v995
        %v1627 = vunpack.c.h.b16 %v995
        %v1628 = vunpack.c.l.b16 %v996
        %v1629 = vunpack.c.h.b16 %v996
        %v1630 = vunpack.c.l.b16 %v997
        %v1631 = vunpack.c.h.b16 %v997
        %v1632 = vunpack.c.l.b16 %v998
        %v1633 = vunpack.c.l.b16 %v999
        %v1634 = vunpack.c.h.b16 %v999
        %v1635 = vunpack.c.l.b16 %v1000
        %v1636 = vunpack.c.h.b16 %v1000
        %v1637 = vunpack.c.l.b16 %v1001
        %v1638 = vunpack.c.h.b16 %v1001
        %v1639 = vunpack.c.l.b16 %v1002
        %v1640 = vunpack.c.h.b16 %v1002
        %v1641 = vunpack.c.l.b16 %v1003
        %v1642 = vunpack.c.l.b16 %v1004
        %v1643 = vunpack.c.h.b16 %v1004
        %v1644 = vunpack.c.l.b16 %v1005
        %v1645 = vunpack.c.h.b16 %v1005
        %v1646 = vunpack.c.l.b16 %v1006
        %v1647 = vunpack.c.h.b16 %v1006
        %v1648 = vunpack.c.l.b16 %v1007
        %v1649 = vunpack.c.h.b16 %v1007
        %v1650 = vunpack.c.l.b16 %v1008
        %v1651 = vunpack.c.l.b16 %v1009
        %v1652 = vunpack.c.h.b16 %v1009
        %v1653 = vunpack.c.l.b16 %v1010
        %v1654 = vunpack.c.h.b16 %v1010
        %v1655 = vunpack.c.l.b16 %v1011
        %v1656 = vunpack.c.h.b16 %v1011
        %v1657 = vunpack.c.l.b16 %v1012
        %v1658 = vunpack.c.h.b16 %v1012
        %v1659 = vunpack.c.l.b16 %v1013
        %v1660 = vunpack.c.l.b16 %v1014
        %v1661 = vunpack.c.h.b16 %v1014
        %v1662 = vunpack.c.l.b16 %v1015
        %v1663 = vunpack.c.h.b16 %v1015
        %v1664 = vunpack.c.l.b16 %v1016
        %v1665 = vunpack.c.h.b16 %v1016
        %v1666 = vunpack.c.l.b16 %v1017
        %v1667 = vunpack.c.h.b16 %v1017
        %v1668 = vunpack.c.l.b16 %v1018
        %v1669 = vunpack.c.l.b16 %v1019
        %v1670 = vunpack.c.h.b16 %v1019
        %v1671 = vunpack.c.l.b16 %v1020
        %v1672 = vunpack.c.h.b16 %v1020
        %v1673 = vunpack.c.l.b16 %v1021
        %v1674 = vunpack.c.h.b16 %v1021
        %v1675 = vunpack.c.l.b16 %v1022
        %v1676 = vunpack.c.h.b16 %v1022
        %v1677 = vunpack.c.l.b16 %v1023
        %v1678 = vunpack.c.l.b16 %v1024
        %v1679 = vunpack.c.h.b16 %v1024
        %v1680 = vunpack.c.l.b16 %v1025
        %v1681 = vunpack.c.h.b16 %v1025
        %v1682 = vunpack.c.l.b16 %v1026
        %v1683 = vunpack.c.h.b16 %v1026
        %v1684 = vunpack.c.l.b16 %v1027
        %v1685 = vunpack.c.h.b16 %v1027
        %v1686 = vunpack.c.l.b16 %v1028
        %v1687 = vunpack.c.l.b16 %v1029
        %v1688 = vunpack.c.h.b16 %v1029
        %v1689 = vunpack.c.l.b16 %v1030
        %v1690 = vunpack.c.h.b16 %v1030
        %v1691 = vunpack.c.l.b16 %v1031
        %v1692 = vunpack.c.h.b16 %v1031
        %v1693 = vunpack.c.l.b16 %v1032
        %v1694 = vunpack.c.h.b16 %v1032
        %v1695 = vunpack.c.l.b16 %v1033
        %v1696 = vunpack.c.l.b16 %v1034
        %v1697 = vunpack.c.h.b16 %v1034
        %v1698 = vunpack.c.l.b16 %v1035
        %v1699 = vunpack.c.h.b16 %v1035
        %v1700 = vunpack.c.l.b16 %v1036
        %v1701 = vunpack.c.h.b16 %v1036
        %v1702 = vunpack.c.l.b16 %v1037
        %v1703 = vunpack.c.h.b16 %v1037
        %v1704 = vunpack.c.l.b16 %v1038
        %v1705 = vunpack.c.l.b16 %v1039
        %v1706 = vunpack.c.h.b16 %v1039
        %v1707 = vunpack.c.l.b16 %v1040
        %v1708 = vunpack.c.h.b16 %v1040
        %v1709 = vunpack.c.l.b16 %v1041
        %v1710 = vunpack.c.h.b16 %v1041
        %v1711 = vunpack.c.l.b16 %v1042
        %v1712 = vunpack.c.h.b16 %v1042
        %v1713 = vunpack.c.l.b16 %v1043
        %v1714 = vunpack.c.l.b16 %v1044
        %v1715 = vunpack.c.h.b16 %v1044
        %v1716 = vunpack.c.l.b16 %v1045
        %v1717 = vunpack.c.h.b16 %v1045
        %v1718 = vunpack.c.l.b16 %v1046
        %v1719 = vunpack.c.h.b16 %v1046
        %v1720 = vunpack.c.l.b16 %v1047
        %v1721 = vunpack.c.h.b16 %v1047
        %v1722 = vunpack.c.l.b16 %v1048
        %v1723 = vunpack.c.l.b16 %v1049
        %v1724 = vunpack.c.h.b16 %v1049
        %v1725 = vunpack.c.l.b16 %v1050
        %v1726 = vunpack.c.h.b16 %v1050
        %v1727 = vunpack.c.l.b16 %v1051
        %v1728 = vunpack.c.h.b16 %v1051
        %v1729 = vunpack.c.l.b16 %v1052
        %v1730 = vunpack.c.h.b16 %v1052
        %v1731 = vunpack.c.l.b16 %v1053
        %v1732 = vunpack.c.l.b16 %v1054
        %v1733 = vunpack.c.h.b16 %v1054
        %v1734 = vunpack.c.l.b16 %v1055
        %v1735 = vunpack.c.h.b16 %v1055
        %v1736 = vunpack.c.l.b16 %v1056
        %v1737 = vunpack.c.h.b16 %v1056
        %v1738 = vunpack.c.l.b16 %v1057
        %v1739 = vunpack.c.h.b16 %v1057
        %v1740 = vunpack.c.l.b16 %v1058
        %v1741 = vunpack.c.l.b16 %v1059
        %v1742 = vunpack.c.h.b16 %v1059
        %v1743 = vunpack.c.l.b16 %v1060
        %v1744 = vunpack.c.h.b16 %v1060
        %v1745 = vunpack.c.l.b16 %v1061
        %v1746 = vunpack.c.h.b16 %v1061
        %v1747 = vunpack.c.l.b16 %v1062
        %v1748 = vunpack.c.h.b16 %v1062
        %v1749 = vunpack.c.l.b16 %v1063
        %v1750 = vunpack.c.l.b16 %v1064
        %v1751 = vunpack.c.h.b16 %v1064
        %v1752 = vunpack.c.l.b16 %v1065
        %v1753 = vunpack.c.h.b16 %v1065
        %v1754 = vunpack.c.l.b16 %v1066
        %v1755 = vunpack.c.h.b16 %v1066
        %v1756 = vunpack.c.l.b16 %v1067
        %v1757 = vunpack.c.h.b16 %v1067
        %v1758 = vunpack.c.l.b16 %v1068
        %v1759 = vunpack.c.l.b16 %v1069
        %v1760 = vunpack.c.h.b16 %v1069
        %v1761 = vunpack.c.l.b16 %v1070
        %v1762 = vunpack.c.h.b16 %v1070
        %v1763 = vunpack.c.l.b16 %v1071
        %v1764 = vunpack.c.h.b16 %v1071
        %v1765 = vunpack.c.l.b16 %v1072
        %v1766 = vunpack.c.h.b16 %v1072
        %v1767 = vunpack.c.l.b16 %v1073
        %v1768 = vpack.c.b16 %v1345, %v1336
        %v1769 = vpack.c.b16 %v1346, %v1337
        %v1770 = vpack.c.b16 %v1347, %v1338
        %v1771 = vpack.c.b16 %v1348, %v1339
        %v1772 = vpack.c.b16 %v1349, %v1340
        %v1773 = vpack.c.b16 %v1350, %v1341
        %v1774 = vpack.c.b16 %v1351, %v1342
        %v1775 = vpack.c.b16 %v1352, %v1343
        %v1776 = vpack.c.b16 %v1353, %v1344
        %v1777 = vpack.c.b16 %v1363, %v1354
        %v1778 = vpack.c.b16 %v1364, %v1355
        %v1779 = vpack.c.b16 %v1365, %v1356
        %v1780 = vpack.c.b16 %v1366, %v1357
        %v1781 = vpack.c.b16 %v1367, %v1358
        %v1782 = vpack.c.b16 %v1368, %v1359
        %v1783 = vpack.c.b16 %v1369, %v1360
        %v1784 = vpack.c.b16 %v1370, %v1361
        %v1785 = vpack.c.b16 %v1371, %v1362
        %v1786 = vpack.c.b16 %v1381, %v1372
        %v1787 = vpack.c.b16 %v1382, %v1373
        %v1788 = vpack.c.b16 %v1383, %v1374
        %v1789 = vpack.c.b16 %v1384, %v1375
        %v1790 = vpack.c.b16 %v1385, %v1376
        %v1791 = vpack.c.b16 %v1386, %v1377
        %v1792 = vpack.c.b16 %v1387, %v1378
        %v1793 = vpack.c.b16 %v1388, %v1379
        %v1794 = vpack.c.b16 %v1389, %v1380
        %v1795 = vpack.c.b16 %v1399, %v1390
        %v1796 = vpack.c.b16 %v1400, %v1391
        %v1797 = vpack.c.b16 %v1401, %v1392
        %v1798 = vpack.c.b16 %v1402, %v1393
        %v1799 = vpack.c.b16 %v1403, %v1394
        %v1800 = vpack.c.b16 %v1404, %v1395
        %v1801 = vpack.c.b16 %v1405, %v1396
        %v1802 = vpack.c.b16 %v1406, %v1397
        %v1803 = vpack.c.b16 %v1407, %v1398
        %v1804 = vpack.c.b16 %v1417, %v1408
        %v1805 = vpack.c.b16 %v1418, %v1409
        %v1806 = vpack.c.b16 %v1419, %v1410
        %v1807 = vpack.c.b16 %v1420, %v1411
        %v1808 = vpack.c.b16 %v1421, %v1412
        %v1809 = vpack.c.b16 %v1422, %v1413
        %v1810 = vpack.c.b16 %v1423, %v1414
        %v1811 = vpack.c.b16 %v1424, %v1415
        %v1812 = vpack.c.b16 %v1425, %v1416
        %v1813 = vpack.c.b16 %v1435, %v1426
        %v1814 = vpack.c.b16 %v1436, %v1427
        %v1815 = vpack.c.b16 %v1437, %v1428
        %v1816 = vpack.c.b16 %v1438, %v1429
        %v1817 = vpack.c.b16 %v1439, %v1430
        %v1818 = vpack.c.b16 %v1440, %v1431
        %v1819 = vpack.c.b16 %v1441, %v1432
        %v1820 = vpack.c.b16 %v1442, %v1433
        %v1821 = vpack.c.b16 %v1443, %v1434
        %v1822 = vpack.c.b16 %v1453, %v1444
        %v1823 = vpack.c.b16 %v1454, %v1445
        %v1824 = vpack.c.b16 %v1455, %v1446
        %v1825 = vpack.c.b16 %v1456, %v1447
        %v1826 = vpack.c.b16 %v1457, %v1448
        %v1827 = vpack.c.b16 %v1458, %v1449
        %v1828 = vpack.c.b16 %v1459, %v1450
        %v1829 = vpack.c.b16 %v1460, %v1451
        %v1830 = vpack.c.b16 %v1461, %v1452
        %v1831 = vpack.c.b16 %v1471, %v1462
        %v1832 = vpack.c.b16 %v1472, %v1463
        %v1833 = vpack.c.b16 %v1473, %v1464
        %v1834 = vpack.c.b16 %v1474, %v1465
        %v1835 = vpack.c.b16 %v1475, %v1466
        %v1836 = vpack.c.b16 %v1476, %v1467
        %v1837 = vpack.c.b16 %v1477, %v1468
        %v1838 = vpack.c.b16 %v1478, %v1469
        %v1839 = vpack.c.b16 %v1479, %v1470
        %v1840 = vpack.c.b16 %v1489, %v1480
        %v1841 = vpack.c.b16 %v1490, %v1481
        %v1842 = vpack.c.b16 %v1491, %v1482
        %v1843 = vpack.c.b16 %v1492, %v1483
        %v1844 = vpack.c.b16 %v1493, %v1484
        %v1845 = vpack.c.b16 %v1494, %v1485
        %v1846 = vpack.c.b16 %v1495, %v1486
        %v1847 = vpack.c.b16 %v1496, %v1487
        %v1848 = vpack.c.b16 %v1497, %v1488
        %v1849 = vpack.c.b16 %v1507, %v1498
        %v1850 = vpack.c.b16 %v1508, %v1499
        %v1851 = vpack.c.b16 %v1509, %v1500
        %v1852 = vpack.c.b16 %v1510, %v1501
        %v1853 = vpack.c.b16 %v1511, %v1502
        %v1854 = vpack.c.b16 %v1512, %v1503
        %v1855 = vpack.c.b16 %v1513, %v1504
        %v1856 = vpack.c.b16 %v1514, %v1505
        %v1857 = vpack.c.b16 %v1515, %v1506
        %v1858 = vpack.c.b16 %v1525, %v1516
        %v1859 = vpack.c.b16 %v1526, %v1517
        %v1860 = vpack.c.b16 %v1527, %v1518
        %v1861 = vpack.c.b16 %v1528, %v1519
        %v1862 = vpack.c.b16 %v1529, %v1520
        %v1863 = vpack.c.b16 %v1530, %v1521
        %v1864 = vpack.c.b16 %v1531, %v1522
        %v1865 = vpack.c.b16 %v1532, %v1523
        %v1866 = vpack.c.b16 %v1533, %v1524
        %v1867 = vpack.c.b16 %v1543, %v1534
        %v1868 = vpack.c.b16 %v1544, %v1535
        %v1869 = vpack.c.b16 %v1545, %v1536
        %v1870 = vpack.c.b16 %v1546, %v1537
        %v1871 = vpack.c.b16 %v1547, %v1538
        %v1872 = vpack.c.b16 %v1548, %v1539
        %v1873 = vpack.c.b16 %v1549, %v1540
        %v1874 = vpack.c.b16 %v1550, %v1541
        %v1875 = vpack.c.b16 %v1551, %v1542
        %v1876 = vpack.c.b16 %v1561, %v1552
        %v1877 = vpack.c.b16 %v1562, %v1553
        %v1878 = vpack.c.b16 %v1563, %v1554
        %v1879 = vpack.c.b16 %v1564, %v1555
        %v1880 = vpack.c.b16 %v1565, %v1556
        %v1881 = vpack.c.b16 %v1566, %v1557
        %v1882 = vpack.c.b16 %v1567, %v1558
        %v1883 = vpack.c.b16 %v1568, %v1559
        %v1884 = vpack.c.b16 %v1569, %v1560
        %v1885 = vpack.c.b16 %v1579, %v1570
        %v1886 = vpack.c.b16 %v1580, %v1571
        %v1887 = vpack.c.b16 %v1581, %v1572
        %v1888 = vpack.c.b16 %v1582, %v1573
        %v1889 = vpack.c.b16 %v1583, %v1574
        %v1890 = vpack.c.b16 %v1584, %v1575
        %v1891 = vpack.c.b16 %v1585, %v1576
        %v1892 = vpack.c.b16 %v1586, %v1577
        %v1893 = vpack.c.b16 %v1587, %v1578
        %v1894 = vpack.c.b16 %v1597, %v1588
        %v1895 = vpack.c.b16 %v1598, %v1589
        %v1896 = vpack.c.b16 %v1599, %v1590
        %v1897 = vpack.c.b16 %v1600, %v1591
        %v1898 = vpack.c.b16 %v1601, %v1592
        %v1899 = vpack.c.b16 %v1602, %v1593
        %v1900 = vpack.c.b16 %v1603, %v1594
        %v1901 = vpack.c.b16 %v1604, %v1595
        %v1902 = vpack.c.b16 %v1605, %v1596
        %v1903 = vpack.c.b16 %v1615, %v1606
        %v1904 = vpack.c.b16 %v1616, %v1607
        %v1905 = vpack.c.b16 %v1617, %v1608
        %v1906 = vpack.c.b16 %v1618, %v1609
        %v1907 = vpack.c.b16 %v1619, %v1610
        %v1908 = vpack.c.b16 %v1620, %v1611
        %v1909 = vpack.c.b16 %v1621, %v1612
        %v1910 = vpack.c.b16 %v1622, %v1613
        %v1911 = vpack.c.b16 %v1623, %v1614
        %v1912 = vpack.c.b16 %v1633, %v1624
        %v1913 = vpack.c.b16 %v1634, %v1625
        %v1914 = vpack.c.b16 %v1635, %v1626
        %v1915 = vpack.c.b16 %v1636, %v1627
        %v1916 = vpack.c.b16 %v1637, %v1628
        %v1917 = vpack.c.b16 %v1638, %v1629
        %v1918 = vpack.c.b16 %v1639, %v1630
        %v1919 = vpack.c.b16 %v1640, %v1631
        %v1920 = vpack.c.b16 %v1641, %v1632
        %v1921 = vpack.c.b16 %v1651, %v1642
        %v1922 = vpack.c.b16 %v1652, %v1643
        %v1923 = vpack.c.b16 %v1653, %v1644
        %v1924 = vpack.c.b16 %v1654, %v1645
        %v1925 = vpack.c.b16 %v1655, %v1646
        %v1926 = vpack.c.b16 %v1656, %v1647
        %v1927 = vpack.c.b16 %v1657, %v1648
        %v1928 = vpack.c.b16 %v1658, %v1649
        %v1929 = vpack.c.b16 %v1659, %v1650
        %v1930 = vpack.c.b16 %v1669, %v1660
        %v1931 = vpack.c.b16 %v1670, %v1661
        %v1932 = vpack.c.b16 %v1671, %v1662
        %v1933 = vpack.c.b16 %v1672, %v1663
        %v1934 = vpack.c.b16 %v1673, %v1664
        %v1935 = vpack.c.b16 %v1674, %v1665
        %v1936 = vpack.c.b16 %v1675, %v1666
        %v1937 = vpack.c.b16 %v1676, %v1667
        %v1938 = vpack.c.b16 %v1677, %v1668
        %v1939 = vpack.c.b16 %v1687, %v1678
        %v1940 = vpack.c.b16 %v1688, %v1679
        %v1941 = vpack.c.b16 %v1689, %v1680
        %v1942 = vpack.c.b16 %v1690, %v1681
        %v1943 = vpack.c.b16 %v1691, %v1682
        %v1944 = vpack.c.b16 %v1692, %v1683
        %v1945 = vpack.c.b16 %v1693, %v1684
        %v1946 = vpack.c.b16 %v1694, %v1685
        %v1947 = vpack.c.b16 %v1695, %v1686
        %v1948 = vpack.c.b16 %v1705, %v1696
        %v1949 = vpack.c.b16 %v1706, %v1697
        %v1950 = vpack.c.b16 %v1707, %v1698
        %v1951 = vpack.c.b16 %v1708, %v1699
        %v1952 = vpack.c.b16 %v1709, %v1700
        %v1953 = vpack.c.b16 %v1710, %v1701
        %v1954 = vpack.c.b16 %v1711, %v1702
        %v1955 = vpack.c.b16 %v1712, %v1703
        %v1956 = vpack.c.b16 %v1713, %v1704
        %v1957 = vpack.c.b16 %v1723, %v1714
        %v1958 = vpack.c.b16 %v1724, %v1715
        %v1959 = vpack.c.b16 %v1725, %v1716
        %v1960 = vpack.c.b16 %v1726, %v1717
        %v1961 = vpack.c.b16 %v1727, %v1718
        %v1962 = vpack.c.b16 %v1728, %v1719
        %v1963 = vpack.c.b16 %v1729, %v1720
        %v1964 = vpack.c.b16 %v1730, %v1721
        %v1965 = vpack.c.b16 %v1731, %v1722
        %v1966 = vpack.c.b16 %v1741, %v1732
        %v1967 = vpack.c.b16 %v1742, %v1733
        %v1968 = vpack.c.b16 %v1743, %v1734
        %v1969 = vpack.c.b16 %v1744, %v1735
        %v1970 = vpack.c.b16 %v1745, %v1736
        %v1971 = vpack.c.b16 %v1746, %v1737
        %v1972 = vpack.c.b16 %v1747, %v1738
        %v1973 = vpack.c.b16 %v1748, %v1739
        %v1974 = vpack.c.b16 %v1749, %v1740
        %v1975 = vpack.c.b16 %v1759, %v1750
        %v1976 = vpack.c.b16 %v1760, %v1751
        %v1977 = vpack.c.b16 %v1761, %v1752
        %v1978 = vpack.c.b16 %v1762, %v1753
        %v1979 = vpack.c.b16 %v1763, %v1754
        %v1980 = vpack.c.b16 %v1764, %v1755
        %v1981 = vpack.c.b16 %v1765, %v1756
        %v1982 = vpack.c.b16 %v1766, %v1757
        %v1983 = vpack.c.b16 %v1767, %v1758
        %2200 = vmatpush.bf16.msra.mxu0 %v1831
        %2201 = vmatpush.bf16.msra.mxu0 %v1822
        %2202 = vmatpush.bf16.msra.mxu0 %v1813
        %2203 = vmatpush.bf16.msra.mxu0 %v1804
        %2204 = vmatpush.bf16.msra.mxu0 %v1795
        %2205 = vmatpush.bf16.msra.mxu0 %v1786
        %2206 = vmatpush.bf16.msra.mxu0 %v1777
        %2207 = vmatpush.bf16.msra.mxu0 %v1768
        %2208 = vmatmul.bf16.gmra.mxu0 %v831
        %v2209 = vpop.f32.mrf.mxu0
        %v2210 = vadd.f32 %v1078, %v2209
        %v2211 = vpop.f32.mrf.mxu0
        %v2212 = vadd.f32 %v1078, %v2211
        %2213 = vdwg.mxu0
        %2214 = vmatpush.bf16.msra.mxu0 %v1903
        %2215 = vmatpush.bf16.msra.mxu0 %v1894
        %2216 = vmatpush.bf16.msra.mxu0 %v1885
        %2217 = vmatpush.bf16.msra.mxu0 %v1876
        %2218 = vmatpush.bf16.msra.mxu0 %v1867
        %2219 = vmatpush.bf16.msra.mxu0 %v1858
        %2220 = vmatpush.bf16.msra.mxu0 %v1849
        %2221 = vmatpush.bf16.msra.mxu0 %v1840
        %2222 = vmatmul.bf16.gmra.mxu0 %v832
        %v2223 = vpop.f32.mrf.mxu0
        %v2224 = vadd.f32 %v2210, %v2223
        %v2225 = vpop.f32.mrf.mxu0
        %v2226 = vadd.f32 %v2212, %v2225
        %2227 = vdwg.mxu0
        %2228 = vmatpush.bf16.msra.mxu0 %v1975
        %2229 = vmatpush.bf16.msra.mxu0 %v1966
        %2230 = vmatpush.bf16.msra.mxu0 %v1957
        %2231 = vmatpush.bf16.msra.mxu0 %v1948
        %2232 = vmatpush.bf16.msra.mxu0 %v1939
        %2233 = vmatpush.bf16.msra.mxu0 %v1930
        %2234 = vmatpush.bf16.msra.mxu0 %v1921
        %2235 = vmatpush.bf16.msra.mxu0 %v1912
        %2236 = vmatmul.bf16.gmra.mxu0 %v833
        %v2237 = vpop.f32.mrf.mxu0
        %v2238 = vadd.f32 %v2224, %v2237
        %v2239 = vpop.f32.mrf.mxu0
        %v2240 = vadd.f32 %v2226, %v2239
        %2241 = vdwg.mxu0
        %2242 = vmatpush.bf16.msra.mxu0 %v1832
        %2243 = vmatpush.bf16.msra.mxu0 %v1823
        %2244 = vmatpush.bf16.msra.mxu0 %v1814
        %2245 = vmatpush.bf16.msra.mxu0 %v1805
        %2246 = vmatpush.bf16.msra.mxu0 %v1796
        %2247 = vmatpush.bf16.msra.mxu0 %v1787
        %2248 = vmatpush.bf16.msra.mxu0 %v1778
        %2249 = vmatpush.bf16.msra.mxu0 %v1769
        %2250 = vmatmul.bf16.gmra.mxu0 %v831
        %v2251 = vpop.f32.mrf.mxu0
        %v2252 = vadd.f32 %v1079, %v2251
        %v2253 = vpop.f32.mrf.mxu0
        %v2254 = vadd.f32 %v1079, %v2253
        %2255 = vdwg.mxu0
        %2256 = vmatpush.bf16.msra.mxu0 %v1904
        %2257 = vmatpush.bf16.msra.mxu0 %v1895
        %2258 = vmatpush.bf16.msra.mxu0 %v1886
        %2259 = vmatpush.bf16.msra.mxu0 %v1877
        %2260 = vmatpush.bf16.msra.mxu0 %v1868
        %2261 = vmatpush.bf16.msra.mxu0 %v1859
        %2262 = vmatpush.bf16.msra.mxu0 %v1850
        %2263 = vmatpush.bf16.msra.mxu0 %v1841
        %2264 = vmatmul.bf16.gmra.mxu0 %v832
        %v2265 = vpop.f32.mrf.mxu0
        %v2266 = vadd.f32 %v2252, %v2265
        %v2267 = vpop.f32.mrf.mxu0
        %v2268 = vadd.f32 %v2254, %v2267
        %2269 = vdwg.mxu0
        %2270 = vmatpush.bf16.msra.mxu0 %v1976
        %2271 = vmatpush.bf16.msra.mxu0 %v1967
        %2272 = vmatpush.bf16.msra.mxu0 %v1958
        %2273 = vmatpush.bf16.msra.mxu0 %v1949
        %2274 = vmatpush.bf16.msra.mxu0 %v1940
        %2275 = vmatpush.bf16.msra.mxu0 %v1931
        %2276 = vmatpush.bf16.msra.mxu0 %v1922
        %2277 = vmatpush.bf16.msra.mxu0 %v1913
        %2278 = vmatmul.bf16.gmra.mxu0 %v833
        %v2279 = vpop.f32.mrf.mxu0
        %v2280 = vadd.f32 %v2266, %v2279
        %v2281 = vpop.f32.mrf.mxu0
        %v2282 = vadd.f32 %v2268, %v2281
        %2283 = vdwg.mxu0
        %2284 = vmatpush.bf16.msra.mxu0 %v1833
        %2285 = vmatpush.bf16.msra.mxu0 %v1824
        %2286 = vmatpush.bf16.msra.mxu0 %v1815
        %2287 = vmatpush.bf16.msra.mxu0 %v1806
        %2288 = vmatpush.bf16.msra.mxu0 %v1797
        %2289 = vmatpush.bf16.msra.mxu0 %v1788
        %2290 = vmatpush.bf16.msra.mxu0 %v1779
        %2291 = vmatpush.bf16.msra.mxu0 %v1770
        %2292 = vmatmul.bf16.gmra.mxu0 %v831
        %v2293 = vpop.f32.mrf.mxu0
        %v2294 = vadd.f32 %v1080, %v2293
        %v2295 = vpop.f32.mrf.mxu0
        %v2296 = vadd.f32 %v1080, %v2295
        %2297 = vdwg.mxu0
        %2298 = vmatpush.bf16.msra.mxu0 %v1905
        %2299 = vmatpush.bf16.msra.mxu0 %v1896
        %2300 = vmatpush.bf16.msra.mxu0 %v1887
        %2301 = vmatpush.bf16.msra.mxu0 %v1878
        %2302 = vmatpush.bf16.msra.mxu0 %v1869
        %2303 = vmatpush.bf16.msra.mxu0 %v1860
        %2304 = vmatpush.bf16.msra.mxu0 %v1851
        %2305 = vmatpush.bf16.msra.mxu0 %v1842
        %2306 = vmatmul.bf16.gmra.mxu0 %v832
        %v2307 = vpop.f32.mrf.mxu0
        %v2308 = vadd.f32 %v2294, %v2307
        %v2309 = vpop.f32.mrf.mxu0
        %v2310 = vadd.f32 %v2296, %v2309
        %2311 = vdwg.mxu0
        %2312 = vmatpush.bf16.msra.mxu0 %v1977
        %2313 = vmatpush.bf16.msra.mxu0 %v1968
        %2314 = vmatpush.bf16.msra.mxu0 %v1959
        %2315 = vmatpush.bf16.msra.mxu0 %v1950
        %2316 = vmatpush.bf16.msra.mxu0 %v1941
        %2317 = vmatpush.bf16.msra.mxu0 %v1932
        %2318 = vmatpush.bf16.msra.mxu0 %v1923
        %2319 = vmatpush.bf16.msra.mxu0 %v1914
        %2320 = vmatmul.bf16.gmra.mxu0 %v833
        %v2321 = vpop.f32.mrf.mxu0
        %v2322 = vadd.f32 %v2308, %v2321
        %v2323 = vpop.f32.mrf.mxu0
        %v2324 = vadd.f32 %v2310, %v2323
        %2325 = vdwg.mxu0
        %2326 = vmatpush.bf16.msra.mxu0 %v1834
        %2327 = vmatpush.bf16.msra.mxu0 %v1825
        %2328 = vmatpush.bf16.msra.mxu0 %v1816
        %2329 = vmatpush.bf16.msra.mxu0 %v1807
        %2330 = vmatpush.bf16.msra.mxu0 %v1798
        %2331 = vmatpush.bf16.msra.mxu0 %v1789
        %2332 = vmatpush.bf16.msra.mxu0 %v1780
        %2333 = vmatpush.bf16.msra.mxu0 %v1771
        %2334 = vmatmul.bf16.gmra.mxu0 %v831
        %v2335 = vpop.f32.mrf.mxu0
        %v2336 = vadd.f32 %v1081, %v2335
        %v2337 = vpop.f32.mrf.mxu0
        %v2338 = vadd.f32 %v1081, %v2337
        %2339 = vdwg.mxu0
        %2340 = vmatpush.bf16.msra.mxu0 %v1906
        %2341 = vmatpush.bf16.msra.mxu0 %v1897
        %2342 = vmatpush.bf16.msra.mxu0 %v1888
        %2343 = vmatpush.bf16.msra.mxu0 %v1879
        %2344 = vmatpush.bf16.msra.mxu0 %v1870
        %2345 = vmatpush.bf16.msra.mxu0 %v1861
        %2346 = vmatpush.bf16.msra.mxu0 %v1852
        %2347 = vmatpush.bf16.msra.mxu0 %v1843
        %2348 = vmatmul.bf16.gmra.mxu0 %v832
        %v2349 = vpop.f32.mrf.mxu0
        %v2350 = vadd.f32 %v2336, %v2349
        %v2351 = vpop.f32.mrf.mxu0
        %v2352 = vadd.f32 %v2338, %v2351
        %2353 = vdwg.mxu0
        %2354 = vmatpush.bf16.msra.mxu0 %v1978
        %2355 = vmatpush.bf16.msra.mxu0 %v1969
        %2356 = vmatpush.bf16.msra.mxu0 %v1960
        %2357 = vmatpush.bf16.msra.mxu0 %v1951
        %2358 = vmatpush.bf16.msra.mxu0 %v1942
        %2359 = vmatpush.bf16.msra.mxu0 %v1933
        %2360 = vmatpush.bf16.msra.mxu0 %v1924
        %2361 = vmatpush.bf16.msra.mxu0 %v1915
        %2362 = vmatmul.bf16.gmra.mxu0 %v833
        %v2363 = vpop.f32.mrf.mxu0
        %v2364 = vadd.f32 %v2350, %v2363
        %v2365 = vpop.f32.mrf.mxu0
        %v2366 = vadd.f32 %v2352, %v2365
        %2367 = vdwg.mxu0
        %2368 = vmatpush.bf16.msra.mxu0 %v1835
        %2369 = vmatpush.bf16.msra.mxu0 %v1826
        %2370 = vmatpush.bf16.msra.mxu0 %v1817
        %2371 = vmatpush.bf16.msra.mxu0 %v1808
        %2372 = vmatpush.bf16.msra.mxu0 %v1799
        %2373 = vmatpush.bf16.msra.mxu0 %v1790
        %2374 = vmatpush.bf16.msra.mxu0 %v1781
        %2375 = vmatpush.bf16.msra.mxu0 %v1772
        %2376 = vmatmul.bf16.gmra.mxu0 %v831
        %v2377 = vpop.f32.mrf.mxu0
        %v2378 = vadd.f32 %v1082, %v2377
        %v2379 = vpop.f32.mrf.mxu0
        %v2380 = vadd.f32 %v1082, %v2379
        %2381 = vdwg.mxu0
        %2382 = vmatpush.bf16.msra.mxu0 %v1907
        %2383 = vmatpush.bf16.msra.mxu0 %v1898
        %2384 = vmatpush.bf16.msra.mxu0 %v1889
        %2385 = vmatpush.bf16.msra.mxu0 %v1880
        %2386 = vmatpush.bf16.msra.mxu0 %v1871
        %2387 = vmatpush.bf16.msra.mxu0 %v1862
        %2388 = vmatpush.bf16.msra.mxu0 %v1853
        %2389 = vmatpush.bf16.msra.mxu0 %v1844
        %2390 = vmatmul.bf16.gmra.mxu0 %v832
        %v2391 = vpop.f32.mrf.mxu0
        %v2392 = vadd.f32 %v2378, %v2391
        %v2393 = vpop.f32.mrf.mxu0
        %v2394 = vadd.f32 %v2380, %v2393
        %2395 = vdwg.mxu0
        %2396 = vmatpush.bf16.msra.mxu0 %v1979
        %2397 = vmatpush.bf16.msra.mxu0 %v1970
        %2398 = vmatpush.bf16.msra.mxu0 %v1961
        %2399 = vmatpush.bf16.msra.mxu0 %v1952
        %2400 = vmatpush.bf16.msra.mxu0 %v1943
        %2401 = vmatpush.bf16.msra.mxu0 %v1934
        %2402 = vmatpush.bf16.msra.mxu0 %v1925
        %2403 = vmatpush.bf16.msra.mxu0 %v1916
        %2404 = vmatmul.bf16.gmra.mxu0 %v833
        %v2405 = vpop.f32.mrf.mxu0
        %v2406 = vadd.f32 %v2392, %v2405
        %v2407 = vpop.f32.mrf.mxu0
        %v2408 = vadd.f32 %v2394, %v2407
        %2409 = vdwg.mxu0
        %2410 = vmatpush.bf16.msra.mxu0 %v1836
        %2411 = vmatpush.bf16.msra.mxu0 %v1827
        %2412 = vmatpush.bf16.msra.mxu0 %v1818
        %2413 = vmatpush.bf16.msra.mxu0 %v1809
        %2414 = vmatpush.bf16.msra.mxu0 %v1800
        %2415 = vmatpush.bf16.msra.mxu0 %v1791
        %2416 = vmatpush.bf16.msra.mxu0 %v1782
        %2417 = vmatpush.bf16.msra.mxu0 %v1773
        %2418 = vmatmul.bf16.gmra.mxu0 %v831
        %v2419 = vpop.f32.mrf.mxu0
        %v2420 = vadd.f32 %v1083, %v2419
        %v2421 = vpop.f32.mrf.mxu0
        %v2422 = vadd.f32 %v1083, %v2421
        %2423 = vdwg.mxu0
        %2424 = vmatpush.bf16.msra.mxu0 %v1908
        %2425 = vmatpush.bf16.msra.mxu0 %v1899
        %2426 = vmatpush.bf16.msra.mxu0 %v1890
        %2427 = vmatpush.bf16.msra.mxu0 %v1881
        %2428 = vmatpush.bf16.msra.mxu0 %v1872
        %2429 = vmatpush.bf16.msra.mxu0 %v1863
        %2430 = vmatpush.bf16.msra.mxu0 %v1854
        %2431 = vmatpush.bf16.msra.mxu0 %v1845
        %2432 = vmatmul.bf16.gmra.mxu0 %v832
        %v2433 = vpop.f32.mrf.mxu0
        %v2434 = vadd.f32 %v2420, %v2433
        %v2435 = vpop.f32.mrf.mxu0
        %v2436 = vadd.f32 %v2422, %v2435
        %2437 = vdwg.mxu0
        %2438 = vmatpush.bf16.msra.mxu0 %v1980
        %2439 = vmatpush.bf16.msra.mxu0 %v1971
        %2440 = vmatpush.bf16.msra.mxu0 %v1962
        %2441 = vmatpush.bf16.msra.mxu0 %v1953
        %2442 = vmatpush.bf16.msra.mxu0 %v1944
        %2443 = vmatpush.bf16.msra.mxu0 %v1935
        %2444 = vmatpush.bf16.msra.mxu0 %v1926
        %2445 = vmatpush.bf16.msra.mxu0 %v1917
        %2446 = vmatmul.bf16.gmra.mxu0 %v833
        %v2447 = vpop.f32.mrf.mxu0
        %v2448 = vadd.f32 %v2434, %v2447
        %v2449 = vpop.f32.mrf.mxu0
        %v2450 = vadd.f32 %v2436, %v2449
        %2451 = vdwg.mxu0
        %2452 = vmatpush.bf16.msra.mxu0 %v1837
        %2453 = vmatpush.bf16.msra.mxu0 %v1828
        %2454 = vmatpush.bf16.msra.mxu0 %v1819
        %2455 = vmatpush.bf16.msra.mxu0 %v1810
        %2456 = vmatpush.bf16.msra.mxu0 %v1801
        %2457 = vmatpush.bf16.msra.mxu0 %v1792
        %2458 = vmatpush.bf16.msra.mxu0 %v1783
        %2459 = vmatpush.bf16.msra.mxu0 %v1774
        %2460 = vmatmul.bf16.gmra.mxu0 %v831
        %v2461 = vpop.f32.mrf.mxu0
        %v2462 = vadd.f32 %v1084, %v2461
        %v2463 = vpop.f32.mrf.mxu0
        %v2464 = vadd.f32 %v1084, %v2463
        %2465 = vdwg.mxu0
        %2466 = vmatpush.bf16.msra.mxu0 %v1909
        %2467 = vmatpush.bf16.msra.mxu0 %v1900
        %2468 = vmatpush.bf16.msra.mxu0 %v1891
        %2469 = vmatpush.bf16.msra.mxu0 %v1882
        %2470 = vmatpush.bf16.msra.mxu0 %v1873
        %2471 = vmatpush.bf16.msra.mxu0 %v1864
        %2472 = vmatpush.bf16.msra.mxu0 %v1855
        %2473 = vmatpush.bf16.msra.mxu0 %v1846
        %2474 = vmatmul.bf16.gmra.mxu0 %v832
        %v2475 = vpop.f32.mrf.mxu0
        %v2476 = vadd.f32 %v2462, %v2475
        %v2477 = vpop.f32.mrf.mxu0
        %v2478 = vadd.f32 %v2464, %v2477
        %2479 = vdwg.mxu0
        %2480 = vmatpush.bf16.msra.mxu0 %v1981
        %2481 = vmatpush.bf16.msra.mxu0 %v1972
        %2482 = vmatpush.bf16.msra.mxu0 %v1963
        %2483 = vmatpush.bf16.msra.mxu0 %v1954
        %2484 = vmatpush.bf16.msra.mxu0 %v1945
        %2485 = vmatpush.bf16.msra.mxu0 %v1936
        %2486 = vmatpush.bf16.msra.mxu0 %v1927
        %2487 = vmatpush.bf16.msra.mxu0 %v1918
        %2488 = vmatmul.bf16.gmra.mxu0 %v833
        %v2489 = vpop.f32.mrf.mxu0
        %v2490 = vadd.f32 %v2476, %v2489
        %v2491 = vpop.f32.mrf.mxu0
        %v2492 = vadd.f32 %v2478, %v2491
        %2493 = vdwg.mxu0
        %2494 = vmatpush.bf16.msra.mxu0 %v1838
        %2495 = vmatpush.bf16.msra.mxu0 %v1829
        %2496 = vmatpush.bf16.msra.mxu0 %v1820
        %2497 = vmatpush.bf16.msra.mxu0 %v1811
        %2498 = vmatpush.bf16.msra.mxu0 %v1802
        %2499 = vmatpush.bf16.msra.mxu0 %v1793
        %2500 = vmatpush.bf16.msra.mxu0 %v1784
        %2501 = vmatpush.bf16.msra.mxu0 %v1775
        %2502 = vmatmul.bf16.gmra.mxu0 %v831
        %v2503 = vpop.f32.mrf.mxu0
        %v2504 = vadd.f32 %v1085, %v2503
        %v2505 = vpop.f32.mrf.mxu0
        %v2506 = vadd.f32 %v1085, %v2505
        %2507 = vdwg.mxu0
        %2508 = vmatpush.bf16.msra.mxu0 %v1910
        %2509 = vmatpush.bf16.msra.mxu0 %v1901
        %2510 = vmatpush.bf16.msra.mxu0 %v1892
        %2511 = vmatpush.bf16.msra.mxu0 %v1883
        %2512 = vmatpush.bf16.msra.mxu0 %v1874
        %2513 = vmatpush.bf16.msra.mxu0 %v1865
        %2514 = vmatpush.bf16.msra.mxu0 %v1856
        %2515 = vmatpush.bf16.msra.mxu0 %v1847
        %2516 = vmatmul.bf16.gmra.mxu0 %v832
        %v2517 = vpop.f32.mrf.mxu0
        %v2518 = vadd.f32 %v2504, %v2517
        %v2519 = vpop.f32.mrf.mxu0
        %v2520 = vadd.f32 %v2506, %v2519
        %2521 = vdwg.mxu0
        %2522 = vmatpush.bf16.msra.mxu0 %v1982
        %2523 = vmatpush.bf16.msra.mxu0 %v1973
        %2524 = vmatpush.bf16.msra.mxu0 %v1964
        %2525 = vmatpush.bf16.msra.mxu0 %v1955
        %2526 = vmatpush.bf16.msra.mxu0 %v1946
        %2527 = vmatpush.bf16.msra.mxu0 %v1937
        %2528 = vmatpush.bf16.msra.mxu0 %v1928
        %2529 = vmatpush.bf16.msra.mxu0 %v1919
        %2530 = vmatmul.bf16.gmra.mxu0 %v833
        %v2531 = vpop.f32.mrf.mxu0
        %v2532 = vadd.f32 %v2518, %v2531
        %v2533 = vpop.f32.mrf.mxu0
        %v2534 = vadd.f32 %v2520, %v2533
        %2535 = vdwg.mxu0
        %2536 = vmatpush.bf16.msra.mxu0 %v1839
        %2537 = vmatpush.bf16.msra.mxu0 %v1830
        %2538 = vmatpush.bf16.msra.mxu0 %v1821
        %2539 = vmatpush.bf16.msra.mxu0 %v1812
        %2540 = vmatpush.bf16.msra.mxu0 %v1803
        %2541 = vmatpush.bf16.msra.mxu0 %v1794
        %2542 = vmatpush.bf16.msra.mxu0 %v1785
        %2543 = vmatpush.bf16.msra.mxu0 %v1776
        %2544 = vmatmul.bf16.gmra.mxu0 %v831
        %v2545 = vpop.f32.mrf.mxu0
        %v2546 = vadd.f32 %v1086, %v2545
        %v2547 = vpop.f32.mrf.mxu0
        %v2548 = vadd.f32 %v1086, %v2547
        %2549 = vdwg.mxu0
        %2550 = vmatpush.bf16.msra.mxu0 %v1911
        %2551 = vmatpush.bf16.msra.mxu0 %v1902
        %2552 = vmatpush.bf16.msra.mxu0 %v1893
        %2553 = vmatpush.bf16.msra.mxu0 %v1884
        %2554 = vmatpush.bf16.msra.mxu0 %v1875
        %2555 = vmatpush.bf16.msra.mxu0 %v1866
        %2556 = vmatpush.bf16.msra.mxu0 %v1857
        %2557 = vmatpush.bf16.msra.mxu0 %v1848
        %2558 = vmatmul.bf16.gmra.mxu0 %v832
        %v2559 = vpop.f32.mrf.mxu0
        %v2560 = vadd.f32 %v2546, %v2559
        %v2561 = vpop.f32.mrf.mxu0
        %v2562 = vadd.f32 %v2548, %v2561
        %2563 = vdwg.mxu0
        %2564 = vmatpush.bf16.msra.mxu0 %v1983
        %2565 = vmatpush.bf16.msra.mxu0 %v1974
        %2566 = vmatpush.bf16.msra.mxu0 %v1965
        %2567 = vmatpush.bf16.msra.mxu0 %v1956
        %2568 = vmatpush.bf16.msra.mxu0 %v1947
        %2569 = vmatpush.bf16.msra.mxu0 %v1938
        %2570 = vmatpush.bf16.msra.mxu0 %v1929
        %2571 = vmatpush.bf16.msra.mxu0 %v1920
        %2572 = vmatmul.bf16.gmra.mxu0 %v833
        %v2573 = vpop.f32.mrf.mxu0
        %v2574 = vadd.f32 %v2560, %v2573
        %v2575 = vpop.f32.mrf.mxu0
        %v2576 = vadd.f32 %v2562, %v2575
        %2577 = vdwg.mxu0
        %v2578 = vpack.c.bf16 %v2280, %v2238
        %v2579 = vpack.c.bf16 %v2364, %v2322
        %v2580 = vpack.c.bf16 %v2448, %v2406
        %v2581 = vpack.c.bf16 %v2532, %v2490
        %v2582 = vpack.c.bf16 %v2574, %v2574
        %v2583 = vpack.c.bf16 %v2282, %v2240
        %v2584 = vpack.c.bf16 %v2366, %v2324
        %v2585 = vpack.c.bf16 %v2450, %v2408
        %v2586 = vpack.c.bf16 %v2534, %v2492
        %v2587 = vpack.c.bf16 %v2576, %v2576
        %v2588 = vlaneseq
        %v2589 = vshrl.u32 %v2588, 7
        %v2590 = vlaneseq
        %v2591 = vand.u32 %v2590, 127
        %vm2592 = vcmp.le.s32.totalorder %v2591, %v2589
        %v2594 = vrot.slane %v2579, 4
        %vm2595 = vcmask 523264
        %v2597 = vsel %vm2595, %v2578, 0
        %v2600 = vsel %vm2595, %v2594, 0
        %2602 = vmatpush.bf16.xpose.msra.mxu0 0
        %2603 = vmatpush.bf16.xpose.msra.mxu0 0
        %2604 = vmatpush.bf16.xpose.msra.mxu0 0
        %2605 = vmatpush.bf16.xpose.msra.mxu0 0
        %2606 = vmatpush.bf16.xpose.msra.mxu0 0
        %2607 = vmatpush.bf16.xpose.msra.mxu0 0
        %2608 = vmatpush.bf16.xpose.msra.mxu0 0
        %2609 = vmatpush.bf16.xpose.msra.mxu0 %v2600
        %2610 = vmatmul.bf16.gmra.mxu0 %v2597
        %v2611 = vpop.f32.mrf.mxu0
        %v2612 = vadd.f32 0.0, %v2611
        %v2613 = vpop.f32.mrf.mxu0
        %2614 = vdwg.mxu0
        %v2616 = vrot.slane %v2584, 4
        %v2618 = vsel %vm2595, %v2583, 0
        %v2621 = vsel %vm2595, %v2616, 0
        %2623 = vmatpush.bf16.xpose.msra.mxu0 0
        %2624 = vmatpush.bf16.xpose.msra.mxu0 0
        %2625 = vmatpush.bf16.xpose.msra.mxu0 0
        %2626 = vmatpush.bf16.xpose.msra.mxu0 0
        %2627 = vmatpush.bf16.xpose.msra.mxu0 0
        %2628 = vmatpush.bf16.xpose.msra.mxu0 0
        %2629 = vmatpush.bf16.xpose.msra.mxu0 0
        %2630 = vmatpush.bf16.xpose.msra.mxu0 %v2621
        %2631 = vmatmul.bf16.gmra.mxu0 %v2618
        %v2632 = vpop.f32.mrf.mxu0
        %v2633 = vadd.f32 0.0, %v2632
        %v2634 = vpop.f32.mrf.mxu0
        %2635 = vdwg.mxu0
        %v2636 = vmul.f32 %v2612, 0.05103104
        %v2637 = vmul.f32 %v2633, 0.05103104
        %v2638 = vsel %vm2592, 1, 0
        %vm2639 = vcmp.eq.s32.totalorder %v2638, 1
        %v2640 = vsel %vm2639, %v2636, -1e+30
        %v2641 = vsel %vm2639, %v2637, -1e+30
        %vm2642 = vcmask 64512
        %v2643 = vsel %vm2642, %v2640, -inf
        %2644 = vmax.xlane.f32.xlu0 %v2643
        %v2645 = vpop.xlane.xlu0 %2644
        %v2646 = vsel %vm2642, %v2641, -inf
        %2647 = vmax.xlane.f32.xlu0 %v2646
        %v2648 = vpop.xlane.xlu0 %2647
        %v2649 = vsub.f32 %v2640, %v2645
        %v2650 = vsub.f32 %v2641, %v2648
        %v2651 = vmul.f32 %v2649, 1.442695
        %v2652 = vpow.pop %v2651
        %v2653 = vmul.f32 %v2650, 1.442695
        %v2654 = vpow.pop %v2653
        %v2655 = vsel %vm2642, %v2652, 0.0
        %2656 = vadd.xlane.f32.xlu0 %v2655
        %v2657 = vpop.xlane.xlu0 %2656
        %v2658 = vsel %vm2642, %v2654, 0.0
        %2659 = vadd.xlane.f32.xlu0 %v2658
        %v2660 = vpop.xlane.xlu0 %2659
        %v2661 = vrcp.pop %v2657
        %v2662 = vrcp.pop %v2660
        %v2663 = vmul.f32 %v2652, %v2661
        %v2664 = vmul.f32 %v2654, %v2662
        %v2665 = vpack.c.bf16 %v2663, %v2663
        %v2666 = vpack.c.bf16 %v2664, %v2664
        %v2668 = vsel %vm2642, %v2665, 0
        %vm2670 = vcmask 1043456
        %v2672 = vsel %vm2670, %v2581, 0
        %2674 = vmatpush.bf16.msra.mxu0 0
        %2675 = vmatpush.bf16.msra.mxu0 0
        %2676 = vmatpush.bf16.msra.mxu0 0
        %2677 = vmatpush.bf16.msra.mxu0 0
        %2678 = vmatpush.bf16.msra.mxu0 0
        %2679 = vmatpush.bf16.msra.mxu0 0
        %2680 = vmatpush.bf16.msra.mxu0 0
        %2681 = vmatpush.bf16.msra.mxu0 %v2672
        %2682 = vmatmul.bf16.gmra.mxu0 %v2668
        %v2683 = vpop.f32.mrf.mxu0
        %v2684 = vadd.f32 0.0, %v2683
        %v2685 = vpop.f32.mrf.mxu0
        %2686 = vdwg.mxu0
        %v2688 = vsel %vm2642, %v2666, 0
        %v2691 = vsel %vm2670, %v2586, 0
        %2693 = vmatpush.bf16.msra.mxu0 0
        %2694 = vmatpush.bf16.msra.mxu0 0
        %2695 = vmatpush.bf16.msra.mxu0 0
        %2696 = vmatpush.bf16.msra.mxu0 0
        %2697 = vmatpush.bf16.msra.mxu0 0
        %2698 = vmatpush.bf16.msra.mxu0 0
        %2699 = vmatpush.bf16.msra.mxu0 0
        %2700 = vmatpush.bf16.msra.mxu0 %v2691
        %2701 = vmatmul.bf16.gmra.mxu0 %v2688
        %v2702 = vpop.f32.mrf.mxu0
        %v2703 = vadd.f32 0.0, %v2702
        %v2704 = vpop.f32.mrf.mxu0
        %2705 = vdwg.mxu0
        %2706 = vrot.lane.b32.xlu0 %v2579, 64
        %v2707 = vpop.permute.xlu0 %2706
        %v2708 = vrot.slane %v2707, 4
        %v2710 = vunpack.c.l.b16 %v2578
        %v2711 = vpack.c.b16 %v2710, %v2710
        %2712 = vrot.lane.b32.xlu0 %v2711, 64
        %v2713 = vpop.permute.xlu0 %2712
        %v2715 = vsel %vm2595, %v2713, 0
        %v2718 = vsel %vm2595, %v2708, 0
        %2720 = vmatpush.bf16.xpose.msra.mxu0 0
        %2721 = vmatpush.bf16.xpose.msra.mxu0 0
        %2722 = vmatpush.bf16.xpose.msra.mxu0 0
        %2723 = vmatpush.bf16.xpose.msra.mxu0 0
        %2724 = vmatpush.bf16.xpose.msra.mxu0 0
        %2725 = vmatpush.bf16.xpose.msra.mxu0 0
        %2726 = vmatpush.bf16.xpose.msra.mxu0 0
        %2727 = vmatpush.bf16.xpose.msra.mxu0 %v2718
        %2728 = vmatmul.bf16.gmra.mxu0 %v2715
        %v2729 = vpop.f32.mrf.mxu0
        %v2730 = vadd.f32 0.0, %v2729
        %v2731 = vpop.f32.mrf.mxu0
        %2732 = vdwg.mxu0
        %2733 = vrot.lane.b32.xlu0 %v2584, 64
        %v2734 = vpop.permute.xlu0 %2733
        %v2735 = vrot.slane %v2734, 4
        %v2737 = vunpack.c.l.b16 %v2583
        %v2738 = vpack.c.b16 %v2737, %v2737
        %2739 = vrot.lane.b32.xlu0 %v2738, 64
        %v2740 = vpop.permute.xlu0 %2739
        %v2742 = vsel %vm2595, %v2740, 0
        %v2745 = vsel %vm2595, %v2735, 0
        %2747 = vmatpush.bf16.xpose.msra.mxu0 0
        %2748 = vmatpush.bf16.xpose.msra.mxu0 0
        %2749 = vmatpush.bf16.xpose.msra.mxu0 0
        %2750 = vmatpush.bf16.xpose.msra.mxu0 0
        %2751 = vmatpush.bf16.xpose.msra.mxu0 0
        %2752 = vmatpush.bf16.xpose.msra.mxu0 0
        %2753 = vmatpush.bf16.xpose.msra.mxu0 0
        %2754 = vmatpush.bf16.xpose.msra.mxu0 %v2745
        %2755 = vmatmul.bf16.gmra.mxu0 %v2742
        %v2756 = vpop.f32.mrf.mxu0
        %v2757 = vadd.f32 0.0, %v2756
        %v2758 = vpop.f32.mrf.mxu0
        %2759 = vdwg.mxu0
        %v2760 = vmul.f32 %v2730, 0.05103104
        %v2761 = vmul.f32 %v2757, 0.05103104
        %v2762 = vsel %vm2639, %v2760, -1e+30
        %v2763 = vsel %vm2639, %v2761, -1e+30
        %v2764 = vsel %vm2642, %v2762, -inf
        %2765 = vmax.xlane.f32.xlu0 %v2764
        %v2766 = vpop.xlane.xlu0 %2765
        %v2767 = vsel %vm2642, %v2763, -inf
        %2768 = vmax.xlane.f32.xlu0 %v2767
        %v2769 = vpop.xlane.xlu0 %2768
        %v2770 = vsub.f32 %v2762, %v2766
        %v2771 = vsub.f32 %v2763, %v2769
        %v2772 = vmul.f32 %v2770, 1.442695
        %v2773 = vpow.pop %v2772
        %v2774 = vmul.f32 %v2771, 1.442695
        %v2775 = vpow.pop %v2774
        %v2776 = vsel %vm2642, %v2773, 0.0
        %2777 = vadd.xlane.f32.xlu0 %v2776
        %v2778 = vpop.xlane.xlu0 %2777
        %v2779 = vsel %vm2642, %v2775, 0.0
        %2780 = vadd.xlane.f32.xlu0 %v2779
        %v2781 = vpop.xlane.xlu0 %2780
        %v2782 = vrcp.pop %v2778
        %v2783 = vrcp.pop %v2781
        %v2784 = vmul.f32 %v2773, %v2782
        %v2785 = vmul.f32 %v2775, %v2783
        %v2786 = vpack.c.bf16 %v2784, %v2784
        %v2787 = vpack.c.bf16 %v2785, %v2785
        %v2789 = vunpack.c.l.b16 %v2581
        %v2790 = vpack.c.b16 %v2789, %v2789
        %2791 = vrot.lane.b32.xlu0 %v2790, 64
        %v2792 = vpop.permute.xlu0 %2791
        %v2794 = vsel %vm2642, %v2786, 0
        %v2797 = vsel %vm2670, %v2792, 0
        %2799 = vmatpush.bf16.msra.mxu0 0
        %2800 = vmatpush.bf16.msra.mxu0 0
        %2801 = vmatpush.bf16.msra.mxu0 0
        %2802 = vmatpush.bf16.msra.mxu0 0
        %2803 = vmatpush.bf16.msra.mxu0 0
        %2804 = vmatpush.bf16.msra.mxu0 0
        %2805 = vmatpush.bf16.msra.mxu0 0
        %2806 = vmatpush.bf16.msra.mxu0 %v2797
        %2807 = vmatmul.bf16.gmra.mxu0 %v2794
        %v2808 = vpop.f32.mrf.mxu0
        %v2809 = vadd.f32 0.0, %v2808
        %v2810 = vpop.f32.mrf.mxu0
        %2811 = vdwg.mxu0
        %v2813 = vunpack.c.l.b16 %v2586
        %v2814 = vpack.c.b16 %v2813, %v2813
        %2815 = vrot.lane.b32.xlu0 %v2814, 64
        %v2816 = vpop.permute.xlu0 %2815
        %v2818 = vsel %vm2642, %v2787, 0
        %v2821 = vsel %vm2670, %v2816, 0
        %2823 = vmatpush.bf16.msra.mxu0 0
        %2824 = vmatpush.bf16.msra.mxu0 0
        %2825 = vmatpush.bf16.msra.mxu0 0
        %2826 = vmatpush.bf16.msra.mxu0 0
        %2827 = vmatpush.bf16.msra.mxu0 0
        %2828 = vmatpush.bf16.msra.mxu0 0
        %2829 = vmatpush.bf16.msra.mxu0 0
        %2830 = vmatpush.bf16.msra.mxu0 %v2821
        %2831 = vmatmul.bf16.gmra.mxu0 %v2818
        %v2832 = vpop.f32.mrf.mxu0
        %v2833 = vadd.f32 0.0, %v2832
        %v2834 = vpop.f32.mrf.mxu0
        %2835 = vdwg.mxu0
        %v2836 = vrot.slane %v2578, 4
        %v2838 = vsel %vm2595, %v2836, 0
        %v2841 = vsel %vm2595, %v2580, 0
        %2843 = vmatpush.bf16.xpose.msra.mxu0 0
        %2844 = vmatpush.bf16.xpose.msra.mxu0 0
        %2845 = vmatpush.bf16.xpose.msra.mxu0 0
        %2846 = vmatpush.bf16.xpose.msra.mxu0 0
        %2847 = vmatpush.bf16.xpose.msra.mxu0 0
        %2848 = vmatpush.bf16.xpose.msra.mxu0 0
        %2849 = vmatpush.bf16.xpose.msra.mxu0 0
        %2850 = vmatpush.bf16.xpose.msra.mxu0 %v2841
        %2851 = vmatmul.bf16.gmra.mxu0 %v2838
        %v2852 = vpop.f32.mrf.mxu0
        %v2853 = vadd.f32 0.0, %v2852
        %v2854 = vpop.f32.mrf.mxu0
        %2855 = vdwg.mxu0
        %v2856 = vrot.slane %v2583, 4
        %v2858 = vsel %vm2595, %v2856, 0
        %v2861 = vsel %vm2595, %v2585, 0
        %2863 = vmatpush.bf16.xpose.msra.mxu0 0
        %2864 = vmatpush.bf16.xpose.msra.mxu0 0
        %2865 = vmatpush.bf16.xpose.msra.mxu0 0
        %2866 = vmatpush.bf16.xpose.msra.mxu0 0
        %2867 = vmatpush.bf16.xpose.msra.mxu0 0
        %2868 = vmatpush.bf16.xpose.msra.mxu0 0
        %2869 = vmatpush.bf16.xpose.msra.mxu0 0
        %2870 = vmatpush.bf16.xpose.msra.mxu0 %v2861
        %2871 = vmatmul.bf16.gmra.mxu0 %v2858
        %v2872 = vpop.f32.mrf.mxu0
        %v2873 = vadd.f32 0.0, %v2872
        %v2874 = vpop.f32.mrf.mxu0
        %2875 = vdwg.mxu0
        %v2876 = vmul.f32 %v2853, 0.05103104
        %v2877 = vmul.f32 %v2873, 0.05103104
        %v2878 = vsel %vm2639, %v2876, -1e+30
        %v2879 = vsel %vm2639, %v2877, -1e+30
        %v2880 = vsel %vm2642, %v2878, -inf
        %2881 = vmax.xlane.f32.xlu0 %v2880
        %v2882 = vpop.xlane.xlu0 %2881
        %v2883 = vsel %vm2642, %v2879, -inf
        %2884 = vmax.xlane.f32.xlu0 %v2883
        %v2885 = vpop.xlane.xlu0 %2884
        %v2886 = vsub.f32 %v2878, %v2882
        %v2887 = vsub.f32 %v2879, %v2885
        %v2888 = vmul.f32 %v2886, 1.442695
        %v2889 = vpow.pop %v2888
        %v2890 = vmul.f32 %v2887, 1.442695
        %v2891 = vpow.pop %v2890
        %v2892 = vsel %vm2642, %v2889, 0.0
        %2893 = vadd.xlane.f32.xlu0 %v2892
        %v2894 = vpop.xlane.xlu0 %2893
        %v2895 = vsel %vm2642, %v2891, 0.0
        %2896 = vadd.xlane.f32.xlu0 %v2895
        %v2897 = vpop.xlane.xlu0 %2896
        %v2898 = vrcp.pop %v2894
        %v2899 = vrcp.pop %v2897
        %v2900 = vmul.f32 %v2889, %v2898
        %v2901 = vmul.f32 %v2891, %v2899
        %v2902 = vpack.c.bf16 %v2900, %v2900
        %v2903 = vpack.c.bf16 %v2901, %v2901
        %v2904 = vrot.slane %v2581, 4
        %v2906 = vsel %vm2642, %v2902, 0
        %v2909 = vsel %vm2670, %v2904, 0
        %2911 = vmatpush.bf16.msra.mxu0 0
        %2912 = vmatpush.bf16.msra.mxu0 0
        %2913 = vmatpush.bf16.msra.mxu0 0
        %2914 = vmatpush.bf16.msra.mxu0 0
        %2915 = vmatpush.bf16.msra.mxu0 0
        %2916 = vmatpush.bf16.msra.mxu0 0
        %2917 = vmatpush.bf16.msra.mxu0 0
        %2918 = vmatpush.bf16.msra.mxu0 %v2909
        %2919 = vmatmul.bf16.gmra.mxu0 %v2906
        %v2920 = vpop.f32.mrf.mxu0
        %v2921 = vadd.f32 0.0, %v2920
        %v2922 = vpop.f32.mrf.mxu0
        %2923 = vdwg.mxu0
        %v2924 = vrot.slane %v2586, 4
        %v2926 = vsel %vm2642, %v2903, 0
        %v2929 = vsel %vm2670, %v2924, 0
        %2931 = vmatpush.bf16.msra.mxu0 0
        %2932 = vmatpush.bf16.msra.mxu0 0
        %2933 = vmatpush.bf16.msra.mxu0 0
        %2934 = vmatpush.bf16.msra.mxu0 0
        %2935 = vmatpush.bf16.msra.mxu0 0
        %2936 = vmatpush.bf16.msra.mxu0 0
        %2937 = vmatpush.bf16.msra.mxu0 0
        %2938 = vmatpush.bf16.msra.mxu0 %v2929
        %2939 = vmatmul.bf16.gmra.mxu0 %v2926
        %v2940 = vpop.f32.mrf.mxu0
        %v2941 = vadd.f32 0.0, %v2940
        %v2942 = vpop.f32.mrf.mxu0
        %2943 = vdwg.mxu0
        %2944 = vrot.lane.b32.xlu0 %v2578, 64
        %v2945 = vpop.permute.xlu0 %2944
        %v2946 = vrot.slane %v2945, 4
        %v2948 = vunpack.c.l.b16 %v2580
        %v2949 = vpack.c.b16 %v2948, %v2948
        %2950 = vrot.lane.b32.xlu0 %v2949, 64
        %v2951 = vpop.permute.xlu0 %2950
        %v2953 = vsel %vm2595, %v2946, 0
        %v2956 = vsel %vm2595, %v2951, 0
        %2958 = vmatpush.bf16.xpose.msra.mxu0 0
        %2959 = vmatpush.bf16.xpose.msra.mxu0 0
        %2960 = vmatpush.bf16.xpose.msra.mxu0 0
        %2961 = vmatpush.bf16.xpose.msra.mxu0 0
        %2962 = vmatpush.bf16.xpose.msra.mxu0 0
        %2963 = vmatpush.bf16.xpose.msra.mxu0 0
        %2964 = vmatpush.bf16.xpose.msra.mxu0 0
        %2965 = vmatpush.bf16.xpose.msra.mxu0 %v2956
        %2966 = vmatmul.bf16.gmra.mxu0 %v2953
        %v2967 = vpop.f32.mrf.mxu0
        %v2968 = vadd.f32 0.0, %v2967
        %v2969 = vpop.f32.mrf.mxu0
        %2970 = vdwg.mxu0
        %2971 = vrot.lane.b32.xlu0 %v2583, 64
        %v2972 = vpop.permute.xlu0 %2971
        %v2973 = vrot.slane %v2972, 4
        %v2975 = vunpack.c.l.b16 %v2585
        %v2976 = vpack.c.b16 %v2975, %v2975
        %2977 = vrot.lane.b32.xlu0 %v2976, 64
        %v2978 = vpop.permute.xlu0 %2977
        %v2980 = vsel %vm2595, %v2973, 0
        %v2983 = vsel %vm2595, %v2978, 0
        %2985 = vmatpush.bf16.xpose.msra.mxu0 0
        %2986 = vmatpush.bf16.xpose.msra.mxu0 0
        %2987 = vmatpush.bf16.xpose.msra.mxu0 0
        %2988 = vmatpush.bf16.xpose.msra.mxu0 0
        %2989 = vmatpush.bf16.xpose.msra.mxu0 0
        %2990 = vmatpush.bf16.xpose.msra.mxu0 0
        %2991 = vmatpush.bf16.xpose.msra.mxu0 0
        %2992 = vmatpush.bf16.xpose.msra.mxu0 %v2983
        %2993 = vmatmul.bf16.gmra.mxu0 %v2980
        %v2994 = vpop.f32.mrf.mxu0
        %v2995 = vadd.f32 0.0, %v2994
        %v2996 = vpop.f32.mrf.mxu0
        %2997 = vdwg.mxu0
        %v2998 = vmul.f32 %v2968, 0.05103104
        %v2999 = vmul.f32 %v2995, 0.05103104
        %v3000 = vsel %vm2639, %v2998, -1e+30
        %v3001 = vsel %vm2639, %v2999, -1e+30
        %v3002 = vsel %vm2642, %v3000, -inf
        %3003 = vmax.xlane.f32.xlu0 %v3002
        %v3004 = vpop.xlane.xlu0 %3003
        %v3005 = vsel %vm2642, %v3001, -inf
        %3006 = vmax.xlane.f32.xlu0 %v3005
        %v3007 = vpop.xlane.xlu0 %3006
        %v3008 = vsub.f32 %v3000, %v3004
        %v3009 = vsub.f32 %v3001, %v3007
        %v3010 = vmul.f32 %v3008, 1.442695
        %v3011 = vpow.pop %v3010
        %v3012 = vmul.f32 %v3009, 1.442695
        %v3013 = vpow.pop %v3012
        %v3014 = vsel %vm2642, %v3011, 0.0
        %3015 = vadd.xlane.f32.xlu0 %v3014
        %v3016 = vpop.xlane.xlu0 %3015
        %v3017 = vsel %vm2642, %v3013, 0.0
        %3018 = vadd.xlane.f32.xlu0 %v3017
        %v3019 = vpop.xlane.xlu0 %3018
        %v3020 = vrcp.pop %v3016
        %v3021 = vrcp.pop %v3019
        %v3022 = vmul.f32 %v3011, %v3020
        %v3023 = vmul.f32 %v3013, %v3021
        %v3024 = vpack.c.bf16 %v3022, %v3022
        %v3025 = vpack.c.bf16 %v3023, %v3023
        %3026 = vrot.lane.b32.xlu0 %v2581, 64
        %v3027 = vpop.permute.xlu0 %3026
        %v3028 = vrot.slane %v3027, 4
        %v3030 = vsel %vm2642, %v3024, 0
        %v3033 = vsel %vm2670, %v3028, 0
        %3035 = vmatpush.bf16.msra.mxu0 0
        %3036 = vmatpush.bf16.msra.mxu0 0
        %3037 = vmatpush.bf16.msra.mxu0 0
        %3038 = vmatpush.bf16.msra.mxu0 0
        %3039 = vmatpush.bf16.msra.mxu0 0
        %3040 = vmatpush.bf16.msra.mxu0 0
        %3041 = vmatpush.bf16.msra.mxu0 0
        %3042 = vmatpush.bf16.msra.mxu0 %v3033
        %3043 = vmatmul.bf16.gmra.mxu0 %v3030
        %v3044 = vpop.f32.mrf.mxu0
        %v3045 = vadd.f32 0.0, %v3044
        %v3046 = vpop.f32.mrf.mxu0
        %3047 = vdwg.mxu0
        %3048 = vrot.lane.b32.xlu0 %v2586, 64
        %v3049 = vpop.permute.xlu0 %3048
        %v3050 = vrot.slane %v3049, 4
        %v3052 = vsel %vm2642, %v3025, 0
        %v3055 = vsel %vm2670, %v3050, 0
        %3057 = vmatpush.bf16.msra.mxu0 0
        %3058 = vmatpush.bf16.msra.mxu0 0
        %3059 = vmatpush.bf16.msra.mxu0 0
        %3060 = vmatpush.bf16.msra.mxu0 0
        %3061 = vmatpush.bf16.msra.mxu0 0
        %3062 = vmatpush.bf16.msra.mxu0 0
        %3063 = vmatpush.bf16.msra.mxu0 0
        %3064 = vmatpush.bf16.msra.mxu0 %v3055
        %3065 = vmatmul.bf16.gmra.mxu0 %v3052
        %v3066 = vpop.f32.mrf.mxu0
        %v3067 = vadd.f32 0.0, %v3066
        %v3068 = vpop.f32.mrf.mxu0
        %3069 = vdwg.mxu0
        %v3070 = vrot.slane %v2580, 4
        %v3072 = vsel %vm2595, %v2579, 0
        %v3075 = vsel %vm2595, %v3070, 0
        %3077 = vmatpush.bf16.xpose.msra.mxu0 0
        %3078 = vmatpush.bf16.xpose.msra.mxu0 0
        %3079 = vmatpush.bf16.xpose.msra.mxu0 0
        %3080 = vmatpush.bf16.xpose.msra.mxu0 0
        %3081 = vmatpush.bf16.xpose.msra.mxu0 0
        %3082 = vmatpush.bf16.xpose.msra.mxu0 0
        %3083 = vmatpush.bf16.xpose.msra.mxu0 0
        %3084 = vmatpush.bf16.xpose.msra.mxu0 %v3075
        %3085 = vmatmul.bf16.gmra.mxu0 %v3072
        %v3086 = vpop.f32.mrf.mxu0
        %v3087 = vadd.f32 0.0, %v3086
        %v3088 = vpop.f32.mrf.mxu0
        %3089 = vdwg.mxu0
        %v3090 = vrot.slane %v2585, 4
        %v3092 = vsel %vm2595, %v2584, 0
        %v3095 = vsel %vm2595, %v3090, 0
        %3097 = vmatpush.bf16.xpose.msra.mxu0 0
        %3098 = vmatpush.bf16.xpose.msra.mxu0 0
        %3099 = vmatpush.bf16.xpose.msra.mxu0 0
        %3100 = vmatpush.bf16.xpose.msra.mxu0 0
        %3101 = vmatpush.bf16.xpose.msra.mxu0 0
        %3102 = vmatpush.bf16.xpose.msra.mxu0 0
        %3103 = vmatpush.bf16.xpose.msra.mxu0 0
        %3104 = vmatpush.bf16.xpose.msra.mxu0 %v3095
        %3105 = vmatmul.bf16.gmra.mxu0 %v3092
        %v3106 = vpop.f32.mrf.mxu0
        %v3107 = vadd.f32 0.0, %v3106
        %v3108 = vpop.f32.mrf.mxu0
        %3109 = vdwg.mxu0
        %v3110 = vmul.f32 %v3087, 0.05103104
        %v3111 = vmul.f32 %v3107, 0.05103104
        %v3112 = vsel %vm2639, %v3110, -1e+30
        %v3113 = vsel %vm2639, %v3111, -1e+30
        %v3114 = vsel %vm2642, %v3112, -inf
        %3115 = vmax.xlane.f32.xlu0 %v3114
        %v3116 = vpop.xlane.xlu0 %3115
        %v3117 = vsel %vm2642, %v3113, -inf
        %3118 = vmax.xlane.f32.xlu0 %v3117
        %v3119 = vpop.xlane.xlu0 %3118
        %v3120 = vsub.f32 %v3112, %v3116
        %v3121 = vsub.f32 %v3113, %v3119
        %v3122 = vmul.f32 %v3120, 1.442695
        %v3123 = vpow.pop %v3122
        %v3124 = vmul.f32 %v3121, 1.442695
        %v3125 = vpow.pop %v3124
        %v3126 = vsel %vm2642, %v3123, 0.0
        %3127 = vadd.xlane.f32.xlu0 %v3126
        %v3128 = vpop.xlane.xlu0 %3127
        %v3129 = vsel %vm2642, %v3125, 0.0
        %3130 = vadd.xlane.f32.xlu0 %v3129
        %v3131 = vpop.xlane.xlu0 %3130
        %v3132 = vrcp.pop %v3128
        %v3133 = vrcp.pop %v3131
        %v3134 = vmul.f32 %v3123, %v3132
        %v3135 = vmul.f32 %v3125, %v3133
        %v3136 = vpack.c.bf16 %v3134, %v3134
        %v3137 = vpack.c.bf16 %v3135, %v3135
        %v3139 = vsel %vm2642, %v3136, 0
        %v3142 = vsel %vm2670, %v2582, 0
        %3144 = vmatpush.bf16.msra.mxu0 0
        %3145 = vmatpush.bf16.msra.mxu0 0
        %3146 = vmatpush.bf16.msra.mxu0 0
        %3147 = vmatpush.bf16.msra.mxu0 0
        %3148 = vmatpush.bf16.msra.mxu0 0
        %3149 = vmatpush.bf16.msra.mxu0 0
        %3150 = vmatpush.bf16.msra.mxu0 0
        %3151 = vmatpush.bf16.msra.mxu0 %v3142
        %3152 = vmatmul.bf16.gmra.mxu0 %v3139
        %v3153 = vpop.f32.mrf.mxu0
        %v3154 = vadd.f32 0.0, %v3153
        %v3155 = vpop.f32.mrf.mxu0
        %3156 = vdwg.mxu0
        %v3158 = vsel %vm2642, %v3137, 0
        %v3161 = vsel %vm2670, %v2587, 0
        %3163 = vmatpush.bf16.msra.mxu0 0
        %3164 = vmatpush.bf16.msra.mxu0 0
        %3165 = vmatpush.bf16.msra.mxu0 0
        %3166 = vmatpush.bf16.msra.mxu0 0
        %3167 = vmatpush.bf16.msra.mxu0 0
        %3168 = vmatpush.bf16.msra.mxu0 0
        %3169 = vmatpush.bf16.msra.mxu0 0
        %3170 = vmatpush.bf16.msra.mxu0 %v3161
        %3171 = vmatmul.bf16.gmra.mxu0 %v3158
        %v3172 = vpop.f32.mrf.mxu0
        %v3173 = vadd.f32 0.0, %v3172
        %v3174 = vpop.f32.mrf.mxu0
        %3175 = vdwg.mxu0
        %3176 = vrot.lane.b32.xlu0 %v2580, 64
        %v3177 = vpop.permute.xlu0 %3176
        %v3178 = vrot.slane %v3177, 4
        %v3179 = vunpack.c.l.b16 %v2579
        %v3180 = vpack.c.b16 %v3179, %v3179
        %3181 = vrot.lane.b32.xlu0 %v3180, 64
        %v3182 = vpop.permute.xlu0 %3181
        %v3184 = vsel %vm2595, %v3182, 0
        %v3187 = vsel %vm2595, %v3178, 0
        %3189 = vmatpush.bf16.xpose.msra.mxu0 0
        %3190 = vmatpush.bf16.xpose.msra.mxu0 0
        %3191 = vmatpush.bf16.xpose.msra.mxu0 0
        %3192 = vmatpush.bf16.xpose.msra.mxu0 0
        %3193 = vmatpush.bf16.xpose.msra.mxu0 0
        %3194 = vmatpush.bf16.xpose.msra.mxu0 0
        %3195 = vmatpush.bf16.xpose.msra.mxu0 0
        %3196 = vmatpush.bf16.xpose.msra.mxu0 %v3187
        %3197 = vmatmul.bf16.gmra.mxu0 %v3184
        %v3198 = vpop.f32.mrf.mxu0
        %v3199 = vadd.f32 0.0, %v3198
        %v3200 = vpop.f32.mrf.mxu0
        %3201 = vdwg.mxu0
        %3202 = vrot.lane.b32.xlu0 %v2585, 64
        %v3203 = vpop.permute.xlu0 %3202
        %v3204 = vrot.slane %v3203, 4
        %v3205 = vunpack.c.l.b16 %v2584
        %v3206 = vpack.c.b16 %v3205, %v3205
        %3207 = vrot.lane.b32.xlu0 %v3206, 64
        %v3208 = vpop.permute.xlu0 %3207
        %v3210 = vsel %vm2595, %v3208, 0
        %v3213 = vsel %vm2595, %v3204, 0
        %3215 = vmatpush.bf16.xpose.msra.mxu0 0
        %3216 = vmatpush.bf16.xpose.msra.mxu0 0
        %3217 = vmatpush.bf16.xpose.msra.mxu0 0
        %3218 = vmatpush.bf16.xpose.msra.mxu0 0
        %3219 = vmatpush.bf16.xpose.msra.mxu0 0
        %3220 = vmatpush.bf16.xpose.msra.mxu0 0
        %3221 = vmatpush.bf16.xpose.msra.mxu0 0
        %3222 = vmatpush.bf16.xpose.msra.mxu0 %v3213
        %3223 = vmatmul.bf16.gmra.mxu0 %v3210
        %v3224 = vpop.f32.mrf.mxu0
        %v3225 = vadd.f32 0.0, %v3224
        %v3226 = vpop.f32.mrf.mxu0
        %3227 = vdwg.mxu0
        %v3228 = vmul.f32 %v3199, 0.05103104
        %v3229 = vmul.f32 %v3225, 0.05103104
        %v3230 = vsel %vm2639, %v3228, -1e+30
        %v3231 = vsel %vm2639, %v3229, -1e+30
        %v3232 = vsel %vm2642, %v3230, -inf
        %3233 = vmax.xlane.f32.xlu0 %v3232
        %v3234 = vpop.xlane.xlu0 %3233
        %v3235 = vsel %vm2642, %v3231, -inf
        %3236 = vmax.xlane.f32.xlu0 %v3235
        %v3237 = vpop.xlane.xlu0 %3236
        %v3238 = vsub.f32 %v3230, %v3234
        %v3239 = vsub.f32 %v3231, %v3237
        %v3240 = vmul.f32 %v3238, 1.442695
        %v3241 = vpow.pop %v3240
        %v3242 = vmul.f32 %v3239, 1.442695
        %v3243 = vpow.pop %v3242
        %v3244 = vsel %vm2642, %v3241, 0.0
        %3245 = vadd.xlane.f32.xlu0 %v3244
        %v3246 = vpop.xlane.xlu0 %3245
        %v3247 = vsel %vm2642, %v3243, 0.0
        %3248 = vadd.xlane.f32.xlu0 %v3247
        %v3249 = vpop.xlane.xlu0 %3248
        %v3250 = vrcp.pop %v3246
        %v3251 = vrcp.pop %v3249
        %v3252 = vmul.f32 %v3241, %v3250
        %v3253 = vmul.f32 %v3243, %v3251
        %v3254 = vpack.c.bf16 %v3252, %v3252
        %v3255 = vpack.c.bf16 %v3253, %v3253
        %v3257 = vunpack.c.l.b16 %v2582
        %v3258 = vpack.c.b16 %v3257, %v3257
        %3259 = vrot.lane.b32.xlu0 %v3258, 64
        %v3260 = vpop.permute.xlu0 %3259
        %v3262 = vsel %vm2642, %v3254, 0
        %v3265 = vsel %vm2670, %v3260, 0
        %3267 = vmatpush.bf16.msra.mxu0 0
        %3268 = vmatpush.bf16.msra.mxu0 0
        %3269 = vmatpush.bf16.msra.mxu0 0
        %3270 = vmatpush.bf16.msra.mxu0 0
        %3271 = vmatpush.bf16.msra.mxu0 0
        %3272 = vmatpush.bf16.msra.mxu0 0
        %3273 = vmatpush.bf16.msra.mxu0 0
        %3274 = vmatpush.bf16.msra.mxu0 %v3265
        %3275 = vmatmul.bf16.gmra.mxu0 %v3262
        %v3276 = vpop.f32.mrf.mxu0
        %v3277 = vadd.f32 0.0, %v3276
        %v3278 = vpop.f32.mrf.mxu0
        %3279 = vdwg.mxu0
        %v3281 = vunpack.c.l.b16 %v2587
        %v3282 = vpack.c.b16 %v3281, %v3281
        %3283 = vrot.lane.b32.xlu0 %v3282, 64
        %v3284 = vpop.permute.xlu0 %3283
        %v3286 = vsel %vm2642, %v3255, 0
        %v3289 = vsel %vm2670, %v3284, 0
        %3291 = vmatpush.bf16.msra.mxu0 0
        %3292 = vmatpush.bf16.msra.mxu0 0
        %3293 = vmatpush.bf16.msra.mxu0 0
        %3294 = vmatpush.bf16.msra.mxu0 0
        %3295 = vmatpush.bf16.msra.mxu0 0
        %3296 = vmatpush.bf16.msra.mxu0 0
        %3297 = vmatpush.bf16.msra.mxu0 0
        %3298 = vmatpush.bf16.msra.mxu0 %v3289
        %3299 = vmatmul.bf16.gmra.mxu0 %v3286
        %v3300 = vpop.f32.mrf.mxu0
        %v3301 = vadd.f32 0.0, %v3300
        %v3302 = vpop.f32.mrf.mxu0
        %3303 = vdwg.mxu0
        %3306 = vrot.lane.b32.xlu0 %v2809, 64
        %v3307 = vpop.permute.xlu0 %3306
        %3308 = vrot.lane.b32.xlu0 %v2833, 64
        %v3309 = vpop.permute.xlu0 %3308
        %3314 = vrot.lane.b32.xlu0 %v3045, 64
        %v3315 = vpop.permute.xlu0 %3314
        %3316 = vrot.lane.b32.xlu0 %v3067, 64
        %v3317 = vpop.permute.xlu0 %3316
        %3322 = vrot.lane.b32.xlu0 %v3277, 64
        %v3323 = vpop.permute.xlu0 %3322
        %3324 = vrot.lane.b32.xlu0 %v3301, 64
        %v3325 = vpop.permute.xlu0 %3324
        %v3328 = vsel %vm2595, %v2684, %v3307
        %v3329 = vsel %vm2595, %v2703, %v3309
        %v3330 = vsel %vm2595, %v2921, %v3315
        %v3331 = vsel %vm2595, %v2941, %v3317
        %v3332 = vsel %vm2595, %v3154, %v3323
        %v3333 = vsel %vm2595, %v3173, %v3325
        %v3334 = vpack.c.bf16 %v3329, %v3328
        %v3335 = vpack.c.bf16 %v3331, %v3330
        %v3336 = vpack.c.bf16 %v3333, %v3332
        %v3337 = vld [vmem:[%s609] sm:$0xff]
        %v3338 = vld [vmem:[%s609 + $0x8] sm:$0xf]
        %v3339 = vld [vmem:[%s609 + $0xc] sm:$0xff]
        %v3340 = vld [vmem:[%s609 + $0x14] sm:$0xf]
        %v3341 = vld [vmem:[%s609 + $0x18] sm:$0xff]
        %v3342 = vld [vmem:[%s609 + $0x20] sm:$0xf]
        %v3343 = vld [vmem:[%s609 + $0x24] sm:$0xff]
        %v3344 = vld [vmem:[%s609 + $0x2c] sm:$0xf]
        %v3345 = vld [vmem:[%s609 + $0x30] sm:$0xff]
        %v3346 = vld [vmem:[%s609 + $0x38] sm:$0xf]
        %v3347 = vld [vmem:[%s609 + $0x3c] sm:$0xff]
        %v3348 = vld [vmem:[%s609 + $0x44] sm:$0xf]
        %v3349 = vld [vmem:[%s609 + $0x48] sm:$0xff]
        %v3350 = vld [vmem:[%s609 + $0x50] sm:$0xf]
        %v3351 = vld [vmem:[%s609 + $0x54] sm:$0xff]
        %v3352 = vld [vmem:[%s609 + $0x5c] sm:$0xf]
        %v3353 = vld [vmem:[%s609 + $0x60] sm:$0xff]
        %v3354 = vld [vmem:[%s609 + $0x68] sm:$0xf]
        %v3355 = vld [vmem:[%s609 + $0x6c] sm:$0xff]
        %v3356 = vld [vmem:[%s609 + $0x74] sm:$0xf]
        %v3357 = vld [vmem:[%s609 + $0x78] sm:$0xff]
        %v3358 = vld [vmem:[%s609 + $0x80] sm:$0xf]
        %v3359 = vld [vmem:[%s609 + $0x84] sm:$0xff]
        %v3360 = vld [vmem:[%s609 + $0x8c] sm:$0xf]
        %v3361 = vld [vmem:[%s609 + $0x90] sm:$0xff]
        %v3362 = vld [vmem:[%s609 + $0x98] sm:$0xf]
        %v3363 = vld [vmem:[%s609 + $0x9c] sm:$0xff]
        %v3364 = vld [vmem:[%s609 + $0xa4] sm:$0xf]
        %v3365 = vld [vmem:[%s609 + $0xa8] sm:$0xff]
        %v3366 = vld [vmem:[%s609 + $0xb0] sm:$0xf]
        %v3367 = vld [vmem:[%s609 + $0xb4] sm:$0xff]
        %v3368 = vld [vmem:[%s609 + $0xbc] sm:$0xf]
        %v3369 = vld [vmem:[%s609 + $0xc0] sm:$0xff]
        %v3370 = vld [vmem:[%s609 + $0xc8] sm:$0xf]
        %v3371 = vld [vmem:[%s609 + $0xcc] sm:$0xff]
        %v3372 = vld [vmem:[%s609 + $0xd4] sm:$0xf]
        %v3373 = vld [vmem:[%s609 + $0xd8] sm:$0xff]
        %v3374 = vld [vmem:[%s609 + $0xe0] sm:$0xf]
        %v3375 = vld [vmem:[%s609 + $0xe4] sm:$0xff]
        %v3376 = vld [vmem:[%s609 + $0xec] sm:$0xf]
        %v3377 = vld [vmem:[%s609 + $0xf0] sm:$0xff]
        %v3378 = vld [vmem:[%s609 + $0xf8] sm:$0xf]
        %v3379 = vld [vmem:[%s609 + $0xfc] sm:$0xff]
        %v3380 = vld [vmem:[%s609 + $0x104] sm:$0xf]
        %v3381 = vld [vmem:[%s609 + $0x108] sm:$0xff]
        %v3382 = vld [vmem:[%s609 + $0x110] sm:$0xf]
        %v3383 = vld [vmem:[%s609 + $0x114] sm:$0xff]
        %v3384 = vld [vmem:[%s609 + $0x11c] sm:$0xf]
        %v3385 = vld [vmem:[%s609 + $0x120] sm:$0xff]
        %v3386 = vld [vmem:[%s609 + $0x128] sm:$0xf]
        %v3387 = vld [vmem:[%s609 + $0x12c] sm:$0xff]
        %v3388 = vld [vmem:[%s609 + $0x134] sm:$0xf]
        %v3389 = vld [vmem:[%s609 + $0x138] sm:$0xff]
        %v3390 = vld [vmem:[%s609 + $0x140] sm:$0xf]
        %v3391 = vld [vmem:[%s609 + $0x144] sm:$0xff]
        %v3392 = vld [vmem:[%s609 + $0x14c] sm:$0xf]
        %v3393 = vld [vmem:[%s609 + $0x150] sm:$0xff]
        %v3394 = vld [vmem:[%s609 + $0x158] sm:$0xf]
        %v3395 = vld [vmem:[%s609 + $0x15c] sm:$0xff]
        %v3396 = vld [vmem:[%s609 + $0x164] sm:$0xf]
        %v3397 = vld [vmem:[%s609 + $0x168] sm:$0xff]
        %v3398 = vld [vmem:[%s609 + $0x170] sm:$0xf]
        %v3399 = vld [vmem:[%s609 + $0x174] sm:$0xff]
        %v3400 = vld [vmem:[%s609 + $0x17c] sm:$0xf]
        %v3401 = vld [vmem:[%s609 + $0x180] sm:$0xff]
        %v3402 = vld [vmem:[%s609 + $0x188] sm:$0xf]
        %v3403 = vld [vmem:[%s609 + $0x18c] sm:$0xff]
        %v3404 = vld [vmem:[%s609 + $0x194] sm:$0xf]
        %v3405 = vld [vmem:[%s609 + $0x198] sm:$0xff]
        %v3406 = vld [vmem:[%s609 + $0x1a0] sm:$0xf]
        %v3407 = vld [vmem:[%s609 + $0x1a4] sm:$0xff]
        %v3408 = vld [vmem:[%s609 + $0x1ac] sm:$0xf]
        %v3409 = vld [vmem:[%s609 + $0x1b0] sm:$0xff]
        %v3410 = vld [vmem:[%s609 + $0x1b8] sm:$0xf]
        %v3411 = vld [vmem:[%s609 + $0x1bc] sm:$0xff]
        %v3412 = vld [vmem:[%s609 + $0x1c4] sm:$0xf]
        %v3413 = vld [vmem:[%s609 + $0x1c8] sm:$0xff]
        %v3414 = vld [vmem:[%s609 + $0x1d0] sm:$0xf]
        %v3415 = vld [vmem:[%s609 + $0x1d4] sm:$0xff]
        %v3416 = vld [vmem:[%s609 + $0x1dc] sm:$0xf]
        %v3417 = vld [vmem:[%s609 + $0x1e0] sm:$0xff]
        %v3418 = vld [vmem:[%s609 + $0x1e8] sm:$0xf]
        %v3419 = vld [vmem:[%s609 + $0x1ec] sm:$0xff]
        %v3420 = vld [vmem:[%s609 + $0x1f4] sm:$0xf]
        %v3421 = vld [vmem:[%s609 + $0x1f8] sm:$0xff]
        %v3422 = vld [vmem:[%s609 + $0x200] sm:$0xf]
        %v3423 = vld [vmem:[%s609 + $0x204] sm:$0xff]
        %v3424 = vld [vmem:[%s609 + $0x20c] sm:$0xf]
        %v3425 = vld [vmem:[%s609 + $0x210] sm:$0xff]
        %v3426 = vld [vmem:[%s609 + $0x218] sm:$0xf]
        %v3427 = vld [vmem:[%s609 + $0x21c] sm:$0xff]
        %v3428 = vld [vmem:[%s609 + $0x224] sm:$0xf]
        %v3429 = vld [vmem:[%s609 + $0x228] sm:$0xff]
        %v3430 = vld [vmem:[%s609 + $0x230] sm:$0xf]
        %v3431 = vld [vmem:[%s609 + $0x234] sm:$0xff]
        %v3432 = vld [vmem:[%s609 + $0x23c] sm:$0xf]
        %v3433 = vld [vmem:[%s619] sm:$0x7]
        %v3435 = vperm.slane %v3433, 0
        %v3436 = vperm.slane %v3433, 1
        %v3437 = vperm.slane %v3433, 2
        %v3537 = vunpack.c.l.b16 %v3337
        %v3538 = vunpack.c.h.b16 %v3337
        %v3539 = vunpack.c.l.b16 %v3338
        %v3540 = vunpack.c.l.b16 %v3339
        %v3541 = vunpack.c.h.b16 %v3339
        %v3542 = vunpack.c.l.b16 %v3340
        %v3543 = vunpack.c.l.b16 %v3341
        %v3544 = vunpack.c.h.b16 %v3341
        %v3545 = vunpack.c.l.b16 %v3342
        %v3546 = vunpack.c.l.b16 %v3343
        %v3547 = vunpack.c.h.b16 %v3343
        %v3548 = vunpack.c.l.b16 %v3344
        %v3549 = vunpack.c.l.b16 %v3345
        %v3550 = vunpack.c.h.b16 %v3345
        %v3551 = vunpack.c.l.b16 %v3346
        %v3552 = vunpack.c.l.b16 %v3347
        %v3553 = vunpack.c.h.b16 %v3347
        %v3554 = vunpack.c.l.b16 %v3348
        %v3555 = vunpack.c.l.b16 %v3349
        %v3556 = vunpack.c.h.b16 %v3349
        %v3557 = vunpack.c.l.b16 %v3350
        %v3558 = vunpack.c.l.b16 %v3351
        %v3559 = vunpack.c.h.b16 %v3351
        %v3560 = vunpack.c.l.b16 %v3352
        %v3561 = vunpack.c.l.b16 %v3353
        %v3562 = vunpack.c.h.b16 %v3353
        %v3563 = vunpack.c.l.b16 %v3354
        %v3564 = vunpack.c.l.b16 %v3355
        %v3565 = vunpack.c.h.b16 %v3355
        %v3566 = vunpack.c.l.b16 %v3356
        %v3567 = vunpack.c.l.b16 %v3357
        %v3568 = vunpack.c.h.b16 %v3357
        %v3569 = vunpack.c.l.b16 %v3358
        %v3570 = vunpack.c.l.b16 %v3359
        %v3571 = vunpack.c.h.b16 %v3359
        %v3572 = vunpack.c.l.b16 %v3360
        %v3573 = vunpack.c.l.b16 %v3361
        %v3574 = vunpack.c.h.b16 %v3361
        %v3575 = vunpack.c.l.b16 %v3362
        %v3576 = vunpack.c.l.b16 %v3363
        %v3577 = vunpack.c.h.b16 %v3363
        %v3578 = vunpack.c.l.b16 %v3364
        %v3579 = vunpack.c.l.b16 %v3365
        %v3580 = vunpack.c.h.b16 %v3365
        %v3581 = vunpack.c.l.b16 %v3366
        %v3582 = vunpack.c.l.b16 %v3367
        %v3583 = vunpack.c.h.b16 %v3367
        %v3584 = vunpack.c.l.b16 %v3368
        %v3585 = vunpack.c.l.b16 %v3369
        %v3586 = vunpack.c.h.b16 %v3369
        %v3587 = vunpack.c.l.b16 %v3370
        %v3588 = vunpack.c.l.b16 %v3371
        %v3589 = vunpack.c.h.b16 %v3371
        %v3590 = vunpack.c.l.b16 %v3372
        %v3591 = vunpack.c.l.b16 %v3373
        %v3592 = vunpack.c.h.b16 %v3373
        %v3593 = vunpack.c.l.b16 %v3374
        %v3594 = vunpack.c.l.b16 %v3375
        %v3595 = vunpack.c.h.b16 %v3375
        %v3596 = vunpack.c.l.b16 %v3376
        %v3597 = vunpack.c.l.b16 %v3377
        %v3598 = vunpack.c.h.b16 %v3377
        %v3599 = vunpack.c.l.b16 %v3378
        %v3600 = vunpack.c.l.b16 %v3379
        %v3601 = vunpack.c.h.b16 %v3379
        %v3602 = vunpack.c.l.b16 %v3380
        %v3603 = vunpack.c.l.b16 %v3381
        %v3604 = vunpack.c.h.b16 %v3381
        %v3605 = vunpack.c.l.b16 %v3382
        %v3606 = vunpack.c.l.b16 %v3383
        %v3607 = vunpack.c.h.b16 %v3383
        %v3608 = vunpack.c.l.b16 %v3384
        %v3609 = vunpack.c.l.b16 %v3385
        %v3610 = vunpack.c.h.b16 %v3385
        %v3611 = vunpack.c.l.b16 %v3386
        %v3612 = vunpack.c.l.b16 %v3387
        %v3613 = vunpack.c.h.b16 %v3387
        %v3614 = vunpack.c.l.b16 %v3388
        %v3615 = vunpack.c.l.b16 %v3389
        %v3616 = vunpack.c.h.b16 %v3389
        %v3617 = vunpack.c.l.b16 %v3390
        %v3618 = vunpack.c.l.b16 %v3391
        %v3619 = vunpack.c.h.b16 %v3391
        %v3620 = vunpack.c.l.b16 %v3392
        %v3621 = vunpack.c.l.b16 %v3393
        %v3622 = vunpack.c.h.b16 %v3393
        %v3623 = vunpack.c.l.b16 %v3394
        %v3624 = vunpack.c.l.b16 %v3395
        %v3625 = vunpack.c.h.b16 %v3395
        %v3626 = vunpack.c.l.b16 %v3396
        %v3627 = vunpack.c.l.b16 %v3397
        %v3628 = vunpack.c.h.b16 %v3397
        %v3629 = vunpack.c.l.b16 %v3398
        %v3630 = vunpack.c.l.b16 %v3399
        %v3631 = vunpack.c.h.b16 %v3399
        %v3632 = vunpack.c.l.b16 %v3400
        %v3633 = vunpack.c.l.b16 %v3401
        %v3634 = vunpack.c.h.b16 %v3401
        %v3635 = vunpack.c.l.b16 %v3402
        %v3636 = vunpack.c.l.b16 %v3403
        %v3637 = vunpack.c.h.b16 %v3403
        %v3638 = vunpack.c.l.b16 %v3404
        %v3639 = vunpack.c.l.b16 %v3405
        %v3640 = vunpack.c.h.b16 %v3405
        %v3641 = vunpack.c.l.b16 %v3406
        %v3642 = vunpack.c.l.b16 %v3407
        %v3643 = vunpack.c.h.b16 %v3407
        %v3644 = vunpack.c.l.b16 %v3408
        %v3645 = vunpack.c.l.b16 %v3409
        %v3646 = vunpack.c.h.b16 %v3409
        %v3647 = vunpack.c.l.b16 %v3410
        %v3648 = vunpack.c.l.b16 %v3411
        %v3649 = vunpack.c.h.b16 %v3411
        %v3650 = vunpack.c.l.b16 %v3412
        %v3651 = vunpack.c.l.b16 %v3413
        %v3652 = vunpack.c.h.b16 %v3413
        %v3653 = vunpack.c.l.b16 %v3414
        %v3654 = vunpack.c.l.b16 %v3415
        %v3655 = vunpack.c.h.b16 %v3415
        %v3656 = vunpack.c.l.b16 %v3416
        %v3657 = vunpack.c.l.b16 %v3417
        %v3658 = vunpack.c.h.b16 %v3417
        %v3659 = vunpack.c.l.b16 %v3418
        %v3660 = vunpack.c.l.b16 %v3419
        %v3661 = vunpack.c.h.b16 %v3419
        %v3662 = vunpack.c.l.b16 %v3420
        %v3663 = vunpack.c.l.b16 %v3421
        %v3664 = vunpack.c.h.b16 %v3421
        %v3665 = vunpack.c.l.b16 %v3422
        %v3666 = vunpack.c.l.b16 %v3423
        %v3667 = vunpack.c.h.b16 %v3423
        %v3668 = vunpack.c.l.b16 %v3424
        %v3669 = vunpack.c.l.b16 %v3425
        %v3670 = vunpack.c.h.b16 %v3425
        %v3671 = vunpack.c.l.b16 %v3426
        %v3672 = vunpack.c.l.b16 %v3427
        %v3673 = vunpack.c.h.b16 %v3427
        %v3674 = vunpack.c.l.b16 %v3428
        %v3675 = vunpack.c.l.b16 %v3429
        %v3676 = vunpack.c.h.b16 %v3429
        %v3677 = vunpack.c.l.b16 %v3430
        %v3678 = vunpack.c.l.b16 %v3431
        %v3679 = vunpack.c.h.b16 %v3431
        %v3680 = vunpack.c.l.b16 %v3432
        %v3681 = vpack.c.b16 %v3540, %v3537
        %v3682 = vpack.c.b16 %v3541, %v3538
        %v3683 = vpack.c.b16 %v3542, %v3539
        %v3684 = vpack.c.b16 %v3546, %v3543
        %v3685 = vpack.c.b16 %v3547, %v3544
        %v3686 = vpack.c.b16 %v3548, %v3545
        %v3687 = vpack.c.b16 %v3552, %v3549
        %v3688 = vpack.c.b16 %v3553, %v3550
        %v3689 = vpack.c.b16 %v3554, %v3551
        %v3690 = vpack.c.b16 %v3558, %v3555
        %v3691 = vpack.c.b16 %v3559, %v3556
        %v3692 = vpack.c.b16 %v3560, %v3557
        %v3693 = vpack.c.b16 %v3564, %v3561
        %v3694 = vpack.c.b16 %v3565, %v3562
        %v3695 = vpack.c.b16 %v3566, %v3563
        %v3696 = vpack.c.b16 %v3570, %v3567
        %v3697 = vpack.c.b16 %v3571, %v3568
        %v3698 = vpack.c.b16 %v3572, %v3569
        %v3699 = vpack.c.b16 %v3576, %v3573
        %v3700 = vpack.c.b16 %v3577, %v3574
        %v3701 = vpack.c.b16 %v3578, %v3575
        %v3702 = vpack.c.b16 %v3582, %v3579
        %v3703 = vpack.c.b16 %v3583, %v3580
        %v3704 = vpack.c.b16 %v3584, %v3581
        %v3705 = vpack.c.b16 %v3588, %v3585
        %v3706 = vpack.c.b16 %v3589, %v3586
        %v3707 = vpack.c.b16 %v3590, %v3587
        %v3708 = vpack.c.b16 %v3594, %v3591
        %v3709 = vpack.c.b16 %v3595, %v3592
        %v3710 = vpack.c.b16 %v3596, %v3593
        %v3711 = vpack.c.b16 %v3600, %v3597
        %v3712 = vpack.c.b16 %v3601, %v3598
        %v3713 = vpack.c.b16 %v3602, %v3599
        %v3714 = vpack.c.b16 %v3606, %v3603
        %v3715 = vpack.c.b16 %v3607, %v3604
        %v3716 = vpack.c.b16 %v3608, %v3605
        %v3717 = vpack.c.b16 %v3612, %v3609
        %v3718 = vpack.c.b16 %v3613, %v3610
        %v3719 = vpack.c.b16 %v3614, %v3611
        %v3720 = vpack.c.b16 %v3618, %v3615
        %v3721 = vpack.c.b16 %v3619, %v3616
        %v3722 = vpack.c.b16 %v3620, %v3617
        %v3723 = vpack.c.b16 %v3624, %v3621
        %v3724 = vpack.c.b16 %v3625, %v3622
        %v3725 = vpack.c.b16 %v3626, %v3623
        %v3726 = vpack.c.b16 %v3630, %v3627
        %v3727 = vpack.c.b16 %v3631, %v3628
        %v3728 = vpack.c.b16 %v3632, %v3629
        %v3729 = vpack.c.b16 %v3636, %v3633
        %v3730 = vpack.c.b16 %v3637, %v3634
        %v3731 = vpack.c.b16 %v3638, %v3635
        %v3732 = vpack.c.b16 %v3642, %v3639
        %v3733 = vpack.c.b16 %v3643, %v3640
        %v3734 = vpack.c.b16 %v3644, %v3641
        %v3735 = vpack.c.b16 %v3648, %v3645
        %v3736 = vpack.c.b16 %v3649, %v3646
        %v3737 = vpack.c.b16 %v3650, %v3647
        %v3738 = vpack.c.b16 %v3654, %v3651
        %v3739 = vpack.c.b16 %v3655, %v3652
        %v3740 = vpack.c.b16 %v3656, %v3653
        %v3741 = vpack.c.b16 %v3660, %v3657
        %v3742 = vpack.c.b16 %v3661, %v3658
        %v3743 = vpack.c.b16 %v3662, %v3659
        %v3744 = vpack.c.b16 %v3666, %v3663
        %v3745 = vpack.c.b16 %v3667, %v3664
        %v3746 = vpack.c.b16 %v3668, %v3665
        %v3747 = vpack.c.b16 %v3672, %v3669
        %v3748 = vpack.c.b16 %v3673, %v3670
        %v3749 = vpack.c.b16 %v3674, %v3671
        %v3750 = vpack.c.b16 %v3678, %v3675
        %v3751 = vpack.c.b16 %v3679, %v3676
        %v3752 = vpack.c.b16 %v3680, %v3677
        %3825 = vmatpush.bf16.msra.mxu0 %v3702
        %3826 = vmatpush.bf16.msra.mxu0 %v3699
        %3827 = vmatpush.bf16.msra.mxu0 %v3696
        %3828 = vmatpush.bf16.msra.mxu0 %v3693
        %3829 = vmatpush.bf16.msra.mxu0 %v3690
        %3830 = vmatpush.bf16.msra.mxu0 %v3687
        %3831 = vmatpush.bf16.msra.mxu0 %v3684
        %3832 = vmatpush.bf16.msra.mxu0 %v3681
        %3833 = vmatmul.bf16.gmra.mxu0 %v3334
        %v3834 = vpop.f32.mrf.mxu0
        %v3835 = vadd.f32 %v3435, %v3834
        %v3836 = vpop.f32.mrf.mxu0
        %v3837 = vadd.f32 %v3435, %v3836
        %3838 = vdwg.mxu0
        %3839 = vmatpush.bf16.msra.mxu0 %v3726
        %3840 = vmatpush.bf16.msra.mxu0 %v3723
        %3841 = vmatpush.bf16.msra.mxu0 %v3720
        %3842 = vmatpush.bf16.msra.mxu0 %v3717
        %3843 = vmatpush.bf16.msra.mxu0 %v3714
        %3844 = vmatpush.bf16.msra.mxu0 %v3711
        %3845 = vmatpush.bf16.msra.mxu0 %v3708
        %3846 = vmatpush.bf16.msra.mxu0 %v3705
        %3847 = vmatmul.bf16.gmra.mxu0 %v3335
        %v3848 = vpop.f32.mrf.mxu0
        %v3849 = vadd.f32 %v3835, %v3848
        %v3850 = vpop.f32.mrf.mxu0
        %v3851 = vadd.f32 %v3837, %v3850
        %3852 = vdwg.mxu0
        %3853 = vmatpush.bf16.msra.mxu0 %v3750
        %3854 = vmatpush.bf16.msra.mxu0 %v3747
        %3855 = vmatpush.bf16.msra.mxu0 %v3744
        %3856 = vmatpush.bf16.msra.mxu0 %v3741
        %3857 = vmatpush.bf16.msra.mxu0 %v3738
        %3858 = vmatpush.bf16.msra.mxu0 %v3735
        %3859 = vmatpush.bf16.msra.mxu0 %v3732
        %3860 = vmatpush.bf16.msra.mxu0 %v3729
        %3861 = vmatmul.bf16.gmra.mxu0 %v3336
        %v3862 = vpop.f32.mrf.mxu0
        %v3863 = vadd.f32 %v3849, %v3862
        %v3864 = vpop.f32.mrf.mxu0
        %v3865 = vadd.f32 %v3851, %v3864
        %3866 = vdwg.mxu0
        %3867 = vmatpush.bf16.msra.mxu0 %v3703
        %3868 = vmatpush.bf16.msra.mxu0 %v3700
        %3869 = vmatpush.bf16.msra.mxu0 %v3697
        %3870 = vmatpush.bf16.msra.mxu0 %v3694
        %3871 = vmatpush.bf16.msra.mxu0 %v3691
        %3872 = vmatpush.bf16.msra.mxu0 %v3688
        %3873 = vmatpush.bf16.msra.mxu0 %v3685
        %3874 = vmatpush.bf16.msra.mxu0 %v3682
        %3875 = vmatmul.bf16.gmra.mxu0 %v3334
        %v3876 = vpop.f32.mrf.mxu0
        %v3877 = vadd.f32 %v3436, %v3876
        %v3878 = vpop.f32.mrf.mxu0
        %v3879 = vadd.f32 %v3436, %v3878
        %3880 = vdwg.mxu0
        %3881 = vmatpush.bf16.msra.mxu0 %v3727
        %3882 = vmatpush.bf16.msra.mxu0 %v3724
        %3883 = vmatpush.bf16.msra.mxu0 %v3721
        %3884 = vmatpush.bf16.msra.mxu0 %v3718
        %3885 = vmatpush.bf16.msra.mxu0 %v3715
        %3886 = vmatpush.bf16.msra.mxu0 %v3712
        %3887 = vmatpush.bf16.msra.mxu0 %v3709
        %3888 = vmatpush.bf16.msra.mxu0 %v3706
        %3889 = vmatmul.bf16.gmra.mxu0 %v3335
        %v3890 = vpop.f32.mrf.mxu0
        %v3891 = vadd.f32 %v3877, %v3890
        %v3892 = vpop.f32.mrf.mxu0
        %v3893 = vadd.f32 %v3879, %v3892
        %3894 = vdwg.mxu0
        %3895 = vmatpush.bf16.msra.mxu0 %v3751
        %3896 = vmatpush.bf16.msra.mxu0 %v3748
        %3897 = vmatpush.bf16.msra.mxu0 %v3745
        %3898 = vmatpush.bf16.msra.mxu0 %v3742
        %3899 = vmatpush.bf16.msra.mxu0 %v3739
        %3900 = vmatpush.bf16.msra.mxu0 %v3736
        %3901 = vmatpush.bf16.msra.mxu0 %v3733
        %3902 = vmatpush.bf16.msra.mxu0 %v3730
        %3903 = vmatmul.bf16.gmra.mxu0 %v3336
        %v3904 = vpop.f32.mrf.mxu0
        %v3905 = vadd.f32 %v3891, %v3904
        %v3906 = vpop.f32.mrf.mxu0
        %v3907 = vadd.f32 %v3893, %v3906
        %3908 = vdwg.mxu0
        %3909 = vmatpush.bf16.msra.mxu0 %v3704
        %3910 = vmatpush.bf16.msra.mxu0 %v3701
        %3911 = vmatpush.bf16.msra.mxu0 %v3698
        %3912 = vmatpush.bf16.msra.mxu0 %v3695
        %3913 = vmatpush.bf16.msra.mxu0 %v3692
        %3914 = vmatpush.bf16.msra.mxu0 %v3689
        %3915 = vmatpush.bf16.msra.mxu0 %v3686
        %3916 = vmatpush.bf16.msra.mxu0 %v3683
        %3917 = vmatmul.bf16.gmra.mxu0 %v3334
        %v3918 = vpop.f32.mrf.mxu0
        %v3919 = vadd.f32 %v3437, %v3918
        %v3920 = vpop.f32.mrf.mxu0
        %v3921 = vadd.f32 %v3437, %v3920
        %3922 = vdwg.mxu0
        %3923 = vmatpush.bf16.msra.mxu0 %v3728
        %3924 = vmatpush.bf16.msra.mxu0 %v3725
        %3925 = vmatpush.bf16.msra.mxu0 %v3722
        %3926 = vmatpush.bf16.msra.mxu0 %v3719
        %3927 = vmatpush.bf16.msra.mxu0 %v3716
        %3928 = vmatpush.bf16.msra.mxu0 %v3713
        %3929 = vmatpush.bf16.msra.mxu0 %v3710
        %3930 = vmatpush.bf16.msra.mxu0 %v3707
        %3931 = vmatmul.bf16.gmra.mxu0 %v3335
        %v3932 = vpop.f32.mrf.mxu0
        %v3933 = vadd.f32 %v3919, %v3932
        %v3934 = vpop.f32.mrf.mxu0
        %v3935 = vadd.f32 %v3921, %v3934
        %3936 = vdwg.mxu0
        %3937 = vmatpush.bf16.msra.mxu0 %v3752
        %3938 = vmatpush.bf16.msra.mxu0 %v3749
        %3939 = vmatpush.bf16.msra.mxu0 %v3746
        %3940 = vmatpush.bf16.msra.mxu0 %v3743
        %3941 = vmatpush.bf16.msra.mxu0 %v3740
        %3942 = vmatpush.bf16.msra.mxu0 %v3737
        %3943 = vmatpush.bf16.msra.mxu0 %v3734
        %3944 = vmatpush.bf16.msra.mxu0 %v3731
        %3945 = vmatmul.bf16.gmra.mxu0 %v3336
        %v3946 = vpop.f32.mrf.mxu0
        %v3947 = vadd.f32 %v3933, %v3946
        %v3948 = vpop.f32.mrf.mxu0
        %v3949 = vadd.f32 %v3935, %v3948
        %3950 = vdwg.mxu0
        %v3951 = vadd.f32 %v758, %v3863
        %v3952 = vadd.f32 %v759, %v3905
        %v3953 = vadd.f32 %v760, %v3947
        %v3954 = vadd.f32 %v761, %v3865
        %v3955 = vadd.f32 %v762, %v3907
        %v3956 = vadd.f32 %v763, %v3949
        %v3957 = vadd.f32 %v3951, %v3952
        %v3958 = vadd.f32 %v3957, %v3953
        %3959 = vadd.xlane.f32.xlu0 %v3958
        %v3960 = vpop.xlane.xlu0 %3959
        %v3961 = vadd.f32 %v3954, %v3955
        %v3962 = vadd.f32 %v3961, %v3956
        %3963 = vadd.xlane.f32.xlu0 %v3962
        %v3964 = vpop.xlane.xlu0 %3963
        %v3965 = vmul.f32 %v3960, %v778
        %v3966 = vmul.f32 %v3964, %v778
        %v3967 = vsub.f32 %v3951, %v3965
        %v3968 = vsub.f32 %v3952, %v3965
        %v3969 = vsub.f32 %v3953, %v3965
        %v3970 = vsub.f32 %v3954, %v3966
        %v3971 = vsub.f32 %v3955, %v3966
        %v3972 = vsub.f32 %v3956, %v3966
        %v3973 = vmul.f32 %v3967, %v3967
        %v3974 = vmul.f32 %v3968, %v3968
        %v3975 = vmul.f32 %v3969, %v3969
        %v3976 = vmul.f32 %v3970, %v3970
        %v3977 = vmul.f32 %v3971, %v3971
        %v3978 = vmul.f32 %v3972, %v3972
        %v3979 = vadd.f32 %v3973, %v3974
        %v3980 = vadd.f32 %v3979, %v3975
        %3981 = vadd.xlane.f32.xlu0 %v3980
        %v3982 = vpop.xlane.xlu0 %3981
        %v3983 = vadd.f32 %v3976, %v3977
        %v3984 = vadd.f32 %v3983, %v3978
        %3985 = vadd.xlane.f32.xlu0 %v3984
        %v3986 = vpop.xlane.xlu0 %3985
        %v3987 = vmul.f32 %v3982, %v778
        %v3988 = vmul.f32 %v3986, %v778
        %v3989 = vadd.f32 %v3987, 1e-05
        %v3990 = vadd.f32 %v3988, 1e-05
        %v3991 = vrsqrt.pop %v3989
        %v3992 = vmul.f32 %v3991, %v3989
        %v3993 = vmul.f32 %v3992, %v3991
        %v3994 = vmul.f32 0.5, %v3993
        %v3995 = vsub.f32 1.5, %v3994
        %v3996 = vmul.f32 %v3991, %v3995
        %vm3997 = vweird.f32 %v3989
        %vm3998 = vweird.f32 %v3991
        %vm3999 = vmor %vm3997, %vm3998
        %v4000 = vsel %vm3999, %v3991, %v3996
        %v4001 = vrsqrt.pop %v3990
        %v4002 = vmul.f32 %v4001, %v3990
        %v4003 = vmul.f32 %v4002, %v4001
        %v4004 = vmul.f32 0.5, %v4003
        %v4005 = vsub.f32 1.5, %v4004
        %v4006 = vmul.f32 %v4001, %v4005
        %vm4007 = vweird.f32 %v3990
        %vm4008 = vweird.f32 %v4001
        %vm4009 = vmor %vm4007, %vm4008
        %v4010 = vsel %vm4009, %v4001, %v4006
        %v4011 = vmul.f32 %v3967, %v4000
        %v4012 = vmul.f32 %v3968, %v4000
        %v4013 = vmul.f32 %v3969, %v4000
        %v4014 = vmul.f32 %v3970, %v4010
        %v4015 = vmul.f32 %v3971, %v4010
        %v4016 = vmul.f32 %v3972, %v4010
        %v4017 = vpack.c.bf16 %v4014, %v4011
        %v4018 = vpack.c.bf16 %v4015, %v4012
        %v4019 = vpack.c.bf16 %v4016, %v4013
        %v4020 = vld [vmem:[%s629] sm:$0xff]
        %v4021 = vld [vmem:[%s629 + $0x8] sm:$0xff]
        %v4022 = vld [vmem:[%s629 + $0x10] sm:$0xff]
        %v4023 = vld [vmem:[%s629 + $0x18] sm:$0xff]
        %v4024 = vld [vmem:[%s629 + $0x20] sm:$0xff]
        %v4025 = vld [vmem:[%s629 + $0x28] sm:$0xff]
        %v4026 = vld [vmem:[%s629 + $0x30] sm:$0xff]
        %v4027 = vld [vmem:[%s629 + $0x38] sm:$0xff]
        %v4028 = vld [vmem:[%s629 + $0x40] sm:$0xff]
        %v4029 = vld [vmem:[%s629 + $0x48] sm:$0xff]
        %v4030 = vld [vmem:[%s629 + $0x50] sm:$0xff]
        %v4031 = vld [vmem:[%s629 + $0x58] sm:$0xff]
        %v4032 = vld [vmem:[%s629 + $0x60] sm:$0xff]
        %v4033 = vld [vmem:[%s629 + $0x68] sm:$0xff]
        %v4034 = vld [vmem:[%s629 + $0x70] sm:$0xff]
        %v4035 = vld [vmem:[%s629 + $0x78] sm:$0xff]
        %v4036 = vld [vmem:[%s629 + $0x80] sm:$0xff]
        %v4037 = vld [vmem:[%s629 + $0x88] sm:$0xff]
        %v4038 = vld [vmem:[%s629 + $0x90] sm:$0xff]
        %v4039 = vld [vmem:[%s629 + $0x98] sm:$0xff]
        %v4040 = vld [vmem:[%s629 + $0xa0] sm:$0xff]
        %v4041 = vld [vmem:[%s629 + $0xa8] sm:$0xff]
        %v4042 = vld [vmem:[%s629 + $0xb0] sm:$0xff]
        %v4043 = vld [vmem:[%s629 + $0xb8] sm:$0xff]
        %v4044 = vld [vmem:[%s629 + $0xc0] sm:$0xff]
        %v4045 = vld [vmem:[%s629 + $0xc8] sm:$0xff]
        %v4046 = vld [vmem:[%s629 + $0xd0] sm:$0xff]
        %v4047 = vld [vmem:[%s629 + $0xd8] sm:$0xff]
        %v4048 = vld [vmem:[%s629 + $0xe0] sm:$0xff]
        %v4049 = vld [vmem:[%s629 + $0xe8] sm:$0xff]
        %v4050 = vld [vmem:[%s629 + $0xf0] sm:$0xff]
        %v4051 = vld [vmem:[%s629 + $0xf8] sm:$0xff]
        %v4052 = vld [vmem:[%s629 + $0x100] sm:$0xff]
        %v4053 = vld [vmem:[%s629 + $0x108] sm:$0xff]
        %v4054 = vld [vmem:[%s629 + $0x110] sm:$0xff]
        %v4055 = vld [vmem:[%s629 + $0x118] sm:$0xff]
        %v4056 = vld [vmem:[%s629 + $0x120] sm:$0xff]
        %v4057 = vld [vmem:[%s629 + $0x128] sm:$0xff]
        %v4058 = vld [vmem:[%s629 + $0x130] sm:$0xff]
        %v4059 = vld [vmem:[%s629 + $0x138] sm:$0xff]
        %v4060 = vld [vmem:[%s629 + $0x140] sm:$0xff]
        %v4061 = vld [vmem:[%s629 + $0x148] sm:$0xff]
        %v4062 = vld [vmem:[%s629 + $0x150] sm:$0xff]
        %v4063 = vld [vmem:[%s629 + $0x158] sm:$0xff]
        %v4064 = vld [vmem:[%s629 + $0x160] sm:$0xff]
        %v4065 = vld [vmem:[%s629 + $0x168] sm:$0xff]
        %v4066 = vld [vmem:[%s629 + $0x170] sm:$0xff]
        %v4067 = vld [vmem:[%s629 + $0x178] sm:$0xff]
        %v4068 = vld [vmem:[%s629 + $0x180] sm:$0xff]
        %v4069 = vld [vmem:[%s629 + $0x188] sm:$0xff]
        %v4070 = vld [vmem:[%s629 + $0x190] sm:$0xff]
        %v4071 = vld [vmem:[%s629 + $0x198] sm:$0xff]
        %v4072 = vld [vmem:[%s629 + $0x1a0] sm:$0xff]
        %v4073 = vld [vmem:[%s629 + $0x1a8] sm:$0xff]
        %v4074 = vld [vmem:[%s629 + $0x1b0] sm:$0xff]
        %v4075 = vld [vmem:[%s629 + $0x1b8] sm:$0xff]
        %v4076 = vld [vmem:[%s629 + $0x1c0] sm:$0xff]
        %v4077 = vld [vmem:[%s629 + $0x1c8] sm:$0xff]
        %v4078 = vld [vmem:[%s629 + $0x1d0] sm:$0xff]
        %v4079 = vld [vmem:[%s629 + $0x1d8] sm:$0xff]
        %v4080 = vld [vmem:[%s629 + $0x1e0] sm:$0xff]
        %v4081 = vld [vmem:[%s629 + $0x1e8] sm:$0xff]
        %v4082 = vld [vmem:[%s629 + $0x1f0] sm:$0xff]
        %v4083 = vld [vmem:[%s629 + $0x1f8] sm:$0xff]
        %v4084 = vld [vmem:[%s629 + $0x200] sm:$0xff]
        %v4085 = vld [vmem:[%s629 + $0x208] sm:$0xff]
        %v4086 = vld [vmem:[%s629 + $0x210] sm:$0xff]
        %v4087 = vld [vmem:[%s629 + $0x218] sm:$0xff]
        %v4088 = vld [vmem:[%s629 + $0x220] sm:$0xff]
        %v4089 = vld [vmem:[%s629 + $0x228] sm:$0xff]
        %v4090 = vld [vmem:[%s629 + $0x230] sm:$0xff]
        %v4091 = vld [vmem:[%s629 + $0x238] sm:$0xff]
        %v4092 = vld [vmem:[%s629 + $0x240] sm:$0xff]
        %v4093 = vld [vmem:[%s629 + $0x248] sm:$0xff]
        %v4094 = vld [vmem:[%s629 + $0x250] sm:$0xff]
        %v4095 = vld [vmem:[%s629 + $0x258] sm:$0xff]
        %v4096 = vld [vmem:[%s629 + $0x260] sm:$0xff]
        %v4097 = vld [vmem:[%s629 + $0x268] sm:$0xff]
        %v4098 = vld [vmem:[%s629 + $0x270] sm:$0xff]
        %v4099 = vld [vmem:[%s629 + $0x278] sm:$0xff]
        %v4100 = vld [vmem:[%s629 + $0x280] sm:$0xff]
        %v4101 = vld [vmem:[%s629 + $0x288] sm:$0xff]
        %v4102 = vld [vmem:[%s629 + $0x290] sm:$0xff]
        %v4103 = vld [vmem:[%s629 + $0x298] sm:$0xff]
        %v4104 = vld [vmem:[%s629 + $0x2a0] sm:$0xff]
        %v4105 = vld [vmem:[%s629 + $0x2a8] sm:$0xff]
        %v4106 = vld [vmem:[%s629 + $0x2b0] sm:$0xff]
        %v4107 = vld [vmem:[%s629 + $0x2b8] sm:$0xff]
        %v4108 = vld [vmem:[%s629 + $0x2c0] sm:$0xff]
        %v4109 = vld [vmem:[%s629 + $0x2c8] sm:$0xff]
        %v4110 = vld [vmem:[%s629 + $0x2d0] sm:$0xff]
        %v4111 = vld [vmem:[%s629 + $0x2d8] sm:$0xff]
        %v4112 = vld [vmem:[%s629 + $0x2e0] sm:$0xff]
        %v4113 = vld [vmem:[%s629 + $0x2e8] sm:$0xff]
        %v4114 = vld [vmem:[%s629 + $0x2f0] sm:$0xff]
        %v4115 = vld [vmem:[%s629 + $0x2f8] sm:$0xff]
        %v4116 = vld [vmem:[%s629 + $0x300] sm:$0xff]
        %v4117 = vld [vmem:[%s629 + $0x308] sm:$0xff]
        %v4118 = vld [vmem:[%s629 + $0x310] sm:$0xff]
        %v4119 = vld [vmem:[%s629 + $0x318] sm:$0xff]
        %v4120 = vld [vmem:[%s629 + $0x320] sm:$0xff]
        %v4121 = vld [vmem:[%s629 + $0x328] sm:$0xff]
        %v4122 = vld [vmem:[%s629 + $0x330] sm:$0xff]
        %v4123 = vld [vmem:[%s629 + $0x338] sm:$0xff]
        %v4124 = vld [vmem:[%s629 + $0x340] sm:$0xff]
        %v4125 = vld [vmem:[%s629 + $0x348] sm:$0xff]
        %v4126 = vld [vmem:[%s629 + $0x350] sm:$0xff]
        %v4127 = vld [vmem:[%s629 + $0x358] sm:$0xff]
        %v4128 = vld [vmem:[%s629 + $0x360] sm:$0xff]
        %v4129 = vld [vmem:[%s629 + $0x368] sm:$0xff]
        %v4130 = vld [vmem:[%s629 + $0x370] sm:$0xff]
        %v4131 = vld [vmem:[%s629 + $0x378] sm:$0xff]
        %v4132 = vld [vmem:[%s629 + $0x380] sm:$0xff]
        %v4133 = vld [vmem:[%s629 + $0x388] sm:$0xff]
        %v4134 = vld [vmem:[%s629 + $0x390] sm:$0xff]
        %v4135 = vld [vmem:[%s629 + $0x398] sm:$0xff]
        %v4136 = vld [vmem:[%s629 + $0x3a0] sm:$0xff]
        %v4137 = vld [vmem:[%s629 + $0x3a8] sm:$0xff]
        %v4138 = vld [vmem:[%s629 + $0x3b0] sm:$0xff]
        %v4139 = vld [vmem:[%s629 + $0x3b8] sm:$0xff]
        %v4140 = vld [vmem:[%s629 + $0x3c0] sm:$0xff]
        %v4141 = vld [vmem:[%s629 + $0x3c8] sm:$0xff]
        %v4142 = vld [vmem:[%s629 + $0x3d0] sm:$0xff]
        %v4143 = vld [vmem:[%s629 + $0x3d8] sm:$0xff]
        %v4144 = vld [vmem:[%s629 + $0x3e0] sm:$0xff]
        %v4145 = vld [vmem:[%s629 + $0x3e8] sm:$0xff]
        %v4146 = vld [vmem:[%s629 + $0x3f0] sm:$0xff]
        %v4147 = vld [vmem:[%s629 + $0x3f8] sm:$0xff]
        %v4148 = vld [vmem:[%s629 + $0x400] sm:$0xff]
        %v4149 = vld [vmem:[%s629 + $0x408] sm:$0xff]
        %v4150 = vld [vmem:[%s629 + $0x410] sm:$0xff]
        %v4151 = vld [vmem:[%s629 + $0x418] sm:$0xff]
        %v4152 = vld [vmem:[%s629 + $0x420] sm:$0xff]
        %v4153 = vld [vmem:[%s629 + $0x428] sm:$0xff]
        %v4154 = vld [vmem:[%s629 + $0x430] sm:$0xff]
        %v4155 = vld [vmem:[%s629 + $0x438] sm:$0xff]
        %v4156 = vld [vmem:[%s629 + $0x440] sm:$0xff]
        %v4157 = vld [vmem:[%s629 + $0x448] sm:$0xff]
        %v4158 = vld [vmem:[%s629 + $0x450] sm:$0xff]
        %v4159 = vld [vmem:[%s629 + $0x458] sm:$0xff]
        %v4160 = vld [vmem:[%s629 + $0x460] sm:$0xff]
        %v4161 = vld [vmem:[%s629 + $0x468] sm:$0xff]
        %v4162 = vld [vmem:[%s629 + $0x470] sm:$0xff]
        %v4163 = vld [vmem:[%s629 + $0x478] sm:$0xff]
        %v4164 = vld [vmem:[%s629 + $0x480] sm:$0xff]
        %v4165 = vld [vmem:[%s629 + $0x488] sm:$0xff]
        %v4166 = vld [vmem:[%s629 + $0x490] sm:$0xff]
        %v4167 = vld [vmem:[%s629 + $0x498] sm:$0xff]
        %v4168 = vld [vmem:[%s629 + $0x4a0] sm:$0xff]
        %v4169 = vld [vmem:[%s629 + $0x4a8] sm:$0xff]
        %v4170 = vld [vmem:[%s629 + $0x4b0] sm:$0xff]
        %v4171 = vld [vmem:[%s629 + $0x4b8] sm:$0xff]
        %v4172 = vld [vmem:[%s629 + $0x4c0] sm:$0xff]
        %v4173 = vld [vmem:[%s629 + $0x4c8] sm:$0xff]
        %v4174 = vld [vmem:[%s629 + $0x4d0] sm:$0xff]
        %v4175 = vld [vmem:[%s629 + $0x4d8] sm:$0xff]
        %v4176 = vld [vmem:[%s629 + $0x4e0] sm:$0xff]
        %v4177 = vld [vmem:[%s629 + $0x4e8] sm:$0xff]
        %v4178 = vld [vmem:[%s629 + $0x4f0] sm:$0xff]
        %v4179 = vld [vmem:[%s629 + $0x4f8] sm:$0xff]
        %v4180 = vld [vmem:[%s629 + $0x500] sm:$0xff]
        %v4181 = vld [vmem:[%s629 + $0x508] sm:$0xff]
        %v4182 = vld [vmem:[%s629 + $0x510] sm:$0xff]
        %v4183 = vld [vmem:[%s629 + $0x518] sm:$0xff]
        %v4184 = vld [vmem:[%s629 + $0x520] sm:$0xff]
        %v4185 = vld [vmem:[%s629 + $0x528] sm:$0xff]
        %v4186 = vld [vmem:[%s629 + $0x530] sm:$0xff]
        %v4187 = vld [vmem:[%s629 + $0x538] sm:$0xff]
        %v4188 = vld [vmem:[%s629 + $0x540] sm:$0xff]
        %v4189 = vld [vmem:[%s629 + $0x548] sm:$0xff]
        %v4190 = vld [vmem:[%s629 + $0x550] sm:$0xff]
        %v4191 = vld [vmem:[%s629 + $0x558] sm:$0xff]
        %v4192 = vld [vmem:[%s629 + $0x560] sm:$0xff]
        %v4193 = vld [vmem:[%s629 + $0x568] sm:$0xff]
        %v4194 = vld [vmem:[%s629 + $0x570] sm:$0xff]
        %v4195 = vld [vmem:[%s629 + $0x578] sm:$0xff]
        %v4196 = vld [vmem:[%s629 + $0x580] sm:$0xff]
        %v4197 = vld [vmem:[%s629 + $0x588] sm:$0xff]
        %v4198 = vld [vmem:[%s629 + $0x590] sm:$0xff]
        %v4199 = vld [vmem:[%s629 + $0x598] sm:$0xff]
        %v4200 = vld [vmem:[%s629 + $0x5a0] sm:$0xff]
        %v4201 = vld [vmem:[%s629 + $0x5a8] sm:$0xff]
        %v4202 = vld [vmem:[%s629 + $0x5b0] sm:$0xff]
        %v4203 = vld [vmem:[%s629 + $0x5b8] sm:$0xff]
        %v4204 = vld [vmem:[%s629 + $0x5c0] sm:$0xff]
        %v4205 = vld [vmem:[%s629 + $0x5c8] sm:$0xff]
        %v4206 = vld [vmem:[%s629 + $0x5d0] sm:$0xff]
        %v4207 = vld [vmem:[%s629 + $0x5d8] sm:$0xff]
        %v4208 = vld [vmem:[%s629 + $0x5e0] sm:$0xff]
        %v4209 = vld [vmem:[%s629 + $0x5e8] sm:$0xff]
        %v4210 = vld [vmem:[%s629 + $0x5f0] sm:$0xff]
        %v4211 = vld [vmem:[%s629 + $0x5f8] sm:$0xff]
        %v4212 = vld [vmem:[%s629 + $0x600] sm:$0xff]
        %v4213 = vld [vmem:[%s629 + $0x608] sm:$0xff]
        %v4214 = vld [vmem:[%s629 + $0x610] sm:$0xff]
        %v4215 = vld [vmem:[%s629 + $0x618] sm:$0xff]
        %v4216 = vld [vmem:[%s629 + $0x620] sm:$0xff]
        %v4217 = vld [vmem:[%s629 + $0x628] sm:$0xff]
        %v4218 = vld [vmem:[%s629 + $0x630] sm:$0xff]
        %v4219 = vld [vmem:[%s629 + $0x638] sm:$0xff]
        %v4220 = vld [vmem:[%s629 + $0x640] sm:$0xff]
        %v4221 = vld [vmem:[%s629 + $0x648] sm:$0xff]
        %v4222 = vld [vmem:[%s629 + $0x650] sm:$0xff]
        %v4223 = vld [vmem:[%s629 + $0x658] sm:$0xff]
        %v4224 = vld [vmem:[%s629 + $0x660] sm:$0xff]
        %v4225 = vld [vmem:[%s629 + $0x668] sm:$0xff]
        %v4226 = vld [vmem:[%s629 + $0x670] sm:$0xff]
        %v4227 = vld [vmem:[%s629 + $0x678] sm:$0xff]
        %v4228 = vld [vmem:[%s629 + $0x680] sm:$0xff]
        %v4229 = vld [vmem:[%s629 + $0x688] sm:$0xff]
        %v4230 = vld [vmem:[%s629 + $0x690] sm:$0xff]
        %v4231 = vld [vmem:[%s629 + $0x698] sm:$0xff]
        %v4232 = vld [vmem:[%s629 + $0x6a0] sm:$0xff]
        %v4233 = vld [vmem:[%s629 + $0x6a8] sm:$0xff]
        %v4234 = vld [vmem:[%s629 + $0x6b0] sm:$0xff]
        %v4235 = vld [vmem:[%s629 + $0x6b8] sm:$0xff]
        %v4236 = vld [vmem:[%s629 + $0x6c0] sm:$0xff]
        %v4237 = vld [vmem:[%s629 + $0x6c8] sm:$0xff]
        %v4238 = vld [vmem:[%s629 + $0x6d0] sm:$0xff]
        %v4239 = vld [vmem:[%s629 + $0x6d8] sm:$0xff]
        %v4240 = vld [vmem:[%s629 + $0x6e0] sm:$0xff]
        %v4241 = vld [vmem:[%s629 + $0x6e8] sm:$0xff]
        %v4242 = vld [vmem:[%s629 + $0x6f0] sm:$0xff]
        %v4243 = vld [vmem:[%s629 + $0x6f8] sm:$0xff]
        %v4244 = vld [vmem:[%s629 + $0x700] sm:$0xff]
        %v4245 = vld [vmem:[%s629 + $0x708] sm:$0xff]
        %v4246 = vld [vmem:[%s629 + $0x710] sm:$0xff]
        %v4247 = vld [vmem:[%s629 + $0x718] sm:$0xff]
        %v4248 = vld [vmem:[%s629 + $0x720] sm:$0xff]
        %v4249 = vld [vmem:[%s629 + $0x728] sm:$0xff]
        %v4250 = vld [vmem:[%s629 + $0x730] sm:$0xff]
        %v4251 = vld [vmem:[%s629 + $0x738] sm:$0xff]
        %v4252 = vld [vmem:[%s629 + $0x740] sm:$0xff]
        %v4253 = vld [vmem:[%s629 + $0x748] sm:$0xff]
        %v4254 = vld [vmem:[%s629 + $0x750] sm:$0xff]
        %v4255 = vld [vmem:[%s629 + $0x758] sm:$0xff]
        %v4256 = vld [vmem:[%s629 + $0x760] sm:$0xff]
        %v4257 = vld [vmem:[%s629 + $0x768] sm:$0xff]
        %v4258 = vld [vmem:[%s629 + $0x770] sm:$0xff]
        %v4259 = vld [vmem:[%s629 + $0x778] sm:$0xff]
        %v4260 = vld [vmem:[%s629 + $0x780] sm:$0xff]
        %v4261 = vld [vmem:[%s629 + $0x788] sm:$0xff]
        %v4262 = vld [vmem:[%s629 + $0x790] sm:$0xff]
        %v4263 = vld [vmem:[%s629 + $0x798] sm:$0xff]
        %v4264 = vld [vmem:[%s629 + $0x7a0] sm:$0xff]
        %v4265 = vld [vmem:[%s629 + $0x7a8] sm:$0xff]
        %v4266 = vld [vmem:[%s629 + $0x7b0] sm:$0xff]
        %v4267 = vld [vmem:[%s629 + $0x7b8] sm:$0xff]
        %v4268 = vld [vmem:[%s629 + $0x7c0] sm:$0xff]
        %v4269 = vld [vmem:[%s629 + $0x7c8] sm:$0xff]
        %v4270 = vld [vmem:[%s629 + $0x7d0] sm:$0xff]
        %v4271 = vld [vmem:[%s629 + $0x7d8] sm:$0xff]
        %v4272 = vld [vmem:[%s629 + $0x7e0] sm:$0xff]
        %v4273 = vld [vmem:[%s629 + $0x7e8] sm:$0xff]
        %v4274 = vld [vmem:[%s629 + $0x7f0] sm:$0xff]
        %v4275 = vld [vmem:[%s629 + $0x7f8] sm:$0xff]
        %v4276 = vld [vmem:[%s629 + $0x800] sm:$0xff]
        %v4277 = vld [vmem:[%s629 + $0x808] sm:$0xff]
        %v4278 = vld [vmem:[%s629 + $0x810] sm:$0xff]
        %v4279 = vld [vmem:[%s629 + $0x818] sm:$0xff]
        %v4280 = vld [vmem:[%s629 + $0x820] sm:$0xff]
        %v4281 = vld [vmem:[%s629 + $0x828] sm:$0xff]
        %v4282 = vld [vmem:[%s629 + $0x830] sm:$0xff]
        %v4283 = vld [vmem:[%s629 + $0x838] sm:$0xff]
        %v4284 = vld [vmem:[%s629 + $0x840] sm:$0xff]
        %v4285 = vld [vmem:[%s629 + $0x848] sm:$0xff]
        %v4286 = vld [vmem:[%s629 + $0x850] sm:$0xff]
        %v4287 = vld [vmem:[%s629 + $0x858] sm:$0xff]
        %v4288 = vld [vmem:[%s629 + $0x860] sm:$0xff]
        %v4289 = vld [vmem:[%s629 + $0x868] sm:$0xff]
        %v4290 = vld [vmem:[%s629 + $0x870] sm:$0xff]
        %v4291 = vld [vmem:[%s629 + $0x878] sm:$0xff]
        %v4292 = vld [vmem:[%s629 + $0x880] sm:$0xff]
        %v4293 = vld [vmem:[%s629 + $0x888] sm:$0xff]
        %v4294 = vld [vmem:[%s629 + $0x890] sm:$0xff]
        %v4295 = vld [vmem:[%s629 + $0x898] sm:$0xff]
        %v4296 = vld [vmem:[%s629 + $0x8a0] sm:$0xff]
        %v4297 = vld [vmem:[%s629 + $0x8a8] sm:$0xff]
        %v4298 = vld [vmem:[%s629 + $0x8b0] sm:$0xff]
        %v4299 = vld [vmem:[%s629 + $0x8b8] sm:$0xff]
        %v4300 = vld [vmem:[%s629 + $0x8c0] sm:$0xff]
        %v4301 = vld [vmem:[%s629 + $0x8c8] sm:$0xff]
        %v4302 = vld [vmem:[%s629 + $0x8d0] sm:$0xff]
        %v4303 = vld [vmem:[%s629 + $0x8d8] sm:$0xff]
        %v4304 = vld [vmem:[%s629 + $0x8e0] sm:$0xff]
        %v4305 = vld [vmem:[%s629 + $0x8e8] sm:$0xff]
        %v4306 = vld [vmem:[%s629 + $0x8f0] sm:$0xff]
        %v4307 = vld [vmem:[%s629 + $0x8f8] sm:$0xff]
        %v4308 = vld [vmem:[%s639] sm:$0xff]
        %v4309 = vld [vmem:[%s639 + $0x8] sm:$0xf]
        %v4312 = vperm.slane %v4308, 0
        %v4313 = vperm.slane %v4308, 1
        %v4314 = vperm.slane %v4308, 2
        %v4315 = vperm.slane %v4308, 3
        %v4316 = vperm.slane %v4308, 4
        %v4317 = vperm.slane %v4308, 5
        %v4318 = vperm.slane %v4308, 6
        %v4319 = vperm.slane %v4308, 7
        %v4320 = vperm.slane %v4309, 0
        %v4321 = vperm.slane %v4309, 1
        %v4322 = vperm.slane %v4309, 2
        %v4323 = vperm.slane %v4309, 3
        %v4624 = vunpack.c.l.b16 %v4020
        %v4625 = vunpack.c.h.b16 %v4020
        %v4626 = vunpack.c.l.b16 %v4021
        %v4627 = vunpack.c.h.b16 %v4021
        %v4628 = vunpack.c.l.b16 %v4022
        %v4629 = vunpack.c.h.b16 %v4022
        %v4630 = vunpack.c.l.b16 %v4023
        %v4631 = vunpack.c.h.b16 %v4023
        %v4632 = vunpack.c.l.b16 %v4024
        %v4633 = vunpack.c.h.b16 %v4024
        %v4634 = vunpack.c.l.b16 %v4025
        %v4635 = vunpack.c.h.b16 %v4025
        %v4636 = vunpack.c.l.b16 %v4026
        %v4637 = vunpack.c.h.b16 %v4026
        %v4638 = vunpack.c.l.b16 %v4027
        %v4639 = vunpack.c.h.b16 %v4027
        %v4640 = vunpack.c.l.b16 %v4028
        %v4641 = vunpack.c.h.b16 %v4028
        %v4642 = vunpack.c.l.b16 %v4029
        %v4643 = vunpack.c.h.b16 %v4029
        %v4644 = vunpack.c.l.b16 %v4030
        %v4645 = vunpack.c.h.b16 %v4030
        %v4646 = vunpack.c.l.b16 %v4031
        %v4647 = vunpack.c.h.b16 %v4031
        %v4648 = vunpack.c.l.b16 %v4032
        %v4649 = vunpack.c.h.b16 %v4032
        %v4650 = vunpack.c.l.b16 %v4033
        %v4651 = vunpack.c.h.b16 %v4033
        %v4652 = vunpack.c.l.b16 %v4034
        %v4653 = vunpack.c.h.b16 %v4034
        %v4654 = vunpack.c.l.b16 %v4035
        %v4655 = vunpack.c.h.b16 %v4035
        %v4656 = vunpack.c.l.b16 %v4036
        %v4657 = vunpack.c.h.b16 %v4036
        %v4658 = vunpack.c.l.b16 %v4037
        %v4659 = vunpack.c.h.b16 %v4037
        %v4660 = vunpack.c.l.b16 %v4038
        %v4661 = vunpack.c.h.b16 %v4038
        %v4662 = vunpack.c.l.b16 %v4039
        %v4663 = vunpack.c.h.b16 %v4039
        %v4664 = vunpack.c.l.b16 %v4040
        %v4665 = vunpack.c.h.b16 %v4040
        %v4666 = vunpack.c.l.b16 %v4041
        %v4667 = vunpack.c.h.b16 %v4041
        %v4668 = vunpack.c.l.b16 %v4042
        %v4669 = vunpack.c.h.b16 %v4042
        %v4670 = vunpack.c.l.b16 %v4043
        %v4671 = vunpack.c.h.b16 %v4043
        %v4672 = vunpack.c.l.b16 %v4044
        %v4673 = vunpack.c.h.b16 %v4044
        %v4674 = vunpack.c.l.b16 %v4045
        %v4675 = vunpack.c.h.b16 %v4045
        %v4676 = vunpack.c.l.b16 %v4046
        %v4677 = vunpack.c.h.b16 %v4046
        %v4678 = vunpack.c.l.b16 %v4047
        %v4679 = vunpack.c.h.b16 %v4047
        %v4680 = vunpack.c.l.b16 %v4048
        %v4681 = vunpack.c.h.b16 %v4048
        %v4682 = vunpack.c.l.b16 %v4049
        %v4683 = vunpack.c.h.b16 %v4049
        %v4684 = vunpack.c.l.b16 %v4050
        %v4685 = vunpack.c.h.b16 %v4050
        %v4686 = vunpack.c.l.b16 %v4051
        %v4687 = vunpack.c.h.b16 %v4051
        %v4688 = vunpack.c.l.b16 %v4052
        %v4689 = vunpack.c.h.b16 %v4052
        %v4690 = vunpack.c.l.b16 %v4053
        %v4691 = vunpack.c.h.b16 %v4053
        %v4692 = vunpack.c.l.b16 %v4054
        %v4693 = vunpack.c.h.b16 %v4054
        %v4694 = vunpack.c.l.b16 %v4055
        %v4695 = vunpack.c.h.b16 %v4055
        %v4696 = vunpack.c.l.b16 %v4056
        %v4697 = vunpack.c.h.b16 %v4056
        %v4698 = vunpack.c.l.b16 %v4057
        %v4699 = vunpack.c.h.b16 %v4057
        %v4700 = vunpack.c.l.b16 %v4058
        %v4701 = vunpack.c.h.b16 %v4058
        %v4702 = vunpack.c.l.b16 %v4059
        %v4703 = vunpack.c.h.b16 %v4059
        %v4704 = vunpack.c.l.b16 %v4060
        %v4705 = vunpack.c.h.b16 %v4060
        %v4706 = vunpack.c.l.b16 %v4061
        %v4707 = vunpack.c.h.b16 %v4061
        %v4708 = vunpack.c.l.b16 %v4062
        %v4709 = vunpack.c.h.b16 %v4062
        %v4710 = vunpack.c.l.b16 %v4063
        %v4711 = vunpack.c.h.b16 %v4063
        %v4712 = vunpack.c.l.b16 %v4064
        %v4713 = vunpack.c.h.b16 %v4064
        %v4714 = vunpack.c.l.b16 %v4065
        %v4715 = vunpack.c.h.b16 %v4065
        %v4716 = vunpack.c.l.b16 %v4066
        %v4717 = vunpack.c.h.b16 %v4066
        %v4718 = vunpack.c.l.b16 %v4067
        %v4719 = vunpack.c.h.b16 %v4067
        %v4720 = vunpack.c.l.b16 %v4068
        %v4721 = vunpack.c.h.b16 %v4068
        %v4722 = vunpack.c.l.b16 %v4069
        %v4723 = vunpack.c.h.b16 %v4069
        %v4724 = vunpack.c.l.b16 %v4070
        %v4725 = vunpack.c.h.b16 %v4070
        %v4726 = vunpack.c.l.b16 %v4071
        %v4727 = vunpack.c.h.b16 %v4071
        %v4728 = vunpack.c.l.b16 %v4072
        %v4729 = vunpack.c.h.b16 %v4072
        %v4730 = vunpack.c.l.b16 %v4073
        %v4731 = vunpack.c.h.b16 %v4073
        %v4732 = vunpack.c.l.b16 %v4074
        %v4733 = vunpack.c.h.b16 %v4074
        %v4734 = vunpack.c.l.b16 %v4075
        %v4735 = vunpack.c.h.b16 %v4075
        %v4736 = vunpack.c.l.b16 %v4076
        %v4737 = vunpack.c.h.b16 %v4076
        %v4738 = vunpack.c.l.b16 %v4077
        %v4739 = vunpack.c.h.b16 %v4077
        %v4740 = vunpack.c.l.b16 %v4078
        %v4741 = vunpack.c.h.b16 %v4078
        %v4742 = vunpack.c.l.b16 %v4079
        %v4743 = vunpack.c.h.b16 %v4079
        %v4744 = vunpack.c.l.b16 %v4080
        %v4745 = vunpack.c.h.b16 %v4080
        %v4746 = vunpack.c.l.b16 %v4081
        %v4747 = vunpack.c.h.b16 %v4081
        %v4748 = vunpack.c.l.b16 %v4082
        %v4749 = vunpack.c.h.b16 %v4082
        %v4750 = vunpack.c.l.b16 %v4083
        %v4751 = vunpack.c.h.b16 %v4083
        %v4752 = vunpack.c.l.b16 %v4084
        %v4753 = vunpack.c.h.b16 %v4084
        %v4754 = vunpack.c.l.b16 %v4085
        %v4755 = vunpack.c.h.b16 %v4085
        %v4756 = vunpack.c.l.b16 %v4086
        %v4757 = vunpack.c.h.b16 %v4086
        %v4758 = vunpack.c.l.b16 %v4087
        %v4759 = vunpack.c.h.b16 %v4087
        %v4760 = vunpack.c.l.b16 %v4088
        %v4761 = vunpack.c.h.b16 %v4088
        %v4762 = vunpack.c.l.b16 %v4089
        %v4763 = vunpack.c.h.b16 %v4089
        %v4764 = vunpack.c.l.b16 %v4090
        %v4765 = vunpack.c.h.b16 %v4090
        %v4766 = vunpack.c.l.b16 %v4091
        %v4767 = vunpack.c.h.b16 %v4091
        %v4768 = vunpack.c.l.b16 %v4092
        %v4769 = vunpack.c.h.b16 %v4092
        %v4770 = vunpack.c.l.b16 %v4093
        %v4771 = vunpack.c.h.b16 %v4093
        %v4772 = vunpack.c.l.b16 %v4094
        %v4773 = vunpack.c.h.b16 %v4094
        %v4774 = vunpack.c.l.b16 %v4095
        %v4775 = vunpack.c.h.b16 %v4095
        %v4776 = vunpack.c.l.b16 %v4096
        %v4777 = vunpack.c.h.b16 %v4096
        %v4778 = vunpack.c.l.b16 %v4097
        %v4779 = vunpack.c.h.b16 %v4097
        %v4780 = vunpack.c.l.b16 %v4098
        %v4781 = vunpack.c.h.b16 %v4098
        %v4782 = vunpack.c.l.b16 %v4099
        %v4783 = vunpack.c.h.b16 %v4099
        %v4784 = vunpack.c.l.b16 %v4100
        %v4785 = vunpack.c.h.b16 %v4100
        %v4786 = vunpack.c.l.b16 %v4101
        %v4787 = vunpack.c.h.b16 %v4101
        %v4788 = vunpack.c.l.b16 %v4102
        %v4789 = vunpack.c.h.b16 %v4102
        %v4790 = vunpack.c.l.b16 %v4103
        %v4791 = vunpack.c.h.b16 %v4103
        %v4792 = vunpack.c.l.b16 %v4104
        %v4793 = vunpack.c.h.b16 %v4104
        %v4794 = vunpack.c.l.b16 %v4105
        %v4795 = vunpack.c.h.b16 %v4105
        %v4796 = vunpack.c.l.b16 %v4106
        %v4797 = vunpack.c.h.b16 %v4106
        %v4798 = vunpack.c.l.b16 %v4107
        %v4799 = vunpack.c.h.b16 %v4107
        %v4800 = vunpack.c.l.b16 %v4108
        %v4801 = vunpack.c.h.b16 %v4108
        %v4802 = vunpack.c.l.b16 %v4109
        %v4803 = vunpack.c.h.b16 %v4109
        %v4804 = vunpack.c.l.b16 %v4110
        %v4805 = vunpack.c.h.b16 %v4110
        %v4806 = vunpack.c.l.b16 %v4111
        %v4807 = vunpack.c.h.b16 %v4111
        %v4808 = vunpack.c.l.b16 %v4112
        %v4809 = vunpack.c.h.b16 %v4112
        %v4810 = vunpack.c.l.b16 %v4113
        %v4811 = vunpack.c.h.b16 %v4113
        %v4812 = vunpack.c.l.b16 %v4114
        %v4813 = vunpack.c.h.b16 %v4114
        %v4814 = vunpack.c.l.b16 %v4115
        %v4815 = vunpack.c.h.b16 %v4115
        %v4816 = vunpack.c.l.b16 %v4116
        %v4817 = vunpack.c.h.b16 %v4116
        %v4818 = vunpack.c.l.b16 %v4117
        %v4819 = vunpack.c.h.b16 %v4117
        %v4820 = vunpack.c.l.b16 %v4118
        %v4821 = vunpack.c.h.b16 %v4118
        %v4822 = vunpack.c.l.b16 %v4119
        %v4823 = vunpack.c.h.b16 %v4119
        %v4824 = vunpack.c.l.b16 %v4120
        %v4825 = vunpack.c.h.b16 %v4120
        %v4826 = vunpack.c.l.b16 %v4121
        %v4827 = vunpack.c.h.b16 %v4121
        %v4828 = vunpack.c.l.b16 %v4122
        %v4829 = vunpack.c.h.b16 %v4122
        %v4830 = vunpack.c.l.b16 %v4123
        %v4831 = vunpack.c.h.b16 %v4123
        %v4832 = vunpack.c.l.b16 %v4124
        %v4833 = vunpack.c.h.b16 %v4124
        %v4834 = vunpack.c.l.b16 %v4125
        %v4835 = vunpack.c.h.b16 %v4125
        %v4836 = vunpack.c.l.b16 %v4126
        %v4837 = vunpack.c.h.b16 %v4126
        %v4838 = vunpack.c.l.b16 %v4127
        %v4839 = vunpack.c.h.b16 %v4127
        %v4840 = vunpack.c.l.b16 %v4128
        %v4841 = vunpack.c.h.b16 %v4128
        %v4842 = vunpack.c.l.b16 %v4129
        %v4843 = vunpack.c.h.b16 %v4129
        %v4844 = vunpack.c.l.b16 %v4130
        %v4845 = vunpack.c.h.b16 %v4130
        %v4846 = vunpack.c.l.b16 %v4131
        %v4847 = vunpack.c.h.b16 %v4131
        %v4848 = vunpack.c.l.b16 %v4132
        %v4849 = vunpack.c.h.b16 %v4132
        %v4850 = vunpack.c.l.b16 %v4133
        %v4851 = vunpack.c.h.b16 %v4133
        %v4852 = vunpack.c.l.b16 %v4134
        %v4853 = vunpack.c.h.b16 %v4134
        %v4854 = vunpack.c.l.b16 %v4135
        %v4855 = vunpack.c.h.b16 %v4135
        %v4856 = vunpack.c.l.b16 %v4136
        %v4857 = vunpack.c.h.b16 %v4136
        %v4858 = vunpack.c.l.b16 %v4137
        %v4859 = vunpack.c.h.b16 %v4137
        %v4860 = vunpack.c.l.b16 %v4138
        %v4861 = vunpack.c.h.b16 %v4138
        %v4862 = vunpack.c.l.b16 %v4139
        %v4863 = vunpack.c.h.b16 %v4139
        %v4864 = vunpack.c.l.b16 %v4140
        %v4865 = vunpack.c.h.b16 %v4140
        %v4866 = vunpack.c.l.b16 %v4141
        %v4867 = vunpack.c.h.b16 %v4141
        %v4868 = vunpack.c.l.b16 %v4142
        %v4869 = vunpack.c.h.b16 %v4142
        %v4870 = vunpack.c.l.b16 %v4143
        %v4871 = vunpack.c.h.b16 %v4143
        %v4872 = vunpack.c.l.b16 %v4144
        %v4873 = vunpack.c.h.b16 %v4144
        %v4874 = vunpack.c.l.b16 %v4145
        %v4875 = vunpack.c.h.b16 %v4145
        %v4876 = vunpack.c.l.b16 %v4146
        %v4877 = vunpack.c.h.b16 %v4146
        %v4878 = vunpack.c.l.b16 %v4147
        %v4879 = vunpack.c.h.b16 %v4147
        %v4880 = vunpack.c.l.b16 %v4148
        %v4881 = vunpack.c.h.b16 %v4148
        %v4882 = vunpack.c.l.b16 %v4149
        %v4883 = vunpack.c.h.b16 %v4149
        %v4884 = vunpack.c.l.b16 %v4150
        %v4885 = vunpack.c.h.b16 %v4150
        %v4886 = vunpack.c.l.b16 %v4151
        %v4887 = vunpack.c.h.b16 %v4151
        %v4888 = vunpack.c.l.b16 %v4152
        %v4889 = vunpack.c.h.b16 %v4152
        %v4890 = vunpack.c.l.b16 %v4153
        %v4891 = vunpack.c.h.b16 %v4153
        %v4892 = vunpack.c.l.b16 %v4154
        %v4893 = vunpack.c.h.b16 %v4154
        %v4894 = vunpack.c.l.b16 %v4155
        %v4895 = vunpack.c.h.b16 %v4155
        %v4896 = vunpack.c.l.b16 %v4156
        %v4897 = vunpack.c.h.b16 %v4156
        %v4898 = vunpack.c.l.b16 %v4157
        %v4899 = vunpack.c.h.b16 %v4157
        %v4900 = vunpack.c.l.b16 %v4158
        %v4901 = vunpack.c.h.b16 %v4158
        %v4902 = vunpack.c.l.b16 %v4159
        %v4903 = vunpack.c.h.b16 %v4159
        %v4904 = vunpack.c.l.b16 %v4160
        %v4905 = vunpack.c.h.b16 %v4160
        %v4906 = vunpack.c.l.b16 %v4161
        %v4907 = vunpack.c.h.b16 %v4161
        %v4908 = vunpack.c.l.b16 %v4162
        %v4909 = vunpack.c.h.b16 %v4162
        %v4910 = vunpack.c.l.b16 %v4163
        %v4911 = vunpack.c.h.b16 %v4163
        %v4912 = vunpack.c.l.b16 %v4164
        %v4913 = vunpack.c.h.b16 %v4164
        %v4914 = vunpack.c.l.b16 %v4165
        %v4915 = vunpack.c.h.b16 %v4165
        %v4916 = vunpack.c.l.b16 %v4166
        %v4917 = vunpack.c.h.b16 %v4166
        %v4918 = vunpack.c.l.b16 %v4167
        %v4919 = vunpack.c.h.b16 %v4167
        %v4920 = vunpack.c.l.b16 %v4168
        %v4921 = vunpack.c.h.b16 %v4168
        %v4922 = vunpack.c.l.b16 %v4169
        %v4923 = vunpack.c.h.b16 %v4169
        %v4924 = vunpack.c.l.b16 %v4170
        %v4925 = vunpack.c.h.b16 %v4170
        %v4926 = vunpack.c.l.b16 %v4171
        %v4927 = vunpack.c.h.b16 %v4171
        %v4928 = vunpack.c.l.b16 %v4172
        %v4929 = vunpack.c.h.b16 %v4172
        %v4930 = vunpack.c.l.b16 %v4173
        %v4931 = vunpack.c.h.b16 %v4173
        %v4932 = vunpack.c.l.b16 %v4174
        %v4933 = vunpack.c.h.b16 %v4174
        %v4934 = vunpack.c.l.b16 %v4175
        %v4935 = vunpack.c.h.b16 %v4175
        %v4936 = vunpack.c.l.b16 %v4176
        %v4937 = vunpack.c.h.b16 %v4176
        %v4938 = vunpack.c.l.b16 %v4177
        %v4939 = vunpack.c.h.b16 %v4177
        %v4940 = vunpack.c.l.b16 %v4178
        %v4941 = vunpack.c.h.b16 %v4178
        %v4942 = vunpack.c.l.b16 %v4179
        %v4943 = vunpack.c.h.b16 %v4179
        %v4944 = vunpack.c.l.b16 %v4180
        %v4945 = vunpack.c.h.b16 %v4180
        %v4946 = vunpack.c.l.b16 %v4181
        %v4947 = vunpack.c.h.b16 %v4181
        %v4948 = vunpack.c.l.b16 %v4182
        %v4949 = vunpack.c.h.b16 %v4182
        %v4950 = vunpack.c.l.b16 %v4183
        %v4951 = vunpack.c.h.b16 %v4183
        %v4952 = vunpack.c.l.b16 %v4184
        %v4953 = vunpack.c.h.b16 %v4184
        %v4954 = vunpack.c.l.b16 %v4185
        %v4955 = vunpack.c.h.b16 %v4185
        %v4956 = vunpack.c.l.b16 %v4186
        %v4957 = vunpack.c.h.b16 %v4186
        %v4958 = vunpack.c.l.b16 %v4187
        %v4959 = vunpack.c.h.b16 %v4187
        %v4960 = vunpack.c.l.b16 %v4188
        %v4961 = vunpack.c.h.b16 %v4188
        %v4962 = vunpack.c.l.b16 %v4189
        %v4963 = vunpack.c.h.b16 %v4189
        %v4964 = vunpack.c.l.b16 %v4190
        %v4965 = vunpack.c.h.b16 %v4190
        %v4966 = vunpack.c.l.b16 %v4191
        %v4967 = vunpack.c.h.b16 %v4191
        %v4968 = vunpack.c.l.b16 %v4192
        %v4969 = vunpack.c.h.b16 %v4192
        %v4970 = vunpack.c.l.b16 %v4193
        %v4971 = vunpack.c.h.b16 %v4193
        %v4972 = vunpack.c.l.b16 %v4194
        %v4973 = vunpack.c.h.b16 %v4194
        %v4974 = vunpack.c.l.b16 %v4195
        %v4975 = vunpack.c.h.b16 %v4195
        %v4976 = vunpack.c.l.b16 %v4196
        %v4977 = vunpack.c.h.b16 %v4196
        %v4978 = vunpack.c.l.b16 %v4197
        %v4979 = vunpack.c.h.b16 %v4197
        %v4980 = vunpack.c.l.b16 %v4198
        %v4981 = vunpack.c.h.b16 %v4198
        %v4982 = vunpack.c.l.b16 %v4199
        %v4983 = vunpack.c.h.b16 %v4199
        %v4984 = vunpack.c.l.b16 %v4200
        %v4985 = vunpack.c.h.b16 %v4200
        %v4986 = vunpack.c.l.b16 %v4201
        %v4987 = vunpack.c.h.b16 %v4201
        %v4988 = vunpack.c.l.b16 %v4202
        %v4989 = vunpack.c.h.b16 %v4202
        %v4990 = vunpack.c.l.b16 %v4203
        %v4991 = vunpack.c.h.b16 %v4203
        %v4992 = vunpack.c.l.b16 %v4204
        %v4993 = vunpack.c.h.b16 %v4204
        %v4994 = vunpack.c.l.b16 %v4205
        %v4995 = vunpack.c.h.b16 %v4205
        %v4996 = vunpack.c.l.b16 %v4206
        %v4997 = vunpack.c.h.b16 %v4206
        %v4998 = vunpack.c.l.b16 %v4207
        %v4999 = vunpack.c.h.b16 %v4207
        %v5000 = vunpack.c.l.b16 %v4208
        %v5001 = vunpack.c.h.b16 %v4208
        %v5002 = vunpack.c.l.b16 %v4209
        %v5003 = vunpack.c.h.b16 %v4209
        %v5004 = vunpack.c.l.b16 %v4210
        %v5005 = vunpack.c.h.b16 %v4210
        %v5006 = vunpack.c.l.b16 %v4211
        %v5007 = vunpack.c.h.b16 %v4211
        %v5008 = vunpack.c.l.b16 %v4212
        %v5009 = vunpack.c.h.b16 %v4212
        %v5010 = vunpack.c.l.b16 %v4213
        %v5011 = vunpack.c.h.b16 %v4213
        %v5012 = vunpack.c.l.b16 %v4214
        %v5013 = vunpack.c.h.b16 %v4214
        %v5014 = vunpack.c.l.b16 %v4215
        %v5015 = vunpack.c.h.b16 %v4215
        %v5016 = vunpack.c.l.b16 %v4216
        %v5017 = vunpack.c.h.b16 %v4216
        %v5018 = vunpack.c.l.b16 %v4217
        %v5019 = vunpack.c.h.b16 %v4217
        %v5020 = vunpack.c.l.b16 %v4218
        %v5021 = vunpack.c.h.b16 %v4218
        %v5022 = vunpack.c.l.b16 %v4219
        %v5023 = vunpack.c.h.b16 %v4219
        %v5024 = vunpack.c.l.b16 %v4220
        %v5025 = vunpack.c.h.b16 %v4220
        %v5026 = vunpack.c.l.b16 %v4221
        %v5027 = vunpack.c.h.b16 %v4221
        %v5028 = vunpack.c.l.b16 %v4222
        %v5029 = vunpack.c.h.b16 %v4222
        %v5030 = vunpack.c.l.b16 %v4223
        %v5031 = vunpack.c.h.b16 %v4223
        %v5032 = vunpack.c.l.b16 %v4224
        %v5033 = vunpack.c.h.b16 %v4224
        %v5034 = vunpack.c.l.b16 %v4225
        %v5035 = vunpack.c.h.b16 %v4225
        %v5036 = vunpack.c.l.b16 %v4226
        %v5037 = vunpack.c.h.b16 %v4226
        %v5038 = vunpack.c.l.b16 %v4227
        %v5039 = vunpack.c.h.b16 %v4227
        %v5040 = vunpack.c.l.b16 %v4228
        %v5041 = vunpack.c.h.b16 %v4228
        %v5042 = vunpack.c.l.b16 %v4229
        %v5043 = vunpack.c.h.b16 %v4229
        %v5044 = vunpack.c.l.b16 %v4230
        %v5045 = vunpack.c.h.b16 %v4230
        %v5046 = vunpack.c.l.b16 %v4231
        %v5047 = vunpack.c.h.b16 %v4231
        %v5048 = vunpack.c.l.b16 %v4232
        %v5049 = vunpack.c.h.b16 %v4232
        %v5050 = vunpack.c.l.b16 %v4233
        %v5051 = vunpack.c.h.b16 %v4233
        %v5052 = vunpack.c.l.b16 %v4234
        %v5053 = vunpack.c.h.b16 %v4234
        %v5054 = vunpack.c.l.b16 %v4235
        %v5055 = vunpack.c.h.b16 %v4235
        %v5056 = vunpack.c.l.b16 %v4236
        %v5057 = vunpack.c.h.b16 %v4236
        %v5058 = vunpack.c.l.b16 %v4237
        %v5059 = vunpack.c.h.b16 %v4237
        %v5060 = vunpack.c.l.b16 %v4238
        %v5061 = vunpack.c.h.b16 %v4238
        %v5062 = vunpack.c.l.b16 %v4239
        %v5063 = vunpack.c.h.b16 %v4239
        %v5064 = vunpack.c.l.b16 %v4240
        %v5065 = vunpack.c.h.b16 %v4240
        %v5066 = vunpack.c.l.b16 %v4241
        %v5067 = vunpack.c.h.b16 %v4241
        %v5068 = vunpack.c.l.b16 %v4242
        %v5069 = vunpack.c.h.b16 %v4242
        %v5070 = vunpack.c.l.b16 %v4243
        %v5071 = vunpack.c.h.b16 %v4243
        %v5072 = vunpack.c.l.b16 %v4244
        %v5073 = vunpack.c.h.b16 %v4244
        %v5074 = vunpack.c.l.b16 %v4245
        %v5075 = vunpack.c.h.b16 %v4245
        %v5076 = vunpack.c.l.b16 %v4246
        %v5077 = vunpack.c.h.b16 %v4246
        %v5078 = vunpack.c.l.b16 %v4247
        %v5079 = vunpack.c.h.b16 %v4247
        %v5080 = vunpack.c.l.b16 %v4248
        %v5081 = vunpack.c.h.b16 %v4248
        %v5082 = vunpack.c.l.b16 %v4249
        %v5083 = vunpack.c.h.b16 %v4249
        %v5084 = vunpack.c.l.b16 %v4250
        %v5085 = vunpack.c.h.b16 %v4250
        %v5086 = vunpack.c.l.b16 %v4251
        %v5087 = vunpack.c.h.b16 %v4251
        %v5088 = vunpack.c.l.b16 %v4252
        %v5089 = vunpack.c.h.b16 %v4252
        %v5090 = vunpack.c.l.b16 %v4253
        %v5091 = vunpack.c.h.b16 %v4253
        %v5092 = vunpack.c.l.b16 %v4254
        %v5093 = vunpack.c.h.b16 %v4254
        %v5094 = vunpack.c.l.b16 %v4255
        %v5095 = vunpack.c.h.b16 %v4255
        %v5096 = vunpack.c.l.b16 %v4256
        %v5097 = vunpack.c.h.b16 %v4256
        %v5098 = vunpack.c.l.b16 %v4257
        %v5099 = vunpack.c.h.b16 %v4257
        %v5100 = vunpack.c.l.b16 %v4258
        %v5101 = vunpack.c.h.b16 %v4258
        %v5102 = vunpack.c.l.b16 %v4259
        %v5103 = vunpack.c.h.b16 %v4259
        %v5104 = vunpack.c.l.b16 %v4260
        %v5105 = vunpack.c.h.b16 %v4260
        %v5106 = vunpack.c.l.b16 %v4261
        %v5107 = vunpack.c.h.b16 %v4261
        %v5108 = vunpack.c.l.b16 %v4262
        %v5109 = vunpack.c.h.b16 %v4262
        %v5110 = vunpack.c.l.b16 %v4263
        %v5111 = vunpack.c.h.b16 %v4263
        %v5112 = vunpack.c.l.b16 %v4264
        %v5113 = vunpack.c.h.b16 %v4264
        %v5114 = vunpack.c.l.b16 %v4265
        %v5115 = vunpack.c.h.b16 %v4265
        %v5116 = vunpack.c.l.b16 %v4266
        %v5117 = vunpack.c.h.b16 %v4266
        %v5118 = vunpack.c.l.b16 %v4267
        %v5119 = vunpack.c.h.b16 %v4267
        %v5120 = vunpack.c.l.b16 %v4268
        %v5121 = vunpack.c.h.b16 %v4268
        %v5122 = vunpack.c.l.b16 %v4269
        %v5123 = vunpack.c.h.b16 %v4269
        %v5124 = vunpack.c.l.b16 %v4270
        %v5125 = vunpack.c.h.b16 %v4270
        %v5126 = vunpack.c.l.b16 %v4271
        %v5127 = vunpack.c.h.b16 %v4271
        %v5128 = vunpack.c.l.b16 %v4272
        %v5129 = vunpack.c.h.b16 %v4272
        %v5130 = vunpack.c.l.b16 %v4273
        %v5131 = vunpack.c.h.b16 %v4273
        %v5132 = vunpack.c.l.b16 %v4274
        %v5133 = vunpack.c.h.b16 %v4274
        %v5134 = vunpack.c.l.b16 %v4275
        %v5135 = vunpack.c.h.b16 %v4275
        %v5136 = vunpack.c.l.b16 %v4276
        %v5137 = vunpack.c.h.b16 %v4276
        %v5138 = vunpack.c.l.b16 %v4277
        %v5139 = vunpack.c.h.b16 %v4277
        %v5140 = vunpack.c.l.b16 %v4278
        %v5141 = vunpack.c.h.b16 %v4278
        %v5142 = vunpack.c.l.b16 %v4279
        %v5143 = vunpack.c.h.b16 %v4279
        %v5144 = vunpack.c.l.b16 %v4280
        %v5145 = vunpack.c.h.b16 %v4280
        %v5146 = vunpack.c.l.b16 %v4281
        %v5147 = vunpack.c.h.b16 %v4281
        %v5148 = vunpack.c.l.b16 %v4282
        %v5149 = vunpack.c.h.b16 %v4282
        %v5150 = vunpack.c.l.b16 %v4283
        %v5151 = vunpack.c.h.b16 %v4283
        %v5152 = vunpack.c.l.b16 %v4284
        %v5153 = vunpack.c.h.b16 %v4284
        %v5154 = vunpack.c.l.b16 %v4285
        %v5155 = vunpack.c.h.b16 %v4285
        %v5156 = vunpack.c.l.b16 %v4286
        %v5157 = vunpack.c.h.b16 %v4286
        %v5158 = vunpack.c.l.b16 %v4287
        %v5159 = vunpack.c.h.b16 %v4287
        %v5160 = vunpack.c.l.b16 %v4288
        %v5161 = vunpack.c.h.b16 %v4288
        %v5162 = vunpack.c.l.b16 %v4289
        %v5163 = vunpack.c.h.b16 %v4289
        %v5164 = vunpack.c.l.b16 %v4290
        %v5165 = vunpack.c.h.b16 %v4290
        %v5166 = vunpack.c.l.b16 %v4291
        %v5167 = vunpack.c.h.b16 %v4291
        %v5168 = vunpack.c.l.b16 %v4292
        %v5169 = vunpack.c.h.b16 %v4292
        %v5170 = vunpack.c.l.b16 %v4293
        %v5171 = vunpack.c.h.b16 %v4293
        %v5172 = vunpack.c.l.b16 %v4294
        %v5173 = vunpack.c.h.b16 %v4294
        %v5174 = vunpack.c.l.b16 %v4295
        %v5175 = vunpack.c.h.b16 %v4295
        %v5176 = vunpack.c.l.b16 %v4296
        %v5177 = vunpack.c.h.b16 %v4296
        %v5178 = vunpack.c.l.b16 %v4297
        %v5179 = vunpack.c.h.b16 %v4297
        %v5180 = vunpack.c.l.b16 %v4298
        %v5181 = vunpack.c.h.b16 %v4298
        %v5182 = vunpack.c.l.b16 %v4299
        %v5183 = vunpack.c.h.b16 %v4299
        %v5184 = vunpack.c.l.b16 %v4300
        %v5185 = vunpack.c.h.b16 %v4300
        %v5186 = vunpack.c.l.b16 %v4301
        %v5187 = vunpack.c.h.b16 %v4301
        %v5188 = vunpack.c.l.b16 %v4302
        %v5189 = vunpack.c.h.b16 %v4302
        %v5190 = vunpack.c.l.b16 %v4303
        %v5191 = vunpack.c.h.b16 %v4303
        %v5192 = vunpack.c.l.b16 %v4304
        %v5193 = vunpack.c.h.b16 %v4304
        %v5194 = vunpack.c.l.b16 %v4305
        %v5195 = vunpack.c.h.b16 %v4305
        %v5196 = vunpack.c.l.b16 %v4306
        %v5197 = vunpack.c.h.b16 %v4306
        %v5198 = vunpack.c.l.b16 %v4307
        %v5199 = vunpack.c.h.b16 %v4307
        %v5200 = vpack.c.b16 %v4636, %v4624
        %v5201 = vpack.c.b16 %v4637, %v4625
        %v5202 = vpack.c.b16 %v4638, %v4626
        %v5203 = vpack.c.b16 %v4639, %v4627
        %v5204 = vpack.c.b16 %v4640, %v4628
        %v5205 = vpack.c.b16 %v4641, %v4629
        %v5206 = vpack.c.b16 %v4642, %v4630
        %v5207 = vpack.c.b16 %v4643, %v4631
        %v5208 = vpack.c.b16 %v4644, %v4632
        %v5209 = vpack.c.b16 %v4645, %v4633
        %v5210 = vpack.c.b16 %v4646, %v4634
        %v5211 = vpack.c.b16 %v4647, %v4635
        %v5212 = vpack.c.b16 %v4660, %v4648
        %v5213 = vpack.c.b16 %v4661, %v4649
        %v5214 = vpack.c.b16 %v4662, %v4650
        %v5215 = vpack.c.b16 %v4663, %v4651
        %v5216 = vpack.c.b16 %v4664, %v4652
        %v5217 = vpack.c.b16 %v4665, %v4653
        %v5218 = vpack.c.b16 %v4666, %v4654
        %v5219 = vpack.c.b16 %v4667, %v4655
        %v5220 = vpack.c.b16 %v4668, %v4656
        %v5221 = vpack.c.b16 %v4669, %v4657
        %v5222 = vpack.c.b16 %v4670, %v4658
        %v5223 = vpack.c.b16 %v4671, %v4659
        %v5224 = vpack.c.b16 %v4684, %v4672
        %v5225 = vpack.c.b16 %v4685, %v4673
        %v5226 = vpack.c.b16 %v4686, %v4674
        %v5227 = vpack.c.b16 %v4687, %v4675
        %v5228 = vpack.c.b16 %v4688, %v4676
        %v5229 = vpack.c.b16 %v4689, %v4677
        %v5230 = vpack.c.b16 %v4690, %v4678
        %v5231 = vpack.c.b16 %v4691, %v4679
        %v5232 = vpack.c.b16 %v4692, %v4680
        %v5233 = vpack.c.b16 %v4693, %v4681
        %v5234 = vpack.c.b16 %v4694, %v4682
        %v5235 = vpack.c.b16 %v4695, %v4683
        %v5236 = vpack.c.b16 %v4708, %v4696
        %v5237 = vpack.c.b16 %v4709, %v4697
        %v5238 = vpack.c.b16 %v4710, %v4698
        %v5239 = vpack.c.b16 %v4711, %v4699
        %v5240 = vpack.c.b16 %v4712, %v4700
        %v5241 = vpack.c.b16 %v4713, %v4701
        %v5242 = vpack.c.b16 %v4714, %v4702
        %v5243 = vpack.c.b16 %v4715, %v4703
        %v5244 = vpack.c.b16 %v4716, %v4704
        %v5245 = vpack.c.b16 %v4717, %v4705
        %v5246 = vpack.c.b16 %v4718, %v4706
        %v5247 = vpack.c.b16 %v4719, %v4707
        %v5248 = vpack.c.b16 %v4732, %v4720
        %v5249 = vpack.c.b16 %v4733, %v4721
        %v5250 = vpack.c.b16 %v4734, %v4722
        %v5251 = vpack.c.b16 %v4735, %v4723
        %v5252 = vpack.c.b16 %v4736, %v4724
        %v5253 = vpack.c.b16 %v4737, %v4725
        %v5254 = vpack.c.b16 %v4738, %v4726
        %v5255 = vpack.c.b16 %v4739, %v4727
        %v5256 = vpack.c.b16 %v4740, %v4728
        %v5257 = vpack.c.b16 %v4741, %v4729
        %v5258 = vpack.c.b16 %v4742, %v4730
        %v5259 = vpack.c.b16 %v4743, %v4731
        %v5260 = vpack.c.b16 %v4756, %v4744
        %v5261 = vpack.c.b16 %v4757, %v4745
        %v5262 = vpack.c.b16 %v4758, %v4746
        %v5263 = vpack.c.b16 %v4759, %v4747
        %v5264 = vpack.c.b16 %v4760, %v4748
        %v5265 = vpack.c.b16 %v4761, %v4749
        %v5266 = vpack.c.b16 %v4762, %v4750
        %v5267 = vpack.c.b16 %v4763, %v4751
        %v5268 = vpack.c.b16 %v4764, %v4752
        %v5269 = vpack.c.b16 %v4765, %v4753
        %v5270 = vpack.c.b16 %v4766, %v4754
        %v5271 = vpack.c.b16 %v4767, %v4755
        %v5272 = vpack.c.b16 %v4780, %v4768
        %v5273 = vpack.c.b16 %v4781, %v4769
        %v5274 = vpack.c.b16 %v4782, %v4770
        %v5275 = vpack.c.b16 %v4783, %v4771
        %v5276 = vpack.c.b16 %v4784, %v4772
        %v5277 = vpack.c.b16 %v4785, %v4773
        %v5278 = vpack.c.b16 %v4786, %v4774
        %v5279 = vpack.c.b16 %v4787, %v4775
        %v5280 = vpack.c.b16 %v4788, %v4776
        %v5281 = vpack.c.b16 %v4789, %v4777
        %v5282 = vpack.c.b16 %v4790, %v4778
        %v5283 = vpack.c.b16 %v4791, %v4779
        %v5284 = vpack.c.b16 %v4804, %v4792
        %v5285 = vpack.c.b16 %v4805, %v4793
        %v5286 = vpack.c.b16 %v4806, %v4794
        %v5287 = vpack.c.b16 %v4807, %v4795
        %v5288 = vpack.c.b16 %v4808, %v4796
        %v5289 = vpack.c.b16 %v4809, %v4797
        %v5290 = vpack.c.b16 %v4810, %v4798
        %v5291 = vpack.c.b16 %v4811, %v4799
        %v5292 = vpack.c.b16 %v4812, %v4800
        %v5293 = vpack.c.b16 %v4813, %v4801
        %v5294 = vpack.c.b16 %v4814, %v4802
        %v5295 = vpack.c.b16 %v4815, %v4803
        %v5296 = vpack.c.b16 %v4828, %v4816
        %v5297 = vpack.c.b16 %v4829, %v4817
        %v5298 = vpack.c.b16 %v4830, %v4818
        %v5299 = vpack.c.b16 %v4831, %v4819
        %v5300 = vpack.c.b16 %v4832, %v4820
        %v5301 = vpack.c.b16 %v4833, %v4821
        %v5302 = vpack.c.b16 %v4834, %v4822
        %v5303 = vpack.c.b16 %v4835, %v4823
        %v5304 = vpack.c.b16 %v4836, %v4824
        %v5305 = vpack.c.b16 %v4837, %v4825
        %v5306 = vpack.c.b16 %v4838, %v4826
        %v5307 = vpack.c.b16 %v4839, %v4827
        %v5308 = vpack.c.b16 %v4852, %v4840
        %v5309 = vpack.c.b16 %v4853, %v4841
        %v5310 = vpack.c.b16 %v4854, %v4842
        %v5311 = vpack.c.b16 %v4855, %v4843
        %v5312 = vpack.c.b16 %v4856, %v4844
        %v5313 = vpack.c.b16 %v4857, %v4845
        %v5314 = vpack.c.b16 %v4858, %v4846
        %v5315 = vpack.c.b16 %v4859, %v4847
        %v5316 = vpack.c.b16 %v4860, %v4848
        %v5317 = vpack.c.b16 %v4861, %v4849
        %v5318 = vpack.c.b16 %v4862, %v4850
        %v5319 = vpack.c.b16 %v4863, %v4851
        %v5320 = vpack.c.b16 %v4876, %v4864
        %v5321 = vpack.c.b16 %v4877, %v4865
        %v5322 = vpack.c.b16 %v4878, %v4866
        %v5323 = vpack.c.b16 %v4879, %v4867
        %v5324 = vpack.c.b16 %v4880, %v4868
        %v5325 = vpack.c.b16 %v4881, %v4869
        %v5326 = vpack.c.b16 %v4882, %v4870
        %v5327 = vpack.c.b16 %v4883, %v4871
        %v5328 = vpack.c.b16 %v4884, %v4872
        %v5329 = vpack.c.b16 %v4885, %v4873
        %v5330 = vpack.c.b16 %v4886, %v4874
        %v5331 = vpack.c.b16 %v4887, %v4875
        %v5332 = vpack.c.b16 %v4900, %v4888
        %v5333 = vpack.c.b16 %v4901, %v4889
        %v5334 = vpack.c.b16 %v4902, %v4890
        %v5335 = vpack.c.b16 %v4903, %v4891
        %v5336 = vpack.c.b16 %v4904, %v4892
        %v5337 = vpack.c.b16 %v4905, %v4893
        %v5338 = vpack.c.b16 %v4906, %v4894
        %v5339 = vpack.c.b16 %v4907, %v4895
        %v5340 = vpack.c.b16 %v4908, %v4896
        %v5341 = vpack.c.b16 %v4909, %v4897
        %v5342 = vpack.c.b16 %v4910, %v4898
        %v5343 = vpack.c.b16 %v4911, %v4899
        %v5344 = vpack.c.b16 %v4924, %v4912
        %v5345 = vpack.c.b16 %v4925, %v4913
        %v5346 = vpack.c.b16 %v4926, %v4914
        %v5347 = vpack.c.b16 %v4927, %v4915
        %v5348 = vpack.c.b16 %v4928, %v4916
        %v5349 = vpack.c.b16 %v4929, %v4917
        %v5350 = vpack.c.b16 %v4930, %v4918
        %v5351 = vpack.c.b16 %v4931, %v4919
        %v5352 = vpack.c.b16 %v4932, %v4920
        %v5353 = vpack.c.b16 %v4933, %v4921
        %v5354 = vpack.c.b16 %v4934, %v4922
        %v5355 = vpack.c.b16 %v4935, %v4923
        %v5356 = vpack.c.b16 %v4948, %v4936
        %v5357 = vpack.c.b16 %v4949, %v4937
        %v5358 = vpack.c.b16 %v4950, %v4938
        %v5359 = vpack.c.b16 %v4951, %v4939
        %v5360 = vpack.c.b16 %v4952, %v4940
        %v5361 = vpack.c.b16 %v4953, %v4941
        %v5362 = vpack.c.b16 %v4954, %v4942
        %v5363 = vpack.c.b16 %v4955, %v4943
        %v5364 = vpack.c.b16 %v4956, %v4944
        %v5365 = vpack.c.b16 %v4957, %v4945
        %v5366 = vpack.c.b16 %v4958, %v4946
        %v5367 = vpack.c.b16 %v4959, %v4947
        %v5368 = vpack.c.b16 %v4972, %v4960
        %v5369 = vpack.c.b16 %v4973, %v4961
        %v5370 = vpack.c.b16 %v4974, %v4962
        %v5371 = vpack.c.b16 %v4975, %v4963
        %v5372 = vpack.c.b16 %v4976, %v4964
        %v5373 = vpack.c.b16 %v4977, %v4965
        %v5374 = vpack.c.b16 %v4978, %v4966
        %v5375 = vpack.c.b16 %v4979, %v4967
        %v5376 = vpack.c.b16 %v4980, %v4968
        %v5377 = vpack.c.b16 %v4981, %v4969
        %v5378 = vpack.c.b16 %v4982, %v4970
        %v5379 = vpack.c.b16 %v4983, %v4971
        %v5380 = vpack.c.b16 %v4996, %v4984
        %v5381 = vpack.c.b16 %v4997, %v4985
        %v5382 = vpack.c.b16 %v4998, %v4986
        %v5383 = vpack.c.b16 %v4999, %v4987
        %v5384 = vpack.c.b16 %v5000, %v4988
        %v5385 = vpack.c.b16 %v5001, %v4989
        %v5386 = vpack.c.b16 %v5002, %v4990
        %v5387 = vpack.c.b16 %v5003, %v4991
        %v5388 = vpack.c.b16 %v5004, %v4992
        %v5389 = vpack.c.b16 %v5005, %v4993
        %v5390 = vpack.c.b16 %v5006, %v4994
        %v5391 = vpack.c.b16 %v5007, %v4995
        %v5392 = vpack.c.b16 %v5020, %v5008
        %v5393 = vpack.c.b16 %v5021, %v5009
        %v5394 = vpack.c.b16 %v5022, %v5010
        %v5395 = vpack.c.b16 %v5023, %v5011
        %v5396 = vpack.c.b16 %v5024, %v5012
        %v5397 = vpack.c.b16 %v5025, %v5013
        %v5398 = vpack.c.b16 %v5026, %v5014
        %v5399 = vpack.c.b16 %v5027, %v5015
        %v5400 = vpack.c.b16 %v5028, %v5016
        %v5401 = vpack.c.b16 %v5029, %v5017
        %v5402 = vpack.c.b16 %v5030, %v5018
        %v5403 = vpack.c.b16 %v5031, %v5019
        %v5404 = vpack.c.b16 %v5044, %v5032
        %v5405 = vpack.c.b16 %v5045, %v5033
        %v5406 = vpack.c.b16 %v5046, %v5034
        %v5407 = vpack.c.b16 %v5047, %v5035
        %v5408 = vpack.c.b16 %v5048, %v5036
        %v5409 = vpack.c.b16 %v5049, %v5037
        %v5410 = vpack.c.b16 %v5050, %v5038
        %v5411 = vpack.c.b16 %v5051, %v5039
        %v5412 = vpack.c.b16 %v5052, %v5040
        %v5413 = vpack.c.b16 %v5053, %v5041
        %v5414 = vpack.c.b16 %v5054, %v5042
        %v5415 = vpack.c.b16 %v5055, %v5043
        %v5416 = vpack.c.b16 %v5068, %v5056
        %v5417 = vpack.c.b16 %v5069, %v5057
        %v5418 = vpack.c.b16 %v5070, %v5058
        %v5419 = vpack.c.b16 %v5071, %v5059
        %v5420 = vpack.c.b16 %v5072, %v5060
        %v5421 = vpack.c.b16 %v5073, %v5061
        %v5422 = vpack.c.b16 %v5074, %v5062
        %v5423 = vpack.c.b16 %v5075, %v5063
        %v5424 = vpack.c.b16 %v5076, %v5064
        %v5425 = vpack.c.b16 %v5077, %v5065
        %v5426 = vpack.c.b16 %v5078, %v5066
        %v5427 = vpack.c.b16 %v5079, %v5067
        %v5428 = vpack.c.b16 %v5092, %v5080
        %v5429 = vpack.c.b16 %v5093, %v5081
        %v5430 = vpack.c.b16 %v5094, %v5082
        %v5431 = vpack.c.b16 %v5095, %v5083
        %v5432 = vpack.c.b16 %v5096, %v5084
        %v5433 = vpack.c.b16 %v5097, %v5085
        %v5434 = vpack.c.b16 %v5098, %v5086
        %v5435 = vpack.c.b16 %v5099, %v5087
        %v5436 = vpack.c.b16 %v5100, %v5088
        %v5437 = vpack.c.b16 %v5101, %v5089
        %v5438 = vpack.c.b16 %v5102, %v5090
        %v5439 = vpack.c.b16 %v5103, %v5091
        %v5440 = vpack.c.b16 %v5116, %v5104
        %v5441 = vpack.c.b16 %v5117, %v5105
        %v5442 = vpack.c.b16 %v5118, %v5106
        %v5443 = vpack.c.b16 %v5119, %v5107
        %v5444 = vpack.c.b16 %v5120, %v5108
        %v5445 = vpack.c.b16 %v5121, %v5109
        %v5446 = vpack.c.b16 %v5122, %v5110
        %v5447 = vpack.c.b16 %v5123, %v5111
        %v5448 = vpack.c.b16 %v5124, %v5112
        %v5449 = vpack.c.b16 %v5125, %v5113
        %v5450 = vpack.c.b16 %v5126, %v5114
        %v5451 = vpack.c.b16 %v5127, %v5115
        %v5452 = vpack.c.b16 %v5140, %v5128
        %v5453 = vpack.c.b16 %v5141, %v5129
        %v5454 = vpack.c.b16 %v5142, %v5130
        %v5455 = vpack.c.b16 %v5143, %v5131
        %v5456 = vpack.c.b16 %v5144, %v5132
        %v5457 = vpack.c.b16 %v5145, %v5133
        %v5458 = vpack.c.b16 %v5146, %v5134
        %v5459 = vpack.c.b16 %v5147, %v5135
        %v5460 = vpack.c.b16 %v5148, %v5136
        %v5461 = vpack.c.b16 %v5149, %v5137
        %v5462 = vpack.c.b16 %v5150, %v5138
        %v5463 = vpack.c.b16 %v5151, %v5139
        %v5464 = vpack.c.b16 %v5164, %v5152
        %v5465 = vpack.c.b16 %v5165, %v5153
        %v5466 = vpack.c.b16 %v5166, %v5154
        %v5467 = vpack.c.b16 %v5167, %v5155
        %v5468 = vpack.c.b16 %v5168, %v5156
        %v5469 = vpack.c.b16 %v5169, %v5157
        %v5470 = vpack.c.b16 %v5170, %v5158
        %v5471 = vpack.c.b16 %v5171, %v5159
        %v5472 = vpack.c.b16 %v5172, %v5160
        %v5473 = vpack.c.b16 %v5173, %v5161
        %v5474 = vpack.c.b16 %v5174, %v5162
        %v5475 = vpack.c.b16 %v5175, %v5163
        %v5476 = vpack.c.b16 %v5188, %v5176
        %v5477 = vpack.c.b16 %v5189, %v5177
        %v5478 = vpack.c.b16 %v5190, %v5178
        %v5479 = vpack.c.b16 %v5191, %v5179
        %v5480 = vpack.c.b16 %v5192, %v5180
        %v5481 = vpack.c.b16 %v5193, %v5181
        %v5482 = vpack.c.b16 %v5194, %v5182
        %v5483 = vpack.c.b16 %v5195, %v5183
        %v5484 = vpack.c.b16 %v5196, %v5184
        %v5485 = vpack.c.b16 %v5197, %v5185
        %v5486 = vpack.c.b16 %v5198, %v5186
        %v5487 = vpack.c.b16 %v5199, %v5187
        %5776 = vmatpush.bf16.msra.mxu0 %v5284
        %5777 = vmatpush.bf16.msra.mxu0 %v5272
        %5778 = vmatpush.bf16.msra.mxu0 %v5260
        %5779 = vmatpush.bf16.msra.mxu0 %v5248
        %5780 = vmatpush.bf16.msra.mxu0 %v5236
        %5781 = vmatpush.bf16.msra.mxu0 %v5224
        %5782 = vmatpush.bf16.msra.mxu0 %v5212
        %5783 = vmatpush.bf16.msra.mxu0 %v5200
        %5784 = vmatmul.bf16.gmra.mxu0 %v4017
        %v5785 = vpop.f32.mrf.mxu0
        %v5786 = vadd.f32 %v4312, %v5785
        %v5787 = vpop.f32.mrf.mxu0
        %v5788 = vadd.f32 %v4312, %v5787
        %5789 = vdwg.mxu0
        %5790 = vmatpush.bf16.msra.mxu0 %v5380
        %5791 = vmatpush.bf16.msra.mxu0 %v5368
        %5792 = vmatpush.bf16.msra.mxu0 %v5356
        %5793 = vmatpush.bf16.msra.mxu0 %v5344
        %5794 = vmatpush.bf16.msra.mxu0 %v5332
        %5795 = vmatpush.bf16.msra.mxu0 %v5320
        %5796 = vmatpush.bf16.msra.mxu0 %v5308
        %5797 = vmatpush.bf16.msra.mxu0 %v5296
        %5798 = vmatmul.bf16.gmra.mxu0 %v4018
        %v5799 = vpop.f32.mrf.mxu0
        %v5800 = vadd.f32 %v5786, %v5799
        %v5801 = vpop.f32.mrf.mxu0
        %v5802 = vadd.f32 %v5788, %v5801
        %5803 = vdwg.mxu0
        %5804 = vmatpush.bf16.msra.mxu0 %v5476
        %5805 = vmatpush.bf16.msra.mxu0 %v5464
        %5806 = vmatpush.bf16.msra.mxu0 %v5452
        %5807 = vmatpush.bf16.msra.mxu0 %v5440
        %5808 = vmatpush.bf16.msra.mxu0 %v5428
        %5809 = vmatpush.bf16.msra.mxu0 %v5416
        %5810 = vmatpush.bf16.msra.mxu0 %v5404
        %5811 = vmatpush.bf16.msra.mxu0 %v5392
        %5812 = vmatmul.bf16.gmra.mxu0 %v4019
        %v5813 = vpop.f32.mrf.mxu0
        %v5814 = vadd.f32 %v5800, %v5813
        %v5815 = vpop.f32.mrf.mxu0
        %v5816 = vadd.f32 %v5802, %v5815
        %5817 = vdwg.mxu0
        %5818 = vmatpush.bf16.msra.mxu0 %v5285
        %5819 = vmatpush.bf16.msra.mxu0 %v5273
        %5820 = vmatpush.bf16.msra.mxu0 %v5261
        %5821 = vmatpush.bf16.msra.mxu0 %v5249
        %5822 = vmatpush.bf16.msra.mxu0 %v5237
        %5823 = vmatpush.bf16.msra.mxu0 %v5225
        %5824 = vmatpush.bf16.msra.mxu0 %v5213
        %5825 = vmatpush.bf16.msra.mxu0 %v5201
        %5826 = vmatmul.bf16.gmra.mxu0 %v4017
        %v5827 = vpop.f32.mrf.mxu0
        %v5828 = vadd.f32 %v4313, %v5827
        %v5829 = vpop.f32.mrf.mxu0
        %v5830 = vadd.f32 %v4313, %v5829
        %5831 = vdwg.mxu0
        %5832 = vmatpush.bf16.msra.mxu0 %v5381
        %5833 = vmatpush.bf16.msra.mxu0 %v5369
        %5834 = vmatpush.bf16.msra.mxu0 %v5357
        %5835 = vmatpush.bf16.msra.mxu0 %v5345
        %5836 = vmatpush.bf16.msra.mxu0 %v5333
        %5837 = vmatpush.bf16.msra.mxu0 %v5321
        %5838 = vmatpush.bf16.msra.mxu0 %v5309
        %5839 = vmatpush.bf16.msra.mxu0 %v5297
        %5840 = vmatmul.bf16.gmra.mxu0 %v4018
        %v5841 = vpop.f32.mrf.mxu0
        %v5842 = vadd.f32 %v5828, %v5841
        %v5843 = vpop.f32.mrf.mxu0
        %v5844 = vadd.f32 %v5830, %v5843
        %5845 = vdwg.mxu0
        %5846 = vmatpush.bf16.msra.mxu0 %v5477
        %5847 = vmatpush.bf16.msra.mxu0 %v5465
        %5848 = vmatpush.bf16.msra.mxu0 %v5453
        %5849 = vmatpush.bf16.msra.mxu0 %v5441
        %5850 = vmatpush.bf16.msra.mxu0 %v5429
        %5851 = vmatpush.bf16.msra.mxu0 %v5417
        %5852 = vmatpush.bf16.msra.mxu0 %v5405
        %5853 = vmatpush.bf16.msra.mxu0 %v5393
        %5854 = vmatmul.bf16.gmra.mxu0 %v4019
        %v5855 = vpop.f32.mrf.mxu0
        %v5856 = vadd.f32 %v5842, %v5855
        %v5857 = vpop.f32.mrf.mxu0
        %v5858 = vadd.f32 %v5844, %v5857
        %5859 = vdwg.mxu0
        %5860 = vmatpush.bf16.msra.mxu0 %v5286
        %5861 = vmatpush.bf16.msra.mxu0 %v5274
        %5862 = vmatpush.bf16.msra.mxu0 %v5262
        %5863 = vmatpush.bf16.msra.mxu0 %v5250
        %5864 = vmatpush.bf16.msra.mxu0 %v5238
        %5865 = vmatpush.bf16.msra.mxu0 %v5226
        %5866 = vmatpush.bf16.msra.mxu0 %v5214
        %5867 = vmatpush.bf16.msra.mxu0 %v5202
        %5868 = vmatmul.bf16.gmra.mxu0 %v4017
        %v5869 = vpop.f32.mrf.mxu0
        %v5870 = vadd.f32 %v4314, %v5869
        %v5871 = vpop.f32.mrf.mxu0
        %v5872 = vadd.f32 %v4314, %v5871
        %5873 = vdwg.mxu0
        %5874 = vmatpush.bf16.msra.mxu0 %v5382
        %5875 = vmatpush.bf16.msra.mxu0 %v5370
        %5876 = vmatpush.bf16.msra.mxu0 %v5358
        %5877 = vmatpush.bf16.msra.mxu0 %v5346
        %5878 = vmatpush.bf16.msra.mxu0 %v5334
        %5879 = vmatpush.bf16.msra.mxu0 %v5322
        %5880 = vmatpush.bf16.msra.mxu0 %v5310
        %5881 = vmatpush.bf16.msra.mxu0 %v5298
        %5882 = vmatmul.bf16.gmra.mxu0 %v4018
        %v5883 = vpop.f32.mrf.mxu0
        %v5884 = vadd.f32 %v5870, %v5883
        %v5885 = vpop.f32.mrf.mxu0
        %v5886 = vadd.f32 %v5872, %v5885
        %5887 = vdwg.mxu0
        %5888 = vmatpush.bf16.msra.mxu0 %v5478
        %5889 = vmatpush.bf16.msra.mxu0 %v5466
        %5890 = vmatpush.bf16.msra.mxu0 %v5454
        %5891 = vmatpush.bf16.msra.mxu0 %v5442
        %5892 = vmatpush.bf16.msra.mxu0 %v5430
        %5893 = vmatpush.bf16.msra.mxu0 %v5418
        %5894 = vmatpush.bf16.msra.mxu0 %v5406
        %5895 = vmatpush.bf16.msra.mxu0 %v5394
        %5896 = vmatmul.bf16.gmra.mxu0 %v4019
        %v5897 = vpop.f32.mrf.mxu0
        %v5898 = vadd.f32 %v5884, %v5897
        %v5899 = vpop.f32.mrf.mxu0
        %v5900 = vadd.f32 %v5886, %v5899
        %5901 = vdwg.mxu0
        %5902 = vmatpush.bf16.msra.mxu0 %v5287
        %5903 = vmatpush.bf16.msra.mxu0 %v5275
        %5904 = vmatpush.bf16.msra.mxu0 %v5263
        %5905 = vmatpush.bf16.msra.mxu0 %v5251
        %5906 = vmatpush.bf16.msra.mxu0 %v5239
        %5907 = vmatpush.bf16.msra.mxu0 %v5227
        %5908 = vmatpush.bf16.msra.mxu0 %v5215
        %5909 = vmatpush.bf16.msra.mxu0 %v5203
        %5910 = vmatmul.bf16.gmra.mxu0 %v4017
        %v5911 = vpop.f32.mrf.mxu0
        %v5912 = vadd.f32 %v4315, %v5911
        %v5913 = vpop.f32.mrf.mxu0
        %v5914 = vadd.f32 %v4315, %v5913
        %5915 = vdwg.mxu0
        %5916 = vmatpush.bf16.msra.mxu0 %v5383
        %5917 = vmatpush.bf16.msra.mxu0 %v5371
        %5918 = vmatpush.bf16.msra.mxu0 %v5359
        %5919 = vmatpush.bf16.msra.mxu0 %v5347
        %5920 = vmatpush.bf16.msra.mxu0 %v5335
        %5921 = vmatpush.bf16.msra.mxu0 %v5323
        %5922 = vmatpush.bf16.msra.mxu0 %v5311
        %5923 = vmatpush.bf16.msra.mxu0 %v5299
        %5924 = vmatmul.bf16.gmra.mxu0 %v4018
        %v5925 = vpop.f32.mrf.mxu0
        %v5926 = vadd.f32 %v5912, %v5925
        %v5927 = vpop.f32.mrf.mxu0
        %v5928 = vadd.f32 %v5914, %v5927
        %5929 = vdwg.mxu0
        %5930 = vmatpush.bf16.msra.mxu0 %v5479
        %5931 = vmatpush.bf16.msra.mxu0 %v5467
        %5932 = vmatpush.bf16.msra.mxu0 %v5455
        %5933 = vmatpush.bf16.msra.mxu0 %v5443
        %5934 = vmatpush.bf16.msra.mxu0 %v5431
        %5935 = vmatpush.bf16.msra.mxu0 %v5419
        %5936 = vmatpush.bf16.msra.mxu0 %v5407
        %5937 = vmatpush.bf16.msra.mxu0 %v5395
        %5938 = vmatmul.bf16.gmra.mxu0 %v4019
        %v5939 = vpop.f32.mrf.mxu0
        %v5940 = vadd.f32 %v5926, %v5939
        %v5941 = vpop.f32.mrf.mxu0
        %v5942 = vadd.f32 %v5928, %v5941
        %5943 = vdwg.mxu0
        %5944 = vmatpush.bf16.msra.mxu0 %v5288
        %5945 = vmatpush.bf16.msra.mxu0 %v5276
        %5946 = vmatpush.bf16.msra.mxu0 %v5264
        %5947 = vmatpush.bf16.msra.mxu0 %v5252
        %5948 = vmatpush.bf16.msra.mxu0 %v5240
        %5949 = vmatpush.bf16.msra.mxu0 %v5228
        %5950 = vmatpush.bf16.msra.mxu0 %v5216
        %5951 = vmatpush.bf16.msra.mxu0 %v5204
        %5952 = vmatmul.bf16.gmra.mxu0 %v4017
        %v5953 = vpop.f32.mrf.mxu0
        %v5954 = vadd.f32 %v4316, %v5953
        %v5955 = vpop.f32.mrf.mxu0
        %v5956 = vadd.f32 %v4316, %v5955
        %5957 = vdwg.mxu0
        %5958 = vmatpush.bf16.msra.mxu0 %v5384
        %5959 = vmatpush.bf16.msra.mxu0 %v5372
        %5960 = vmatpush.bf16.msra.mxu0 %v5360
        %5961 = vmatpush.bf16.msra.mxu0 %v5348
        %5962 = vmatpush.bf16.msra.mxu0 %v5336
        %5963 = vmatpush.bf16.msra.mxu0 %v5324
        %5964 = vmatpush.bf16.msra.mxu0 %v5312
        %5965 = vmatpush.bf16.msra.mxu0 %v5300
        %5966 = vmatmul.bf16.gmra.mxu0 %v4018
        %v5967 = vpop.f32.mrf.mxu0
        %v5968 = vadd.f32 %v5954, %v5967
        %v5969 = vpop.f32.mrf.mxu0
        %v5970 = vadd.f32 %v5956, %v5969
        %5971 = vdwg.mxu0
        %5972 = vmatpush.bf16.msra.mxu0 %v5480
        %5973 = vmatpush.bf16.msra.mxu0 %v5468
        %5974 = vmatpush.bf16.msra.mxu0 %v5456
        %5975 = vmatpush.bf16.msra.mxu0 %v5444
        %5976 = vmatpush.bf16.msra.mxu0 %v5432
        %5977 = vmatpush.bf16.msra.mxu0 %v5420
        %5978 = vmatpush.bf16.msra.mxu0 %v5408
        %5979 = vmatpush.bf16.msra.mxu0 %v5396
        %5980 = vmatmul.bf16.gmra.mxu0 %v4019
        %v5981 = vpop.f32.mrf.mxu0
        %v5982 = vadd.f32 %v5968, %v5981
        %v5983 = vpop.f32.mrf.mxu0
        %v5984 = vadd.f32 %v5970, %v5983
        %5985 = vdwg.mxu0
        %5986 = vmatpush.bf16.msra.mxu0 %v5289
        %5987 = vmatpush.bf16.msra.mxu0 %v5277
        %5988 = vmatpush.bf16.msra.mxu0 %v5265
        %5989 = vmatpush.bf16.msra.mxu0 %v5253
        %5990 = vmatpush.bf16.msra.mxu0 %v5241
        %5991 = vmatpush.bf16.msra.mxu0 %v5229
        %5992 = vmatpush.bf16.msra.mxu0 %v5217
        %5993 = vmatpush.bf16.msra.mxu0 %v5205
        %5994 = vmatmul.bf16.gmra.mxu0 %v4017
        %v5995 = vpop.f32.mrf.mxu0
        %v5996 = vadd.f32 %v4317, %v5995
        %v5997 = vpop.f32.mrf.mxu0
        %v5998 = vadd.f32 %v4317, %v5997
        %5999 = vdwg.mxu0
        %6000 = vmatpush.bf16.msra.mxu0 %v5385
        %6001 = vmatpush.bf16.msra.mxu0 %v5373
        %6002 = vmatpush.bf16.msra.mxu0 %v5361
        %6003 = vmatpush.bf16.msra.mxu0 %v5349
        %6004 = vmatpush.bf16.msra.mxu0 %v5337
        %6005 = vmatpush.bf16.msra.mxu0 %v5325
        %6006 = vmatpush.bf16.msra.mxu0 %v5313
        %6007 = vmatpush.bf16.msra.mxu0 %v5301
        %6008 = vmatmul.bf16.gmra.mxu0 %v4018
        %v6009 = vpop.f32.mrf.mxu0
        %v6010 = vadd.f32 %v5996, %v6009
        %v6011 = vpop.f32.mrf.mxu0
        %v6012 = vadd.f32 %v5998, %v6011
        %6013 = vdwg.mxu0
        %6014 = vmatpush.bf16.msra.mxu0 %v5481
        %6015 = vmatpush.bf16.msra.mxu0 %v5469
        %6016 = vmatpush.bf16.msra.mxu0 %v5457
        %6017 = vmatpush.bf16.msra.mxu0 %v5445
        %6018 = vmatpush.bf16.msra.mxu0 %v5433
        %6019 = vmatpush.bf16.msra.mxu0 %v5421
        %6020 = vmatpush.bf16.msra.mxu0 %v5409
        %6021 = vmatpush.bf16.msra.mxu0 %v5397
        %6022 = vmatmul.bf16.gmra.mxu0 %v4019
        %v6023 = vpop.f32.mrf.mxu0
        %v6024 = vadd.f32 %v6010, %v6023
        %v6025 = vpop.f32.mrf.mxu0
        %v6026 = vadd.f32 %v6012, %v6025
        %6027 = vdwg.mxu0
        %6028 = vmatpush.bf16.msra.mxu0 %v5290
        %6029 = vmatpush.bf16.msra.mxu0 %v5278
        %6030 = vmatpush.bf16.msra.mxu0 %v5266
        %6031 = vmatpush.bf16.msra.mxu0 %v5254
        %6032 = vmatpush.bf16.msra.mxu0 %v5242
        %6033 = vmatpush.bf16.msra.mxu0 %v5230
        %6034 = vmatpush.bf16.msra.mxu0 %v5218
        %6035 = vmatpush.bf16.msra.mxu0 %v5206
        %6036 = vmatmul.bf16.gmra.mxu0 %v4017
        %v6037 = vpop.f32.mrf.mxu0
        %v6038 = vadd.f32 %v4318, %v6037
        %v6039 = vpop.f32.mrf.mxu0
        %v6040 = vadd.f32 %v4318, %v6039
        %6041 = vdwg.mxu0
        %6042 = vmatpush.bf16.msra.mxu0 %v5386
        %6043 = vmatpush.bf16.msra.mxu0 %v5374
        %6044 = vmatpush.bf16.msra.mxu0 %v5362
        %6045 = vmatpush.bf16.msra.mxu0 %v5350
        %6046 = vmatpush.bf16.msra.mxu0 %v5338
        %6047 = vmatpush.bf16.msra.mxu0 %v5326
        %6048 = vmatpush.bf16.msra.mxu0 %v5314
        %6049 = vmatpush.bf16.msra.mxu0 %v5302
        %6050 = vmatmul.bf16.gmra.mxu0 %v4018
        %v6051 = vpop.f32.mrf.mxu0
        %v6052 = vadd.f32 %v6038, %v6051
        %v6053 = vpop.f32.mrf.mxu0
        %v6054 = vadd.f32 %v6040, %v6053
        %6055 = vdwg.mxu0
        %6056 = vmatpush.bf16.msra.mxu0 %v5482
        %6057 = vmatpush.bf16.msra.mxu0 %v5470
        %6058 = vmatpush.bf16.msra.mxu0 %v5458
        %6059 = vmatpush.bf16.msra.mxu0 %v5446
        %6060 = vmatpush.bf16.msra.mxu0 %v5434
        %6061 = vmatpush.bf16.msra.mxu0 %v5422
        %6062 = vmatpush.bf16.msra.mxu0 %v5410
        %6063 = vmatpush.bf16.msra.mxu0 %v5398
        %6064 = vmatmul.bf16.gmra.mxu0 %v4019
        %v6065 = vpop.f32.mrf.mxu0
        %v6066 = vadd.f32 %v6052, %v6065
        %v6067 = vpop.f32.mrf.mxu0
        %v6068 = vadd.f32 %v6054, %v6067
        %6069 = vdwg.mxu0
        %6070 = vmatpush.bf16.msra.mxu0 %v5291
        %6071 = vmatpush.bf16.msra.mxu0 %v5279
        %6072 = vmatpush.bf16.msra.mxu0 %v5267
        %6073 = vmatpush.bf16.msra.mxu0 %v5255
        %6074 = vmatpush.bf16.msra.mxu0 %v5243
        %6075 = vmatpush.bf16.msra.mxu0 %v5231
        %6076 = vmatpush.bf16.msra.mxu0 %v5219
        %6077 = vmatpush.bf16.msra.mxu0 %v5207
        %6078 = vmatmul.bf16.gmra.mxu0 %v4017
        %v6079 = vpop.f32.mrf.mxu0
        %v6080 = vadd.f32 %v4319, %v6079
        %v6081 = vpop.f32.mrf.mxu0
        %v6082 = vadd.f32 %v4319, %v6081
        %6083 = vdwg.mxu0
        %6084 = vmatpush.bf16.msra.mxu0 %v5387
        %6085 = vmatpush.bf16.msra.mxu0 %v5375
        %6086 = vmatpush.bf16.msra.mxu0 %v5363
        %6087 = vmatpush.bf16.msra.mxu0 %v5351
        %6088 = vmatpush.bf16.msra.mxu0 %v5339
        %6089 = vmatpush.bf16.msra.mxu0 %v5327
        %6090 = vmatpush.bf16.msra.mxu0 %v5315
        %6091 = vmatpush.bf16.msra.mxu0 %v5303
        %6092 = vmatmul.bf16.gmra.mxu0 %v4018
        %v6093 = vpop.f32.mrf.mxu0
        %v6094 = vadd.f32 %v6080, %v6093
        %v6095 = vpop.f32.mrf.mxu0
        %v6096 = vadd.f32 %v6082, %v6095
        %6097 = vdwg.mxu0
        %6098 = vmatpush.bf16.msra.mxu0 %v5483
        %6099 = vmatpush.bf16.msra.mxu0 %v5471
        %6100 = vmatpush.bf16.msra.mxu0 %v5459
        %6101 = vmatpush.bf16.msra.mxu0 %v5447
        %6102 = vmatpush.bf16.msra.mxu0 %v5435
        %6103 = vmatpush.bf16.msra.mxu0 %v5423
        %6104 = vmatpush.bf16.msra.mxu0 %v5411
        %6105 = vmatpush.bf16.msra.mxu0 %v5399
        %6106 = vmatmul.bf16.gmra.mxu0 %v4019
        %v6107 = vpop.f32.mrf.mxu0
        %v6108 = vadd.f32 %v6094, %v6107
        %v6109 = vpop.f32.mrf.mxu0
        %v6110 = vadd.f32 %v6096, %v6109
        %6111 = vdwg.mxu0
        %6112 = vmatpush.bf16.msra.mxu0 %v5292
        %6113 = vmatpush.bf16.msra.mxu0 %v5280
        %6114 = vmatpush.bf16.msra.mxu0 %v5268
        %6115 = vmatpush.bf16.msra.mxu0 %v5256
        %6116 = vmatpush.bf16.msra.mxu0 %v5244
        %6117 = vmatpush.bf16.msra.mxu0 %v5232
        %6118 = vmatpush.bf16.msra.mxu0 %v5220
        %6119 = vmatpush.bf16.msra.mxu0 %v5208
        %6120 = vmatmul.bf16.gmra.mxu0 %v4017
        %v6121 = vpop.f32.mrf.mxu0
        %v6122 = vadd.f32 %v4320, %v6121
        %v6123 = vpop.f32.mrf.mxu0
        %v6124 = vadd.f32 %v4320, %v6123
        %6125 = vdwg.mxu0
        %6126 = vmatpush.bf16.msra.mxu0 %v5388
        %6127 = vmatpush.bf16.msra.mxu0 %v5376
        %6128 = vmatpush.bf16.msra.mxu0 %v5364
        %6129 = vmatpush.bf16.msra.mxu0 %v5352
        %6130 = vmatpush.bf16.msra.mxu0 %v5340
        %6131 = vmatpush.bf16.msra.mxu0 %v5328
        %6132 = vmatpush.bf16.msra.mxu0 %v5316
        %6133 = vmatpush.bf16.msra.mxu0 %v5304
        %6134 = vmatmul.bf16.gmra.mxu0 %v4018
        %v6135 = vpop.f32.mrf.mxu0
        %v6136 = vadd.f32 %v6122, %v6135
        %v6137 = vpop.f32.mrf.mxu0
        %v6138 = vadd.f32 %v6124, %v6137
        %6139 = vdwg.mxu0
        %6140 = vmatpush.bf16.msra.mxu0 %v5484
        %6141 = vmatpush.bf16.msra.mxu0 %v5472
        %6142 = vmatpush.bf16.msra.mxu0 %v5460
        %6143 = vmatpush.bf16.msra.mxu0 %v5448
        %6144 = vmatpush.bf16.msra.mxu0 %v5436
        %6145 = vmatpush.bf16.msra.mxu0 %v5424
        %6146 = vmatpush.bf16.msra.mxu0 %v5412
        %6147 = vmatpush.bf16.msra.mxu0 %v5400
        %6148 = vmatmul.bf16.gmra.mxu0 %v4019
        %v6149 = vpop.f32.mrf.mxu0
        %v6150 = vadd.f32 %v6136, %v6149
        %v6151 = vpop.f32.mrf.mxu0
        %v6152 = vadd.f32 %v6138, %v6151
        %6153 = vdwg.mxu0
        %6154 = vmatpush.bf16.msra.mxu0 %v5293
        %6155 = vmatpush.bf16.msra.mxu0 %v5281
        %6156 = vmatpush.bf16.msra.mxu0 %v5269
        %6157 = vmatpush.bf16.msra.mxu0 %v5257
        %6158 = vmatpush.bf16.msra.mxu0 %v5245
        %6159 = vmatpush.bf16.msra.mxu0 %v5233
        %6160 = vmatpush.bf16.msra.mxu0 %v5221
        %6161 = vmatpush.bf16.msra.mxu0 %v5209
        %6162 = vmatmul.bf16.gmra.mxu0 %v4017
        %v6163 = vpop.f32.mrf.mxu0
        %v6164 = vadd.f32 %v4321, %v6163
        %v6165 = vpop.f32.mrf.mxu0
        %v6166 = vadd.f32 %v4321, %v6165
        %6167 = vdwg.mxu0
        %6168 = vmatpush.bf16.msra.mxu0 %v5389
        %6169 = vmatpush.bf16.msra.mxu0 %v5377
        %6170 = vmatpush.bf16.msra.mxu0 %v5365
        %6171 = vmatpush.bf16.msra.mxu0 %v5353
        %6172 = vmatpush.bf16.msra.mxu0 %v5341
        %6173 = vmatpush.bf16.msra.mxu0 %v5329
        %6174 = vmatpush.bf16.msra.mxu0 %v5317
        %6175 = vmatpush.bf16.msra.mxu0 %v5305
        %6176 = vmatmul.bf16.gmra.mxu0 %v4018
        %v6177 = vpop.f32.mrf.mxu0
        %v6178 = vadd.f32 %v6164, %v6177
        %v6179 = vpop.f32.mrf.mxu0
        %v6180 = vadd.f32 %v6166, %v6179
        %6181 = vdwg.mxu0
        %6182 = vmatpush.bf16.msra.mxu0 %v5485
        %6183 = vmatpush.bf16.msra.mxu0 %v5473
        %6184 = vmatpush.bf16.msra.mxu0 %v5461
        %6185 = vmatpush.bf16.msra.mxu0 %v5449
        %6186 = vmatpush.bf16.msra.mxu0 %v5437
        %6187 = vmatpush.bf16.msra.mxu0 %v5425
        %6188 = vmatpush.bf16.msra.mxu0 %v5413
        %6189 = vmatpush.bf16.msra.mxu0 %v5401
        %6190 = vmatmul.bf16.gmra.mxu0 %v4019
        %v6191 = vpop.f32.mrf.mxu0
        %v6192 = vadd.f32 %v6178, %v6191
        %v6193 = vpop.f32.mrf.mxu0
        %v6194 = vadd.f32 %v6180, %v6193
        %6195 = vdwg.mxu0
        %6196 = vmatpush.bf16.msra.mxu0 %v5294
        %6197 = vmatpush.bf16.msra.mxu0 %v5282
        %6198 = vmatpush.bf16.msra.mxu0 %v5270
        %6199 = vmatpush.bf16.msra.mxu0 %v5258
        %6200 = vmatpush.bf16.msra.mxu0 %v5246
        %6201 = vmatpush.bf16.msra.mxu0 %v5234
        %6202 = vmatpush.bf16.msra.mxu0 %v5222
        %6203 = vmatpush.bf16.msra.mxu0 %v5210
        %6204 = vmatmul.bf16.gmra.mxu0 %v4017
        %v6205 = vpop.f32.mrf.mxu0
        %v6206 = vadd.f32 %v4322, %v6205
        %v6207 = vpop.f32.mrf.mxu0
        %v6208 = vadd.f32 %v4322, %v6207
        %6209 = vdwg.mxu0
        %6210 = vmatpush.bf16.msra.mxu0 %v5390
        %6211 = vmatpush.bf16.msra.mxu0 %v5378
        %6212 = vmatpush.bf16.msra.mxu0 %v5366
        %6213 = vmatpush.bf16.msra.mxu0 %v5354
        %6214 = vmatpush.bf16.msra.mxu0 %v5342
        %6215 = vmatpush.bf16.msra.mxu0 %v5330
        %6216 = vmatpush.bf16.msra.mxu0 %v5318
        %6217 = vmatpush.bf16.msra.mxu0 %v5306
        %6218 = vmatmul.bf16.gmra.mxu0 %v4018
        %v6219 = vpop.f32.mrf.mxu0
        %v6220 = vadd.f32 %v6206, %v6219
        %v6221 = vpop.f32.mrf.mxu0
        %v6222 = vadd.f32 %v6208, %v6221
        %6223 = vdwg.mxu0
        %6224 = vmatpush.bf16.msra.mxu0 %v5486
        %6225 = vmatpush.bf16.msra.mxu0 %v5474
        %6226 = vmatpush.bf16.msra.mxu0 %v5462
        %6227 = vmatpush.bf16.msra.mxu0 %v5450
        %6228 = vmatpush.bf16.msra.mxu0 %v5438
        %6229 = vmatpush.bf16.msra.mxu0 %v5426
        %6230 = vmatpush.bf16.msra.mxu0 %v5414
        %6231 = vmatpush.bf16.msra.mxu0 %v5402
        %6232 = vmatmul.bf16.gmra.mxu0 %v4019
        %v6233 = vpop.f32.mrf.mxu0
        %v6234 = vadd.f32 %v6220, %v6233
        %v6235 = vpop.f32.mrf.mxu0
        %v6236 = vadd.f32 %v6222, %v6235
        %6237 = vdwg.mxu0
        %6238 = vmatpush.bf16.msra.mxu0 %v5295
        %6239 = vmatpush.bf16.msra.mxu0 %v5283
        %6240 = vmatpush.bf16.msra.mxu0 %v5271
        %6241 = vmatpush.bf16.msra.mxu0 %v5259
        %6242 = vmatpush.bf16.msra.mxu0 %v5247
        %6243 = vmatpush.bf16.msra.mxu0 %v5235
        %6244 = vmatpush.bf16.msra.mxu0 %v5223
        %6245 = vmatpush.bf16.msra.mxu0 %v5211
        %6246 = vmatmul.bf16.gmra.mxu0 %v4017
        %v6247 = vpop.f32.mrf.mxu0
        %v6248 = vadd.f32 %v4323, %v6247
        %v6249 = vpop.f32.mrf.mxu0
        %v6250 = vadd.f32 %v4323, %v6249
        %6251 = vdwg.mxu0
        %6252 = vmatpush.bf16.msra.mxu0 %v5391
        %6253 = vmatpush.bf16.msra.mxu0 %v5379
        %6254 = vmatpush.bf16.msra.mxu0 %v5367
        %6255 = vmatpush.bf16.msra.mxu0 %v5355
        %6256 = vmatpush.bf16.msra.mxu0 %v5343
        %6257 = vmatpush.bf16.msra.mxu0 %v5331
        %6258 = vmatpush.bf16.msra.mxu0 %v5319
        %6259 = vmatpush.bf16.msra.mxu0 %v5307
        %6260 = vmatmul.bf16.gmra.mxu0 %v4018
        %v6261 = vpop.f32.mrf.mxu0
        %v6262 = vadd.f32 %v6248, %v6261
        %v6263 = vpop.f32.mrf.mxu0
        %v6264 = vadd.f32 %v6250, %v6263
        %6265 = vdwg.mxu0
        %6266 = vmatpush.bf16.msra.mxu0 %v5487
        %6267 = vmatpush.bf16.msra.mxu0 %v5475
        %6268 = vmatpush.bf16.msra.mxu0 %v5463
        %6269 = vmatpush.bf16.msra.mxu0 %v5451
        %6270 = vmatpush.bf16.msra.mxu0 %v5439
        %6271 = vmatpush.bf16.msra.mxu0 %v5427
        %6272 = vmatpush.bf16.msra.mxu0 %v5415
        %6273 = vmatpush.bf16.msra.mxu0 %v5403
        %6274 = vmatmul.bf16.gmra.mxu0 %v4019
        %v6275 = vpop.f32.mrf.mxu0
        %v6276 = vadd.f32 %v6262, %v6275
        %v6277 = vpop.f32.mrf.mxu0
        %v6278 = vadd.f32 %v6264, %v6277
        %6279 = vdwg.mxu0
        %v6280 = vmax.f32 %v5814, 0.0
        %v6281 = vmax.f32 %v5856, 0.0
        %v6282 = vmax.f32 %v5898, 0.0
        %v6283 = vmax.f32 %v5940, 0.0
        %v6284 = vmax.f32 %v5982, 0.0
        %v6285 = vmax.f32 %v6024, 0.0
        %v6286 = vmax.f32 %v6066, 0.0
        %v6287 = vmax.f32 %v6108, 0.0
        %v6288 = vmax.f32 %v6150, 0.0
        %v6289 = vmax.f32 %v6192, 0.0
        %v6290 = vmax.f32 %v6234, 0.0
        %v6291 = vmax.f32 %v6276, 0.0
        %v6292 = vmax.f32 %v5816, 0.0
        %v6293 = vmax.f32 %v5858, 0.0
        %v6294 = vmax.f32 %v5900, 0.0
        %v6295 = vmax.f32 %v5942, 0.0
        %v6296 = vmax.f32 %v5984, 0.0
        %v6297 = vmax.f32 %v6026, 0.0
        %v6298 = vmax.f32 %v6068, 0.0
        %v6299 = vmax.f32 %v6110, 0.0
        %v6300 = vmax.f32 %v6152, 0.0
        %v6301 = vmax.f32 %v6194, 0.0
        %v6302 = vmax.f32 %v6236, 0.0
        %v6303 = vmax.f32 %v6278, 0.0
        %v6304 = vpack.c.bf16 %v6292, %v6280
        %v6305 = vpack.c.bf16 %v6293, %v6281
        %v6306 = vpack.c.bf16 %v6294, %v6282
        %v6307 = vpack.c.bf16 %v6295, %v6283
        %v6308 = vpack.c.bf16 %v6296, %v6284
        %v6309 = vpack.c.bf16 %v6297, %v6285
        %v6310 = vpack.c.bf16 %v6298, %v6286
        %v6311 = vpack.c.bf16 %v6299, %v6287
        %v6312 = vpack.c.bf16 %v6300, %v6288
        %v6313 = vpack.c.bf16 %v6301, %v6289
        %v6314 = vpack.c.bf16 %v6302, %v6290
        %v6315 = vpack.c.bf16 %v6303, %v6291
        %v6316 = vld [vmem:[%s649] sm:$0xff]
        %v6317 = vld [vmem:[%s649 + $0x8] sm:$0xf]
        %v6318 = vld [vmem:[%s649 + $0xc] sm:$0xff]
        %v6319 = vld [vmem:[%s649 + $0x14] sm:$0xf]
        %v6320 = vld [vmem:[%s649 + $0x18] sm:$0xff]
        %v6321 = vld [vmem:[%s649 + $0x20] sm:$0xf]
        %v6322 = vld [vmem:[%s649 + $0x24] sm:$0xff]
        %v6323 = vld [vmem:[%s649 + $0x2c] sm:$0xf]
        %v6324 = vld [vmem:[%s649 + $0x30] sm:$0xff]
        %v6325 = vld [vmem:[%s649 + $0x38] sm:$0xf]
        %v6326 = vld [vmem:[%s649 + $0x3c] sm:$0xff]
        %v6327 = vld [vmem:[%s649 + $0x44] sm:$0xf]
        %v6328 = vld [vmem:[%s649 + $0x48] sm:$0xff]
        %v6329 = vld [vmem:[%s649 + $0x50] sm:$0xf]
        %v6330 = vld [vmem:[%s649 + $0x54] sm:$0xff]
        %v6331 = vld [vmem:[%s649 + $0x5c] sm:$0xf]
        %v6332 = vld [vmem:[%s649 + $0x60] sm:$0xff]
        %v6333 = vld [vmem:[%s649 + $0x68] sm:$0xf]
        %v6334 = vld [vmem:[%s649 + $0x6c] sm:$0xff]
        %v6335 = vld [vmem:[%s649 + $0x74] sm:$0xf]
        %v6336 = vld [vmem:[%s649 + $0x78] sm:$0xff]
        %v6337 = vld [vmem:[%s649 + $0x80] sm:$0xf]
        %v6338 = vld [vmem:[%s649 + $0x84] sm:$0xff]
        %v6339 = vld [vmem:[%s649 + $0x8c] sm:$0xf]
        %v6340 = vld [vmem:[%s649 + $0x90] sm:$0xff]
        %v6341 = vld [vmem:[%s649 + $0x98] sm:$0xf]
        %v6342 = vld [vmem:[%s649 + $0x9c] sm:$0xff]
        %v6343 = vld [vmem:[%s649 + $0xa4] sm:$0xf]
        %v6344 = vld [vmem:[%s649 + $0xa8] sm:$0xff]
        %v6345 = vld [vmem:[%s649 + $0xb0] sm:$0xf]
        %v6346 = vld [vmem:[%s649 + $0xb4] sm:$0xff]
        %v6347 = vld [vmem:[%s649 + $0xbc] sm:$0xf]
        %v6348 = vld [vmem:[%s649 + $0xc0] sm:$0xff]
        %v6349 = vld [vmem:[%s649 + $0xc8] sm:$0xf]
        %v6350 = vld [vmem:[%s649 + $0xcc] sm:$0xff]
        %v6351 = vld [vmem:[%s649 + $0xd4] sm:$0xf]
        %v6352 = vld [vmem:[%s649 + $0xd8] sm:$0xff]
        %v6353 = vld [vmem:[%s649 + $0xe0] sm:$0xf]
        %v6354 = vld [vmem:[%s649 + $0xe4] sm:$0xff]
        %v6355 = vld [vmem:[%s649 + $0xec] sm:$0xf]
        %v6356 = vld [vmem:[%s649 + $0xf0] sm:$0xff]
        %v6357 = vld [vmem:[%s649 + $0xf8] sm:$0xf]
        %v6358 = vld [vmem:[%s649 + $0xfc] sm:$0xff]
        %v6359 = vld [vmem:[%s649 + $0x104] sm:$0xf]
        %v6360 = vld [vmem:[%s649 + $0x108] sm:$0xff]
        %v6361 = vld [vmem:[%s649 + $0x110] sm:$0xf]
        %v6362 = vld [vmem:[%s649 + $0x114] sm:$0xff]
        %v6363 = vld [vmem:[%s649 + $0x11c] sm:$0xf]
        %v6364 = vld [vmem:[%s649 + $0x120] sm:$0xff]
        %v6365 = vld [vmem:[%s649 + $0x128] sm:$0xf]
        %v6366 = vld [vmem:[%s649 + $0x12c] sm:$0xff]
        %v6367 = vld [vmem:[%s649 + $0x134] sm:$0xf]
        %v6368 = vld [vmem:[%s649 + $0x138] sm:$0xff]
        %v6369 = vld [vmem:[%s649 + $0x140] sm:$0xf]
        %v6370 = vld [vmem:[%s649 + $0x144] sm:$0xff]
        %v6371 = vld [vmem:[%s649 + $0x14c] sm:$0xf]
        %v6372 = vld [vmem:[%s649 + $0x150] sm:$0xff]
        %v6373 = vld [vmem:[%s649 + $0x158] sm:$0xf]
        %v6374 = vld [vmem:[%s649 + $0x15c] sm:$0xff]
        %v6375 = vld [vmem:[%s649 + $0x164] sm:$0xf]
        %v6376 = vld [vmem:[%s649 + $0x168] sm:$0xff]
        %v6377 = vld [vmem:[%s649 + $0x170] sm:$0xf]
        %v6378 = vld [vmem:[%s649 + $0x174] sm:$0xff]
        %v6379 = vld [vmem:[%s649 + $0x17c] sm:$0xf]
        %v6380 = vld [vmem:[%s649 + $0x180] sm:$0xff]
        %v6381 = vld [vmem:[%s649 + $0x188] sm:$0xf]
        %v6382 = vld [vmem:[%s649 + $0x18c] sm:$0xff]
        %v6383 = vld [vmem:[%s649 + $0x194] sm:$0xf]
        %v6384 = vld [vmem:[%s649 + $0x198] sm:$0xff]
        %v6385 = vld [vmem:[%s649 + $0x1a0] sm:$0xf]
        %v6386 = vld [vmem:[%s649 + $0x1a4] sm:$0xff]
        %v6387 = vld [vmem:[%s649 + $0x1ac] sm:$0xf]
        %v6388 = vld [vmem:[%s649 + $0x1b0] sm:$0xff]
        %v6389 = vld [vmem:[%s649 + $0x1b8] sm:$0xf]
        %v6390 = vld [vmem:[%s649 + $0x1bc] sm:$0xff]
        %v6391 = vld [vmem:[%s649 + $0x1c4] sm:$0xf]
        %v6392 = vld [vmem:[%s649 + $0x1c8] sm:$0xff]
        %v6393 = vld [vmem:[%s649 + $0x1d0] sm:$0xf]
        %v6394 = vld [vmem:[%s649 + $0x1d4] sm:$0xff]
        %v6395 = vld [vmem:[%s649 + $0x1dc] sm:$0xf]
        %v6396 = vld [vmem:[%s649 + $0x1e0] sm:$0xff]
        %v6397 = vld [vmem:[%s649 + $0x1e8] sm:$0xf]
        %v6398 = vld [vmem:[%s649 + $0x1ec] sm:$0xff]
        %v6399 = vld [vmem:[%s649 + $0x1f4] sm:$0xf]
        %v6400 = vld [vmem:[%s649 + $0x1f8] sm:$0xff]
        %v6401 = vld [vmem:[%s649 + $0x200] sm:$0xf]
        %v6402 = vld [vmem:[%s649 + $0x204] sm:$0xff]
        %v6403 = vld [vmem:[%s649 + $0x20c] sm:$0xf]
        %v6404 = vld [vmem:[%s649 + $0x210] sm:$0xff]
        %v6405 = vld [vmem:[%s649 + $0x218] sm:$0xf]
        %v6406 = vld [vmem:[%s649 + $0x21c] sm:$0xff]
        %v6407 = vld [vmem:[%s649 + $0x224] sm:$0xf]
        %v6408 = vld [vmem:[%s649 + $0x228] sm:$0xff]
        %v6409 = vld [vmem:[%s649 + $0x230] sm:$0xf]
        %v6410 = vld [vmem:[%s649 + $0x234] sm:$0xff]
        %v6411 = vld [vmem:[%s649 + $0x23c] sm:$0xf]
        %v6412 = vld [vmem:[%s649 + $0x240] sm:$0xff]
        %v6413 = vld [vmem:[%s649 + $0x248] sm:$0xf]
        %v6414 = vld [vmem:[%s649 + $0x24c] sm:$0xff]
        %v6415 = vld [vmem:[%s649 + $0x254] sm:$0xf]
        %v6416 = vld [vmem:[%s649 + $0x258] sm:$0xff]
        %v6417 = vld [vmem:[%s649 + $0x260] sm:$0xf]
        %v6418 = vld [vmem:[%s649 + $0x264] sm:$0xff]
        %v6419 = vld [vmem:[%s649 + $0x26c] sm:$0xf]
        %v6420 = vld [vmem:[%s649 + $0x270] sm:$0xff]
        %v6421 = vld [vmem:[%s649 + $0x278] sm:$0xf]
        %v6422 = vld [vmem:[%s649 + $0x27c] sm:$0xff]
        %v6423 = vld [vmem:[%s649 + $0x284] sm:$0xf]
        %v6424 = vld [vmem:[%s649 + $0x288] sm:$0xff]
        %v6425 = vld [vmem:[%s649 + $0x290] sm:$0xf]
        %v6426 = vld [vmem:[%s649 + $0x294] sm:$0xff]
        %v6427 = vld [vmem:[%s649 + $0x29c] sm:$0xf]
        %v6428 = vld [vmem:[%s649 + $0x2a0] sm:$0xff]
        %v6429 = vld [vmem:[%s649 + $0x2a8] sm:$0xf]
        %v6430 = vld [vmem:[%s649 + $0x2ac] sm:$0xff]
        %v6431 = vld [vmem:[%s649 + $0x2b4] sm:$0xf]
        %v6432 = vld [vmem:[%s649 + $0x2b8] sm:$0xff]
        %v6433 = vld [vmem:[%s649 + $0x2c0] sm:$0xf]
        %v6434 = vld [vmem:[%s649 + $0x2c4] sm:$0xff]
        %v6435 = vld [vmem:[%s649 + $0x2cc] sm:$0xf]
        %v6436 = vld [vmem:[%s649 + $0x2d0] sm:$0xff]
        %v6437 = vld [vmem:[%s649 + $0x2d8] sm:$0xf]
        %v6438 = vld [vmem:[%s649 + $0x2dc] sm:$0xff]
        %v6439 = vld [vmem:[%s649 + $0x2e4] sm:$0xf]
        %v6440 = vld [vmem:[%s649 + $0x2e8] sm:$0xff]
        %v6441 = vld [vmem:[%s649 + $0x2f0] sm:$0xf]
        %v6442 = vld [vmem:[%s649 + $0x2f4] sm:$0xff]
        %v6443 = vld [vmem:[%s649 + $0x2fc] sm:$0xf]
        %v6444 = vld [vmem:[%s649 + $0x300] sm:$0xff]
        %v6445 = vld [vmem:[%s649 + $0x308] sm:$0xf]
        %v6446 = vld [vmem:[%s649 + $0x30c] sm:$0xff]
        %v6447 = vld [vmem:[%s649 + $0x314] sm:$0xf]
        %v6448 = vld [vmem:[%s649 + $0x318] sm:$0xff]
        %v6449 = vld [vmem:[%s649 + $0x320] sm:$0xf]
        %v6450 = vld [vmem:[%s649 + $0x324] sm:$0xff]
        %v6451 = vld [vmem:[%s649 + $0x32c] sm:$0xf]
        %v6452 = vld [vmem:[%s649 + $0x330] sm:$0xff]
        %v6453 = vld [vmem:[%s649 + $0x338] sm:$0xf]
        %v6454 = vld [vmem:[%s649 + $0x33c] sm:$0xff]
        %v6455 = vld [vmem:[%s649 + $0x344] sm:$0xf]
        %v6456 = vld [vmem:[%s649 + $0x348] sm:$0xff]
        %v6457 = vld [vmem:[%s649 + $0x350] sm:$0xf]
        %v6458 = vld [vmem:[%s649 + $0x354] sm:$0xff]
        %v6459 = vld [vmem:[%s649 + $0x35c] sm:$0xf]
        %v6460 = vld [vmem:[%s649 + $0x360] sm:$0xff]
        %v6461 = vld [vmem:[%s649 + $0x368] sm:$0xf]
        %v6462 = vld [vmem:[%s649 + $0x36c] sm:$0xff]
        %v6463 = vld [vmem:[%s649 + $0x374] sm:$0xf]
        %v6464 = vld [vmem:[%s649 + $0x378] sm:$0xff]
        %v6465 = vld [vmem:[%s649 + $0x380] sm:$0xf]
        %v6466 = vld [vmem:[%s649 + $0x384] sm:$0xff]
        %v6467 = vld [vmem:[%s649 + $0x38c] sm:$0xf]
        %v6468 = vld [vmem:[%s649 + $0x390] sm:$0xff]
        %v6469 = vld [vmem:[%s649 + $0x398] sm:$0xf]
        %v6470 = vld [vmem:[%s649 + $0x39c] sm:$0xff]
        %v6471 = vld [vmem:[%s649 + $0x3a4] sm:$0xf]
        %v6472 = vld [vmem:[%s649 + $0x3a8] sm:$0xff]
        %v6473 = vld [vmem:[%s649 + $0x3b0] sm:$0xf]
        %v6474 = vld [vmem:[%s649 + $0x3b4] sm:$0xff]
        %v6475 = vld [vmem:[%s649 + $0x3bc] sm:$0xf]
        %v6476 = vld [vmem:[%s649 + $0x3c0] sm:$0xff]
        %v6477 = vld [vmem:[%s649 + $0x3c8] sm:$0xf]
        %v6478 = vld [vmem:[%s649 + $0x3cc] sm:$0xff]
        %v6479 = vld [vmem:[%s649 + $0x3d4] sm:$0xf]
        %v6480 = vld [vmem:[%s649 + $0x3d8] sm:$0xff]
        %v6481 = vld [vmem:[%s649 + $0x3e0] sm:$0xf]
        %v6482 = vld [vmem:[%s649 + $0x3e4] sm:$0xff]
        %v6483 = vld [vmem:[%s649 + $0x3ec] sm:$0xf]
        %v6484 = vld [vmem:[%s649 + $0x3f0] sm:$0xff]
        %v6485 = vld [vmem:[%s649 + $0x3f8] sm:$0xf]
        %v6486 = vld [vmem:[%s649 + $0x3fc] sm:$0xff]
        %v6487 = vld [vmem:[%s649 + $0x404] sm:$0xf]
        %v6488 = vld [vmem:[%s649 + $0x408] sm:$0xff]
        %v6489 = vld [vmem:[%s649 + $0x410] sm:$0xf]
        %v6490 = vld [vmem:[%s649 + $0x414] sm:$0xff]
        %v6491 = vld [vmem:[%s649 + $0x41c] sm:$0xf]
        %v6492 = vld [vmem:[%s649 + $0x420] sm:$0xff]
        %v6493 = vld [vmem:[%s649 + $0x428] sm:$0xf]
        %v6494 = vld [vmem:[%s649 + $0x42c] sm:$0xff]
        %v6495 = vld [vmem:[%s649 + $0x434] sm:$0xf]
        %v6496 = vld [vmem:[%s649 + $0x438] sm:$0xff]
        %v6497 = vld [vmem:[%s649 + $0x440] sm:$0xf]
        %v6498 = vld [vmem:[%s649 + $0x444] sm:$0xff]
        %v6499 = vld [vmem:[%s649 + $0x44c] sm:$0xf]
        %v6500 = vld [vmem:[%s649 + $0x450] sm:$0xff]
        %v6501 = vld [vmem:[%s649 + $0x458] sm:$0xf]
        %v6502 = vld [vmem:[%s649 + $0x45c] sm:$0xff]
        %v6503 = vld [vmem:[%s649 + $0x464] sm:$0xf]
        %v6504 = vld [vmem:[%s649 + $0x468] sm:$0xff]
        %v6505 = vld [vmem:[%s649 + $0x470] sm:$0xf]
        %v6506 = vld [vmem:[%s649 + $0x474] sm:$0xff]
        %v6507 = vld [vmem:[%s649 + $0x47c] sm:$0xf]
        %v6508 = vld [vmem:[%s649 + $0x480] sm:$0xff]
        %v6509 = vld [vmem:[%s649 + $0x488] sm:$0xf]
        %v6510 = vld [vmem:[%s649 + $0x48c] sm:$0xff]
        %v6511 = vld [vmem:[%s649 + $0x494] sm:$0xf]
        %v6512 = vld [vmem:[%s649 + $0x498] sm:$0xff]
        %v6513 = vld [vmem:[%s649 + $0x4a0] sm:$0xf]
        %v6514 = vld [vmem:[%s649 + $0x4a4] sm:$0xff]
        %v6515 = vld [vmem:[%s649 + $0x4ac] sm:$0xf]
        %v6516 = vld [vmem:[%s649 + $0x4b0] sm:$0xff]
        %v6517 = vld [vmem:[%s649 + $0x4b8] sm:$0xf]
        %v6518 = vld [vmem:[%s649 + $0x4bc] sm:$0xff]
        %v6519 = vld [vmem:[%s649 + $0x4c4] sm:$0xf]
        %v6520 = vld [vmem:[%s649 + $0x4c8] sm:$0xff]
        %v6521 = vld [vmem:[%s649 + $0x4d0] sm:$0xf]
        %v6522 = vld [vmem:[%s649 + $0x4d4] sm:$0xff]
        %v6523 = vld [vmem:[%s649 + $0x4dc] sm:$0xf]
        %v6524 = vld [vmem:[%s649 + $0x4e0] sm:$0xff]
        %v6525 = vld [vmem:[%s649 + $0x4e8] sm:$0xf]
        %v6526 = vld [vmem:[%s649 + $0x4ec] sm:$0xff]
        %v6527 = vld [vmem:[%s649 + $0x4f4] sm:$0xf]
        %v6528 = vld [vmem:[%s649 + $0x4f8] sm:$0xff]
        %v6529 = vld [vmem:[%s649 + $0x500] sm:$0xf]
        %v6530 = vld [vmem:[%s649 + $0x504] sm:$0xff]
        %v6531 = vld [vmem:[%s649 + $0x50c] sm:$0xf]
        %v6532 = vld [vmem:[%s649 + $0x510] sm:$0xff]
        %v6533 = vld [vmem:[%s649 + $0x518] sm:$0xf]
        %v6534 = vld [vmem:[%s649 + $0x51c] sm:$0xff]
        %v6535 = vld [vmem:[%s649 + $0x524] sm:$0xf]
        %v6536 = vld [vmem:[%s649 + $0x528] sm:$0xff]
        %v6537 = vld [vmem:[%s649 + $0x530] sm:$0xf]
        %v6538 = vld [vmem:[%s649 + $0x534] sm:$0xff]
        %v6539 = vld [vmem:[%s649 + $0x53c] sm:$0xf]
        %v6540 = vld [vmem:[%s649 + $0x540] sm:$0xff]
        %v6541 = vld [vmem:[%s649 + $0x548] sm:$0xf]
        %v6542 = vld [vmem:[%s649 + $0x54c] sm:$0xff]
        %v6543 = vld [vmem:[%s649 + $0x554] sm:$0xf]
        %v6544 = vld [vmem:[%s649 + $0x558] sm:$0xff]
        %v6545 = vld [vmem:[%s649 + $0x560] sm:$0xf]
        %v6546 = vld [vmem:[%s649 + $0x564] sm:$0xff]
        %v6547 = vld [vmem:[%s649 + $0x56c] sm:$0xf]
        %v6548 = vld [vmem:[%s649 + $0x570] sm:$0xff]
        %v6549 = vld [vmem:[%s649 + $0x578] sm:$0xf]
        %v6550 = vld [vmem:[%s649 + $0x57c] sm:$0xff]
        %v6551 = vld [vmem:[%s649 + $0x584] sm:$0xf]
        %v6552 = vld [vmem:[%s649 + $0x588] sm:$0xff]
        %v6553 = vld [vmem:[%s649 + $0x590] sm:$0xf]
        %v6554 = vld [vmem:[%s649 + $0x594] sm:$0xff]
        %v6555 = vld [vmem:[%s649 + $0x59c] sm:$0xf]
        %v6556 = vld [vmem:[%s649 + $0x5a0] sm:$0xff]
        %v6557 = vld [vmem:[%s649 + $0x5a8] sm:$0xf]
        %v6558 = vld [vmem:[%s649 + $0x5ac] sm:$0xff]
        %v6559 = vld [vmem:[%s649 + $0x5b4] sm:$0xf]
        %v6560 = vld [vmem:[%s649 + $0x5b8] sm:$0xff]
        %v6561 = vld [vmem:[%s649 + $0x5c0] sm:$0xf]
        %v6562 = vld [vmem:[%s649 + $0x5c4] sm:$0xff]
        %v6563 = vld [vmem:[%s649 + $0x5cc] sm:$0xf]
        %v6564 = vld [vmem:[%s649 + $0x5d0] sm:$0xff]
        %v6565 = vld [vmem:[%s649 + $0x5d8] sm:$0xf]
        %v6566 = vld [vmem:[%s649 + $0x5dc] sm:$0xff]
        %v6567 = vld [vmem:[%s649 + $0x5e4] sm:$0xf]
        %v6568 = vld [vmem:[%s649 + $0x5e8] sm:$0xff]
        %v6569 = vld [vmem:[%s649 + $0x5f0] sm:$0xf]
        %v6570 = vld [vmem:[%s649 + $0x5f4] sm:$0xff]
        %v6571 = vld [vmem:[%s649 + $0x5fc] sm:$0xf]
        %v6572 = vld [vmem:[%s649 + $0x600] sm:$0xff]
        %v6573 = vld [vmem:[%s649 + $0x608] sm:$0xf]
        %v6574 = vld [vmem:[%s649 + $0x60c] sm:$0xff]
        %v6575 = vld [vmem:[%s649 + $0x614] sm:$0xf]
        %v6576 = vld [vmem:[%s649 + $0x618] sm:$0xff]
        %v6577 = vld [vmem:[%s649 + $0x620] sm:$0xf]
        %v6578 = vld [vmem:[%s649 + $0x624] sm:$0xff]
        %v6579 = vld [vmem:[%s649 + $0x62c] sm:$0xf]
        %v6580 = vld [vmem:[%s649 + $0x630] sm:$0xff]
        %v6581 = vld [vmem:[%s649 + $0x638] sm:$0xf]
        %v6582 = vld [vmem:[%s649 + $0x63c] sm:$0xff]
        %v6583 = vld [vmem:[%s649 + $0x644] sm:$0xf]
        %v6584 = vld [vmem:[%s649 + $0x648] sm:$0xff]
        %v6585 = vld [vmem:[%s649 + $0x650] sm:$0xf]
        %v6586 = vld [vmem:[%s649 + $0x654] sm:$0xff]
        %v6587 = vld [vmem:[%s649 + $0x65c] sm:$0xf]
        %v6588 = vld [vmem:[%s649 + $0x660] sm:$0xff]
        %v6589 = vld [vmem:[%s649 + $0x668] sm:$0xf]
        %v6590 = vld [vmem:[%s649 + $0x66c] sm:$0xff]
        %v6591 = vld [vmem:[%s649 + $0x674] sm:$0xf]
        %v6592 = vld [vmem:[%s649 + $0x678] sm:$0xff]
        %v6593 = vld [vmem:[%s649 + $0x680] sm:$0xf]
        %v6594 = vld [vmem:[%s649 + $0x684] sm:$0xff]
        %v6595 = vld [vmem:[%s649 + $0x68c] sm:$0xf]
        %v6596 = vld [vmem:[%s649 + $0x690] sm:$0xff]
        %v6597 = vld [vmem:[%s649 + $0x698] sm:$0xf]
        %v6598 = vld [vmem:[%s649 + $0x69c] sm:$0xff]
        %v6599 = vld [vmem:[%s649 + $0x6a4] sm:$0xf]
        %v6600 = vld [vmem:[%s649 + $0x6a8] sm:$0xff]
        %v6601 = vld [vmem:[%s649 + $0x6b0] sm:$0xf]
        %v6602 = vld [vmem:[%s649 + $0x6b4] sm:$0xff]
        %v6603 = vld [vmem:[%s649 + $0x6bc] sm:$0xf]
        %v6604 = vld [vmem:[%s649 + $0x6c0] sm:$0xff]
        %v6605 = vld [vmem:[%s649 + $0x6c8] sm:$0xf]
        %v6606 = vld [vmem:[%s649 + $0x6cc] sm:$0xff]
        %v6607 = vld [vmem:[%s649 + $0x6d4] sm:$0xf]
        %v6608 = vld [vmem:[%s649 + $0x6d8] sm:$0xff]
        %v6609 = vld [vmem:[%s649 + $0x6e0] sm:$0xf]
        %v6610 = vld [vmem:[%s649 + $0x6e4] sm:$0xff]
        %v6611 = vld [vmem:[%s649 + $0x6ec] sm:$0xf]
        %v6612 = vld [vmem:[%s649 + $0x6f0] sm:$0xff]
        %v6613 = vld [vmem:[%s649 + $0x6f8] sm:$0xf]
        %v6614 = vld [vmem:[%s649 + $0x6fc] sm:$0xff]
        %v6615 = vld [vmem:[%s649 + $0x704] sm:$0xf]
        %v6616 = vld [vmem:[%s649 + $0x708] sm:$0xff]
        %v6617 = vld [vmem:[%s649 + $0x710] sm:$0xf]
        %v6618 = vld [vmem:[%s649 + $0x714] sm:$0xff]
        %v6619 = vld [vmem:[%s649 + $0x71c] sm:$0xf]
        %v6620 = vld [vmem:[%s649 + $0x720] sm:$0xff]
        %v6621 = vld [vmem:[%s649 + $0x728] sm:$0xf]
        %v6622 = vld [vmem:[%s649 + $0x72c] sm:$0xff]
        %v6623 = vld [vmem:[%s649 + $0x734] sm:$0xf]
        %v6624 = vld [vmem:[%s649 + $0x738] sm:$0xff]
        %v6625 = vld [vmem:[%s649 + $0x740] sm:$0xf]
        %v6626 = vld [vmem:[%s649 + $0x744] sm:$0xff]
        %v6627 = vld [vmem:[%s649 + $0x74c] sm:$0xf]
        %v6628 = vld [vmem:[%s649 + $0x750] sm:$0xff]
        %v6629 = vld [vmem:[%s649 + $0x758] sm:$0xf]
        %v6630 = vld [vmem:[%s649 + $0x75c] sm:$0xff]
        %v6631 = vld [vmem:[%s649 + $0x764] sm:$0xf]
        %v6632 = vld [vmem:[%s649 + $0x768] sm:$0xff]
        %v6633 = vld [vmem:[%s649 + $0x770] sm:$0xf]
        %v6634 = vld [vmem:[%s649 + $0x774] sm:$0xff]
        %v6635 = vld [vmem:[%s649 + $0x77c] sm:$0xf]
        %v6636 = vld [vmem:[%s649 + $0x780] sm:$0xff]
        %v6637 = vld [vmem:[%s649 + $0x788] sm:$0xf]
        %v6638 = vld [vmem:[%s649 + $0x78c] sm:$0xff]
        %v6639 = vld [vmem:[%s649 + $0x794] sm:$0xf]
        %v6640 = vld [vmem:[%s649 + $0x798] sm:$0xff]
        %v6641 = vld [vmem:[%s649 + $0x7a0] sm:$0xf]
        %v6642 = vld [vmem:[%s649 + $0x7a4] sm:$0xff]
        %v6643 = vld [vmem:[%s649 + $0x7ac] sm:$0xf]
        %v6644 = vld [vmem:[%s649 + $0x7b0] sm:$0xff]
        %v6645 = vld [vmem:[%s649 + $0x7b8] sm:$0xf]
        %v6646 = vld [vmem:[%s649 + $0x7bc] sm:$0xff]
        %v6647 = vld [vmem:[%s649 + $0x7c4] sm:$0xf]
        %v6648 = vld [vmem:[%s649 + $0x7c8] sm:$0xff]
        %v6649 = vld [vmem:[%s649 + $0x7d0] sm:$0xf]
        %v6650 = vld [vmem:[%s649 + $0x7d4] sm:$0xff]
        %v6651 = vld [vmem:[%s649 + $0x7dc] sm:$0xf]
        %v6652 = vld [vmem:[%s649 + $0x7e0] sm:$0xff]
        %v6653 = vld [vmem:[%s649 + $0x7e8] sm:$0xf]
        %v6654 = vld [vmem:[%s649 + $0x7ec] sm:$0xff]
        %v6655 = vld [vmem:[%s649 + $0x7f4] sm:$0xf]
        %v6656 = vld [vmem:[%s649 + $0x7f8] sm:$0xff]
        %v6657 = vld [vmem:[%s649 + $0x800] sm:$0xf]
        %v6658 = vld [vmem:[%s649 + $0x804] sm:$0xff]
        %v6659 = vld [vmem:[%s649 + $0x80c] sm:$0xf]
        %v6660 = vld [vmem:[%s649 + $0x810] sm:$0xff]
        %v6661 = vld [vmem:[%s649 + $0x818] sm:$0xf]
        %v6662 = vld [vmem:[%s649 + $0x81c] sm:$0xff]
        %v6663 = vld [vmem:[%s649 + $0x824] sm:$0xf]
        %v6664 = vld [vmem:[%s649 + $0x828] sm:$0xff]
        %v6665 = vld [vmem:[%s649 + $0x830] sm:$0xf]
        %v6666 = vld [vmem:[%s649 + $0x834] sm:$0xff]
        %v6667 = vld [vmem:[%s649 + $0x83c] sm:$0xf]
        %v6668 = vld [vmem:[%s649 + $0x840] sm:$0xff]
        %v6669 = vld [vmem:[%s649 + $0x848] sm:$0xf]
        %v6670 = vld [vmem:[%s649 + $0x84c] sm:$0xff]
        %v6671 = vld [vmem:[%s649 + $0x854] sm:$0xf]
        %v6672 = vld [vmem:[%s649 + $0x858] sm:$0xff]
        %v6673 = vld [vmem:[%s649 + $0x860] sm:$0xf]
        %v6674 = vld [vmem:[%s649 + $0x864] sm:$0xff]
        %v6675 = vld [vmem:[%s649 + $0x86c] sm:$0xf]
        %v6676 = vld [vmem:[%s649 + $0x870] sm:$0xff]
        %v6677 = vld [vmem:[%s649 + $0x878] sm:$0xf]
        %v6678 = vld [vmem:[%s649 + $0x87c] sm:$0xff]
        %v6679 = vld [vmem:[%s649 + $0x884] sm:$0xf]
        %v6680 = vld [vmem:[%s649 + $0x888] sm:$0xff]
        %v6681 = vld [vmem:[%s649 + $0x890] sm:$0xf]
        %v6682 = vld [vmem:[%s649 + $0x894] sm:$0xff]
        %v6683 = vld [vmem:[%s649 + $0x89c] sm:$0xf]
        %v6684 = vld [vmem:[%s649 + $0x8a0] sm:$0xff]
        %v6685 = vld [vmem:[%s649 + $0x8a8] sm:$0xf]
        %v6686 = vld [vmem:[%s649 + $0x8ac] sm:$0xff]
        %v6687 = vld [vmem:[%s649 + $0x8b4] sm:$0xf]
        %v6688 = vld [vmem:[%s649 + $0x8b8] sm:$0xff]
        %v6689 = vld [vmem:[%s649 + $0x8c0] sm:$0xf]
        %v6690 = vld [vmem:[%s649 + $0x8c4] sm:$0xff]
        %v6691 = vld [vmem:[%s649 + $0x8cc] sm:$0xf]
        %v6692 = vld [vmem:[%s649 + $0x8d0] sm:$0xff]
        %v6693 = vld [vmem:[%s649 + $0x8d8] sm:$0xf]
        %v6694 = vld [vmem:[%s649 + $0x8dc] sm:$0xff]
        %v6695 = vld [vmem:[%s649 + $0x8e4] sm:$0xf]
        %v6696 = vld [vmem:[%s649 + $0x8e8] sm:$0xff]
        %v6697 = vld [vmem:[%s649 + $0x8f0] sm:$0xf]
        %v6698 = vld [vmem:[%s649 + $0x8f4] sm:$0xff]
        %v6699 = vld [vmem:[%s649 + $0x8fc] sm:$0xf]
        %v6700 = vld [vmem:[%s659] sm:$0x7]
        %v6702 = vperm.slane %v6700, 0
        %v6703 = vperm.slane %v6700, 1
        %v6704 = vperm.slane %v6700, 2
        %v7092 = vunpack.c.l.b16 %v6316
        %v7093 = vunpack.c.h.b16 %v6316
        %v7094 = vunpack.c.l.b16 %v6317
        %v7095 = vunpack.c.l.b16 %v6318
        %v7096 = vunpack.c.h.b16 %v6318
        %v7097 = vunpack.c.l.b16 %v6319
        %v7098 = vunpack.c.l.b16 %v6320
        %v7099 = vunpack.c.h.b16 %v6320
        %v7100 = vunpack.c.l.b16 %v6321
        %v7101 = vunpack.c.l.b16 %v6322
        %v7102 = vunpack.c.h.b16 %v6322
        %v7103 = vunpack.c.l.b16 %v6323
        %v7104 = vunpack.c.l.b16 %v6324
        %v7105 = vunpack.c.h.b16 %v6324
        %v7106 = vunpack.c.l.b16 %v6325
        %v7107 = vunpack.c.l.b16 %v6326
        %v7108 = vunpack.c.h.b16 %v6326
        %v7109 = vunpack.c.l.b16 %v6327
        %v7110 = vunpack.c.l.b16 %v6328
        %v7111 = vunpack.c.h.b16 %v6328
        %v7112 = vunpack.c.l.b16 %v6329
        %v7113 = vunpack.c.l.b16 %v6330
        %v7114 = vunpack.c.h.b16 %v6330
        %v7115 = vunpack.c.l.b16 %v6331
        %v7116 = vunpack.c.l.b16 %v6332
        %v7117 = vunpack.c.h.b16 %v6332
        %v7118 = vunpack.c.l.b16 %v6333
        %v7119 = vunpack.c.l.b16 %v6334
        %v7120 = vunpack.c.h.b16 %v6334
        %v7121 = vunpack.c.l.b16 %v6335
        %v7122 = vunpack.c.l.b16 %v6336
        %v7123 = vunpack.c.h.b16 %v6336
        %v7124 = vunpack.c.l.b16 %v6337
        %v7125 = vunpack.c.l.b16 %v6338
        %v7126 = vunpack.c.h.b16 %v6338
        %v7127 = vunpack.c.l.b16 %v6339
        %v7128 = vunpack.c.l.b16 %v6340
        %v7129 = vunpack.c.h.b16 %v6340
        %v7130 = vunpack.c.l.b16 %v6341
        %v7131 = vunpack.c.l.b16 %v6342
        %v7132 = vunpack.c.h.b16 %v6342
        %v7133 = vunpack.c.l.b16 %v6343
        %v7134 = vunpack.c.l.b16 %v6344
        %v7135 = vunpack.c.h.b16 %v6344
        %v7136 = vunpack.c.l.b16 %v6345
        %v7137 = vunpack.c.l.b16 %v6346
        %v7138 = vunpack.c.h.b16 %v6346
        %v7139 = vunpack.c.l.b16 %v6347
        %v7140 = vunpack.c.l.b16 %v6348
        %v7141 = vunpack.c.h.b16 %v6348
        %v7142 = vunpack.c.l.b16 %v6349
        %v7143 = vunpack.c.l.b16 %v6350
        %v7144 = vunpack.c.h.b16 %v6350
        %v7145 = vunpack.c.l.b16 %v6351
        %v7146 = vunpack.c.l.b16 %v6352
        %v7147 = vunpack.c.h.b16 %v6352
        %v7148 = vunpack.c.l.b16 %v6353
        %v7149 = vunpack.c.l.b16 %v6354
        %v7150 = vunpack.c.h.b16 %v6354
        %v7151 = vunpack.c.l.b16 %v6355
        %v7152 = vunpack.c.l.b16 %v6356
        %v7153 = vunpack.c.h.b16 %v6356
        %v7154 = vunpack.c.l.b16 %v6357
        %v7155 = vunpack.c.l.b16 %v6358
        %v7156 = vunpack.c.h.b16 %v6358
        %v7157 = vunpack.c.l.b16 %v6359
        %v7158 = vunpack.c.l.b16 %v6360
        %v7159 = vunpack.c.h.b16 %v6360
        %v7160 = vunpack.c.l.b16 %v6361
        %v7161 = vunpack.c.l.b16 %v6362
        %v7162 = vunpack.c.h.b16 %v6362
        %v7163 = vunpack.c.l.b16 %v6363
        %v7164 = vunpack.c.l.b16 %v6364
        %v7165 = vunpack.c.h.b16 %v6364
        %v7166 = vunpack.c.l.b16 %v6365
        %v7167 = vunpack.c.l.b16 %v6366
        %v7168 = vunpack.c.h.b16 %v6366
        %v7169 = vunpack.c.l.b16 %v6367
        %v7170 = vunpack.c.l.b16 %v6368
        %v7171 = vunpack.c.h.b16 %v6368
        %v7172 = vunpack.c.l.b16 %v6369
        %v7173 = vunpack.c.l.b16 %v6370
        %v7174 = vunpack.c.h.b16 %v6370
        %v7175 = vunpack.c.l.b16 %v6371
        %v7176 = vunpack.c.l.b16 %v6372
        %v7177 = vunpack.c.h.b16 %v6372
        %v7178 = vunpack.c.l.b16 %v6373
        %v7179 = vunpack.c.l.b16 %v6374
        %v7180 = vunpack.c.h.b16 %v6374
        %v7181 = vunpack.c.l.b16 %v6375
        %v7182 = vunpack.c.l.b16 %v6376
        %v7183 = vunpack.c.h.b16 %v6376
        %v7184 = vunpack.c.l.b16 %v6377
        %v7185 = vunpack.c.l.b16 %v6378
        %v7186 = vunpack.c.h.b16 %v6378
        %v7187 = vunpack.c.l.b16 %v6379
        %v7188 = vunpack.c.l.b16 %v6380
        %v7189 = vunpack.c.h.b16 %v6380
        %v7190 = vunpack.c.l.b16 %v6381
        %v7191 = vunpack.c.l.b16 %v6382
        %v7192 = vunpack.c.h.b16 %v6382
        %v7193 = vunpack.c.l.b16 %v6383
        %v7194 = vunpack.c.l.b16 %v6384
        %v7195 = vunpack.c.h.b16 %v6384
        %v7196 = vunpack.c.l.b16 %v6385
        %v7197 = vunpack.c.l.b16 %v6386
        %v7198 = vunpack.c.h.b16 %v6386
        %v7199 = vunpack.c.l.b16 %v6387
        %v7200 = vunpack.c.l.b16 %v6388
        %v7201 = vunpack.c.h.b16 %v6388
        %v7202 = vunpack.c.l.b16 %v6389
        %v7203 = vunpack.c.l.b16 %v6390
        %v7204 = vunpack.c.h.b16 %v6390
        %v7205 = vunpack.c.l.b16 %v6391
        %v7206 = vunpack.c.l.b16 %v6392
        %v7207 = vunpack.c.h.b16 %v6392
        %v7208 = vunpack.c.l.b16 %v6393
        %v7209 = vunpack.c.l.b16 %v6394
        %v7210 = vunpack.c.h.b16 %v6394
        %v7211 = vunpack.c.l.b16 %v6395
        %v7212 = vunpack.c.l.b16 %v6396
        %v7213 = vunpack.c.h.b16 %v6396
        %v7214 = vunpack.c.l.b16 %v6397
        %v7215 = vunpack.c.l.b16 %v6398
        %v7216 = vunpack.c.h.b16 %v6398
        %v7217 = vunpack.c.l.b16 %v6399
        %v7218 = vunpack.c.l.b16 %v6400
        %v7219 = vunpack.c.h.b16 %v6400
        %v7220 = vunpack.c.l.b16 %v6401
        %v7221 = vunpack.c.l.b16 %v6402
        %v7222 = vunpack.c.h.b16 %v6402
        %v7223 = vunpack.c.l.b16 %v6403
        %v7224 = vunpack.c.l.b16 %v6404
        %v7225 = vunpack.c.h.b16 %v6404
        %v7226 = vunpack.c.l.b16 %v6405
        %v7227 = vunpack.c.l.b16 %v6406
        %v7228 = vunpack.c.h.b16 %v6406
        %v7229 = vunpack.c.l.b16 %v6407
        %v7230 = vunpack.c.l.b16 %v6408
        %v7231 = vunpack.c.h.b16 %v6408
        %v7232 = vunpack.c.l.b16 %v6409
        %v7233 = vunpack.c.l.b16 %v6410
        %v7234 = vunpack.c.h.b16 %v6410
        %v7235 = vunpack.c.l.b16 %v6411
        %v7236 = vunpack.c.l.b16 %v6412
        %v7237 = vunpack.c.h.b16 %v6412
        %v7238 = vunpack.c.l.b16 %v6413
        %v7239 = vunpack.c.l.b16 %v6414
        %v7240 = vunpack.c.h.b16 %v6414
        %v7241 = vunpack.c.l.b16 %v6415
        %v7242 = vunpack.c.l.b16 %v6416
        %v7243 = vunpack.c.h.b16 %v6416
        %v7244 = vunpack.c.l.b16 %v6417
        %v7245 = vunpack.c.l.b16 %v6418
        %v7246 = vunpack.c.h.b16 %v6418
        %v7247 = vunpack.c.l.b16 %v6419
        %v7248 = vunpack.c.l.b16 %v6420
        %v7249 = vunpack.c.h.b16 %v6420
        %v7250 = vunpack.c.l.b16 %v6421
        %v7251 = vunpack.c.l.b16 %v6422
        %v7252 = vunpack.c.h.b16 %v6422
        %v7253 = vunpack.c.l.b16 %v6423
        %v7254 = vunpack.c.l.b16 %v6424
        %v7255 = vunpack.c.h.b16 %v6424
        %v7256 = vunpack.c.l.b16 %v6425
        %v7257 = vunpack.c.l.b16 %v6426
        %v7258 = vunpack.c.h.b16 %v6426
        %v7259 = vunpack.c.l.b16 %v6427
        %v7260 = vunpack.c.l.b16 %v6428
        %v7261 = vunpack.c.h.b16 %v6428
        %v7262 = vunpack.c.l.b16 %v6429
        %v7263 = vunpack.c.l.b16 %v6430
        %v7264 = vunpack.c.h.b16 %v6430
        %v7265 = vunpack.c.l.b16 %v6431
        %v7266 = vunpack.c.l.b16 %v6432
        %v7267 = vunpack.c.h.b16 %v6432
        %v7268 = vunpack.c.l.b16 %v6433
        %v7269 = vunpack.c.l.b16 %v6434
        %v7270 = vunpack.c.h.b16 %v6434
        %v7271 = vunpack.c.l.b16 %v6435
        %v7272 = vunpack.c.l.b16 %v6436
        %v7273 = vunpack.c.h.b16 %v6436
        %v7274 = vunpack.c.l.b16 %v6437
        %v7275 = vunpack.c.l.b16 %v6438
        %v7276 = vunpack.c.h.b16 %v6438
        %v7277 = vunpack.c.l.b16 %v6439
        %v7278 = vunpack.c.l.b16 %v6440
        %v7279 = vunpack.c.h.b16 %v6440
        %v7280 = vunpack.c.l.b16 %v6441
        %v7281 = vunpack.c.l.b16 %v6442
        %v7282 = vunpack.c.h.b16 %v6442
        %v7283 = vunpack.c.l.b16 %v6443
        %v7284 = vunpack.c.l.b16 %v6444
        %v7285 = vunpack.c.h.b16 %v6444
        %v7286 = vunpack.c.l.b16 %v6445
        %v7287 = vunpack.c.l.b16 %v6446
        %v7288 = vunpack.c.h.b16 %v6446
        %v7289 = vunpack.c.l.b16 %v6447
        %v7290 = vunpack.c.l.b16 %v6448
        %v7291 = vunpack.c.h.b16 %v6448
        %v7292 = vunpack.c.l.b16 %v6449
        %v7293 = vunpack.c.l.b16 %v6450
        %v7294 = vunpack.c.h.b16 %v6450
        %v7295 = vunpack.c.l.b16 %v6451
        %v7296 = vunpack.c.l.b16 %v6452
        %v7297 = vunpack.c.h.b16 %v6452
        %v7298 = vunpack.c.l.b16 %v6453
        %v7299 = vunpack.c.l.b16 %v6454
        %v7300 = vunpack.c.h.b16 %v6454
        %v7301 = vunpack.c.l.b16 %v6455
        %v7302 = vunpack.c.l.b16 %v6456
        %v7303 = vunpack.c.h.b16 %v6456
        %v7304 = vunpack.c.l.b16 %v6457
        %v7305 = vunpack.c.l.b16 %v6458
        %v7306 = vunpack.c.h.b16 %v6458
        %v7307 = vunpack.c.l.b16 %v6459
        %v7308 = vunpack.c.l.b16 %v6460
        %v7309 = vunpack.c.h.b16 %v6460
        %v7310 = vunpack.c.l.b16 %v6461
        %v7311 = vunpack.c.l.b16 %v6462
        %v7312 = vunpack.c.h.b16 %v6462
        %v7313 = vunpack.c.l.b16 %v6463
        %v7314 = vunpack.c.l.b16 %v6464
        %v7315 = vunpack.c.h.b16 %v6464
        %v7316 = vunpack.c.l.b16 %v6465
        %v7317 = vunpack.c.l.b16 %v6466
        %v7318 = vunpack.c.h.b16 %v6466
        %v7319 = vunpack.c.l.b16 %v6467
        %v7320 = vunpack.c.l.b16 %v6468
        %v7321 = vunpack.c.h.b16 %v6468
        %v7322 = vunpack.c.l.b16 %v6469
        %v7323 = vunpack.c.l.b16 %v6470
        %v7324 = vunpack.c.h.b16 %v6470
        %v7325 = vunpack.c.l.b16 %v6471
        %v7326 = vunpack.c.l.b16 %v6472
        %v7327 = vunpack.c.h.b16 %v6472
        %v7328 = vunpack.c.l.b16 %v6473
        %v7329 = vunpack.c.l.b16 %v6474
        %v7330 = vunpack.c.h.b16 %v6474
        %v7331 = vunpack.c.l.b16 %v6475
        %v7332 = vunpack.c.l.b16 %v6476
        %v7333 = vunpack.c.h.b16 %v6476
        %v7334 = vunpack.c.l.b16 %v6477
        %v7335 = vunpack.c.l.b16 %v6478
        %v7336 = vunpack.c.h.b16 %v6478
        %v7337 = vunpack.c.l.b16 %v6479
        %v7338 = vunpack.c.l.b16 %v6480
        %v7339 = vunpack.c.h.b16 %v6480
        %v7340 = vunpack.c.l.b16 %v6481
        %v7341 = vunpack.c.l.b16 %v6482
        %v7342 = vunpack.c.h.b16 %v6482
        %v7343 = vunpack.c.l.b16 %v6483
        %v7344 = vunpack.c.l.b16 %v6484
        %v7345 = vunpack.c.h.b16 %v6484
        %v7346 = vunpack.c.l.b16 %v6485
        %v7347 = vunpack.c.l.b16 %v6486
        %v7348 = vunpack.c.h.b16 %v6486
        %v7349 = vunpack.c.l.b16 %v6487
        %v7350 = vunpack.c.l.b16 %v6488
        %v7351 = vunpack.c.h.b16 %v6488
        %v7352 = vunpack.c.l.b16 %v6489
        %v7353 = vunpack.c.l.b16 %v6490
        %v7354 = vunpack.c.h.b16 %v6490
        %v7355 = vunpack.c.l.b16 %v6491
        %v7356 = vunpack.c.l.b16 %v6492
        %v7357 = vunpack.c.h.b16 %v6492
        %v7358 = vunpack.c.l.b16 %v6493
        %v7359 = vunpack.c.l.b16 %v6494
        %v7360 = vunpack.c.h.b16 %v6494
        %v7361 = vunpack.c.l.b16 %v6495
        %v7362 = vunpack.c.l.b16 %v6496
        %v7363 = vunpack.c.h.b16 %v6496
        %v7364 = vunpack.c.l.b16 %v6497
        %v7365 = vunpack.c.l.b16 %v6498
        %v7366 = vunpack.c.h.b16 %v6498
        %v7367 = vunpack.c.l.b16 %v6499
        %v7368 = vunpack.c.l.b16 %v6500
        %v7369 = vunpack.c.h.b16 %v6500
        %v7370 = vunpack.c.l.b16 %v6501
        %v7371 = vunpack.c.l.b16 %v6502
        %v7372 = vunpack.c.h.b16 %v6502
        %v7373 = vunpack.c.l.b16 %v6503
        %v7374 = vunpack.c.l.b16 %v6504
        %v7375 = vunpack.c.h.b16 %v6504
        %v7376 = vunpack.c.l.b16 %v6505
        %v7377 = vunpack.c.l.b16 %v6506
        %v7378 = vunpack.c.h.b16 %v6506
        %v7379 = vunpack.c.l.b16 %v6507
        %v7380 = vunpack.c.l.b16 %v6508
        %v7381 = vunpack.c.h.b16 %v6508
        %v7382 = vunpack.c.l.b16 %v6509
        %v7383 = vunpack.c.l.b16 %v6510
        %v7384 = vunpack.c.h.b16 %v6510
        %v7385 = vunpack.c.l.b16 %v6511
        %v7386 = vunpack.c.l.b16 %v6512
        %v7387 = vunpack.c.h.b16 %v6512
        %v7388 = vunpack.c.l.b16 %v6513
        %v7389 = vunpack.c.l.b16 %v6514
        %v7390 = vunpack.c.h.b16 %v6514
        %v7391 = vunpack.c.l.b16 %v6515
        %v7392 = vunpack.c.l.b16 %v6516
        %v7393 = vunpack.c.h.b16 %v6516
        %v7394 = vunpack.c.l.b16 %v6517
        %v7395 = vunpack.c.l.b16 %v6518
        %v7396 = vunpack.c.h.b16 %v6518
        %v7397 = vunpack.c.l.b16 %v6519
        %v7398 = vunpack.c.l.b16 %v6520
        %v7399 = vunpack.c.h.b16 %v6520
        %v7400 = vunpack.c.l.b16 %v6521
        %v7401 = vunpack.c.l.b16 %v6522
        %v7402 = vunpack.c.h.b16 %v6522
        %v7403 = vunpack.c.l.b16 %v6523
        %v7404 = vunpack.c.l.b16 %v6524
        %v7405 = vunpack.c.h.b16 %v6524
        %v7406 = vunpack.c.l.b16 %v6525
        %v7407 = vunpack.c.l.b16 %v6526
        %v7408 = vunpack.c.h.b16 %v6526
        %v7409 = vunpack.c.l.b16 %v6527
        %v7410 = vunpack.c.l.b16 %v6528
        %v7411 = vunpack.c.h.b16 %v6528
        %v7412 = vunpack.c.l.b16 %v6529
        %v7413 = vunpack.c.l.b16 %v6530
        %v7414 = vunpack.c.h.b16 %v6530
        %v7415 = vunpack.c.l.b16 %v6531
        %v7416 = vunpack.c.l.b16 %v6532
        %v7417 = vunpack.c.h.b16 %v6532
        %v7418 = vunpack.c.l.b16 %v6533
        %v7419 = vunpack.c.l.b16 %v6534
        %v7420 = vunpack.c.h.b16 %v6534
        %v7421 = vunpack.c.l.b16 %v6535
        %v7422 = vunpack.c.l.b16 %v6536
        %v7423 = vunpack.c.h.b16 %v6536
        %v7424 = vunpack.c.l.b16 %v6537
        %v7425 = vunpack.c.l.b16 %v6538
        %v7426 = vunpack.c.h.b16 %v6538
        %v7427 = vunpack.c.l.b16 %v6539
        %v7428 = vunpack.c.l.b16 %v6540
        %v7429 = vunpack.c.h.b16 %v6540
        %v7430 = vunpack.c.l.b16 %v6541
        %v7431 = vunpack.c.l.b16 %v6542
        %v7432 = vunpack.c.h.b16 %v6542
        %v7433 = vunpack.c.l.b16 %v6543
        %v7434 = vunpack.c.l.b16 %v6544
        %v7435 = vunpack.c.h.b16 %v6544
        %v7436 = vunpack.c.l.b16 %v6545
        %v7437 = vunpack.c.l.b16 %v6546
        %v7438 = vunpack.c.h.b16 %v6546
        %v7439 = vunpack.c.l.b16 %v6547
        %v7440 = vunpack.c.l.b16 %v6548
        %v7441 = vunpack.c.h.b16 %v6548
        %v7442 = vunpack.c.l.b16 %v6549
        %v7443 = vunpack.c.l.b16 %v6550
        %v7444 = vunpack.c.h.b16 %v6550
        %v7445 = vunpack.c.l.b16 %v6551
        %v7446 = vunpack.c.l.b16 %v6552
        %v7447 = vunpack.c.h.b16 %v6552
        %v7448 = vunpack.c.l.b16 %v6553
        %v7449 = vunpack.c.l.b16 %v6554
        %v7450 = vunpack.c.h.b16 %v6554
        %v7451 = vunpack.c.l.b16 %v6555
        %v7452 = vunpack.c.l.b16 %v6556
        %v7453 = vunpack.c.h.b16 %v6556
        %v7454 = vunpack.c.l.b16 %v6557
        %v7455 = vunpack.c.l.b16 %v6558
        %v7456 = vunpack.c.h.b16 %v6558
        %v7457 = vunpack.c.l.b16 %v6559
        %v7458 = vunpack.c.l.b16 %v6560
        %v7459 = vunpack.c.h.b16 %v6560
        %v7460 = vunpack.c.l.b16 %v6561
        %v7461 = vunpack.c.l.b16 %v6562
        %v7462 = vunpack.c.h.b16 %v6562
        %v7463 = vunpack.c.l.b16 %v6563
        %v7464 = vunpack.c.l.b16 %v6564
        %v7465 = vunpack.c.h.b16 %v6564
        %v7466 = vunpack.c.l.b16 %v6565
        %v7467 = vunpack.c.l.b16 %v6566
        %v7468 = vunpack.c.h.b16 %v6566
        %v7469 = vunpack.c.l.b16 %v6567
        %v7470 = vunpack.c.l.b16 %v6568
        %v7471 = vunpack.c.h.b16 %v6568
        %v7472 = vunpack.c.l.b16 %v6569
        %v7473 = vunpack.c.l.b16 %v6570
        %v7474 = vunpack.c.h.b16 %v6570
        %v7475 = vunpack.c.l.b16 %v6571
        %v7476 = vunpack.c.l.b16 %v6572
        %v7477 = vunpack.c.h.b16 %v6572
        %v7478 = vunpack.c.l.b16 %v6573
        %v7479 = vunpack.c.l.b16 %v6574
        %v7480 = vunpack.c.h.b16 %v6574
        %v7481 = vunpack.c.l.b16 %v6575
        %v7482 = vunpack.c.l.b16 %v6576
        %v7483 = vunpack.c.h.b16 %v6576
        %v7484 = vunpack.c.l.b16 %v6577
        %v7485 = vunpack.c.l.b16 %v6578
        %v7486 = vunpack.c.h.b16 %v6578
        %v7487 = vunpack.c.l.b16 %v6579
        %v7488 = vunpack.c.l.b16 %v6580
        %v7489 = vunpack.c.h.b16 %v6580
        %v7490 = vunpack.c.l.b16 %v6581
        %v7491 = vunpack.c.l.b16 %v6582
        %v7492 = vunpack.c.h.b16 %v6582
        %v7493 = vunpack.c.l.b16 %v6583
        %v7494 = vunpack.c.l.b16 %v6584
        %v7495 = vunpack.c.h.b16 %v6584
        %v7496 = vunpack.c.l.b16 %v6585
        %v7497 = vunpack.c.l.b16 %v6586
        %v7498 = vunpack.c.h.b16 %v6586
        %v7499 = vunpack.c.l.b16 %v6587
        %v7500 = vunpack.c.l.b16 %v6588
        %v7501 = vunpack.c.h.b16 %v6588
        %v7502 = vunpack.c.l.b16 %v6589
        %v7503 = vunpack.c.l.b16 %v6590
        %v7504 = vunpack.c.h.b16 %v6590
        %v7505 = vunpack.c.l.b16 %v6591
        %v7506 = vunpack.c.l.b16 %v6592
        %v7507 = vunpack.c.h.b16 %v6592
        %v7508 = vunpack.c.l.b16 %v6593
        %v7509 = vunpack.c.l.b16 %v6594
        %v7510 = vunpack.c.h.b16 %v6594
        %v7511 = vunpack.c.l.b16 %v6595
        %v7512 = vunpack.c.l.b16 %v6596
        %v7513 = vunpack.c.h.b16 %v6596
        %v7514 = vunpack.c.l.b16 %v6597
        %v7515 = vunpack.c.l.b16 %v6598
        %v7516 = vunpack.c.h.b16 %v6598
        %v7517 = vunpack.c.l.b16 %v6599
        %v7518 = vunpack.c.l.b16 %v6600
        %v7519 = vunpack.c.h.b16 %v6600
        %v7520 = vunpack.c.l.b16 %v6601
        %v7521 = vunpack.c.l.b16 %v6602
        %v7522 = vunpack.c.h.b16 %v6602
        %v7523 = vunpack.c.l.b16 %v6603
        %v7524 = vunpack.c.l.b16 %v6604
        %v7525 = vunpack.c.h.b16 %v6604
        %v7526 = vunpack.c.l.b16 %v6605
        %v7527 = vunpack.c.l.b16 %v6606
        %v7528 = vunpack.c.h.b16 %v6606
        %v7529 = vunpack.c.l.b16 %v6607
        %v7530 = vunpack.c.l.b16 %v6608
        %v7531 = vunpack.c.h.b16 %v6608
        %v7532 = vunpack.c.l.b16 %v6609
        %v7533 = vunpack.c.l.b16 %v6610
        %v7534 = vunpack.c.h.b16 %v6610
        %v7535 = vunpack.c.l.b16 %v6611
        %v7536 = vunpack.c.l.b16 %v6612
        %v7537 = vunpack.c.h.b16 %v6612
        %v7538 = vunpack.c.l.b16 %v6613
        %v7539 = vunpack.c.l.b16 %v6614
        %v7540 = vunpack.c.h.b16 %v6614
        %v7541 = vunpack.c.l.b16 %v6615
        %v7542 = vunpack.c.l.b16 %v6616
        %v7543 = vunpack.c.h.b16 %v6616
        %v7544 = vunpack.c.l.b16 %v6617
        %v7545 = vunpack.c.l.b16 %v6618
        %v7546 = vunpack.c.h.b16 %v6618
        %v7547 = vunpack.c.l.b16 %v6619
        %v7548 = vunpack.c.l.b16 %v6620
        %v7549 = vunpack.c.h.b16 %v6620
        %v7550 = vunpack.c.l.b16 %v6621
        %v7551 = vunpack.c.l.b16 %v6622
        %v7552 = vunpack.c.h.b16 %v6622
        %v7553 = vunpack.c.l.b16 %v6623
        %v7554 = vunpack.c.l.b16 %v6624
        %v7555 = vunpack.c.h.b16 %v6624
        %v7556 = vunpack.c.l.b16 %v6625
        %v7557 = vunpack.c.l.b16 %v6626
        %v7558 = vunpack.c.h.b16 %v6626
        %v7559 = vunpack.c.l.b16 %v6627
        %v7560 = vunpack.c.l.b16 %v6628
        %v7561 = vunpack.c.h.b16 %v6628
        %v7562 = vunpack.c.l.b16 %v6629
        %v7563 = vunpack.c.l.b16 %v6630
        %v7564 = vunpack.c.h.b16 %v6630
        %v7565 = vunpack.c.l.b16 %v6631
        %v7566 = vunpack.c.l.b16 %v6632
        %v7567 = vunpack.c.h.b16 %v6632
        %v7568 = vunpack.c.l.b16 %v6633
        %v7569 = vunpack.c.l.b16 %v6634
        %v7570 = vunpack.c.h.b16 %v6634
        %v7571 = vunpack.c.l.b16 %v6635
        %v7572 = vunpack.c.l.b16 %v6636
        %v7573 = vunpack.c.h.b16 %v6636
        %v7574 = vunpack.c.l.b16 %v6637
        %v7575 = vunpack.c.l.b16 %v6638
        %v7576 = vunpack.c.h.b16 %v6638
        %v7577 = vunpack.c.l.b16 %v6639
        %v7578 = vunpack.c.l.b16 %v6640
        %v7579 = vunpack.c.h.b16 %v6640
        %v7580 = vunpack.c.l.b16 %v6641
        %v7581 = vunpack.c.l.b16 %v6642
        %v7582 = vunpack.c.h.b16 %v6642
        %v7583 = vunpack.c.l.b16 %v6643
        %v7584 = vunpack.c.l.b16 %v6644
        %v7585 = vunpack.c.h.b16 %v6644
        %v7586 = vunpack.c.l.b16 %v6645
        %v7587 = vunpack.c.l.b16 %v6646
        %v7588 = vunpack.c.h.b16 %v6646
        %v7589 = vunpack.c.l.b16 %v6647
        %v7590 = vunpack.c.l.b16 %v6648
        %v7591 = vunpack.c.h.b16 %v6648
        %v7592 = vunpack.c.l.b16 %v6649
        %v7593 = vunpack.c.l.b16 %v6650
        %v7594 = vunpack.c.h.b16 %v6650
        %v7595 = vunpack.c.l.b16 %v6651
        %v7596 = vunpack.c.l.b16 %v6652
        %v7597 = vunpack.c.h.b16 %v6652
        %v7598 = vunpack.c.l.b16 %v6653
        %v7599 = vunpack.c.l.b16 %v6654
        %v7600 = vunpack.c.h.b16 %v6654
        %v7601 = vunpack.c.l.b16 %v6655
        %v7602 = vunpack.c.l.b16 %v6656
        %v7603 = vunpack.c.h.b16 %v6656
        %v7604 = vunpack.c.l.b16 %v6657
        %v7605 = vunpack.c.l.b16 %v6658
        %v7606 = vunpack.c.h.b16 %v6658
        %v7607 = vunpack.c.l.b16 %v6659
        %v7608 = vunpack.c.l.b16 %v6660
        %v7609 = vunpack.c.h.b16 %v6660
        %v7610 = vunpack.c.l.b16 %v6661
        %v7611 = vunpack.c.l.b16 %v6662
        %v7612 = vunpack.c.h.b16 %v6662
        %v7613 = vunpack.c.l.b16 %v6663
        %v7614 = vunpack.c.l.b16 %v6664
        %v7615 = vunpack.c.h.b16 %v6664
        %v7616 = vunpack.c.l.b16 %v6665
        %v7617 = vunpack.c.l.b16 %v6666
        %v7618 = vunpack.c.h.b16 %v6666
        %v7619 = vunpack.c.l.b16 %v6667
        %v7620 = vunpack.c.l.b16 %v6668
        %v7621 = vunpack.c.h.b16 %v6668
        %v7622 = vunpack.c.l.b16 %v6669
        %v7623 = vunpack.c.l.b16 %v6670
        %v7624 = vunpack.c.h.b16 %v6670
        %v7625 = vunpack.c.l.b16 %v6671
        %v7626 = vunpack.c.l.b16 %v6672
        %v7627 = vunpack.c.h.b16 %v6672
        %v7628 = vunpack.c.l.b16 %v6673
        %v7629 = vunpack.c.l.b16 %v6674
        %v7630 = vunpack.c.h.b16 %v6674
        %v7631 = vunpack.c.l.b16 %v6675
        %v7632 = vunpack.c.l.b16 %v6676
        %v7633 = vunpack.c.h.b16 %v6676
        %v7634 = vunpack.c.l.b16 %v6677
        %v7635 = vunpack.c.l.b16 %v6678
        %v7636 = vunpack.c.h.b16 %v6678
        %v7637 = vunpack.c.l.b16 %v6679
        %v7638 = vunpack.c.l.b16 %v6680
        %v7639 = vunpack.c.h.b16 %v6680
        %v7640 = vunpack.c.l.b16 %v6681
        %v7641 = vunpack.c.l.b16 %v6682
        %v7642 = vunpack.c.h.b16 %v6682
        %v7643 = vunpack.c.l.b16 %v6683
        %v7644 = vunpack.c.l.b16 %v6684
        %v7645 = vunpack.c.h.b16 %v6684
        %v7646 = vunpack.c.l.b16 %v6685
        %v7647 = vunpack.c.l.b16 %v6686
        %v7648 = vunpack.c.h.b16 %v6686
        %v7649 = vunpack.c.l.b16 %v6687
        %v7650 = vunpack.c.l.b16 %v6688
        %v7651 = vunpack.c.h.b16 %v6688
        %v7652 = vunpack.c.l.b16 %v6689
        %v7653 = vunpack.c.l.b16 %v6690
        %v7654 = vunpack.c.h.b16 %v6690
        %v7655 = vunpack.c.l.b16 %v6691
        %v7656 = vunpack.c.l.b16 %v6692
        %v7657 = vunpack.c.h.b16 %v6692
        %v7658 = vunpack.c.l.b16 %v6693
        %v7659 = vunpack.c.l.b16 %v6694
        %v7660 = vunpack.c.h.b16 %v6694
        %v7661 = vunpack.c.l.b16 %v6695
        %v7662 = vunpack.c.l.b16 %v6696
        %v7663 = vunpack.c.h.b16 %v6696
        %v7664 = vunpack.c.l.b16 %v6697
        %v7665 = vunpack.c.l.b16 %v6698
        %v7666 = vunpack.c.h.b16 %v6698
        %v7667 = vunpack.c.l.b16 %v6699
        %v7668 = vpack.c.b16 %v7095, %v7092
        %v7669 = vpack.c.b16 %v7096, %v7093
        %v7670 = vpack.c.b16 %v7097, %v7094
        %v7671 = vpack.c.b16 %v7101, %v7098
        %v7672 = vpack.c.b16 %v7102, %v7099
        %v7673 = vpack.c.b16 %v7103, %v7100
        %v7674 = vpack.c.b16 %v7107, %v7104
        %v7675 = vpack.c.b16 %v7108, %v7105
        %v7676 = vpack.c.b16 %v7109, %v7106
        %v7677 = vpack.c.b16 %v7113, %v7110
        %v7678 = vpack.c.b16 %v7114, %v7111
        %v7679 = vpack.c.b16 %v7115, %v7112
        %v7680 = vpack.c.b16 %v7119, %v7116
        %v7681 = vpack.c.b16 %v7120, %v7117
        %v7682 = vpack.c.b16 %v7121, %v7118
        %v7683 = vpack.c.b16 %v7125, %v7122
        %v7684 = vpack.c.b16 %v7126, %v7123
        %v7685 = vpack.c.b16 %v7127, %v7124
        %v7686 = vpack.c.b16 %v7131, %v7128
        %v7687 = vpack.c.b16 %v7132, %v7129
        %v7688 = vpack.c.b16 %v7133, %v7130
        %v7689 = vpack.c.b16 %v7137, %v7134
        %v7690 = vpack.c.b16 %v7138, %v7135
        %v7691 = vpack.c.b16 %v7139, %v7136
        %v7692 = vpack.c.b16 %v7143, %v7140
        %v7693 = vpack.c.b16 %v7144, %v7141
        %v7694 = vpack.c.b16 %v7145, %v7142
        %v7695 = vpack.c.b16 %v7149, %v7146
        %v7696 = vpack.c.b16 %v7150, %v7147
        %v7697 = vpack.c.b16 %v7151, %v7148
        %v7698 = vpack.c.b16 %v7155, %v7152
        %v7699 = vpack.c.b16 %v7156, %v7153
        %v7700 = vpack.c.b16 %v7157, %v7154
        %v7701 = vpack.c.b16 %v7161, %v7158
        %v7702 = vpack.c.b16 %v7162, %v7159
        %v7703 = vpack.c.b16 %v7163, %v7160
        %v7704 = vpack.c.b16 %v7167, %v7164
        %v7705 = vpack.c.b16 %v7168, %v7165
        %v7706 = vpack.c.b16 %v7169, %v7166
        %v7707 = vpack.c.b16 %v7173, %v7170
        %v7708 = vpack.c.b16 %v7174, %v7171
        %v7709 = vpack.c.b16 %v7175, %v7172
        %v7710 = vpack.c.b16 %v7179, %v7176
        %v7711 = vpack.c.b16 %v7180, %v7177
        %v7712 = vpack.c.b16 %v7181, %v7178
        %v7713 = vpack.c.b16 %v7185, %v7182
        %v7714 = vpack.c.b16 %v7186, %v7183
        %v7715 = vpack.c.b16 %v7187, %v7184
        %v7716 = vpack.c.b16 %v7191, %v7188
        %v7717 = vpack.c.b16 %v7192, %v7189
        %v7718 = vpack.c.b16 %v7193, %v7190
        %v7719 = vpack.c.b16 %v7197, %v7194
        %v7720 = vpack.c.b16 %v7198, %v7195
        %v7721 = vpack.c.b16 %v7199, %v7196
        %v7722 = vpack.c.b16 %v7203, %v7200
        %v7723 = vpack.c.b16 %v7204, %v7201
        %v7724 = vpack.c.b16 %v7205, %v7202
        %v7725 = vpack.c.b16 %v7209, %v7206
        %v7726 = vpack.c.b16 %v7210, %v7207
        %v7727 = vpack.c.b16 %v7211, %v7208
        %v7728 = vpack.c.b16 %v7215, %v7212
        %v7729 = vpack.c.b16 %v7216, %v7213
        %v7730 = vpack.c.b16 %v7217, %v7214
        %v7731 = vpack.c.b16 %v7221, %v7218
        %v7732 = vpack.c.b16 %v7222, %v7219
        %v7733 = vpack.c.b16 %v7223, %v7220
        %v7734 = vpack.c.b16 %v7227, %v7224
        %v7735 = vpack.c.b16 %v7228, %v7225
        %v7736 = vpack.c.b16 %v7229, %v7226
        %v7737 = vpack.c.b16 %v7233, %v7230
        %v7738 = vpack.c.b16 %v7234, %v7231
        %v7739 = vpack.c.b16 %v7235, %v7232
        %v7740 = vpack.c.b16 %v7239, %v7236
        %v7741 = vpack.c.b16 %v7240, %v7237
        %v7742 = vpack.c.b16 %v7241, %v7238
        %v7743 = vpack.c.b16 %v7245, %v7242
        %v7744 = vpack.c.b16 %v7246, %v7243
        %v7745 = vpack.c.b16 %v7247, %v7244
        %v7746 = vpack.c.b16 %v7251, %v7248
        %v7747 = vpack.c.b16 %v7252, %v7249
        %v7748 = vpack.c.b16 %v7253, %v7250
        %v7749 = vpack.c.b16 %v7257, %v7254
        %v7750 = vpack.c.b16 %v7258, %v7255
        %v7751 = vpack.c.b16 %v7259, %v7256
        %v7752 = vpack.c.b16 %v7263, %v7260
        %v7753 = vpack.c.b16 %v7264, %v7261
        %v7754 = vpack.c.b16 %v7265, %v7262
        %v7755 = vpack.c.b16 %v7269, %v7266
        %v7756 = vpack.c.b16 %v7270, %v7267
        %v7757 = vpack.c.b16 %v7271, %v7268
        %v7758 = vpack.c.b16 %v7275, %v7272
        %v7759 = vpack.c.b16 %v7276, %v7273
        %v7760 = vpack.c.b16 %v7277, %v7274
        %v7761 = vpack.c.b16 %v7281, %v7278
        %v7762 = vpack.c.b16 %v7282, %v7279
        %v7763 = vpack.c.b16 %v7283, %v7280
        %v7764 = vpack.c.b16 %v7287, %v7284
        %v7765 = vpack.c.b16 %v7288, %v7285
        %v7766 = vpack.c.b16 %v7289, %v7286
        %v7767 = vpack.c.b16 %v7293, %v7290
        %v7768 = vpack.c.b16 %v7294, %v7291
        %v7769 = vpack.c.b16 %v7295, %v7292
        %v7770 = vpack.c.b16 %v7299, %v7296
        %v7771 = vpack.c.b16 %v7300, %v7297
        %v7772 = vpack.c.b16 %v7301, %v7298
        %v7773 = vpack.c.b16 %v7305, %v7302
        %v7774 = vpack.c.b16 %v7306, %v7303
        %v7775 = vpack.c.b16 %v7307, %v7304
        %v7776 = vpack.c.b16 %v7311, %v7308
        %v7777 = vpack.c.b16 %v7312, %v7309
        %v7778 = vpack.c.b16 %v7313, %v7310
        %v7779 = vpack.c.b16 %v7317, %v7314
        %v7780 = vpack.c.b16 %v7318, %v7315
        %v7781 = vpack.c.b16 %v7319, %v7316
        %v7782 = vpack.c.b16 %v7323, %v7320
        %v7783 = vpack.c.b16 %v7324, %v7321
        %v7784 = vpack.c.b16 %v7325, %v7322
        %v7785 = vpack.c.b16 %v7329, %v7326
        %v7786 = vpack.c.b16 %v7330, %v7327
        %v7787 = vpack.c.b16 %v7331, %v7328
        %v7788 = vpack.c.b16 %v7335, %v7332
        %v7789 = vpack.c.b16 %v7336, %v7333
        %v7790 = vpack.c.b16 %v7337, %v7334
        %v7791 = vpack.c.b16 %v7341, %v7338
        %v7792 = vpack.c.b16 %v7342, %v7339
        %v7793 = vpack.c.b16 %v7343, %v7340
        %v7794 = vpack.c.b16 %v7347, %v7344
        %v7795 = vpack.c.b16 %v7348, %v7345
        %v7796 = vpack.c.b16 %v7349, %v7346
        %v7797 = vpack.c.b16 %v7353, %v7350
        %v7798 = vpack.c.b16 %v7354, %v7351
        %v7799 = vpack.c.b16 %v7355, %v7352
        %v7800 = vpack.c.b16 %v7359, %v7356
        %v7801 = vpack.c.b16 %v7360, %v7357
        %v7802 = vpack.c.b16 %v7361, %v7358
        %v7803 = vpack.c.b16 %v7365, %v7362
        %v7804 = vpack.c.b16 %v7366, %v7363
        %v7805 = vpack.c.b16 %v7367, %v7364
        %v7806 = vpack.c.b16 %v7371, %v7368
        %v7807 = vpack.c.b16 %v7372, %v7369
        %v7808 = vpack.c.b16 %v7373, %v7370
        %v7809 = vpack.c.b16 %v7377, %v7374
        %v7810 = vpack.c.b16 %v7378, %v7375
        %v7811 = vpack.c.b16 %v7379, %v7376
        %v7812 = vpack.c.b16 %v7383, %v7380
        %v7813 = vpack.c.b16 %v7384, %v7381
        %v7814 = vpack.c.b16 %v7385, %v7382
        %v7815 = vpack.c.b16 %v7389, %v7386
        %v7816 = vpack.c.b16 %v7390, %v7387
        %v7817 = vpack.c.b16 %v7391, %v7388
        %v7818 = vpack.c.b16 %v7395, %v7392
        %v7819 = vpack.c.b16 %v7396, %v7393
        %v7820 = vpack.c.b16 %v7397, %v7394
        %v7821 = vpack.c.b16 %v7401, %v7398
        %v7822 = vpack.c.b16 %v7402, %v7399
        %v7823 = vpack.c.b16 %v7403, %v7400
        %v7824 = vpack.c.b16 %v7407, %v7404
        %v7825 = vpack.c.b16 %v7408, %v7405
        %v7826 = vpack.c.b16 %v7409, %v7406
        %v7827 = vpack.c.b16 %v7413, %v7410
        %v7828 = vpack.c.b16 %v7414, %v7411
        %v7829 = vpack.c.b16 %v7415, %v7412
        %v7830 = vpack.c.b16 %v7419, %v7416
        %v7831 = vpack.c.b16 %v7420, %v7417
        %v7832 = vpack.c.b16 %v7421, %v7418
        %v7833 = vpack.c.b16 %v7425, %v7422
        %v7834 = vpack.c.b16 %v7426, %v7423
        %v7835 = vpack.c.b16 %v7427, %v7424
        %v7836 = vpack.c.b16 %v7431, %v7428
        %v7837 = vpack.c.b16 %v7432, %v7429
        %v7838 = vpack.c.b16 %v7433, %v7430
        %v7839 = vpack.c.b16 %v7437, %v7434
        %v7840 = vpack.c.b16 %v7438, %v7435
        %v7841 = vpack.c.b16 %v7439, %v7436
        %v7842 = vpack.c.b16 %v7443, %v7440
        %v7843 = vpack.c.b16 %v7444, %v7441
        %v7844 = vpack.c.b16 %v7445, %v7442
        %v7845 = vpack.c.b16 %v7449, %v7446
        %v7846 = vpack.c.b16 %v7450, %v7447
        %v7847 = vpack.c.b16 %v7451, %v7448
        %v7848 = vpack.c.b16 %v7455, %v7452
        %v7849 = vpack.c.b16 %v7456, %v7453
        %v7850 = vpack.c.b16 %v7457, %v7454
        %v7851 = vpack.c.b16 %v7461, %v7458
        %v7852 = vpack.c.b16 %v7462, %v7459
        %v7853 = vpack.c.b16 %v7463, %v7460
        %v7854 = vpack.c.b16 %v7467, %v7464
        %v7855 = vpack.c.b16 %v7468, %v7465
        %v7856 = vpack.c.b16 %v7469, %v7466
        %v7857 = vpack.c.b16 %v7473, %v7470
        %v7858 = vpack.c.b16 %v7474, %v7471
        %v7859 = vpack.c.b16 %v7475, %v7472
        %v7860 = vpack.c.b16 %v7479, %v7476
        %v7861 = vpack.c.b16 %v7480, %v7477
        %v7862 = vpack.c.b16 %v7481, %v7478
        %v7863 = vpack.c.b16 %v7485, %v7482
        %v7864 = vpack.c.b16 %v7486, %v7483
        %v7865 = vpack.c.b16 %v7487, %v7484
        %v7866 = vpack.c.b16 %v7491, %v7488
        %v7867 = vpack.c.b16 %v7492, %v7489
        %v7868 = vpack.c.b16 %v7493, %v7490
        %v7869 = vpack.c.b16 %v7497, %v7494
        %v7870 = vpack.c.b16 %v7498, %v7495
        %v7871 = vpack.c.b16 %v7499, %v7496
        %v7872 = vpack.c.b16 %v7503, %v7500
        %v7873 = vpack.c.b16 %v7504, %v7501
        %v7874 = vpack.c.b16 %v7505, %v7502
        %v7875 = vpack.c.b16 %v7509, %v7506
        %v7876 = vpack.c.b16 %v7510, %v7507
        %v7877 = vpack.c.b16 %v7511, %v7508
        %v7878 = vpack.c.b16 %v7515, %v7512
        %v7879 = vpack.c.b16 %v7516, %v7513
        %v7880 = vpack.c.b16 %v7517, %v7514
        %v7881 = vpack.c.b16 %v7521, %v7518
        %v7882 = vpack.c.b16 %v7522, %v7519
        %v7883 = vpack.c.b16 %v7523, %v7520
        %v7884 = vpack.c.b16 %v7527, %v7524
        %v7885 = vpack.c.b16 %v7528, %v7525
        %v7886 = vpack.c.b16 %v7529, %v7526
        %v7887 = vpack.c.b16 %v7533, %v7530
        %v7888 = vpack.c.b16 %v7534, %v7531
        %v7889 = vpack.c.b16 %v7535, %v7532
        %v7890 = vpack.c.b16 %v7539, %v7536
        %v7891 = vpack.c.b16 %v7540, %v7537
        %v7892 = vpack.c.b16 %v7541, %v7538
        %v7893 = vpack.c.b16 %v7545, %v7542
        %v7894 = vpack.c.b16 %v7546, %v7543
        %v7895 = vpack.c.b16 %v7547, %v7544
        %v7896 = vpack.c.b16 %v7551, %v7548
        %v7897 = vpack.c.b16 %v7552, %v7549
        %v7898 = vpack.c.b16 %v7553, %v7550
        %v7899 = vpack.c.b16 %v7557, %v7554
        %v7900 = vpack.c.b16 %v7558, %v7555
        %v7901 = vpack.c.b16 %v7559, %v7556
        %v7902 = vpack.c.b16 %v7563, %v7560
        %v7903 = vpack.c.b16 %v7564, %v7561
        %v7904 = vpack.c.b16 %v7565, %v7562
        %v7905 = vpack.c.b16 %v7569, %v7566
        %v7906 = vpack.c.b16 %v7570, %v7567
        %v7907 = vpack.c.b16 %v7571, %v7568
        %v7908 = vpack.c.b16 %v7575, %v7572
        %v7909 = vpack.c.b16 %v7576, %v7573
        %v7910 = vpack.c.b16 %v7577, %v7574
        %v7911 = vpack.c.b16 %v7581, %v7578
        %v7912 = vpack.c.b16 %v7582, %v7579
        %v7913 = vpack.c.b16 %v7583, %v7580
        %v7914 = vpack.c.b16 %v7587, %v7584
        %v7915 = vpack.c.b16 %v7588, %v7585
        %v7916 = vpack.c.b16 %v7589, %v7586
        %v7917 = vpack.c.b16 %v7593, %v7590
        %v7918 = vpack.c.b16 %v7594, %v7591
        %v7919 = vpack.c.b16 %v7595, %v7592
        %v7920 = vpack.c.b16 %v7599, %v7596
        %v7921 = vpack.c.b16 %v7600, %v7597
        %v7922 = vpack.c.b16 %v7601, %v7598
        %v7923 = vpack.c.b16 %v7605, %v7602
        %v7924 = vpack.c.b16 %v7606, %v7603
        %v7925 = vpack.c.b16 %v7607, %v7604
        %v7926 = vpack.c.b16 %v7611, %v7608
        %v7927 = vpack.c.b16 %v7612, %v7609
        %v7928 = vpack.c.b16 %v7613, %v7610
        %v7929 = vpack.c.b16 %v7617, %v7614
        %v7930 = vpack.c.b16 %v7618, %v7615
        %v7931 = vpack.c.b16 %v7619, %v7616
        %v7932 = vpack.c.b16 %v7623, %v7620
        %v7933 = vpack.c.b16 %v7624, %v7621
        %v7934 = vpack.c.b16 %v7625, %v7622
        %v7935 = vpack.c.b16 %v7629, %v7626
        %v7936 = vpack.c.b16 %v7630, %v7627
        %v7937 = vpack.c.b16 %v7631, %v7628
        %v7938 = vpack.c.b16 %v7635, %v7632
        %v7939 = vpack.c.b16 %v7636, %v7633
        %v7940 = vpack.c.b16 %v7637, %v7634
        %v7941 = vpack.c.b16 %v7641, %v7638
        %v7942 = vpack.c.b16 %v7642, %v7639
        %v7943 = vpack.c.b16 %v7643, %v7640
        %v7944 = vpack.c.b16 %v7647, %v7644
        %v7945 = vpack.c.b16 %v7648, %v7645
        %v7946 = vpack.c.b16 %v7649, %v7646
        %v7947 = vpack.c.b16 %v7653, %v7650
        %v7948 = vpack.c.b16 %v7654, %v7651
        %v7949 = vpack.c.b16 %v7655, %v7652
        %v7950 = vpack.c.b16 %v7659, %v7656
        %v7951 = vpack.c.b16 %v7660, %v7657
        %v7952 = vpack.c.b16 %v7661, %v7658
        %v7953 = vpack.c.b16 %v7665, %v7662
        %v7954 = vpack.c.b16 %v7666, %v7663
        %v7955 = vpack.c.b16 %v7667, %v7664
        %8244 = vmatpush.bf16.msra.mxu0 %v7689
        %8245 = vmatpush.bf16.msra.mxu0 %v7686
        %8246 = vmatpush.bf16.msra.mxu0 %v7683
        %8247 = vmatpush.bf16.msra.mxu0 %v7680
        %8248 = vmatpush.bf16.msra.mxu0 %v7677
        %8249 = vmatpush.bf16.msra.mxu0 %v7674
        %8250 = vmatpush.bf16.msra.mxu0 %v7671
        %8251 = vmatpush.bf16.msra.mxu0 %v7668
        %8252 = vmatmul.bf16.gmra.mxu0 %v6304
        %v8253 = vpop.f32.mrf.mxu0
        %v8254 = vadd.f32 %v6702, %v8253
        %v8255 = vpop.f32.mrf.mxu0
        %v8256 = vadd.f32 %v6702, %v8255
        %8257 = vdwg.mxu0
        %8258 = vmatpush.bf16.msra.mxu0 %v7713
        %8259 = vmatpush.bf16.msra.mxu0 %v7710
        %8260 = vmatpush.bf16.msra.mxu0 %v7707
        %8261 = vmatpush.bf16.msra.mxu0 %v7704
        %8262 = vmatpush.bf16.msra.mxu0 %v7701
        %8263 = vmatpush.bf16.msra.mxu0 %v7698
        %8264 = vmatpush.bf16.msra.mxu0 %v7695
        %8265 = vmatpush.bf16.msra.mxu0 %v7692
        %8266 = vmatmul.bf16.gmra.mxu0 %v6305
        %v8267 = vpop.f32.mrf.mxu0
        %v8268 = vadd.f32 %v8254, %v8267
        %v8269 = vpop.f32.mrf.mxu0
        %v8270 = vadd.f32 %v8256, %v8269
        %8271 = vdwg.mxu0
        %8272 = vmatpush.bf16.msra.mxu0 %v7737
        %8273 = vmatpush.bf16.msra.mxu0 %v7734
        %8274 = vmatpush.bf16.msra.mxu0 %v7731
        %8275 = vmatpush.bf16.msra.mxu0 %v7728
        %8276 = vmatpush.bf16.msra.mxu0 %v7725
        %8277 = vmatpush.bf16.msra.mxu0 %v7722
        %8278 = vmatpush.bf16.msra.mxu0 %v7719
        %8279 = vmatpush.bf16.msra.mxu0 %v7716
        %8280 = vmatmul.bf16.gmra.mxu0 %v6306
        %v8281 = vpop.f32.mrf.mxu0
        %v8282 = vadd.f32 %v8268, %v8281
        %v8283 = vpop.f32.mrf.mxu0
        %v8284 = vadd.f32 %v8270, %v8283
        %8285 = vdwg.mxu0
        %8286 = vmatpush.bf16.msra.mxu0 %v7761
        %8287 = vmatpush.bf16.msra.mxu0 %v7758
        %8288 = vmatpush.bf16.msra.mxu0 %v7755
        %8289 = vmatpush.bf16.msra.mxu0 %v7752
        %8290 = vmatpush.bf16.msra.mxu0 %v7749
        %8291 = vmatpush.bf16.msra.mxu0 %v7746
        %8292 = vmatpush.bf16.msra.mxu0 %v7743
        %8293 = vmatpush.bf16.msra.mxu0 %v7740
        %8294 = vmatmul.bf16.gmra.mxu0 %v6307
        %v8295 = vpop.f32.mrf.mxu0
        %v8296 = vadd.f32 %v8282, %v8295
        %v8297 = vpop.f32.mrf.mxu0
        %v8298 = vadd.f32 %v8284, %v8297
        %8299 = vdwg.mxu0
        %8300 = vmatpush.bf16.msra.mxu0 %v7785
        %8301 = vmatpush.bf16.msra.mxu0 %v7782
        %8302 = vmatpush.bf16.msra.mxu0 %v7779
        %8303 = vmatpush.bf16.msra.mxu0 %v7776
        %8304 = vmatpush.bf16.msra.mxu0 %v7773
        %8305 = vmatpush.bf16.msra.mxu0 %v7770
        %8306 = vmatpush.bf16.msra.mxu0 %v7767
        %8307 = vmatpush.bf16.msra.mxu0 %v7764
        %8308 = vmatmul.bf16.gmra.mxu0 %v6308
        %v8309 = vpop.f32.mrf.mxu0
        %v8310 = vadd.f32 %v8296, %v8309
        %v8311 = vpop.f32.mrf.mxu0
        %v8312 = vadd.f32 %v8298, %v8311
        %8313 = vdwg.mxu0
        %8314 = vmatpush.bf16.msra.mxu0 %v7809
        %8315 = vmatpush.bf16.msra.mxu0 %v7806
        %8316 = vmatpush.bf16.msra.mxu0 %v7803
        %8317 = vmatpush.bf16.msra.mxu0 %v7800
        %8318 = vmatpush.bf16.msra.mxu0 %v7797
        %8319 = vmatpush.bf16.msra.mxu0 %v7794
        %8320 = vmatpush.bf16.msra.mxu0 %v7791
        %8321 = vmatpush.bf16.msra.mxu0 %v7788
        %8322 = vmatmul.bf16.gmra.mxu0 %v6309
        %v8323 = vpop.f32.mrf.mxu0
        %v8324 = vadd.f32 %v8310, %v8323
        %v8325 = vpop.f32.mrf.mxu0
        %v8326 = vadd.f32 %v8312, %v8325
        %8327 = vdwg.mxu0
        %8328 = vmatpush.bf16.msra.mxu0 %v7833
        %8329 = vmatpush.bf16.msra.mxu0 %v7830
        %8330 = vmatpush.bf16.msra.mxu0 %v7827
        %8331 = vmatpush.bf16.msra.mxu0 %v7824
        %8332 = vmatpush.bf16.msra.mxu0 %v7821
        %8333 = vmatpush.bf16.msra.mxu0 %v7818
        %8334 = vmatpush.bf16.msra.mxu0 %v7815
        %8335 = vmatpush.bf16.msra.mxu0 %v7812
        %8336 = vmatmul.bf16.gmra.mxu0 %v6310
        %v8337 = vpop.f32.mrf.mxu0
        %v8338 = vadd.f32 %v8324, %v8337
        %v8339 = vpop.f32.mrf.mxu0
        %v8340 = vadd.f32 %v8326, %v8339
        %8341 = vdwg.mxu0
        %8342 = vmatpush.bf16.msra.mxu0 %v7857
        %8343 = vmatpush.bf16.msra.mxu0 %v7854
        %8344 = vmatpush.bf16.msra.mxu0 %v7851
        %8345 = vmatpush.bf16.msra.mxu0 %v7848
        %8346 = vmatpush.bf16.msra.mxu0 %v7845
        %8347 = vmatpush.bf16.msra.mxu0 %v7842
        %8348 = vmatpush.bf16.msra.mxu0 %v7839
        %8349 = vmatpush.bf16.msra.mxu0 %v7836
        %8350 = vmatmul.bf16.gmra.mxu0 %v6311
        %v8351 = vpop.f32.mrf.mxu0
        %v8352 = vadd.f32 %v8338, %v8351
        %v8353 = vpop.f32.mrf.mxu0
        %v8354 = vadd.f32 %v8340, %v8353
        %8355 = vdwg.mxu0
        %8356 = vmatpush.bf16.msra.mxu0 %v7881
        %8357 = vmatpush.bf16.msra.mxu0 %v7878
        %8358 = vmatpush.bf16.msra.mxu0 %v7875
        %8359 = vmatpush.bf16.msra.mxu0 %v7872
        %8360 = vmatpush.bf16.msra.mxu0 %v7869
        %8361 = vmatpush.bf16.msra.mxu0 %v7866
        %8362 = vmatpush.bf16.msra.mxu0 %v7863
        %8363 = vmatpush.bf16.msra.mxu0 %v7860
        %8364 = vmatmul.bf16.gmra.mxu0 %v6312
        %v8365 = vpop.f32.mrf.mxu0
        %v8366 = vadd.f32 %v8352, %v8365
        %v8367 = vpop.f32.mrf.mxu0
        %v8368 = vadd.f32 %v8354, %v8367
        %8369 = vdwg.mxu0
        %8370 = vmatpush.bf16.msra.mxu0 %v7905
        %8371 = vmatpush.bf16.msra.mxu0 %v7902
        %8372 = vmatpush.bf16.msra.mxu0 %v7899
        %8373 = vmatpush.bf16.msra.mxu0 %v7896
        %8374 = vmatpush.bf16.msra.mxu0 %v7893
        %8375 = vmatpush.bf16.msra.mxu0 %v7890
        %8376 = vmatpush.bf16.msra.mxu0 %v7887
        %8377 = vmatpush.bf16.msra.mxu0 %v7884
        %8378 = vmatmul.bf16.gmra.mxu0 %v6313
        %v8379 = vpop.f32.mrf.mxu0
        %v8380 = vadd.f32 %v8366, %v8379
        %v8381 = vpop.f32.mrf.mxu0
        %v8382 = vadd.f32 %v8368, %v8381
        %8383 = vdwg.mxu0
        %8384 = vmatpush.bf16.msra.mxu0 %v7929
        %8385 = vmatpush.bf16.msra.mxu0 %v7926
        %8386 = vmatpush.bf16.msra.mxu0 %v7923
        %8387 = vmatpush.bf16.msra.mxu0 %v7920
        %8388 = vmatpush.bf16.msra.mxu0 %v7917
        %8389 = vmatpush.bf16.msra.mxu0 %v7914
        %8390 = vmatpush.bf16.msra.mxu0 %v7911
        %8391 = vmatpush.bf16.msra.mxu0 %v7908
        %8392 = vmatmul.bf16.gmra.mxu0 %v6314
        %v8393 = vpop.f32.mrf.mxu0
        %v8394 = vadd.f32 %v8380, %v8393
        %v8395 = vpop.f32.mrf.mxu0
        %v8396 = vadd.f32 %v8382, %v8395
        %8397 = vdwg.mxu0
        %8398 = vmatpush.bf16.msra.mxu0 %v7953
        %8399 = vmatpush.bf16.msra.mxu0 %v7950
        %8400 = vmatpush.bf16.msra.mxu0 %v7947
        %8401 = vmatpush.bf16.msra.mxu0 %v7944
        %8402 = vmatpush.bf16.msra.mxu0 %v7941
        %8403 = vmatpush.bf16.msra.mxu0 %v7938
        %8404 = vmatpush.bf16.msra.mxu0 %v7935
        %8405 = vmatpush.bf16.msra.mxu0 %v7932
        %8406 = vmatmul.bf16.gmra.mxu0 %v6315
        %v8407 = vpop.f32.mrf.mxu0
        %v8408 = vadd.f32 %v8394, %v8407
        %v8409 = vpop.f32.mrf.mxu0
        %v8410 = vadd.f32 %v8396, %v8409
        %8411 = vdwg.mxu0
        %8412 = vmatpush.bf16.msra.mxu0 %v7690
        %8413 = vmatpush.bf16.msra.mxu0 %v7687
        %8414 = vmatpush.bf16.msra.mxu0 %v7684
        %8415 = vmatpush.bf16.msra.mxu0 %v7681
        %8416 = vmatpush.bf16.msra.mxu0 %v7678
        %8417 = vmatpush.bf16.msra.mxu0 %v7675
        %8418 = vmatpush.bf16.msra.mxu0 %v7672
        %8419 = vmatpush.bf16.msra.mxu0 %v7669
        %8420 = vmatmul.bf16.gmra.mxu0 %v6304
        %v8421 = vpop.f32.mrf.mxu0
        %v8422 = vadd.f32 %v6703, %v8421
        %v8423 = vpop.f32.mrf.mxu0
        %v8424 = vadd.f32 %v6703, %v8423
        %8425 = vdwg.mxu0
        %8426 = vmatpush.bf16.msra.mxu0 %v7714
        %8427 = vmatpush.bf16.msra.mxu0 %v7711
        %8428 = vmatpush.bf16.msra.mxu0 %v7708
        %8429 = vmatpush.bf16.msra.mxu0 %v7705
        %8430 = vmatpush.bf16.msra.mxu0 %v7702
        %8431 = vmatpush.bf16.msra.mxu0 %v7699
        %8432 = vmatpush.bf16.msra.mxu0 %v7696
        %8433 = vmatpush.bf16.msra.mxu0 %v7693
        %8434 = vmatmul.bf16.gmra.mxu0 %v6305
        %v8435 = vpop.f32.mrf.mxu0
        %v8436 = vadd.f32 %v8422, %v8435
        %v8437 = vpop.f32.mrf.mxu0
        %v8438 = vadd.f32 %v8424, %v8437
        %8439 = vdwg.mxu0
        %8440 = vmatpush.bf16.msra.mxu0 %v7738
        %8441 = vmatpush.bf16.msra.mxu0 %v7735
        %8442 = vmatpush.bf16.msra.mxu0 %v7732
        %8443 = vmatpush.bf16.msra.mxu0 %v7729
        %8444 = vmatpush.bf16.msra.mxu0 %v7726
        %8445 = vmatpush.bf16.msra.mxu0 %v7723
        %8446 = vmatpush.bf16.msra.mxu0 %v7720
        %8447 = vmatpush.bf16.msra.mxu0 %v7717
        %8448 = vmatmul.bf16.gmra.mxu0 %v6306
        %v8449 = vpop.f32.mrf.mxu0
        %v8450 = vadd.f32 %v8436, %v8449
        %v8451 = vpop.f32.mrf.mxu0
        %v8452 = vadd.f32 %v8438, %v8451
        %8453 = vdwg.mxu0
        %8454 = vmatpush.bf16.msra.mxu0 %v7762
        %8455 = vmatpush.bf16.msra.mxu0 %v7759
        %8456 = vmatpush.bf16.msra.mxu0 %v7756
        %8457 = vmatpush.bf16.msra.mxu0 %v7753
        %8458 = vmatpush.bf16.msra.mxu0 %v7750
        %8459 = vmatpush.bf16.msra.mxu0 %v7747
        %8460 = vmatpush.bf16.msra.mxu0 %v7744
        %8461 = vmatpush.bf16.msra.mxu0 %v7741
        %8462 = vmatmul.bf16.gmra.mxu0 %v6307
        %v8463 = vpop.f32.mrf.mxu0
        %v8464 = vadd.f32 %v8450, %v8463
        %v8465 = vpop.f32.mrf.mxu0
        %v8466 = vadd.f32 %v8452, %v8465
        %8467 = vdwg.mxu0
        %8468 = vmatpush.bf16.msra.mxu0 %v7786
        %8469 = vmatpush.bf16.msra.mxu0 %v7783
        %8470 = vmatpush.bf16.msra.mxu0 %v7780
        %8471 = vmatpush.bf16.msra.mxu0 %v7777
        %8472 = vmatpush.bf16.msra.mxu0 %v7774
        %8473 = vmatpush.bf16.msra.mxu0 %v7771
        %8474 = vmatpush.bf16.msra.mxu0 %v7768
        %8475 = vmatpush.bf16.msra.mxu0 %v7765
        %8476 = vmatmul.bf16.gmra.mxu0 %v6308
        %v8477 = vpop.f32.mrf.mxu0
        %v8478 = vadd.f32 %v8464, %v8477
        %v8479 = vpop.f32.mrf.mxu0
        %v8480 = vadd.f32 %v8466, %v8479
        %8481 = vdwg.mxu0
        %8482 = vmatpush.bf16.msra.mxu0 %v7810
        %8483 = vmatpush.bf16.msra.mxu0 %v7807
        %8484 = vmatpush.bf16.msra.mxu0 %v7804
        %8485 = vmatpush.bf16.msra.mxu0 %v7801
        %8486 = vmatpush.bf16.msra.mxu0 %v7798
        %8487 = vmatpush.bf16.msra.mxu0 %v7795
        %8488 = vmatpush.bf16.msra.mxu0 %v7792
        %8489 = vmatpush.bf16.msra.mxu0 %v7789
        %8490 = vmatmul.bf16.gmra.mxu0 %v6309
        %v8491 = vpop.f32.mrf.mxu0
        %v8492 = vadd.f32 %v8478, %v8491
        %v8493 = vpop.f32.mrf.mxu0
        %v8494 = vadd.f32 %v8480, %v8493
        %8495 = vdwg.mxu0
        %8496 = vmatpush.bf16.msra.mxu0 %v7834
        %8497 = vmatpush.bf16.msra.mxu0 %v7831
        %8498 = vmatpush.bf16.msra.mxu0 %v7828
        %8499 = vmatpush.bf16.msra.mxu0 %v7825
        %8500 = vmatpush.bf16.msra.mxu0 %v7822
        %8501 = vmatpush.bf16.msra.mxu0 %v7819
        %8502 = vmatpush.bf16.msra.mxu0 %v7816
        %8503 = vmatpush.bf16.msra.mxu0 %v7813
        %8504 = vmatmul.bf16.gmra.mxu0 %v6310
        %v8505 = vpop.f32.mrf.mxu0
        %v8506 = vadd.f32 %v8492, %v8505
        %v8507 = vpop.f32.mrf.mxu0
        %v8508 = vadd.f32 %v8494, %v8507
        %8509 = vdwg.mxu0
        %8510 = vmatpush.bf16.msra.mxu0 %v7858
        %8511 = vmatpush.bf16.msra.mxu0 %v7855
        %8512 = vmatpush.bf16.msra.mxu0 %v7852
        %8513 = vmatpush.bf16.msra.mxu0 %v7849
        %8514 = vmatpush.bf16.msra.mxu0 %v7846
        %8515 = vmatpush.bf16.msra.mxu0 %v7843
        %8516 = vmatpush.bf16.msra.mxu0 %v7840
        %8517 = vmatpush.bf16.msra.mxu0 %v7837
        %8518 = vmatmul.bf16.gmra.mxu0 %v6311
        %v8519 = vpop.f32.mrf.mxu0
        %v8520 = vadd.f32 %v8506, %v8519
        %v8521 = vpop.f32.mrf.mxu0
        %v8522 = vadd.f32 %v8508, %v8521
        %8523 = vdwg.mxu0
        %8524 = vmatpush.bf16.msra.mxu0 %v7882
        %8525 = vmatpush.bf16.msra.mxu0 %v7879
        %8526 = vmatpush.bf16.msra.mxu0 %v7876
        %8527 = vmatpush.bf16.msra.mxu0 %v7873
        %8528 = vmatpush.bf16.msra.mxu0 %v7870
        %8529 = vmatpush.bf16.msra.mxu0 %v7867
        %8530 = vmatpush.bf16.msra.mxu0 %v7864
        %8531 = vmatpush.bf16.msra.mxu0 %v7861
        %8532 = vmatmul.bf16.gmra.mxu0 %v6312
        %v8533 = vpop.f32.mrf.mxu0
        %v8534 = vadd.f32 %v8520, %v8533
        %v8535 = vpop.f32.mrf.mxu0
        %v8536 = vadd.f32 %v8522, %v8535
        %8537 = vdwg.mxu0
        %8538 = vmatpush.bf16.msra.mxu0 %v7906
        %8539 = vmatpush.bf16.msra.mxu0 %v7903
        %8540 = vmatpush.bf16.msra.mxu0 %v7900
        %8541 = vmatpush.bf16.msra.mxu0 %v7897
        %8542 = vmatpush.bf16.msra.mxu0 %v7894
        %8543 = vmatpush.bf16.msra.mxu0 %v7891
        %8544 = vmatpush.bf16.msra.mxu0 %v7888
        %8545 = vmatpush.bf16.msra.mxu0 %v7885
        %8546 = vmatmul.bf16.gmra.mxu0 %v6313
        %v8547 = vpop.f32.mrf.mxu0
        %v8548 = vadd.f32 %v8534, %v8547
        %v8549 = vpop.f32.mrf.mxu0
        %v8550 = vadd.f32 %v8536, %v8549
        %8551 = vdwg.mxu0
        %8552 = vmatpush.bf16.msra.mxu0 %v7930
        %8553 = vmatpush.bf16.msra.mxu0 %v7927
        %8554 = vmatpush.bf16.msra.mxu0 %v7924
        %8555 = vmatpush.bf16.msra.mxu0 %v7921
        %8556 = vmatpush.bf16.msra.mxu0 %v7918
        %8557 = vmatpush.bf16.msra.mxu0 %v7915
        %8558 = vmatpush.bf16.msra.mxu0 %v7912
        %8559 = vmatpush.bf16.msra.mxu0 %v7909
        %8560 = vmatmul.bf16.gmra.mxu0 %v6314
        %v8561 = vpop.f32.mrf.mxu0
        %v8562 = vadd.f32 %v8548, %v8561
        %v8563 = vpop.f32.mrf.mxu0
        %v8564 = vadd.f32 %v8550, %v8563
        %8565 = vdwg.mxu0
        %8566 = vmatpush.bf16.msra.mxu0 %v7954
        %8567 = vmatpush.bf16.msra.mxu0 %v7951
        %8568 = vmatpush.bf16.msra.mxu0 %v7948
        %8569 = vmatpush.bf16.msra.mxu0 %v7945
        %8570 = vmatpush.bf16.msra.mxu0 %v7942
        %8571 = vmatpush.bf16.msra.mxu0 %v7939
        %8572 = vmatpush.bf16.msra.mxu0 %v7936
        %8573 = vmatpush.bf16.msra.mxu0 %v7933
        %8574 = vmatmul.bf16.gmra.mxu0 %v6315
        %v8575 = vpop.f32.mrf.mxu0
        %v8576 = vadd.f32 %v8562, %v8575
        %v8577 = vpop.f32.mrf.mxu0
        %v8578 = vadd.f32 %v8564, %v8577
        %8579 = vdwg.mxu0
        %8580 = vmatpush.bf16.msra.mxu0 %v7691
        %8581 = vmatpush.bf16.msra.mxu0 %v7688
        %8582 = vmatpush.bf16.msra.mxu0 %v7685
        %8583 = vmatpush.bf16.msra.mxu0 %v7682
        %8584 = vmatpush.bf16.msra.mxu0 %v7679
        %8585 = vmatpush.bf16.msra.mxu0 %v7676
        %8586 = vmatpush.bf16.msra.mxu0 %v7673
        %8587 = vmatpush.bf16.msra.mxu0 %v7670
        %8588 = vmatmul.bf16.gmra.mxu0 %v6304
        %v8589 = vpop.f32.mrf.mxu0
        %v8590 = vadd.f32 %v6704, %v8589
        %v8591 = vpop.f32.mrf.mxu0
        %v8592 = vadd.f32 %v6704, %v8591
        %8593 = vdwg.mxu0
        %8594 = vmatpush.bf16.msra.mxu0 %v7715
        %8595 = vmatpush.bf16.msra.mxu0 %v7712
        %8596 = vmatpush.bf16.msra.mxu0 %v7709
        %8597 = vmatpush.bf16.msra.mxu0 %v7706
        %8598 = vmatpush.bf16.msra.mxu0 %v7703
        %8599 = vmatpush.bf16.msra.mxu0 %v7700
        %8600 = vmatpush.bf16.msra.mxu0 %v7697
        %8601 = vmatpush.bf16.msra.mxu0 %v7694
        %8602 = vmatmul.bf16.gmra.mxu0 %v6305
        %v8603 = vpop.f32.mrf.mxu0
        %v8604 = vadd.f32 %v8590, %v8603
        %v8605 = vpop.f32.mrf.mxu0
        %v8606 = vadd.f32 %v8592, %v8605
        %8607 = vdwg.mxu0
        %8608 = vmatpush.bf16.msra.mxu0 %v7739
        %8609 = vmatpush.bf16.msra.mxu0 %v7736
        %8610 = vmatpush.bf16.msra.mxu0 %v7733
        %8611 = vmatpush.bf16.msra.mxu0 %v7730
        %8612 = vmatpush.bf16.msra.mxu0 %v7727
        %8613 = vmatpush.bf16.msra.mxu0 %v7724
        %8614 = vmatpush.bf16.msra.mxu0 %v7721
        %8615 = vmatpush.bf16.msra.mxu0 %v7718
        %8616 = vmatmul.bf16.gmra.mxu0 %v6306
        %v8617 = vpop.f32.mrf.mxu0
        %v8618 = vadd.f32 %v8604, %v8617
        %v8619 = vpop.f32.mrf.mxu0
        %v8620 = vadd.f32 %v8606, %v8619
        %8621 = vdwg.mxu0
        %8622 = vmatpush.bf16.msra.mxu0 %v7763
        %8623 = vmatpush.bf16.msra.mxu0 %v7760
        %8624 = vmatpush.bf16.msra.mxu0 %v7757
        %8625 = vmatpush.bf16.msra.mxu0 %v7754
        %8626 = vmatpush.bf16.msra.mxu0 %v7751
        %8627 = vmatpush.bf16.msra.mxu0 %v7748
        %8628 = vmatpush.bf16.msra.mxu0 %v7745
        %8629 = vmatpush.bf16.msra.mxu0 %v7742
        %8630 = vmatmul.bf16.gmra.mxu0 %v6307
        %v8631 = vpop.f32.mrf.mxu0
        %v8632 = vadd.f32 %v8618, %v8631
        %v8633 = vpop.f32.mrf.mxu0
        %v8634 = vadd.f32 %v8620, %v8633
        %8635 = vdwg.mxu0
        %8636 = vmatpush.bf16.msra.mxu0 %v7787
        %8637 = vmatpush.bf16.msra.mxu0 %v7784
        %8638 = vmatpush.bf16.msra.mxu0 %v7781
        %8639 = vmatpush.bf16.msra.mxu0 %v7778
        %8640 = vmatpush.bf16.msra.mxu0 %v7775
        %8641 = vmatpush.bf16.msra.mxu0 %v7772
        %8642 = vmatpush.bf16.msra.mxu0 %v7769
        %8643 = vmatpush.bf16.msra.mxu0 %v7766
        %8644 = vmatmul.bf16.gmra.mxu0 %v6308
        %v8645 = vpop.f32.mrf.mxu0
        %v8646 = vadd.f32 %v8632, %v8645
        %v8647 = vpop.f32.mrf.mxu0
        %v8648 = vadd.f32 %v8634, %v8647
        %8649 = vdwg.mxu0
        %8650 = vmatpush.bf16.msra.mxu0 %v7811
        %8651 = vmatpush.bf16.msra.mxu0 %v7808
        %8652 = vmatpush.bf16.msra.mxu0 %v7805
        %8653 = vmatpush.bf16.msra.mxu0 %v7802
        %8654 = vmatpush.bf16.msra.mxu0 %v7799
        %8655 = vmatpush.bf16.msra.mxu0 %v7796
        %8656 = vmatpush.bf16.msra.mxu0 %v7793
        %8657 = vmatpush.bf16.msra.mxu0 %v7790
        %8658 = vmatmul.bf16.gmra.mxu0 %v6309
        %v8659 = vpop.f32.mrf.mxu0
        %v8660 = vadd.f32 %v8646, %v8659
        %v8661 = vpop.f32.mrf.mxu0
        %v8662 = vadd.f32 %v8648, %v8661
        %8663 = vdwg.mxu0
        %8664 = vmatpush.bf16.msra.mxu0 %v7835
        %8665 = vmatpush.bf16.msra.mxu0 %v7832
        %8666 = vmatpush.bf16.msra.mxu0 %v7829
        %8667 = vmatpush.bf16.msra.mxu0 %v7826
        %8668 = vmatpush.bf16.msra.mxu0 %v7823
        %8669 = vmatpush.bf16.msra.mxu0 %v7820
        %8670 = vmatpush.bf16.msra.mxu0 %v7817
        %8671 = vmatpush.bf16.msra.mxu0 %v7814
        %8672 = vmatmul.bf16.gmra.mxu0 %v6310
        %v8673 = vpop.f32.mrf.mxu0
        %v8674 = vadd.f32 %v8660, %v8673
        %v8675 = vpop.f32.mrf.mxu0
        %v8676 = vadd.f32 %v8662, %v8675
        %8677 = vdwg.mxu0
        %8678 = vmatpush.bf16.msra.mxu0 %v7859
        %8679 = vmatpush.bf16.msra.mxu0 %v7856
        %8680 = vmatpush.bf16.msra.mxu0 %v7853
        %8681 = vmatpush.bf16.msra.mxu0 %v7850
        %8682 = vmatpush.bf16.msra.mxu0 %v7847
        %8683 = vmatpush.bf16.msra.mxu0 %v7844
        %8684 = vmatpush.bf16.msra.mxu0 %v7841
        %8685 = vmatpush.bf16.msra.mxu0 %v7838
        %8686 = vmatmul.bf16.gmra.mxu0 %v6311
        %v8687 = vpop.f32.mrf.mxu0
        %v8688 = vadd.f32 %v8674, %v8687
        %v8689 = vpop.f32.mrf.mxu0
        %v8690 = vadd.f32 %v8676, %v8689
        %8691 = vdwg.mxu0
        %8692 = vmatpush.bf16.msra.mxu0 %v7883
        %8693 = vmatpush.bf16.msra.mxu0 %v7880
        %8694 = vmatpush.bf16.msra.mxu0 %v7877
        %8695 = vmatpush.bf16.msra.mxu0 %v7874
        %8696 = vmatpush.bf16.msra.mxu0 %v7871
        %8697 = vmatpush.bf16.msra.mxu0 %v7868
        %8698 = vmatpush.bf16.msra.mxu0 %v7865
        %8699 = vmatpush.bf16.msra.mxu0 %v7862
        %8700 = vmatmul.bf16.gmra.mxu0 %v6312
        %v8701 = vpop.f32.mrf.mxu0
        %v8702 = vadd.f32 %v8688, %v8701
        %v8703 = vpop.f32.mrf.mxu0
        %v8704 = vadd.f32 %v8690, %v8703
        %8705 = vdwg.mxu0
        %8706 = vmatpush.bf16.msra.mxu0 %v7907
        %8707 = vmatpush.bf16.msra.mxu0 %v7904
        %8708 = vmatpush.bf16.msra.mxu0 %v7901
        %8709 = vmatpush.bf16.msra.mxu0 %v7898
        %8710 = vmatpush.bf16.msra.mxu0 %v7895
        %8711 = vmatpush.bf16.msra.mxu0 %v7892
        %8712 = vmatpush.bf16.msra.mxu0 %v7889
        %8713 = vmatpush.bf16.msra.mxu0 %v7886
        %8714 = vmatmul.bf16.gmra.mxu0 %v6313
        %v8715 = vpop.f32.mrf.mxu0
        %v8716 = vadd.f32 %v8702, %v8715
        %v8717 = vpop.f32.mrf.mxu0
        %v8718 = vadd.f32 %v8704, %v8717
        %8719 = vdwg.mxu0
        %8720 = vmatpush.bf16.msra.mxu0 %v7931
        %8721 = vmatpush.bf16.msra.mxu0 %v7928
        %8722 = vmatpush.bf16.msra.mxu0 %v7925
        %8723 = vmatpush.bf16.msra.mxu0 %v7922
        %8724 = vmatpush.bf16.msra.mxu0 %v7919
        %8725 = vmatpush.bf16.msra.mxu0 %v7916
        %8726 = vmatpush.bf16.msra.mxu0 %v7913
        %8727 = vmatpush.bf16.msra.mxu0 %v7910
        %8728 = vmatmul.bf16.gmra.mxu0 %v6314
        %v8729 = vpop.f32.mrf.mxu0
        %v8730 = vadd.f32 %v8716, %v8729
        %v8731 = vpop.f32.mrf.mxu0
        %v8732 = vadd.f32 %v8718, %v8731
        %8733 = vdwg.mxu0
        %8734 = vmatpush.bf16.msra.mxu0 %v7955
        %8735 = vmatpush.bf16.msra.mxu0 %v7952
        %8736 = vmatpush.bf16.msra.mxu0 %v7949
        %8737 = vmatpush.bf16.msra.mxu0 %v7946
        %8738 = vmatpush.bf16.msra.mxu0 %v7943
        %8739 = vmatpush.bf16.msra.mxu0 %v7940
        %8740 = vmatpush.bf16.msra.mxu0 %v7937
        %8741 = vmatpush.bf16.msra.mxu0 %v7934
        %8742 = vmatmul.bf16.gmra.mxu0 %v6315
        %v8743 = vpop.f32.mrf.mxu0
        %v8744 = vadd.f32 %v8730, %v8743
        %v8745 = vpop.f32.mrf.mxu0
        %v8746 = vadd.f32 %v8732, %v8745
        %8747 = vdwg.mxu0
        %v8748 = vadd.f32 %v3951, %v8408
        %v8749 = vadd.f32 %v3952, %v8576
        %v8750 = vadd.f32 %v3953, %v8744
        %v8751 = vadd.f32 %v3954, %v8410
        %v8752 = vadd.f32 %v3955, %v8578
        %v8753 = vadd.f32 %v3956, %v8746
        %8754 = vst [vmem:[#allocation2] sm:$0xff] %v8748
        %8755 = vst [vmem:[#allocation2 + $0x8] sm:$0xff] %v8749
        %8756 = vst [vmem:[#allocation2 + $0x10] sm:$0xff] %v8750
        %8757 = vst [vmem:[#allocation2 + $0x18] sm:$0xff] %v8751
        %8758 = vst [vmem:[#allocation2 + $0x20] sm:$0xff] %v8752
        %8759 = vst [vmem:[#allocation2 + $0x28] sm:$0xff] %v8753
        %p8760 = scmp.eq.s32.totalorder %s42, 5
        // Predicated region
        $region113: #{tpu_custom_call.1} parent=63 // pred_check
          %p8761 = pneg %p8760
        $region114: #{tpu_custom_call.1} parent=63 // pred_check_branch
          %8763 = sbr.rel (%p8761) target = $region116
        $region115: #{tpu_custom_call.1} parent=63 // pred_region
          %v8764 = vadd.f32 %v8748, %v8749
          %v8765 = vadd.f32 %v8764, %v8750
          %8766 = vadd.xlane.f32.xlu0 %v8765
          %v8767 = vpop.xlane.xlu0 %8766
          %v8768 = vadd.f32 %v8751, %v8752
          %v8769 = vadd.f32 %v8768, %v8753
          %8770 = vadd.xlane.f32.xlu0 %v8769
          %v8771 = vpop.xlane.xlu0 %8770
          %v8772 = vmul.f32 %v8767, %v778
          %v8773 = vmul.f32 %v8771, %v778
          %v8774 = vsub.f32 %v8748, %v8772
          %v8775 = vsub.f32 %v8749, %v8772
          %v8776 = vsub.f32 %v8750, %v8772
          %v8777 = vsub.f32 %v8751, %v8773
          %v8778 = vsub.f32 %v8752, %v8773
          %v8779 = vsub.f32 %v8753, %v8773
          %v8780 = vmul.f32 %v8774, %v8774
          %v8781 = vmul.f32 %v8775, %v8775
          %v8782 = vmul.f32 %v8776, %v8776
          %v8783 = vmul.f32 %v8777, %v8777
          %v8784 = vmul.f32 %v8778, %v8778
          %v8785 = vmul.f32 %v8779, %v8779
          %v8786 = vadd.f32 %v8780, %v8781
          %v8787 = vadd.f32 %v8786, %v8782
          %8788 = vadd.xlane.f32.xlu0 %v8787
          %v8789 = vpop.xlane.xlu0 %8788
          %v8790 = vadd.f32 %v8783, %v8784
          %v8791 = vadd.f32 %v8790, %v8785
          %8792 = vadd.xlane.f32.xlu0 %v8791
          %v8793 = vpop.xlane.xlu0 %8792
          %v8794 = vmul.f32 %v8789, %v778
          %v8795 = vmul.f32 %v8793, %v778
          %v8796 = vadd.f32 %v8794, 1e-05
          %v8797 = vadd.f32 %v8795, 1e-05
          %v8798 = vrsqrt.pop %v8796
          %v8799 = vmul.f32 %v8798, %v8796
          %v8800 = vmul.f32 %v8799, %v8798
          %v8801 = vmul.f32 0.5, %v8800
          %v8802 = vsub.f32 1.5, %v8801
          %v8803 = vmul.f32 %v8798, %v8802
          %vm8804 = vweird.f32 %v8796
          %vm8805 = vweird.f32 %v8798
          %vm8806 = vmor %vm8804, %vm8805
          %v8807 = vsel %vm8806, %v8798, %v8803
          %v8808 = vrsqrt.pop %v8797
          %v8809 = vmul.f32 %v8808, %v8797
          %v8810 = vmul.f32 %v8809, %v8808
          %v8811 = vmul.f32 0.5, %v8810
          %v8812 = vsub.f32 1.5, %v8811
          %v8813 = vmul.f32 %v8808, %v8812
          %vm8814 = vweird.f32 %v8797
          %vm8815 = vweird.f32 %v8808
          %vm8816 = vmor %vm8814, %vm8815
          %v8817 = vsel %vm8816, %v8808, %v8813
          %v8818 = vmul.f32 %v8774, %v8807
          %v8819 = vmul.f32 %v8775, %v8807
          %v8820 = vmul.f32 %v8776, %v8807
          %v8821 = vmul.f32 %v8777, %v8817
          %v8822 = vmul.f32 %v8778, %v8817
          %v8823 = vmul.f32 %v8779, %v8817
          %v8824 = vpack.c.bf16 %v8821, %v8818
          %v8825 = vpack.c.bf16 %v8822, %v8819
          %v8826 = vpack.c.bf16 %v8823, %v8820
          %v8827 = vld [vmem:[#allocation18] sm:$0xff]
          %v8828 = vld [vmem:[#allocation18 + $0x8] sm:$0xff]
          %v8829 = vld [vmem:[#allocation18 + $0x10] sm:$0xff]
          %v8830 = vld [vmem:[#allocation18 + $0x18] sm:$0xff]
          %v8831 = vld [vmem:[#allocation18 + $0x20] sm:$0xff]
          %v8832 = vld [vmem:[#allocation18 + $0x28] sm:$0xff]
          %v8833 = vld [vmem:[#allocation18 + $0x30] sm:$0xff]
          %v8834 = vld [vmem:[#allocation18 + $0x38] sm:$0xff]
          %v8835 = vld [vmem:[#allocation18 + $0x40] sm:$0xff]
          %v8836 = vld [vmem:[#allocation18 + $0x48] sm:$0xff]
          %v8837 = vld [vmem:[#allocation18 + $0x50] sm:$0xff]
          %v8838 = vld [vmem:[#allocation18 + $0x58] sm:$0xff]
          %v8839 = vld [vmem:[#allocation18 + $0x60] sm:$0xff]
          %v8840 = vld [vmem:[#allocation18 + $0x68] sm:$0xff]
          %v8841 = vld [vmem:[#allocation18 + $0x70] sm:$0xff]
          %v8842 = vld [vmem:[#allocation18 + $0x78] sm:$0xff]
          %v8843 = vld [vmem:[#allocation18 + $0x80] sm:$0xff]
          %v8844 = vld [vmem:[#allocation18 + $0x88] sm:$0xff]
          %v8845 = vld [vmem:[#allocation18 + $0x90] sm:$0xff]
          %v8846 = vld [vmem:[#allocation18 + $0x98] sm:$0xff]
          %v8847 = vld [vmem:[#allocation18 + $0xa0] sm:$0xff]
          %v8848 = vld [vmem:[#allocation18 + $0xa8] sm:$0xff]
          %v8849 = vld [vmem:[#allocation18 + $0xb0] sm:$0xff]
          %v8850 = vld [vmem:[#allocation18 + $0xb8] sm:$0xff]
          %v8851 = vld [vmem:[#allocation18 + $0xc0] sm:$0xff]
          %v8852 = vld [vmem:[#allocation18 + $0xc8] sm:$0xff]
          %v8853 = vld [vmem:[#allocation18 + $0xd0] sm:$0xff]
          %v8854 = vld [vmem:[#allocation18 + $0xd8] sm:$0xff]
          %v8855 = vld [vmem:[#allocation18 + $0xe0] sm:$0xff]
          %v8856 = vld [vmem:[#allocation18 + $0xe8] sm:$0xff]
          %v8857 = vld [vmem:[#allocation18 + $0xf0] sm:$0xff]
          %v8858 = vld [vmem:[#allocation18 + $0xf8] sm:$0xff]
          %v8859 = vld [vmem:[#allocation18 + $0x100] sm:$0xff]
          %v8860 = vld [vmem:[#allocation18 + $0x108] sm:$0xff]
          %v8861 = vld [vmem:[#allocation18 + $0x110] sm:$0xff]
          %v8862 = vld [vmem:[#allocation18 + $0x118] sm:$0xff]
          %v8863 = vld [vmem:[#allocation18 + $0x120] sm:$0xff]
          %v8864 = vld [vmem:[#allocation18 + $0x128] sm:$0xff]
          %v8865 = vld [vmem:[#allocation18 + $0x130] sm:$0xff]
          %v8866 = vld [vmem:[#allocation18 + $0x138] sm:$0xff]
          %v8867 = vld [vmem:[#allocation18 + $0x140] sm:$0xff]
          %v8868 = vld [vmem:[#allocation18 + $0x148] sm:$0xff]
          %v8869 = vld [vmem:[#allocation18 + $0x150] sm:$0xff]
          %v8870 = vld [vmem:[#allocation18 + $0x158] sm:$0xff]
          %v8871 = vld [vmem:[#allocation18 + $0x160] sm:$0xff]
          %v8872 = vld [vmem:[#allocation18 + $0x168] sm:$0xff]
          %v8873 = vld [vmem:[#allocation18 + $0x170] sm:$0xff]
          %v8874 = vld [vmem:[#allocation18 + $0x178] sm:$0xff]
          %v8875 = vld [vmem:[#allocation20] sm:$0x3]
          %v8877 = vperm.slane %v8875, 0
          %v8878 = vperm.slane %v8875, 1
          %v8929 = vunpack.c.l.b16 %v8827
          %v8930 = vunpack.c.h.b16 %v8827
          %v8931 = vunpack.c.l.b16 %v8828
          %v8932 = vunpack.c.h.b16 %v8828
          %v8933 = vunpack.c.l.b16 %v8829
          %v8934 = vunpack.c.h.b16 %v8829
          %v8935 = vunpack.c.l.b16 %v8830
          %v8936 = vunpack.c.h.b16 %v8830
          %v8937 = vunpack.c.l.b16 %v8831
          %v8938 = vunpack.c.h.b16 %v8831
          %v8939 = vunpack.c.l.b16 %v8832
          %v8940 = vunpack.c.h.b16 %v8832
          %v8941 = vunpack.c.l.b16 %v8833
          %v8942 = vunpack.c.h.b16 %v8833
          %v8943 = vunpack.c.l.b16 %v8834
          %v8944 = vunpack.c.h.b16 %v8834
          %v8945 = vunpack.c.l.b16 %v8835
          %v8946 = vunpack.c.h.b16 %v8835
          %v8947 = vunpack.c.l.b16 %v8836
          %v8948 = vunpack.c.h.b16 %v8836
          %v8949 = vunpack.c.l.b16 %v8837
          %v8950 = vunpack.c.h.b16 %v8837
          %v8951 = vunpack.c.l.b16 %v8838
          %v8952 = vunpack.c.h.b16 %v8838
          %v8953 = vunpack.c.l.b16 %v8839
          %v8954 = vunpack.c.h.b16 %v8839
          %v8955 = vunpack.c.l.b16 %v8840
          %v8956 = vunpack.c.h.b16 %v8840
          %v8957 = vunpack.c.l.b16 %v8841
          %v8958 = vunpack.c.h.b16 %v8841
          %v8959 = vunpack.c.l.b16 %v8842
          %v8960 = vunpack.c.h.b16 %v8842
          %v8961 = vunpack.c.l.b16 %v8843
          %v8962 = vunpack.c.h.b16 %v8843
          %v8963 = vunpack.c.l.b16 %v8844
          %v8964 = vunpack.c.h.b16 %v8844
          %v8965 = vunpack.c.l.b16 %v8845
          %v8966 = vunpack.c.h.b16 %v8845
          %v8967 = vunpack.c.l.b16 %v8846
          %v8968 = vunpack.c.h.b16 %v8846
          %v8969 = vunpack.c.l.b16 %v8847
          %v8970 = vunpack.c.h.b16 %v8847
          %v8971 = vunpack.c.l.b16 %v8848
          %v8972 = vunpack.c.h.b16 %v8848
          %v8973 = vunpack.c.l.b16 %v8849
          %v8974 = vunpack.c.h.b16 %v8849
          %v8975 = vunpack.c.l.b16 %v8850
          %v8976 = vunpack.c.h.b16 %v8850
          %v8977 = vunpack.c.l.b16 %v8851
          %v8978 = vunpack.c.h.b16 %v8851
          %v8979 = vunpack.c.l.b16 %v8852
          %v8980 = vunpack.c.h.b16 %v8852
          %v8981 = vunpack.c.l.b16 %v8853
          %v8982 = vunpack.c.h.b16 %v8853
          %v8983 = vunpack.c.l.b16 %v8854
          %v8984 = vunpack.c.h.b16 %v8854
          %v8985 = vunpack.c.l.b16 %v8855
          %v8986 = vunpack.c.h.b16 %v8855
          %v8987 = vunpack.c.l.b16 %v8856
          %v8988 = vunpack.c.h.b16 %v8856
          %v8989 = vunpack.c.l.b16 %v8857
          %v8990 = vunpack.c.h.b16 %v8857
          %v8991 = vunpack.c.l.b16 %v8858
          %v8992 = vunpack.c.h.b16 %v8858
          %v8993 = vunpack.c.l.b16 %v8859
          %v8994 = vunpack.c.h.b16 %v8859
          %v8995 = vunpack.c.l.b16 %v8860
          %v8996 = vunpack.c.h.b16 %v8860
          %v8997 = vunpack.c.l.b16 %v8861
          %v8998 = vunpack.c.h.b16 %v8861
          %v8999 = vunpack.c.l.b16 %v8862
          %v9000 = vunpack.c.h.b16 %v8862
          %v9001 = vunpack.c.l.b16 %v8863
          %v9002 = vunpack.c.h.b16 %v8863
          %v9003 = vunpack.c.l.b16 %v8864
          %v9004 = vunpack.c.h.b16 %v8864
          %v9005 = vunpack.c.l.b16 %v8865
          %v9006 = vunpack.c.h.b16 %v8865
          %v9007 = vunpack.c.l.b16 %v8866
          %v9008 = vunpack.c.h.b16 %v8866
          %v9009 = vunpack.c.l.b16 %v8867
          %v9010 = vunpack.c.h.b16 %v8867
          %v9011 = vunpack.c.l.b16 %v8868
          %v9012 = vunpack.c.h.b16 %v8868
          %v9013 = vunpack.c.l.b16 %v8869
          %v9014 = vunpack.c.h.b16 %v8869
          %v9015 = vunpack.c.l.b16 %v8870
          %v9016 = vunpack.c.h.b16 %v8870
          %v9017 = vunpack.c.l.b16 %v8871
          %v9018 = vunpack.c.h.b16 %v8871
          %v9019 = vunpack.c.l.b16 %v8872
          %v9020 = vunpack.c.h.b16 %v8872
          %v9021 = vunpack.c.l.b16 %v8873
          %v9022 = vunpack.c.h.b16 %v8873
          %v9023 = vunpack.c.l.b16 %v8874
          %v9024 = vunpack.c.h.b16 %v8874
          %v9025 = vpack.c.b16 %v8931, %v8929
          %v9026 = vpack.c.b16 %v8932, %v8930
          %v9027 = vpack.c.b16 %v8935, %v8933
          %v9028 = vpack.c.b16 %v8936, %v8934
          %v9029 = vpack.c.b16 %v8939, %v8937
          %v9030 = vpack.c.b16 %v8940, %v8938
          %v9031 = vpack.c.b16 %v8943, %v8941
          %v9032 = vpack.c.b16 %v8944, %v8942
          %v9033 = vpack.c.b16 %v8947, %v8945
          %v9034 = vpack.c.b16 %v8948, %v8946
          %v9035 = vpack.c.b16 %v8951, %v8949
          %v9036 = vpack.c.b16 %v8952, %v8950
          %v9037 = vpack.c.b16 %v8955, %v8953
          %v9038 = vpack.c.b16 %v8956, %v8954
          %v9039 = vpack.c.b16 %v8959, %v8957
          %v9040 = vpack.c.b16 %v8960, %v8958
          %v9041 = vpack.c.b16 %v8963, %v8961
          %v9042 = vpack.c.b16 %v8964, %v8962
          %v9043 = vpack.c.b16 %v8967, %v8965
          %v9044 = vpack.c.b16 %v8968, %v8966
          %v9045 = vpack.c.b16 %v8971, %v8969
          %v9046 = vpack.c.b16 %v8972, %v8970
          %v9047 = vpack.c.b16 %v8975, %v8973
          %v9048 = vpack.c.b16 %v8976, %v8974
          %v9049 = vpack.c.b16 %v8979, %v8977
          %v9050 = vpack.c.b16 %v8980, %v8978
          %v9051 = vpack.c.b16 %v8983, %v8981
          %v9052 = vpack.c.b16 %v8984, %v8982
          %v9053 = vpack.c.b16 %v8987, %v8985
          %v9054 = vpack.c.b16 %v8988, %v8986
          %v9055 = vpack.c.b16 %v8991, %v8989
          %v9056 = vpack.c.b16 %v8992, %v8990
          %v9057 = vpack.c.b16 %v8995, %v8993
          %v9058 = vpack.c.b16 %v8996, %v8994
          %v9059 = vpack.c.b16 %v8999, %v8997
          %v9060 = vpack.c.b16 %v9000, %v8998
          %v9061 = vpack.c.b16 %v9003, %v9001
          %v9062 = vpack.c.b16 %v9004, %v9002
          %v9063 = vpack.c.b16 %v9007, %v9005
          %v9064 = vpack.c.b16 %v9008, %v9006
          %v9065 = vpack.c.b16 %v9011, %v9009
          %v9066 = vpack.c.b16 %v9012, %v9010
          %v9067 = vpack.c.b16 %v9015, %v9013
          %v9068 = vpack.c.b16 %v9016, %v9014
          %v9069 = vpack.c.b16 %v9019, %v9017
          %v9070 = vpack.c.b16 %v9020, %v9018
          %v9071 = vpack.c.b16 %v9023, %v9021
          %v9072 = vpack.c.b16 %v9024, %v9022
          %9121 = vmatpush.bf16.msra.mxu0 %v9039
          %9122 = vmatpush.bf16.msra.mxu0 %v9037
          %9123 = vmatpush.bf16.msra.mxu0 %v9035
          %9124 = vmatpush.bf16.msra.mxu0 %v9033
          %9125 = vmatpush.bf16.msra.mxu0 %v9031
          %9126 = vmatpush.bf16.msra.mxu0 %v9029
          %9127 = vmatpush.bf16.msra.mxu0 %v9027
          %9128 = vmatpush.bf16.msra.mxu0 %v9025
          %9129 = vmatmul.bf16.gmra.mxu0 %v8824
          %v9130 = vpop.f32.mrf.mxu0
          %v9131 = vadd.f32 %v8877, %v9130
          %v9132 = vpop.f32.mrf.mxu0
          %v9133 = vadd.f32 %v8877, %v9132
          %9134 = vdwg.mxu0
          %9135 = vmatpush.bf16.msra.mxu0 %v9055
          %9136 = vmatpush.bf16.msra.mxu0 %v9053
          %9137 = vmatpush.bf16.msra.mxu0 %v9051
          %9138 = vmatpush.bf16.msra.mxu0 %v9049
          %9139 = vmatpush.bf16.msra.mxu0 %v9047
          %9140 = vmatpush.bf16.msra.mxu0 %v9045
          %9141 = vmatpush.bf16.msra.mxu0 %v9043
          %9142 = vmatpush.bf16.msra.mxu0 %v9041
          %9143 = vmatmul.bf16.gmra.mxu0 %v8825
          %v9144 = vpop.f32.mrf.mxu0
          %v9145 = vadd.f32 %v9131, %v9144
          %v9146 = vpop.f32.mrf.mxu0
          %v9147 = vadd.f32 %v9133, %v9146
          %9148 = vdwg.mxu0
          %9149 = vmatpush.bf16.msra.mxu0 %v9071
          %9150 = vmatpush.bf16.msra.mxu0 %v9069
          %9151 = vmatpush.bf16.msra.mxu0 %v9067
          %9152 = vmatpush.bf16.msra.mxu0 %v9065
          %9153 = vmatpush.bf16.msra.mxu0 %v9063
          %9154 = vmatpush.bf16.msra.mxu0 %v9061
          %9155 = vmatpush.bf16.msra.mxu0 %v9059
          %9156 = vmatpush.bf16.msra.mxu0 %v9057
          %9157 = vmatmul.bf16.gmra.mxu0 %v8826
          %v9158 = vpop.f32.mrf.mxu0
          %v9159 = vadd.f32 %v9145, %v9158
          %v9160 = vpop.f32.mrf.mxu0
          %v9161 = vadd.f32 %v9147, %v9160
          %9162 = vdwg.mxu0
          %9163 = vmatpush.bf16.msra.mxu0 %v9040
          %9164 = vmatpush.bf16.msra.mxu0 %v9038
          %9165 = vmatpush.bf16.msra.mxu0 %v9036
          %9166 = vmatpush.bf16.msra.mxu0 %v9034
          %9167 = vmatpush.bf16.msra.mxu0 %v9032
          %9168 = vmatpush.bf16.msra.mxu0 %v9030
          %9169 = vmatpush.bf16.msra.mxu0 %v9028
          %9170 = vmatpush.bf16.msra.mxu0 %v9026
          %9171 = vmatmul.bf16.gmra.mxu0 %v8824
          %v9172 = vpop.f32.mrf.mxu0
          %v9173 = vadd.f32 %v8878, %v9172
          %v9174 = vpop.f32.mrf.mxu0
          %v9175 = vadd.f32 %v8878, %v9174
          %9176 = vdwg.mxu0
          %9177 = vmatpush.bf16.msra.mxu0 %v9056
          %9178 = vmatpush.bf16.msra.mxu0 %v9054
          %9179 = vmatpush.bf16.msra.mxu0 %v9052
          %9180 = vmatpush.bf16.msra.mxu0 %v9050
          %9181 = vmatpush.bf16.msra.mxu0 %v9048
          %9182 = vmatpush.bf16.msra.mxu0 %v9046
          %9183 = vmatpush.bf16.msra.mxu0 %v9044
          %9184 = vmatpush.bf16.msra.mxu0 %v9042
          %9185 = vmatmul.bf16.gmra.mxu0 %v8825
          %v9186 = vpop.f32.mrf.mxu0
          %v9187 = vadd.f32 %v9173, %v9186
          %v9188 = vpop.f32.mrf.mxu0
          %v9189 = vadd.f32 %v9175, %v9188
          %9190 = vdwg.mxu0
          %9191 = vmatpush.bf16.msra.mxu0 %v9072
          %9192 = vmatpush.bf16.msra.mxu0 %v9070
          %9193 = vmatpush.bf16.msra.mxu0 %v9068
          %9194 = vmatpush.bf16.msra.mxu0 %v9066
          %9195 = vmatpush.bf16.msra.mxu0 %v9064
          %9196 = vmatpush.bf16.msra.mxu0 %v9062
          %9197 = vmatpush.bf16.msra.mxu0 %v9060
          %9198 = vmatpush.bf16.msra.mxu0 %v9058
          %9199 = vmatmul.bf16.gmra.mxu0 %v8826
          %v9200 = vpop.f32.mrf.mxu0
          %v9201 = vadd.f32 %v9187, %v9200
          %v9202 = vpop.f32.mrf.mxu0
          %v9203 = vadd.f32 %v9189, %v9202
          %9204 = vdwg.mxu0
          %9205 = vst [vmem:[#allocation21] sm:$0xff] %v9159
          %9206 = vst [vmem:[#allocation21 + $0x8] sm:$0xff] %v9201
          %9207 = vst [vmem:[#allocation21 + $0x10] sm:$0xff] %v9161
          %9208 = vst [vmem:[#allocation21 + $0x18] sm:$0xff] %v9203
        $region116: #{tpu_custom_call.1} parent=63 // pred_fallthru
          _
        // Predicated region
        $region117: #{tpu_custom_call.1} parent=63 // pred_check
          %p9209 = pneg %p343
        $region118: #{tpu_custom_call.1} parent=63 // pred_check_branch
          %9211 = sbr.rel (%p9209) target = $region120
        $region119: #{tpu_custom_call.1} parent=63 // pred_region
          %s9212 = smul.u32 2, %s41
          %9214 = vsyncadd [#allocation5], 0
          %s9215 = smul.addr %s9212, 2
          %s9216 = smul.addr %s9215, 8
          %s9217 = scalar_lea.hbm %s11, %s9216
          %s9218 = sshll.u32 [#allocation21], 4
          %s9219 = int_to_ptr.vmem [resolvable:$true] %s9218
          %s9220 = sshll.u32 %s9217, 4
          %s9221 = int_to_ptr.hbm [resolvable:$true] %s9220
          %9226 = dma.vmem_to_hbm [thread:$0]  %s9219, 512, %s9221, [#allocation5], 256, 256, 16
        $region120: #{tpu_custom_call.1} parent=63 // pred_fallthru
          _
        // Predicated region
        $region121: #{tpu_custom_call.1} parent=63 // pred_check
          %p9227 = pneg %p343
        $region122: #{tpu_custom_call.1} parent=63 // pred_check_branch
          %9229 = sbr.rel (%p9227) target = $region124
        $region123: #{tpu_custom_call.1} parent=63 // pred_region
          %9231 = dma.done [#allocation5], 512
        $region124: #{tpu_custom_call.1} parent=63 // pred_fallthru
          _
      $region64: #{tpu_custom_call.1} parent=5 // pred_fallthru
        _
      %p9232 = scmp.le.s32.totalorder 2, %s32
      // Predicated region
      $region125: #{tpu_custom_call.1} parent=5 // pred_check
        %p9233 = pneg %p9232
      $region126: #{tpu_custom_call.1} parent=5 // pred_check_branch
        %9235 = sbr.rel (%p9233) target = $region128
      $region127: #{tpu_custom_call.1} parent=5 // pred_region
        %s9236 = ssub.s32 %s32, 2
      $region128: #{tpu_custom_call.1} parent=5 // pred_fallthru
        _
    $region6: #{tpu_custom_call.1} parent=1 // loop_footer
      %s36 = sadd.s32 1, %s32
    $region7: #{tpu_custom_call.1} parent=1 // loop_footer_branch
      %31 = sbr.rel target = $region3
    $region8: #{tpu_custom_call.1} parent=1 // loop_exit
      _
    %9237 = vsyncpa [#allocation4], 1
    %s9238 = scalar_lea.sflag [#allocation4], 1
    %9239 = vsyncpa %s9238, 1
    %9240 = vsyncpa [#allocation7], 1
    %s9241 = scalar_lea.sflag [#allocation7], 1
    %9242 = vsyncpa %s9241, 1
    %9243 = vsyncpa [#allocation10], 1
    %s9244 = scalar_lea.sflag [#allocation10], 1
    %9245 = vsyncpa %s9244, 1
    %9246 = vsyncpa [#allocation13], 1
    %s9247 = scalar_lea.sflag [#allocation13], 1
    %9248 = vsyncpa %s9247, 1
    %9249 = vsyncpa [#allocation16], 1
    %s9250 = scalar_lea.sflag [#allocation16], 1
    %9251 = vsyncpa %s9250, 1
    %9252 = vsyncpa [#allocation19], 1
    %9253 = vsyncpa [#allocation5], 1
    %s9254 = scalar_lea.sflag [#allocation5], 1
    %9255 = vsyncpa %s9254, 1

</llo_original>
